<compile_context>
chip_gen: v7x
topology: tpu7x:2x2x1
jax: 0.10.0
libtpu: 0.0.40
codegen_flags: <defaults>
</compile_context>

<pallas_src>
import functools

import jax
import jax.numpy as jnp
from jax.experimental import pallas as pl
from jax.experimental.pallas import tpu as pltpu

LEAKY_SLOPE = 0.01   # nn.LeakyReLU / F.leaky_relu default
BN_EPS = 1e-5        # nn.BatchNorm2d default
_VMEM_LIMIT = 32 * 1024 * 1024   # explicit scoped-VMEM budget (v5e/v6e/v7x safe)


def _round_up(x, m):
    return (x + m - 1) // m * m


def _divisor_tile(m, cap):
    """Largest multiple-of-8 divisor of m that is <= cap; falls back to m
    (m itself is always a legal Pallas block extent via the full-dim rule)."""
    if m <= cap:
        return m
    t = (cap // 8) * 8
    while t >= 8:
        if m % t == 0:
            return t
        t -= 8
    return m


# --------------------------- Pallas kernels ---------------------------------

def _mm_bias_act_kernel(a_ref, b_ref, bias_ref, o_ref, *, slope):
    """out = leaky_relu(a @ b + bias); bf16 operands, f32 accum, bf16 store."""
    acc = jnp.dot(a_ref[...], b_ref[...], preferred_element_type=jnp.float32)
    z = acc + bias_ref[...]
    o_ref[...] = jnp.maximum(z, slope * z).astype(o_ref.dtype)


def _mm_stats_kernel(a_ref, b_ref, o_ref, sum_ref, sq_ref):
    """out = a @ b (bf16 store) plus per-M-tile column sum / sum-of-squares
    taken from the f32 accumulator (exact BN batch statistics)."""
    acc = jnp.dot(a_ref[...], b_ref[...], preferred_element_type=jnp.float32)
    o_ref[...] = acc.astype(o_ref.dtype)
    s = jnp.sum(acc, axis=0, keepdims=True)          # (1, tn) f32
    q = jnp.sum(acc * acc, axis=0, keepdims=True)    # (1, tn) f32
    sum_ref[...] = jnp.broadcast_to(s[None], sum_ref.shape)
    sq_ref[...] = jnp.broadcast_to(q[None], sq_ref.shape)


def _scale_shift_lrelu_kernel(y_ref, scale_ref, shift_ref, o_ref, *, slope):
    """out = leaky_relu(y * scale + shift); bf16 in/out, f32 math."""
    z = y_ref[...].astype(jnp.float32) * scale_ref[...] + shift_ref[...]
    o_ref[...] = jnp.maximum(z, slope * z).astype(o_ref.dtype)


def _conv3x3_to1_kernel(x_ref, w_ref, b_ref, o_ref):
    """Conv2d(C->1, k3, s1) on a spatially pre-padded NHWC tile: 9 VPU FMAs +
    one lane reduction over the channel axis.  The W-axis (sublane) shift is
    hoisted out of the tap loop (3 relayouts instead of 6)."""
    x = x_ref[...].astype(jnp.float32)               # (bb, H+2, W+2, C)
    w = w_ref[...]                                   # (9, 1, 1, C) f32
    bb, hp, wp, c = x.shape
    ho, wo = hp - 2, wp - 2
    acc = jnp.zeros((bb, ho, wo, c), jnp.float32)
    for tx in range(3):
        xs = x[:, :, tx:tx + wo, :]                  # one sublane shift per tx
        for ty in range(3):                          # H shift (leading dim) is free
            acc = acc + xs[:, ty:ty + ho, :, :] * w[ty * 3 + tx]
    o_ref[...] = jnp.sum(acc, axis=-1) + b_ref[0]


# --------------------------- Pallas wrappers ---------------------------------

def pallas_matmul_bias_act(a, b_w, bias_row, *, slope=LEAKY_SLOPE):
    """(M,K) @ (K,N) + bias row, fused LeakyReLU.  bf16 MXU operands, bf16 out.
    K uses a full-dim block (no weight/activation padding)."""
    m, k = a.shape
    k2, n = b_w.shape
    assert k == k2
    if m <= 1024:
        mp, tm = m, m
    else:
        mp = _round_up(m, 8)
        tm = _divisor_tile(mp, 512)
    a_p = a.astype(jnp.bfloat16)
    if mp != m:
        a_p = jnp.pad(a_p, ((0, mp - m), (0, 0)))
    tn = 896 if n % 896 == 0 else n          # 6272 = 7*896 -> >=2 N steps (megacore)
    out = pl.pallas_call(
        functools.partial(_mm_bias_act_kernel, slope=slope),
        out_shape=jax.ShapeDtypeStruct((mp, n), jnp.bfloat16),
        grid=(mp // tm, n // tn),
        in_specs=[
            pl.BlockSpec((tm, k), lambda i, j: (i, 0)),
            pl.BlockSpec((k, tn), lambda i, j: (0, j)),
            pl.BlockSpec((1, tn), lambda i, j: (0, j)),
        ],
        out_specs=pl.BlockSpec((tm, tn), lambda i, j: (i, j)),
        compiler_params=pltpu.CompilerParams(
            dimension_semantics=("parallel", "parallel"),
            vmem_limit_bytes=_VMEM_LIMIT),
    )(a_p, b_w, bias_row)
    return out[:m] if mp != m else out


def pallas_matmul_stats(a, b_w):
    """(M,K) bf16 patches @ (K,N) bf16 weight, no bias, plus fused BN column
    statistics.  Returns (y (Mp,N) bf16, col_sum (N,) f32, col_sumsq (N,) f32).
    Mp == M unless M is not a multiple of 8 (tiny batches only); padded rows
    are zero and contribute nothing to the statistics."""
    m, k = a.shape
    k2, n = b_w.shape
    assert k == k2
    a = a.astype(jnp.bfloat16)
    if m % 8 != 0:
        mp = _round_up(m, 8)
        a = jnp.pad(a, ((0, mp - m), (0, 0)))
        tm = mp
    else:
        mp = m
        cap_rows = max(8, (2 << 20) // (_round_up(k, 128) * 2))  # ~2MB bf16 LHS tile
        tm = _divisor_tile(mp, cap_rows)
    tn = n
    if mp // tm == 1 and n >= 256 and (n // 2) % 128 == 0:
        tn = n // 2                            # keep >=2 grid steps for v7x megacore
    n_m, n_n = mp // tm, n // tn
    y, s, q = pl.pallas_call(
        _mm_stats_kernel,
        out_shape=(
            jax.ShapeDtypeStruct((mp, n), jnp.bfloat16),
            jax.ShapeDtypeStruct((n_m, 8, n), jnp.float32),
            jax.ShapeDtypeStruct((n_m, 8, n), jnp.float32),
        ),
        grid=(n_m, n_n),
        in_specs=[
            pl.BlockSpec((tm, k), lambda i, j: (i, 0)),
            pl.BlockSpec((k, tn), lambda i, j: (0, j)),
        ],
        out_specs=(
            pl.BlockSpec((tm, tn), lambda i, j: (i, j)),
            pl.BlockSpec((1, 8, tn), lambda i, j: (i, 0, j)),
            pl.BlockSpec((1, 8, tn), lambda i, j: (i, 0, j)),
        ),
        compiler_params=pltpu.CompilerParams(
            dimension_semantics=("parallel", "parallel"),
            vmem_limit_bytes=_VMEM_LIMIT),
    )(a, b_w)
    col_sum = jnp.sum(s[:, 0, :], axis=0)
    col_sq = jnp.sum(q[:, 0, :], axis=0)
    return y, col_sum, col_sq


def pallas_scale_shift_lrelu(y, scale_row, shift_row, *, slope=LEAKY_SLOPE,
                             out_dtype=jnp.bfloat16):
    """Row-tiled per-column affine + LeakyReLU (BN normalize pass), bf16 in/out.
    Large row tiles (up to 2048) keep this HBM-streaming pass near roofline."""
    mp, nc = y.shape
    tb = _divisor_tile(mp, 2048)
    return pl.pallas_call(
        functools.partial(_scale_shift_lrelu_kernel, slope=slope),
        out_shape=jax.ShapeDtypeStruct((mp, nc), out_dtype),
        grid=(mp // tb,),
        in_specs=[
            pl.BlockSpec((tb, nc), lambda i: (i, 0)),
            pl.BlockSpec((1, nc), lambda i: (0, 0)),
            pl.BlockSpec((1, nc), lambda i: (0, 0)),
        ],
        out_specs=pl.BlockSpec((tb, nc), lambda i: (i, 0)),
        compiler_params=pltpu.CompilerParams(
            dimension_semantics=("parallel",),
            vmem_limit_bytes=_VMEM_LIMIT),
    )(y, scale_row, shift_row)


def _pick_bb(b):
    """Largest batch tile in (16,8,4,2,1) keeping >=2 grid steps (megacore)."""
    for cand in (16, 8, 4, 2, 1):
        if b % cand == 0 and b // cand >= 2:
            return cand
    return b


def pallas_conv3x3_to1(xpad, w9, bias1):
    """Conv2d(C->1, k3, s1, p1) on NHWC input already zero-padded to
    (B, H+2, W+2, C).  VPU-only kernel, batch-parallel grid."""
    b, hp, wp, c = xpad.shape
    bb = _pick_bb(b)
    return pl.pallas_call(
        _conv3x3_to1_kernel,
        out_shape=jax.ShapeDtypeStruct((b, hp - 2, wp - 2), jnp.float32),
        grid=(b // bb,),
        in_specs=[
            pl.BlockSpec((bb, hp, wp, c), lambda i: (i, 0, 0, 0)),
            pl.BlockSpec((9, 1, 1, c), lambda i: (0, 0, 0, 0)),
            pl.BlockSpec(memory_space=pltpu.MemorySpace.SMEM),
        ],
        out_specs=pl.BlockSpec((bb, hp - 2, wp - 2), lambda i: (i, 0, 0)),
        compiler_params=pltpu.CompilerParams(
            dimension_semantics=("parallel",),
            vmem_limit_bytes=_VMEM_LIMIT),
    )(xpad, w9, bias1)


# --------------------------- XLA layout glue ---------------------------------

def _im2col3x3(x):
    """NHWC bf16 -> (B*H*W, 9*C) bf16 patches of a stride-1 3x3 window, pad=1.
    K ordered (tap_y, tap_x, channel) to match _convT_weight_expanded.  The
    matmul kernels take this array unpadded (full-dim K blocks), so no second
    pad/cast copy of the 9x-expanded patches is materialized.
    # TODO(synk): fold the 9-tap expansion into the matmul kernel itself
    # (pre-padded NHWC activation in HBM + 9 accumulating MXU matmuls) to cut
    # the remaining 9x patch write/read HBM traffic."""
    b, h, w, c = x.shape
    xp = jnp.pad(x, ((0, 0), (1, 1), (1, 1), (0, 0)))
    taps = [xp[:, ty:ty + h, tx:tx + w, :] for ty in range(3) for tx in range(3)]
    patches = jnp.stack(taps, axis=3)                # (B, H, W, 9, C)
    return patches.reshape(b * h * w, 9 * c)


def _depth_to_space2(y, b, h, w, c):
    """(B*H*W, 4*C) with columns ordered (phase_y, phase_x, c) -> (B,2H,2W,C)."""
    return (y.reshape(b, h, w, 2, 2, c)
             .transpose(0, 1, 3, 2, 4, 5)
             .reshape(b, 2 * h, 2 * w, c))


def _convT_weight_expanded(wt):
    """ConvTranspose2d(k=4,s=2,p=1) weight (Cin,Cout,4,4) -> (9*Cin, 4*Cout).
    Rows are the 3x3/pad=1 window taps (ty,tx,cin); columns are the sub-pixel
    phases (py,px,cout).  Each phase uses only its 2x2 sub-kernel, the other
    five taps stay exactly zero."""
    cin, cout, kh, kw = wt.shape
    assert kh == 4 and kw == 4
    m = jnp.zeros((3, 3, cin, 2, 2, cout), jnp.float32)
    for py in range(2):
        for px in range(2):
            for dy in range(2):
                for dx in range(2):
                    ty, tx = dy + py, dx + px
                    ky = (3 if py == 0 else 2) - 2 * dy
                    kx = (3 if px == 0 else 2) - 2 * dx
                    m = m.at[ty, tx, :, py, px, :].set(wt[:, :, ky, kx])
    return m.reshape(9 * cin, 4 * cout)


def _bn_scale_shift(col_sum, col_sq, count, gamma, beta, *, eps=BN_EPS):
    """Fold channel-expanded column stats into per-column scale/shift rows.
    NOTE: single-pass var = E[x^2]-E[x]^2 in f32 can cancel if |mean| >> std;
    fine at these activation scales / the 0.25 test tolerance."""
    c = gamma.shape[0]
    s = col_sum[:4 * c].reshape(4, c).sum(axis=0)
    q = col_sq[:4 * c].reshape(4, c).sum(axis=0)
    mean = s / count
    var = q / count - mean * mean                    # biased var (BN training mode)
    inv = jax.lax.rsqrt(var + eps)
    scale = gamma * inv
    shift = beta - mean * scale
    scale4 = jnp.tile(scale, 4).reshape(1, 4 * c).astype(jnp.float32)
    shift4 = jnp.tile(shift, 4).reshape(1, 4 * c).astype(jnp.float32)
    return scale4, shift4


# --------------------------- Parameters --------------------------------------

def init_params(key, latent_size, class_num, class_emb):
    """Raw parameters in PyTorch layout (same shapes as the nn.Module)."""
    ks = jax.random.split(key, 15)
    sc = 0.05
    n = jax.random.normal
    return {
        "lat_w": sc * n(ks[0], (latent_size, 128 * 7 * 7), jnp.float32),
        "lat_b": sc * n(ks[1], (128 * 7 * 7,), jnp.float32),
        "emb_table": sc * n(ks[2], (class_num, class_emb), jnp.float32),
        "embl_w": sc * n(ks[3], (class_emb, 7 * 7), jnp.float32),
        "embl_b": sc * n(ks[4], (7 * 7,), jnp.float32),
        "ct1_w": sc * n(ks[5], (129, 64, 4, 4), jnp.float32),
        "ct1_b": sc * n(ks[6], (64,), jnp.float32),
        "bn1_g": 1.0 + 0.1 * n(ks[7], (64,), jnp.float32),
        "bn1_b": 0.1 * n(ks[8], (64,), jnp.float32),
        "ct2_w": sc * n(ks[9], (64, 32, 4, 4), jnp.float32),
        "ct2_b": sc * n(ks[10], (32,), jnp.float32),
        "bn2_g": 1.0 + 0.1 * n(ks[11], (32,), jnp.float32),
        "bn2_b": 0.1 * n(ks[12], (32,), jnp.float32),
        "cv_w": sc * n(ks[13], (1, 32, 3, 3), jnp.float32),
        "cv_b": sc * n(ks[14], (1,), jnp.float32),
    }


def prepare_params(p, latent_size):
    """One-time packing: permute / expand / cast weights for the Pallas kernels
    so the per-forward hot path never re-materializes weight copies."""
    del latent_size  # K uses full-dim blocks -> no weight padding needed
    # Latent Linear columns permuted once to NHWC (h, w, c) order: the first
    # matmul then yields (B, 7, 7, 128) with a free reshape (no transpose).
    lat_w = (p["lat_w"].reshape(-1, 128, 7, 7).transpose(0, 2, 3, 1)
             .reshape(-1, 7 * 7 * 128)).astype(jnp.bfloat16)
    lat_b = (p["lat_b"].reshape(128, 7, 7).transpose(1, 2, 0)
             .reshape(1, 7 * 7 * 128)).astype(jnp.float32)
    w1 = _convT_weight_expanded(p["ct1_w"]).astype(jnp.bfloat16)   # (1161, 256)
    w2 = _convT_weight_expanded(p["ct2_w"]).astype(jnp.bfloat16)   # (576, 128)
    return {
        "lat_w": lat_w, "lat_b": lat_b,
        # Embedding + Linear(class_emb -> 49) folded into one per-class table.
        "cls_table": (p["emb_table"] @ p["embl_w"] + p["embl_b"]).astype(jnp.bfloat16),
        "w1": w1, "bn1_g": p["bn1_g"], "bn1_b": p["bn1_b"],
        "w2": w2, "bn2_g": p["bn2_g"], "bn2_b": p["bn2_b"],
        # NOTE: ct1_b / ct2_b are intentionally dropped -- a conv bias is
        # cancelled exactly by the following training-mode BatchNorm.
        "w3": jnp.transpose(p["cv_w"], (2, 3, 1, 0)).reshape(9, 1, 1, 32).astype(jnp.float32),
        "cv_b": p["cv_b"].astype(jnp.float32),                     # (1,)
    }


# --------------------------- Forward pass ------------------------------------

def generator_forward(prep, latents, labels):
    b = latents.shape[0]

    # latent branch: Linear(latent -> 128*7*7) + LeakyReLU (one MXU matmul);
    # columns pre-permuted to NHWC -> free reshape, no HBM transpose.
    base = pallas_matmul_bias_act(latents, prep["lat_w"], prep["lat_b"])  # (B,6272) bf16
    base = base.reshape(b, 7, 7, 128)

    # class branch: pre-folded table lookup (Embedding + Linear -> gather).
    cls = prep["cls_table"][labels].reshape(b, 7, 7, 1)                   # bf16

    x = jnp.concatenate([base, cls], axis=-1)                             # (B,7,7,129) bf16

    # ConvTranspose2d(129->64, k4, s2, p1) + BatchNorm(64) + LeakyReLU.
    m1 = b * 7 * 7
    y1, s1, q1 = pallas_matmul_stats(_im2col3x3(x), prep["w1"])           # (Mp1,256) bf16
    sc1, sh1 = _bn_scale_shift(s1, q1, 4.0 * m1, prep["bn1_g"], prep["bn1_b"])
    a1 = pallas_scale_shift_lrelu(y1, sc1, sh1)                           # (Mp1,256) bf16
    x = _depth_to_space2(a1[:m1], b, 7, 7, 64)                            # (B,14,14,64)

    # ConvTranspose2d(64->32, k4, s2, p1) + BatchNorm(32) + LeakyReLU.
    m2 = b * 14 * 14
    y2, s2, q2 = pallas_matmul_stats(_im2col3x3(x), prep["w2"])           # (Mp2,128) bf16
    sc2, sh2 = _bn_scale_shift(s2, q2, 4.0 * m2, prep["bn2_g"], prep["bn2_b"])
    a2 = pallas_scale_shift_lrelu(y2, sc2, sh2)                           # (Mp2,128) bf16
    x = _depth_to_space2(a2[:m2], b, 14, 14, 32)                          # (B,28,28,32)

    # Conv2d(32->1, k3, s1, p1) as a 9-tap VPU kernel (no padded matmul).
    # TODO(synk): fuse this 1-pixel spatial pad and the depth-to-space above
    # into the preceding Pallas call to drop two more HBM round trips.
    xpad = jnp.pad(x, ((0, 0), (1, 1), (1, 1), (0, 0)))                   # (B,30,30,32)
    out = pallas_conv3x3_to1(xpad, prep["w3"], prep["cv_b"])              # (B,28,28) f32
    return out[:, None, :, :]                                             # (B,1,28,28)


# TODO(synk): BatchNorm running-stat (momentum) buffer updates are not modeled;
# the forward uses batch statistics, matching the module's training-mode output.


# --------------------------- Pure-JAX reference ------------------------------

def _reference_forward(p, latents, labels):
    """f32 reference of the PyTorch module (training-mode BatchNorm)."""
    base = latents @ p["lat_w"] + p["lat_b"]
    base = jnp.where(base >= 0, base, LEAKY_SLOPE * base).reshape(-1, 128, 7, 7)
    cls = (p["emb_table"][labels] @ p["embl_w"] + p["embl_b"]).reshape(-1, 1, 7, 7)
    x = jnp.concatenate([base, cls], axis=1)                              # NCHW

    def conv_t(x, w, bias):       # ConvTranspose2d(k=4, s=2, p=1)
        wc = jnp.transpose(w, (1, 0, 2, 3))[:, :, ::-1, ::-1]
        y = jax.lax.conv_general_dilated(
            x, wc, window_strides=(1, 1), padding=((2, 2), (2, 2)),
            lhs_dilation=(2, 2), dimension_numbers=("NCHW", "OIHW", "NCHW"))
        return y + bias.reshape(1, -1, 1, 1)

    def bn_lrelu(x, g, beta):
        mean = x.mean(axis=(0, 2, 3), keepdims=True)
        var = ((x - mean) ** 2).mean(axis=(0, 2, 3), keepdims=True)
        y = (x - mean) * jax.lax.rsqrt(var + BN_EPS)
        y = y * g.reshape(1, -1, 1, 1) + beta.reshape(1, -1, 1, 1)
        return jnp.where(y >= 0, y, LEAKY_SLOPE * y)

    x = bn_lrelu(conv_t(x, p["ct1_w"], p["ct1_b"]), p["bn1_g"], p["bn1_b"])
    x = bn_lrelu(conv_t(x, p["ct2_w"], p["ct2_b"]), p["bn2_g"], p["bn2_b"])
    y = jax.lax.conv_general_dilated(
        x, p["cv_w"], window_strides=(1, 1), padding=((1, 1), (1, 1)),
        dimension_numbers=("NCHW", "OIHW", "NCHW"))
    return y + p["cv_b"].reshape(1, -1, 1, 1)


if __name__ == "__main__":
    latent_size, class_num, class_emb = 32, 10, 8
    batch = 2

    key = jax.random.PRNGKey(0)
    k_p, k_l, k_c = jax.random.split(key, 3)
    params = init_params(k_p, latent_size, class_num, class_emb)
    prep = prepare_params(params, latent_size)

    latents = jax.random.normal(k_l, (batch, latent_size), jnp.float32)
    labels = jax.random.randint(k_c, (batch,), 0, class_num)

    fwd = jax.jit(generator_forward)
    out = fwd(prep, latents, labels)
    jax.block_until_ready(out)

    assert out.shape == (batch, 1, 28, 28), out.shape
    assert out.dtype == jnp.float32
    assert bool(jnp.all(jnp.isfinite(out)))

    # Cross-check vs. an f32 pure-JAX reference of the PyTorch module.
    # (bf16 MXU operands + bf16 intermediates -> loose tolerance.)
    ref = _reference_forward(params, latents, labels)
    max_err = float(jnp.max(jnp.abs(out - ref)))
    assert max_err < 0.25, max_err

    print("KERNEL_OK")
</pallas_src>

<mosaic_0001>
module attributes {stable_mosaic.version = 11 : i64} {
  func.func @_mm_bias_act_kernel(%arg0: i32, %arg1: i32, %arg2: memref<2x32xbf16, #tpu.memory_space<vmem>>, %arg3: memref<32x896xbf16, #tpu.memory_space<vmem>>, %arg4: memref<1x896xf32, #tpu.memory_space<vmem>>, %arg5: memref<2x896xbf16, #tpu.memory_space<vmem>>) attributes {dimension_semantics = [#tpu.dimension_semantics<parallel>, #tpu.dimension_semantics<parallel>], iteration_bounds = array<i64: 1, 7>, scalar_prefetch = 0 : i64, scratch_operands = 0 : i64, tpu.core_type = #tpu.core_type<tc>, window_params = [{transform_indices = @transform_0, window_bounds = array<i64: 2, 32>}, {transform_indices = @transform_1, window_bounds = array<i64: 32, 896>}, {transform_indices = @transform_2, window_bounds = array<i64: 1, 896>}, {transform_indices = @transform_3, window_bounds = array<i64: 2, 896>}]} {
    %c0 = arith.constant 0 : index
    %c0_0 = arith.constant 0 : index
    %0 = vector.load %arg2[%c0, %c0_0] : memref<2x32xbf16, #tpu.memory_space<vmem>>, vector<2x32xbf16>
    %c0_1 = arith.constant 0 : index
    %c0_2 = arith.constant 0 : index
    %1 = vector.load %arg3[%c0_1, %c0_2] : memref<32x896xbf16, #tpu.memory_space<vmem>>, vector<32x896xbf16>
    %cst = arith.constant dense<0.000000e+00> : vector<2x896xf32>
    %2 = tpu.matmul %0, %1, %cst {dimension_numbers = #tpu.dot_dimension_numbers<[1], [0], [0], [1], [0, 0, 1, 1], [], []>} : vector<2x32xbf16>, vector<32x896xbf16>, vector<2x896xf32> -> vector<2x896xf32>
    %c0_3 = arith.constant 0 : index
    %c0_4 = arith.constant 0 : index
    %3 = vector.load %arg4[%c0_3, %c0_4] : memref<1x896xf32, #tpu.memory_space<vmem>>, vector<1x896xf32>
    %4 = vector.broadcast %3 : vector<1x896xf32> to vector<2x896xf32>
    %5 = arith.addf %2, %4 : vector<2x896xf32>
    %cst_5 = arith.constant 0.00999999977 : f32
    %6 = vector.broadcast %cst_5 : f32 to vector<2x896xf32>
    %7 = arith.mulf %6, %5 : vector<2x896xf32>
    %8 = arith.maximumf %5, %7 : vector<2x896xf32>
    %9 = arith.truncf %8 : vector<2x896xf32> to vector<2x896xbf16>
    %c0_6 = arith.constant 0 : index
    %c0_7 = arith.constant 0 : index
    %10 = vector.load %arg5[%c0_6, %c0_7] : memref<2x896xbf16, #tpu.memory_space<vmem>>, vector<2x896xbf16>
    tpu.vector_store %arg5[%c0_6, %c0_7], %9 {strides = array<i32>} : memref<2x896xbf16, #tpu.memory_space<vmem>>, vector<2x896xbf16>,
    return
  }
  func.func @transform_0(%arg0: i32, %arg1: i32) -> (i32, i32) {
    %c0_i32 = arith.constant 0 : i32
    %c0_i32_0 = arith.constant 0 : i32
    return %arg0, %c0_i32 : i32, i32
  }
  func.func @transform_1(%arg0: i32, %arg1: i32) -> (i32, i32) {
    %c0_i32 = arith.constant 0 : i32
    %c0_i32_0 = arith.constant 0 : i32
    return %c0_i32, %arg1 : i32, i32
  }
  func.func @transform_2(%arg0: i32, %arg1: i32) -> (i32, i32) {
    %c0_i32 = arith.constant 0 : i32
    %c0_i32_0 = arith.constant 0 : i32
    return %c0_i32, %arg1 : i32, i32
  }
  func.func @transform_3(%arg0: i32, %arg1: i32) -> (i32, i32) {
    %c0_i32 = arith.constant 0 : i32
    return %arg0, %arg1 : i32, i32
  }
}

module attributes {stable_mosaic.version = 11 : i64} {
  func.func @_mm_stats_kernel(%arg0: i32, %arg1: i32, %arg2: memref<104x1161xbf16, #tpu.memory_space<vmem>>, %arg3: memref<1161x128xbf16, #tpu.memory_space<vmem>>, %arg4: memref<104x128xbf16, #tpu.memory_space<vmem>>, %arg5: memref<1x8x128xf32, #tpu.memory_space<vmem>>, %arg6: memref<1x8x128xf32, #tpu.memory_space<vmem>>) attributes {dimension_semantics = [#tpu.dimension_semantics<parallel>, #tpu.dimension_semantics<parallel>], iteration_bounds = array<i64: 1, 2>, scalar_prefetch = 0 : i64, scratch_operands = 0 : i64, tpu.core_type = #tpu.core_type<tc>, window_params = [{transform_indices = @transform_0, window_bounds = array<i64: 104, 1161>}, {transform_indices = @transform_1, window_bounds = array<i64: 1161, 128>}, {transform_indices = @transform_2, window_bounds = array<i64: 104, 128>}, {transform_indices = @transform_3, window_bounds = array<i64: 1, 8, 128>}, {transform_indices = @transform_4, window_bounds = array<i64: 1, 8, 128>}]} {
    %c0 = arith.constant 0 : index
    %c0_0 = arith.constant 0 : index
    %0 = vector.load %arg2[%c0, %c0_0] : memref<104x1161xbf16, #tpu.memory_space<vmem>>, vector<104x1161xbf16>
    %c0_1 = arith.constant 0 : index
    %c0_2 = arith.constant 0 : index
    %1 = vector.load %arg3[%c0_1, %c0_2] : memref<1161x128xbf16, #tpu.memory_space<vmem>>, vector<1161x128xbf16>
    %cst = arith.constant dense<0.000000e+00> : vector<104x128xf32>
    %2 = tpu.matmul %0, %1, %cst {dimension_numbers = #tpu.dot_dimension_numbers<[1], [0], [0], [1], [0, 0, 1, 1], [], []>} : vector<104x1161xbf16>, vector<1161x128xbf16>, vector<104x128xf32> -> vector<104x128xf32>
    %3 = arith.truncf %2 : vector<104x128xf32> to vector<104x128xbf16>
    %c0_3 = arith.constant 0 : index
    %c0_4 = arith.constant 0 : index
    %4 = vector.load %arg4[%c0_3, %c0_4] : memref<104x128xbf16, #tpu.memory_space<vmem>>, vector<104x128xbf16>
    tpu.vector_store %arg4[%c0_3, %c0_4], %3 {strides = array<i32>} : memref<104x128xbf16, #tpu.memory_space<vmem>>, vector<104x128xbf16>,
    %cst_5 = arith.constant dense<0.000000e+00> : vector<128xf32>
    %5 = vector.multi_reduction <add>, %2, %cst_5 [0] : vector<104x128xf32> to vector<128xf32>
    %6 = vector.shape_cast %5 : vector<128xf32> to vector<1x128xf32>
    %7 = arith.mulf %2, %2 : vector<104x128xf32>
    %cst_6 = arith.constant dense<0.000000e+00> : vector<128xf32>
    %8 = vector.multi_reduction <add>, %7, %cst_6 [0] : vector<104x128xf32> to vector<128xf32>
    %9 = vector.shape_cast %8 : vector<128xf32> to vector<1x128xf32>
    %10 = vector.shape_cast %6 : vector<1x128xf32> to vector<1x1x128xf32>
    %11 = vector.shape_cast %10 : vector<1x1x128xf32> to vector<1x1x128xf32>
    %12 = vector.broadcast %11 : vector<1x1x128xf32> to vector<1x8x128xf32>
    %c0_7 = arith.constant 0 : index
    %c0_8 = arith.constant 0 : index
    %c0_9 = arith.constant 0 : index
    %13 = vector.load %arg5[%c0_7, %c0_8, %c0_9] : memref<1x8x128xf32, #tpu.memory_space<vmem>>, vector<1x8x128xf32>
    tpu.vector_store %arg5[%c0_7, %c0_8, %c0_9], %12 {strides = array<i32>} : memref<1x8x128xf32, #tpu.memory_space<vmem>>, vector<1x8x128xf32>,
    %14 = vector.shape_cast %9 : vector<1x128xf32> to vector<1x1x128xf32>
    %15 = vector.shape_cast %14 : vector<1x1x128xf32> to vector<1x1x128xf32>
    %16 = vector.broadcast %15 : vector<1x1x128xf32> to vector<1x8x128xf32>
    %c0_10 = arith.constant 0 : index
    %c0_11 = arith.constant 0 : index
    %c0_12 = arith.constant 0 : index
    %17 = vector.load %arg6[%c0_10, %c0_11, %c0_12] : memref<1x8x128xf32, #tpu.memory_space<vmem>>, vector<1x8x128xf32>
    tpu.vector_store %arg6[%c0_10, %c0_11, %c0_12], %16 {strides = array<i32>} : memref<1x8x128xf32, #tpu.memory_space<vmem>>, vector<1x8x128xf32>,
    return
  }
  func.func @transform_0(%arg0: i32, %arg1: i32) -> (i32, i32) {
    %c0_i32 = arith.constant 0 : i32
    %c0_i32_0 = arith.constant 0 : i32
    return %arg0, %c0_i32 : i32, i32
  }
  func.func @transform_1(%arg0: i32, %arg1: i32) -> (i32, i32) {
    %c0_i32 = arith.constant 0 : i32
    %c0_i32_0 = arith.constant 0 : i32
    return %c0_i32, %arg1 : i32, i32
  }
  func.func @transform_2(%arg0: i32, %arg1: i32) -> (i32, i32) {
    %c0_i32 = arith.constant 0 : i32
    return %arg0, %arg1 : i32, i32
  }
  func.func @transform_3(%arg0: i32, %arg1: i32) -> (i32, i32, i32) {
    %c0_i32 = arith.constant 0 : i32
    %c0_i32_0 = arith.constant 0 : i32
    return %arg0, %c0_i32, %arg1 : i32, i32, i32
  }
  func.func @transform_4(%arg0: i32, %arg1: i32) -> (i32, i32, i32) {
    %c0_i32 = arith.constant 0 : i32
    %c0_i32_0 = arith.constant 0 : i32
    return %arg0, %c0_i32, %arg1 : i32, i32, i32
  }
}

module attributes {stable_mosaic.version = 11 : i64} {
  func.func @_scale_shift_lrelu_kernel(%arg0: i32, %arg1: memref<104x256xbf16, #tpu.memory_space<vmem>>, %arg2: memref<1x256xf32, #tpu.memory_space<vmem>>, %arg3: memref<1x256xf32, #tpu.memory_space<vmem>>, %arg4: memref<104x256xbf16, #tpu.memory_space<vmem>>) attributes {dimension_semantics = [#tpu.dimension_semantics<parallel>], iteration_bounds = array<i64: 1>, scalar_prefetch = 0 : i64, scratch_operands = 0 : i64, tpu.core_type = #tpu.core_type<tc>, window_params = [{transform_indices = @transform_0, window_bounds = array<i64: 104, 256>}, {pipeline_mode = #tpu.pipeline_mode<synchronous>, transform_indices = @transform_1, window_bounds = array<i64: 1, 256>}, {pipeline_mode = #tpu.pipeline_mode<synchronous>, transform_indices = @transform_2, window_bounds = array<i64: 1, 256>}, {transform_indices = @transform_3, window_bounds = array<i64: 104, 256>}]} {
    %c0 = arith.constant 0 : index
    %c0_0 = arith.constant 0 : index
    %0 = vector.load %arg1[%c0, %c0_0] : memref<104x256xbf16, #tpu.memory_space<vmem>>, vector<104x256xbf16>
    %1 = arith.extf %0 : vector<104x256xbf16> to vector<104x256xf32>
    %c0_1 = arith.constant 0 : index
    %c0_2 = arith.constant 0 : index
    %2 = vector.load %arg2[%c0_1, %c0_2] : memref<1x256xf32, #tpu.memory_space<vmem>>, vector<1x256xf32>
    %3 = vector.broadcast %2 : vector<1x256xf32> to vector<104x256xf32>
    %4 = arith.mulf %1, %3 : vector<104x256xf32>
    %c0_3 = arith.constant 0 : index
    %c0_4 = arith.constant 0 : index
    %5 = vector.load %arg3[%c0_3, %c0_4] : memref<1x256xf32, #tpu.memory_space<vmem>>, vector<1x256xf32>
    %6 = vector.broadcast %5 : vector<1x256xf32> to vector<104x256xf32>
    %7 = arith.addf %4, %6 : vector<104x256xf32>
    %cst = arith.constant 0.00999999977 : f32
    %8 = vector.broadcast %cst : f32 to vector<104x256xf32>
    %9 = arith.mulf %8, %7 : vector<104x256xf32>
    %10 = arith.maximumf %7, %9 : vector<104x256xf32>
    %11 = arith.truncf %10 : vector<104x256xf32> to vector<104x256xbf16>
    %c0_5 = arith.constant 0 : index
    %c0_6 = arith.constant 0 : index
    %12 = vector.load %arg4[%c0_5, %c0_6] : memref<104x256xbf16, #tpu.memory_space<vmem>>, vector<104x256xbf16>
    tpu.vector_store %arg4[%c0_5, %c0_6], %11 {strides = array<i32>} : memref<104x256xbf16, #tpu.memory_space<vmem>>, vector<104x256xbf16>,
    return
  }
  func.func @transform_0(%arg0: i32) -> (i32, i32) {
    %c0_i32 = arith.constant 0 : i32
    %c0_i32_0 = arith.constant 0 : i32
    return %arg0, %c0_i32 : i32, i32
  }
  func.func @transform_1(%arg0: i32) -> (i32, i32) {
    %c0_i32 = arith.constant 0 : i32
    %c0_i32_0 = arith.constant 0 : i32
    %c0_i32_1 = arith.constant 0 : i32
    return %c0_i32, %c0_i32_0 : i32, i32
  }
  func.func @transform_2(%arg0: i32) -> (i32, i32) {
    %c0_i32 = arith.constant 0 : i32
    %c0_i32_0 = arith.constant 0 : i32
    %c0_i32_1 = arith.constant 0 : i32
    return %c0_i32, %c0_i32_0 : i32, i32
  }
  func.func @transform_3(%arg0: i32) -> (i32, i32) {
    %c0_i32 = arith.constant 0 : i32
    %c0_i32_0 = arith.constant 0 : i32
    return %arg0, %c0_i32 : i32, i32
  }
}

module attributes {stable_mosaic.version = 11 : i64} {
  func.func @_mm_stats_kernel(%arg0: i32, %arg1: i32, %arg2: memref<392x576xbf16, #tpu.memory_space<vmem>>, %arg3: memref<576x128xbf16, #tpu.memory_space<vmem>>, %arg4: memref<392x128xbf16, #tpu.memory_space<vmem>>, %arg5: memref<1x8x128xf32, #tpu.memory_space<vmem>>, %arg6: memref<1x8x128xf32, #tpu.memory_space<vmem>>) attributes {dimension_semantics = [#tpu.dimension_semantics<parallel>, #tpu.dimension_semantics<parallel>], iteration_bounds = array<i64: 1, 1>, scalar_prefetch = 0 : i64, scratch_operands = 0 : i64, tpu.core_type = #tpu.core_type<tc>, window_params = [{transform_indices = @transform_0, window_bounds = array<i64: 392, 576>}, {transform_indices = @transform_1, window_bounds = array<i64: 576, 128>}, {transform_indices = @transform_2, window_bounds = array<i64: 392, 128>}, {transform_indices = @transform_3, window_bounds = array<i64: 1, 8, 128>}, {transform_indices = @transform_4, window_bounds = array<i64: 1, 8, 128>}]} {
    %c0 = arith.constant 0 : index
    %c0_0 = arith.constant 0 : index
    %0 = vector.load %arg2[%c0, %c0_0] : memref<392x576xbf16, #tpu.memory_space<vmem>>, vector<392x576xbf16>
    %c0_1 = arith.constant 0 : index
    %c0_2 = arith.constant 0 : index
    %1 = vector.load %arg3[%c0_1, %c0_2] : memref<576x128xbf16, #tpu.memory_space<vmem>>, vector<576x128xbf16>
    %cst = arith.constant dense<0.000000e+00> : vector<392x128xf32>
    %2 = tpu.matmul %0, %1, %cst {dimension_numbers = #tpu.dot_dimension_numbers<[1], [0], [0], [1], [0, 0, 1, 1], [], []>} : vector<392x576xbf16>, vector<576x128xbf16>, vector<392x128xf32> -> vector<392x128xf32>
    %3 = arith.truncf %2 : vector<392x128xf32> to vector<392x128xbf16>
    %c0_3 = arith.constant 0 : index
    %c0_4 = arith.constant 0 : index
    %4 = vector.load %arg4[%c0_3, %c0_4] : memref<392x128xbf16, #tpu.memory_space<vmem>>, vector<392x128xbf16>
    tpu.vector_store %arg4[%c0_3, %c0_4], %3 {strides = array<i32>} : memref<392x128xbf16, #tpu.memory_space<vmem>>, vector<392x128xbf16>,
    %cst_5 = arith.constant dense<0.000000e+00> : vector<128xf32>
    %5 = vector.multi_reduction <add>, %2, %cst_5 [0] : vector<392x128xf32> to vector<128xf32>
    %6 = vector.shape_cast %5 : vector<128xf32> to vector<1x128xf32>
    %7 = arith.mulf %2, %2 : vector<392x128xf32>
    %cst_6 = arith.constant dense<0.000000e+00> : vector<128xf32>
    %8 = vector.multi_reduction <add>, %7, %cst_6 [0] : vector<392x128xf32> to vector<128xf32>
    %9 = vector.shape_cast %8 : vector<128xf32> to vector<1x128xf32>
    %10 = vector.shape_cast %6 : vector<1x128xf32> to vector<1x1x128xf32>
    %11 = vector.shape_cast %10 : vector<1x1x128xf32> to vector<1x1x128xf32>
    %12 = vector.broadcast %11 : vector<1x1x128xf32> to vector<1x8x128xf32>
    %c0_7 = arith.constant 0 : index
    %c0_8 = arith.constant 0 : index
    %c0_9 = arith.constant 0 : index
    %13 = vector.load %arg5[%c0_7, %c0_8, %c0_9] : memref<1x8x128xf32, #tpu.memory_space<vmem>>, vector<1x8x128xf32>
    tpu.vector_store %arg5[%c0_7, %c0_8, %c0_9], %12 {strides = array<i32>} : memref<1x8x128xf32, #tpu.memory_space<vmem>>, vector<1x8x128xf32>,
    %14 = vector.shape_cast %9 : vector<1x128xf32> to vector<1x1x128xf32>
    %15 = vector.shape_cast %14 : vector<1x1x128xf32> to vector<1x1x128xf32>
    %16 = vector.broadcast %15 : vector<1x1x128xf32> to vector<1x8x128xf32>
    %c0_10 = arith.constant 0 : index
    %c0_11 = arith.constant 0 : index
    %c0_12 = arith.constant 0 : index
    %17 = vector.load %arg6[%c0_10, %c0_11, %c0_12] : memref<1x8x128xf32, #tpu.memory_space<vmem>>, vector<1x8x128xf32>
    tpu.vector_store %arg6[%c0_10, %c0_11, %c0_12], %16 {strides = array<i32>} : memref<1x8x128xf32, #tpu.memory_space<vmem>>, vector<1x8x128xf32>,
    return
  }
  func.func @transform_0(%arg0: i32, %arg1: i32) -> (i32, i32) {
    %c0_i32 = arith.constant 0 : i32
    %c0_i32_0 = arith.constant 0 : i32
    return %arg0, %c0_i32 : i32, i32
  }
  func.func @transform_1(%arg0: i32, %arg1: i32) -> (i32, i32) {
    %c0_i32 = arith.constant 0 : i32
    %c0_i32_0 = arith.constant 0 : i32
    return %c0_i32, %arg1 : i32, i32
  }
  func.func @transform_2(%arg0: i32, %arg1: i32) -> (i32, i32) {
    %c0_i32 = arith.constant 0 : i32
    return %arg0, %arg1 : i32, i32
  }
  func.func @transform_3(%arg0: i32, %arg1: i32) -> (i32, i32, i32) {
    %c0_i32 = arith.constant 0 : i32
    %c0_i32_0 = arith.constant 0 : i32
    return %arg0, %c0_i32, %arg1 : i32, i32, i32
  }
  func.func @transform_4(%arg0: i32, %arg1: i32) -> (i32, i32, i32) {
    %c0_i32 = arith.constant 0 : i32
    %c0_i32_0 = arith.constant 0 : i32
    return %arg0, %c0_i32, %arg1 : i32, i32, i32
  }
}

module attributes {stable_mosaic.version = 11 : i64} {
  func.func @_scale_shift_lrelu_kernel(%arg0: i32, %arg1: memref<392x128xbf16, #tpu.memory_space<vmem>>, %arg2: memref<1x128xf32, #tpu.memory_space<vmem>>, %arg3: memref<1x128xf32, #tpu.memory_space<vmem>>, %arg4: memref<392x128xbf16, #tpu.memory_space<vmem>>) attributes {dimension_semantics = [#tpu.dimension_semantics<parallel>], iteration_bounds = array<i64: 1>, scalar_prefetch = 0 : i64, scratch_operands = 0 : i64, tpu.core_type = #tpu.core_type<tc>, window_params = [{transform_indices = @transform_0, window_bounds = array<i64: 392, 128>}, {pipeline_mode = #tpu.pipeline_mode<synchronous>, transform_indices = @transform_1, window_bounds = array<i64: 1, 128>}, {pipeline_mode = #tpu.pipeline_mode<synchronous>, transform_indices = @transform_2, window_bounds = array<i64: 1, 128>}, {transform_indices = @transform_3, window_bounds = array<i64: 392, 128>}]} {
    %c0 = arith.constant 0 : index
    %c0_0 = arith.constant 0 : index
    %0 = vector.load %arg1[%c0, %c0_0] : memref<392x128xbf16, #tpu.memory_space<vmem>>, vector<392x128xbf16>
    %1 = arith.extf %0 : vector<392x128xbf16> to vector<392x128xf32>
    %c0_1 = arith.constant 0 : index
    %c0_2 = arith.constant 0 : index
    %2 = vector.load %arg2[%c0_1, %c0_2] : memref<1x128xf32, #tpu.memory_space<vmem>>, vector<1x128xf32>
    %3 = vector.broadcast %2 : vector<1x128xf32> to vector<392x128xf32>
    %4 = arith.mulf %1, %3 : vector<392x128xf32>
    %c0_3 = arith.constant 0 : index
    %c0_4 = arith.constant 0 : index
    %5 = vector.load %arg3[%c0_3, %c0_4] : memref<1x128xf32, #tpu.memory_space<vmem>>, vector<1x128xf32>
    %6 = vector.broadcast %5 : vector<1x128xf32> to vector<392x128xf32>
    %7 = arith.addf %4, %6 : vector<392x128xf32>
    %cst = arith.constant 0.00999999977 : f32
    %8 = vector.broadcast %cst : f32 to vector<392x128xf32>
    %9 = arith.mulf %8, %7 : vector<392x128xf32>
    %10 = arith.maximumf %7, %9 : vector<392x128xf32>
    %11 = arith.truncf %10 : vector<392x128xf32> to vector<392x128xbf16>
    %c0_5 = arith.constant 0 : index
    %c0_6 = arith.constant 0 : index
    %12 = vector.load %arg4[%c0_5, %c0_6] : memref<392x128xbf16, #tpu.memory_space<vmem>>, vector<392x128xbf16>
    tpu.vector_store %arg4[%c0_5, %c0_6], %11 {strides = array<i32>} : memref<392x128xbf16, #tpu.memory_space<vmem>>, vector<392x128xbf16>,
    return
  }
  func.func @transform_0(%arg0: i32) -> (i32, i32) {
    %c0_i32 = arith.constant 0 : i32
    %c0_i32_0 = arith.constant 0 : i32
    return %arg0, %c0_i32 : i32, i32
  }
  func.func @transform_1(%arg0: i32) -> (i32, i32) {
    %c0_i32 = arith.constant 0 : i32
    %c0_i32_0 = arith.constant 0 : i32
    %c0_i32_1 = arith.constant 0 : i32
    return %c0_i32, %c0_i32_0 : i32, i32
  }
  func.func @transform_2(%arg0: i32) -> (i32, i32) {
    %c0_i32 = arith.constant 0 : i32
    %c0_i32_0 = arith.constant 0 : i32
    %c0_i32_1 = arith.constant 0 : i32
    return %c0_i32, %c0_i32_0 : i32, i32
  }
  func.func @transform_3(%arg0: i32) -> (i32, i32) {
    %c0_i32 = arith.constant 0 : i32
    %c0_i32_0 = arith.constant 0 : i32
    return %arg0, %c0_i32 : i32, i32
  }
}

module attributes {stable_mosaic.version = 11 : i64} {
  func.func @_conv3x3_to1_kernel(%arg0: i32, %arg1: memref<1x30x30x32xbf16, #tpu.memory_space<vmem>>, %arg2: memref<9x1x1x32xf32, #tpu.memory_space<vmem>>, %arg3: memref<1xf32, #tpu.memory_space<smem>>, %arg4: memref<1x28x28xf32, #tpu.memory_space<vmem>>) attributes {dimension_semantics = [#tpu.dimension_semantics<parallel>], iteration_bounds = array<i64: 2>, scalar_prefetch = 0 : i64, scratch_operands = 0 : i64, tpu.core_type = #tpu.core_type<tc>, window_params = [{transform_indices = @transform_0, window_bounds = array<i64: 1, 30, 30, 32>}, {pipeline_mode = #tpu.pipeline_mode<synchronous>, transform_indices = @transform_1, window_bounds = array<i64: 9, 1, 1, 32>}, {transform_indices = @transform_2, window_bounds = array<i64: 1>}, {transform_indices = @transform_3, window_bounds = array<i64: 1, 28, 28>}]} {
    %c0 = arith.constant 0 : index
    %c0_0 = arith.constant 0 : index
    %c0_1 = arith.constant 0 : index
    %c0_2 = arith.constant 0 : index
    %0 = vector.load %arg1[%c0, %c0_0, %c0_1, %c0_2] : memref<1x30x30x32xbf16, #tpu.memory_space<vmem>>, vector<1x30x30x32xbf16>
    %1 = arith.extf %0 : vector<1x30x30x32xbf16> to vector<1x30x30x32xf32>
    %c0_3 = arith.constant 0 : index
    %c0_4 = arith.constant 0 : index
    %c0_5 = arith.constant 0 : index
    %c0_6 = arith.constant 0 : index
    %2 = vector.load %arg2[%c0_3, %c0_4, %c0_5, %c0_6] : memref<9x1x1x32xf32, #tpu.memory_space<vmem>>, vector<9x1x1x32xf32>
    %cst = arith.constant 0.000000e+00 : f32
    %3 = vector.broadcast %cst : f32 to vector<1x28x28x32xf32>
    %4 = vector.extract_strided_slice %1 {offsets = [0, 0, 0, 0], sizes = [1, 30, 28, 32], strides = [1, 1, 1, 1]} : vector<1x30x30x32xf32> to vector<1x30x28x32xf32>
    %5 = vector.extract_strided_slice %4 {offsets = [0, 0, 0, 0], sizes = [1, 28, 28, 32], strides = [1, 1, 1, 1]} : vector<1x30x28x32xf32> to vector<1x28x28x32xf32>
    %6 = vector.extract_strided_slice %2 {offsets = [0, 0, 0, 0], sizes = [1, 1, 1, 32], strides = [1, 1, 1, 1]} : vector<9x1x1x32xf32> to vector<1x1x1x32xf32>
    %7 = vector.shape_cast %6 : vector<1x1x1x32xf32> to vector<1x1x32xf32>
    %8 = vector.shape_cast %7 : vector<1x1x32xf32> to vector<1x1x1x32xf32>
    %9 = vector.broadcast %8 : vector<1x1x1x32xf32> to vector<1x28x28x32xf32>
    %10 = arith.mulf %5, %9 : vector<1x28x28x32xf32>
    %11 = arith.addf %3, %10 : vector<1x28x28x32xf32>
    %12 = vector.extract_strided_slice %4 {offsets = [0, 1, 0, 0], sizes = [1, 28, 28, 32], strides = [1, 1, 1, 1]} : vector<1x30x28x32xf32> to vector<1x28x28x32xf32>
    %13 = vector.extract_strided_slice %2 {offsets = [3, 0, 0, 0], sizes = [1, 1, 1, 32], strides = [1, 1, 1, 1]} : vector<9x1x1x32xf32> to vector<1x1x1x32xf32>
    %14 = vector.shape_cast %13 : vector<1x1x1x32xf32> to vector<1x1x32xf32>
    %15 = vector.shape_cast %14 : vector<1x1x32xf32> to vector<1x1x1x32xf32>
    %16 = vector.broadcast %15 : vector<1x1x1x32xf32> to vector<1x28x28x32xf32>
    %17 = arith.mulf %12, %16 : vector<1x28x28x32xf32>
    %18 = arith.addf %11, %17 : vector<1x28x28x32xf32>
    %19 = vector.extract_strided_slice %4 {offsets = [0, 2, 0, 0], sizes = [1, 28, 28, 32], strides = [1, 1, 1, 1]} : vector<1x30x28x32xf32> to vector<1x28x28x32xf32>
    %20 = vector.extract_strided_slice %2 {offsets = [6, 0, 0, 0], sizes = [1, 1, 1, 32], strides = [1, 1, 1, 1]} : vector<9x1x1x32xf32> to vector<1x1x1x32xf32>
    %21 = vector.shape_cast %20 : vector<1x1x1x32xf32> to vector<1x1x32xf32>
    %22 = vector.shape_cast %21 : vector<1x1x32xf32> to vector<1x1x1x32xf32>
    %23 = vector.broadcast %22 : vector<1x1x1x32xf32> to vector<1x28x28x32xf32>
    %24 = arith.mulf %19, %23 : vector<1x28x28x32xf32>
    %25 = arith.addf %18, %24 : vector<1x28x28x32xf32>
    %26 = vector.extract_strided_slice %1 {offsets = [0, 0, 1, 0], sizes = [1, 30, 28, 32], strides = [1, 1, 1, 1]} : vector<1x30x30x32xf32> to vector<1x30x28x32xf32>
    %27 = vector.extract_strided_slice %26 {offsets = [0, 0, 0, 0], sizes = [1, 28, 28, 32], strides = [1, 1, 1, 1]} : vector<1x30x28x32xf32> to vector<1x28x28x32xf32>
    %28 = vector.extract_strided_slice %2 {offsets = [1, 0, 0, 0], sizes = [1, 1, 1, 32], strides = [1, 1, 1, 1]} : vector<9x1x1x32xf32> to vector<1x1x1x32xf32>
    %29 = vector.shape_cast %28 : vector<1x1x1x32xf32> to vector<1x1x32xf32>
    %30 = vector.shape_cast %29 : vector<1x1x32xf32> to vector<1x1x1x32xf32>
    %31 = vector.broadcast %30 : vector<1x1x1x32xf32> to vector<1x28x28x32xf32>
    %32 = arith.mulf %27, %31 : vector<1x28x28x32xf32>
    %33 = arith.addf %25, %32 : vector<1x28x28x32xf32>
    %34 = vector.extract_strided_slice %26 {offsets = [0, 1, 0, 0], sizes = [1, 28, 28, 32], strides = [1, 1, 1, 1]} : vector<1x30x28x32xf32> to vector<1x28x28x32xf32>
    %35 = vector.extract_strided_slice %2 {offsets = [4, 0, 0, 0], sizes = [1, 1, 1, 32], strides = [1, 1, 1, 1]} : vector<9x1x1x32xf32> to vector<1x1x1x32xf32>
    %36 = vector.shape_cast %35 : vector<1x1x1x32xf32> to vector<1x1x32xf32>
    %37 = vector.shape_cast %36 : vector<1x1x32xf32> to vector<1x1x1x32xf32>
    %38 = vector.broadcast %37 : vector<1x1x1x32xf32> to vector<1x28x28x32xf32>
    %39 = arith.mulf %34, %38 : vector<1x28x28x32xf32>
    %40 = arith.addf %33, %39 : vector<1x28x28x32xf32>
    %41 = vector.extract_strided_slice %26 {offsets = [0, 2, 0, 0], sizes = [1, 28, 28, 32], strides = [1, 1, 1, 1]} : vector<1x30x28x32xf32> to vector<1x28x28x32xf32>
    %42 = vector.extract_strided_slice %2 {offsets = [7, 0, 0, 0], sizes = [1, 1, 1, 32], strides = [1, 1, 1, 1]} : vector<9x1x1x32xf32> to vector<1x1x1x32xf32>
    %43 = vector.shape_cast %42 : vector<1x1x1x32xf32> to vector<1x1x32xf32>
    %44 = vector.shape_cast %43 : vector<1x1x32xf32> to vector<1x1x1x32xf32>
    %45 = vector.broadcast %44 : vector<1x1x1x32xf32> to vector<1x28x28x32xf32>
    %46 = arith.mulf %41, %45 : vector<1x28x28x32xf32>
    %47 = arith.addf %40, %46 : vector<1x28x28x32xf32>
    %48 = vector.extract_strided_slice %1 {offsets = [0, 0, 2, 0], sizes = [1, 30, 28, 32], strides = [1, 1, 1, 1]} : vector<1x30x30x32xf32> to vector<1x30x28x32xf32>
    %49 = vector.extract_strided_slice %48 {offsets = [0, 0, 0, 0], sizes = [1, 28, 28, 32], strides = [1, 1, 1, 1]} : vector<1x30x28x32xf32> to vector<1x28x28x32xf32>
    %50 = vector.extract_strided_slice %2 {offsets = [2, 0, 0, 0], sizes = [1, 1, 1, 32], strides = [1, 1, 1, 1]} : vector<9x1x1x32xf32> to vector<1x1x1x32xf32>
    %51 = vector.shape_cast %50 : vector<1x1x1x32xf32> to vector<1x1x32xf32>
    %52 = vector.shape_cast %51 : vector<1x1x32xf32> to vector<1x1x1x32xf32>
    %53 = vector.broadcast %52 : vector<1x1x1x32xf32> to vector<1x28x28x32xf32>
    %54 = arith.mulf %49, %53 : vector<1x28x28x32xf32>
    %55 = arith.addf %47, %54 : vector<1x28x28x32xf32>
    %56 = vector.extract_strided_slice %48 {offsets = [0, 1, 0, 0], sizes = [1, 28, 28, 32], strides = [1, 1, 1, 1]} : vector<1x30x28x32xf32> to vector<1x28x28x32xf32>
    %57 = vector.extract_strided_slice %2 {offsets = [5, 0, 0, 0], sizes = [1, 1, 1, 32], strides = [1, 1, 1, 1]} : vector<9x1x1x32xf32> to vector<1x1x1x32xf32>
    %58 = vector.shape_cast %57 : vector<1x1x1x32xf32> to vector<1x1x32xf32>
    %59 = vector.shape_cast %58 : vector<1x1x32xf32> to vector<1x1x1x32xf32>
    %60 = vector.broadcast %59 : vector<1x1x1x32xf32> to vector<1x28x28x32xf32>
    %61 = arith.mulf %56, %60 : vector<1x28x28x32xf32>
    %62 = arith.addf %55, %61 : vector<1x28x28x32xf32>
    %63 = vector.extract_strided_slice %48 {offsets = [0, 2, 0, 0], sizes = [1, 28, 28, 32], strides = [1, 1, 1, 1]} : vector<1x30x28x32xf32> to vector<1x28x28x32xf32>
    %64 = vector.extract_strided_slice %2 {offsets = [8, 0, 0, 0], sizes = [1, 1, 1, 32], strides = [1, 1, 1, 1]} : vector<9x1x1x32xf32> to vector<1x1x1x32xf32>
    %65 = vector.shape_cast %64 : vector<1x1x1x32xf32> to vector<1x1x32xf32>
    %66 = vector.shape_cast %65 : vector<1x1x32xf32> to vector<1x1x1x32xf32>
    %67 = vector.broadcast %66 : vector<1x1x1x32xf32> to vector<1x28x28x32xf32>
    %68 = arith.mulf %63, %67 : vector<1x28x28x32xf32>
    %69 = arith.addf %62, %68 : vector<1x28x28x32xf32>
    %cst_7 = arith.constant dense<0.000000e+00> : vector<1x28x28xf32>
    %70 = vector.multi_reduction <add>, %69, %cst_7 [3] : vector<1x28x28x32xf32> to vector<1x28x28xf32>
    %c0_8 = arith.constant 0 : index
    %71 = memref.load %arg3[%c0_8] : memref<1xf32, #tpu.memory_space<smem>>
    %72 = vector.broadcast %71 : f32 to vector<1x28x28xf32>
    %73 = arith.addf %70, %72 : vector<1x28x28xf32>
    %c0_9 = arith.constant 0 : index
    %c0_10 = arith.constant 0 : index
    %c0_11 = arith.constant 0 : index
    %74 = vector.load %arg4[%c0_9, %c0_10, %c0_11] : memref<1x28x28xf32, #tpu.memory_space<vmem>>, vector<1x28x28xf32>
    tpu.vector_store %arg4[%c0_9, %c0_10, %c0_11], %73 {strides = array<i32>} : memref<1x28x28xf32, #tpu.memory_space<vmem>>, vector<1x28x28xf32>,
    return
  }
  func.func @transform_0(%arg0: i32) -> (i32, i32, i32, i32) {
    %c0_i32 = arith.constant 0 : i32
    %c0_i32_0 = arith.constant 0 : i32
    %c0_i32_1 = arith.constant 0 : i32
    %c0_i32_2 = arith.constant 0 : i32
    return %arg0, %c0_i32, %c0_i32_0, %c0_i32_1 : i32, i32, i32, i32
  }
  func.func @transform_1(%arg0: i32) -> (i32, i32, i32, i32) {
    %c0_i32 = arith.constant 0 : i32
    %c0_i32_0 = arith.constant 0 : i32
    %c0_i32_1 = arith.constant 0 : i32
    %c0_i32_2 = arith.constant 0 : i32
    %c0_i32_3 = arith.constant 0 : i32
    return %c0_i32, %c0_i32_0, %c0_i32_1, %c0_i32_2 : i32, i32, i32, i32
  }
  func.func @transform_2(%arg0: i32) -> i32 {
    %c0_i32 = arith.constant 0 : i32
    %c0_i32_0 = arith.constant 0 : i32
    return %c0_i32 : i32
  }
  func.func @transform_3(%arg0: i32) -> (i32, i32, i32) {
    %c0_i32 = arith.constant 0 : i32
    %c0_i32_0 = arith.constant 0 : i32
    %c0_i32_1 = arith.constant 0 : i32
    return %arg0, %c0_i32, %c0_i32_0 : i32, i32, i32
  }
}

</mosaic_0001>

<llo_original>
// kernel: generator_forward.6
$region0: #{generator_forward.6}
  #allocation0 [shape = 'u32[]', space=smem, size = 0x4, offset = 0x4, fixed_abs, tag = 'smem constant byte address 0x4 - core index']
  #allocation1 [shape = 'u32[144,128]{1,0:T(1,128)}', space=vmem, size = 0x12000, scoped, tag = 'internal scratch']
  %s0 = inlined_call_operand.vmem [shape: bf16[2,32], index: 0, kind: input, shape index: {}]
  %s1 = inlined_call_operand.hbm [shape: bf16[32,6272], index: 1, kind: input, shape index: {}]
  %s2 = inlined_call_operand.hbm [shape: f32[1,6272], index: 2, kind: input, shape index: {}]
  %s3 = inlined_call_operand.vmem [shape: bf16[2,6272], index: 3, kind: output, shape index: {}]
  %s4 = sld [smem:[#allocation0]]
  $region53: #{generator_forward.6} parent=0
    _
  %s6 = ssub.s32 1, %s4
  %s7 = scalar_select 0, %s6, %s4
  $region1: #{generator_forward.6} parent=0
    #allocation2 [shape = 'u8[114688]{0}', space=vmem, size = 0x1c000, scoped, tag = 'input window, operand 1']
    #allocation3 [shape = 's32[2]{0}', space=sflag, size = 0x8, scoped, tag = 'scoped memory for generator_forward.6']
    #allocation4 [shape = 'u8[7168]{0}', space=vmem, size = 0x1c00, scoped, tag = 'input window, operand 2']
    #allocation5 [shape = 's32[2]{0}', space=sflag, size = 0x8, scoped, tag = 'scoped memory for generator_forward.6']
    %8 = vsyncpa [#allocation3], 0
    %s9 = scalar_lea.sflag [#allocation3], 1
    %10 = vsyncpa %s9, 0
    %11 = vsyncpa [#allocation5], 0
    %s12 = scalar_lea.sflag [#allocation5], 1
    %13 = vsyncpa %s12, 0
    loop: start=0, step=1, limit=9
    $region2: #{generator_forward.6} parent=1 // loop_pre_header
      _
    $region3: #{generator_forward.6} parent=1 // loop_header
      %s15 = sphi 0, %s19
      %p16 = scmp.ge.s32.totalorder %s15, 9
      %s22 = sphi 0, %s34
      %s23 = sphi 0, %s30
      %s24 = sphi 0, %s22
      %s25 = sphi 0, %s23
      %s26 = sphi 0, %s24
      %s27 = sphi 0, %s25
      %s37 = sphi 0, %s39
      %s40 = sphi 0, %s37
      %s41 = sphi 0, %s40
      %s57 = sphi 0, %s41
      %s63 = sphi 0, %s65
      %s66 = sphi 0, %s63
      %s67 = sphi 0, %s66
      %s83 = sphi 0, %s67
      %s89 = sphi 0, %s91
      %s92 = sphi 0, %s89
      %s93 = sphi 0, %s92
      %s109 = sphi 0, %s93
      %s117 = sphi 0, %s119
      %s120 = sphi 0, %s117
      %s121 = sphi 0, %s120
      %s137 = sphi 0, %s121
    $region4: #{generator_forward.6} parent=1 // loop_header_branch
      %18 = sbr.rel (%p16) target = $region8
    $region5: #{generator_forward.6} parent=1 // loop_body
      %s20 = ssub.s32 %s15, 1
      %s21 = ssub.s32 %s15, 2
      %s28 = sadd.s32 1, %s23
      %p29 = scmp.ge.s32.totalorder %s28, 7
      %s30 = scalar_select %p29, 0, %s28
      %s31 = sadd.s32 1, %s22
      %s32 = scalar_select %p29, %s31, %s22
      %p33 = scmp.ge.s32.totalorder %s32, 1
      %s34 = scalar_select %p33, 0, %s32
      %s35 = ssub.s32 %s22, %s34
      %p36 = scmp.eq.s32.totalorder %s35, 0
      %s38 = sadd.s32 %s37, 1
      %s39 = scalar_select %p36, %s37, %s38
      %p42 = pneg %p36
      %p43 = scmp.eq.s32.totalorder %s15, 6
      %p44 = por %p42, %p43
      %p45 = scmp.ne.s32.totalorder %s37, %s40
      %p46 = scmp.eq.s32.totalorder %s15, 0
      %p47 = por %p45, %p46
      %p48 = scmp.ne.s32.totalorder %s37, %s40
      %p49 = scmp.eq.s32.totalorder %s20, 6
      %p50 = por %p48, %p49
      %p51 = scmp.ne.s32.totalorder %s40, %s41
      %p52 = scmp.eq.s32.totalorder %s20, 0
      %p53 = por %p51, %p52
      %p54 = scmp.ne.s32.totalorder %s40, %s41
      %p55 = scmp.eq.s32.totalorder %s21, 6
      %p56 = por %p54, %p55
      %p58 = scmp.ne.s32.totalorder %s41, %s57
      %p59 = scmp.eq.s32.totalorder %s21, 0
      %p60 = por %p58, %p59
      %s61 = ssub.s32 %s23, %s30
      %p62 = scmp.eq.s32.totalorder %s61, 0
      %s64 = sadd.s32 %s63, 1
      %s65 = scalar_select %p62, %s63, %s64
      %p68 = pneg %p62
      %p69 = scmp.eq.s32.totalorder %s15, 6
      %p70 = por %p68, %p69
      %p71 = scmp.ne.s32.totalorder %s63, %s66
      %p72 = scmp.eq.s32.totalorder %s15, 0
      %p73 = por %p71, %p72
      %p74 = scmp.ne.s32.totalorder %s63, %s66
      %p75 = scmp.eq.s32.totalorder %s20, 6
      %p76 = por %p74, %p75
      %p77 = scmp.ne.s32.totalorder %s66, %s67
      %p78 = scmp.eq.s32.totalorder %s20, 0
      %p79 = por %p77, %p78
      %p80 = scmp.ne.s32.totalorder %s66, %s67
      %p81 = scmp.eq.s32.totalorder %s21, 6
      %p82 = por %p80, %p81
      %p84 = scmp.ne.s32.totalorder %s67, %s83
      %p85 = scmp.eq.s32.totalorder %s21, 0
      %p86 = por %p84, %p85
      %s87 = ssub.s32 %s23, %s30
      %p88 = scmp.eq.s32.totalorder %s87, 0
      %s90 = sadd.s32 %s89, 1
      %s91 = scalar_select %p88, %s89, %s90
      %p94 = pneg %p88
      %p95 = scmp.eq.s32.totalorder %s15, 6
      %p96 = por %p94, %p95
      %p97 = scmp.ne.s32.totalorder %s89, %s92
      %p98 = scmp.eq.s32.totalorder %s15, 0
      %p99 = por %p97, %p98
      %p100 = scmp.ne.s32.totalorder %s89, %s92
      %p101 = scmp.eq.s32.totalorder %s20, 6
      %p102 = por %p100, %p101
      %p103 = scmp.ne.s32.totalorder %s92, %s93
      %p104 = scmp.eq.s32.totalorder %s20, 0
      %p105 = por %p103, %p104
      %p106 = scmp.ne.s32.totalorder %s92, %s93
      %p107 = scmp.eq.s32.totalorder %s21, 6
      %p108 = por %p106, %p107
      %p110 = scmp.ne.s32.totalorder %s93, %s109
      %p111 = scmp.eq.s32.totalorder %s21, 0
      %p112 = por %p110, %p111
      %s113 = ssub.s32 %s22, %s34
      %s114 = ssub.s32 %s23, %s30
      %s115 = sor.u32 %s113, %s114
      %p116 = scmp.eq.s32.totalorder %s115, 0
      %s118 = sadd.s32 %s117, 1
      %s119 = scalar_select %p116, %s117, %s118
      %p122 = pneg %p116
      %p123 = scmp.eq.s32.totalorder %s15, 6
      %p124 = por %p122, %p123
      %p125 = scmp.ne.s32.totalorder %s117, %s120
      %p126 = scmp.eq.s32.totalorder %s15, 0
      %p127 = por %p125, %p126
      %p128 = scmp.ne.s32.totalorder %s117, %s120
      %p129 = scmp.eq.s32.totalorder %s20, 6
      %p130 = por %p128, %p129
      %p131 = scmp.ne.s32.totalorder %s120, %s121
      %p132 = scmp.eq.s32.totalorder %s20, 0
      %p133 = por %p131, %p132
      %p134 = scmp.ne.s32.totalorder %s120, %s121
      %p135 = scmp.eq.s32.totalorder %s21, 6
      %p136 = por %p134, %p135
      %p138 = scmp.ne.s32.totalorder %s121, %s137
      %p139 = scmp.eq.s32.totalorder %s21, 0
      %p140 = por %p138, %p139
      %p141 = scmp.le.s32.totalorder 1, %s15
      %p142 = scmp.lt.s32.totalorder %s15, 8
      %p143 = pnand %p141, %p142
      %p144 = pneg %p143
      // Predicated region
      $region9: #{generator_forward.6} parent=5 // pred_check
        _
      $region10: #{generator_forward.6} parent=5 // pred_check_branch
        %146 = sbr.rel (%p143) target = $region12
      $region11: #{generator_forward.6} parent=5 // pred_region
        %s147 = ssub.s32 %s15, 1
        // Predicated region
        $region13: #{generator_forward.6} parent=11 // pred_check
          %p148 = pneg %p53
        $region14: #{generator_forward.6} parent=11 // pred_check_branch
          %150 = sbr.rel (%p148) target = $region16
        $region15: #{generator_forward.6} parent=11 // pred_region
          %p151 = scmp.lt.s32.totalorder %s24, 0
          %s152 = scalar_select %p151, %s24, 0
          %s153 = scalar_lea.vmem %s0, %s152
        $region16: #{generator_forward.6} parent=11 // pred_fallthru
          _
      $region12: #{generator_forward.6} parent=5 // pred_fallthru
        _
      %p154 = scmp.lt.s32.totalorder %s15, 7
      // Predicated region
      $region17: #{generator_forward.6} parent=5 // pred_check
        %p155 = pneg %p154
      $region18: #{generator_forward.6} parent=5 // pred_check_branch
        %157 = sbr.rel (%p155) target = $region20
      $region19: #{generator_forward.6} parent=5 // pred_region
        // Predicated region
        $region21: #{generator_forward.6} parent=19 // pred_check
          %p158 = pneg %p73
        $region22: #{generator_forward.6} parent=19 // pred_check_branch
          %160 = sbr.rel (%p158) target = $region24
        $region23: #{generator_forward.6} parent=19 // pred_region
          %s161 = sand.u32 %s63, 1
          %s162 = scalar_lea.sflag [#allocation3], %s161
          %s163 = sand.u32 %s63, 1
          %s164 = smul.addr %s163, 112
          %s165 = scalar_lea.vmem [#allocation2], %s164
          %s166 = smul.u32 7, %s23
          %s168 = ssub.s32 1792, 1792
          %169 = vsyncadd %s162, %s168
          %s170 = smul.addr %s166, 64
          %s171 = scalar_lea.hbm %s1, %s170
          %s172 = sshll.u32 %s165, 4
          %s173 = int_to_ptr.vmem [resolvable:$true] %s172
          %178 = dma.hbm_to_vmem [thread:$0]  %s171, 1792, %s173, %s162, 3136, 448, 28
        $region24: #{generator_forward.6} parent=19 // pred_fallthru
          _
        // Predicated region
        $region25: #{generator_forward.6} parent=19 // pred_check
          %p179 = pneg %p99
        $region26: #{generator_forward.6} parent=19 // pred_check_branch
          %181 = sbr.rel (%p179) target = $region28
        $region27: #{generator_forward.6} parent=19 // pred_region
          %s182 = sand.u32 %s89, 1
          %s183 = scalar_lea.sflag [#allocation5], %s182
          %s184 = sand.u32 %s89, 1
          %s185 = smul.addr %s184, 7
          %s186 = scalar_lea.vmem [#allocation4], %s185
          %s187 = smul.u32 7, %s23
          %s189 = ssub.s32 112, 112
          %190 = vsyncadd %s183, %s189
          %s191 = smul.addr %s187, 16
          %s192 = scalar_lea.hbm %s2, %s191
          %s194 = sshll.u32 %s186, 4
          %s195 = int_to_ptr.vmem [resolvable:$true] %s194
          %197 = dma.hbm_to_vmem [thread:$0]  %s192, 112, %s195, %s183
        $region28: #{generator_forward.6} parent=19 // pred_fallthru
          _
      $region20: #{generator_forward.6} parent=5 // pred_fallthru
        _
      %p198 = scmp.le.s32.totalorder 1, %s15
      %p199 = scmp.lt.s32.totalorder %s15, 8
      %p200 = pnand %p198, %p199
      %p201 = pneg %p200
      // Predicated region
      $region29: #{generator_forward.6} parent=5 // pred_check
        _
      $region30: #{generator_forward.6} parent=5 // pred_check_branch
        %203 = sbr.rel (%p200) target = $region32
      $region31: #{generator_forward.6} parent=5 // pred_region
        %s204 = ssub.s32 %s15, 1
        %s205 = sand.u32 %s66, 1
        %s206 = scalar_lea.sflag [#allocation3], %s205
        %s207 = sand.u32 %s66, 1
        %s208 = smul.addr %s207, 112
        %s209 = scalar_lea.vmem [#allocation2], %s208
        // Predicated region
        $region33: #{generator_forward.6} parent=31 // pred_check
          %p210 = pneg %p79
        $region34: #{generator_forward.6} parent=31 // pred_check_branch
          %212 = sbr.rel (%p210) target = $region36
        $region35: #{generator_forward.6} parent=31 // pred_region
          %213 = dma.done %s206, 1792
        $region36: #{generator_forward.6} parent=31 // pred_fallthru
          _
        %s214 = sand.u32 %s92, 1
        %s215 = scalar_lea.sflag [#allocation5], %s214
        %s216 = sand.u32 %s92, 1
        %s217 = smul.addr %s216, 7
        %s218 = scalar_lea.vmem [#allocation4], %s217
        // Predicated region
        $region37: #{generator_forward.6} parent=31 // pred_check
          %p219 = pneg %p105
        $region38: #{generator_forward.6} parent=31 // pred_check_branch
          %221 = sbr.rel (%p219) target = $region40
        $region39: #{generator_forward.6} parent=31 // pred_region
          %222 = dma.done %s215, 112
        $region40: #{generator_forward.6} parent=31 // pred_fallthru
          _
        %p223 = scmp.lt.s32.totalorder %s24, 0
        %s224 = scalar_select %p223, %s24, 0
        %s225 = scalar_lea.vmem %s0, %s224
        %p226 = pneg %p53
        %p227 = pneg %p50
        %s228 = sand.u32 %s66, 1
        %s229 = scalar_lea.sflag [#allocation3], %s228
        %s230 = sand.u32 %s66, 1
        %s231 = smul.addr %s230, 112
        %s232 = scalar_lea.vmem [#allocation2], %s231
        %p233 = pneg %p79
        %p234 = pneg %p76
        %s235 = sand.u32 %s92, 1
        %s236 = scalar_lea.sflag [#allocation5], %s235
        %s237 = sand.u32 %s92, 1
        %s238 = smul.addr %s237, 7
        %s239 = scalar_lea.vmem [#allocation4], %s238
        %p240 = pneg %p105
        %p241 = pneg %p102
        %p242 = pneg %p133
        %p243 = pneg %p130
        %s244 = smul.u32 7, %s25
        %p245 = scmp.lt.s32.totalorder %s24, 0
        %s246 = scalar_select %p245, %s24, 0
        %p247 = scmp.lt.s32.totalorder %s244, 48
        %s248 = scalar_select %p247, %s244, 48
        %s249 = smul.addr %s246, 49
        %s250 = sadd.s32 %s248, %s249
        %s251 = scalar_lea.vmem %s3, %s250
        %p252 = scmp.lt.s32.totalorder %s24, 0
        %s253 = scalar_select %p252, %s24, 0
        %s254 = scalar_lea.vmem %s0, %s253
        %s255 = smul.u32 7, %s25
        %s256 = smul.u32 7, %s25
        %s257 = smul.u32 7, %s25
        %p258 = scmp.lt.s32.totalorder %s24, 0
        %s259 = scalar_select %p258, %s24, 0
        %p260 = scmp.lt.s32.totalorder %s257, 48
        %s261 = scalar_select %p260, %s257, 48
        %s262 = smul.addr %s259, 49
        %s263 = sadd.s32 %s261, %s262
        %s264 = scalar_lea.vmem %s3, %s263
        %s265 = smul.u32 7, %s25
        %v267 = vld [vmem:[%s254] sm:$0x1]
        %v268 = vld [vmem:[%s209] sm:$0xff]
        %v269 = vld [vmem:[%s209 + $0x8] sm:$0xff]
        %v270 = vld [vmem:[%s209 + $0x10] sm:$0xff]
        %v271 = vld [vmem:[%s209 + $0x18] sm:$0xf]
        %v272 = vld [vmem:[%s209 + $0x1c] sm:$0xff]
        %v273 = vld [vmem:[%s209 + $0x24] sm:$0xff]
        %v274 = vld [vmem:[%s209 + $0x2c] sm:$0xff]
        %v275 = vld [vmem:[%s209 + $0x34] sm:$0xf]
        %v276 = vld [vmem:[%s209 + $0x38] sm:$0xff]
        %v277 = vld [vmem:[%s209 + $0x40] sm:$0xff]
        %v278 = vld [vmem:[%s209 + $0x48] sm:$0xff]
        %v279 = vld [vmem:[%s209 + $0x50] sm:$0xf]
        %v280 = vld [vmem:[%s209 + $0x54] sm:$0xff]
        %v281 = vld [vmem:[%s209 + $0x5c] sm:$0xff]
        %v282 = vld [vmem:[%s209 + $0x64] sm:$0xff]
        %v283 = vld [vmem:[%s209 + $0x6c] sm:$0xf]
        %v284 = vld [vmem:[%s218] sm:$0xff]
        %v286 = vlaneseq
        %v287 = vshrl.u32 %v286, 7
        %v288 = vsub.s32 0, %v287
        %v289 = vrot.slane %v284, %v288
        %v290 = vlaneseq
        %v291 = vshrl.u32 %v290, 7
        %v292 = vsub.s32 1, %v291
        %v293 = vrot.slane %v284, %v292
        %v294 = vlaneseq
        %v295 = vshrl.u32 %v294, 7
        %v296 = vsub.s32 2, %v295
        %v297 = vrot.slane %v284, %v296
        %v298 = vlaneseq
        %v299 = vshrl.u32 %v298, 7
        %v300 = vsub.s32 3, %v299
        %v301 = vrot.slane %v284, %v300
        %v302 = vlaneseq
        %v303 = vshrl.u32 %v302, 7
        %v304 = vsub.s32 4, %v303
        %v305 = vrot.slane %v284, %v304
        %v306 = vlaneseq
        %v307 = vshrl.u32 %v306, 7
        %v308 = vsub.s32 5, %v307
        %v309 = vrot.slane %v284, %v308
        %v310 = vlaneseq
        %v311 = vshrl.u32 %v310, 7
        %v312 = vsub.s32 6, %v311
        %v313 = vrot.slane %v284, %v312
        %v337 = vunpack.c.l.b16 %v268
        %v338 = vunpack.c.h.b16 %v268
        %v339 = vunpack.c.l.b16 %v269
        %v340 = vunpack.c.h.b16 %v269
        %v341 = vunpack.c.l.b16 %v270
        %v342 = vunpack.c.h.b16 %v270
        %v343 = vunpack.c.l.b16 %v271
        %v344 = vunpack.c.l.b16 %v272
        %v345 = vunpack.c.h.b16 %v272
        %v346 = vunpack.c.l.b16 %v273
        %v347 = vunpack.c.h.b16 %v273
        %v348 = vunpack.c.l.b16 %v274
        %v349 = vunpack.c.h.b16 %v274
        %v350 = vunpack.c.l.b16 %v275
        %v351 = vunpack.c.l.b16 %v276
        %v352 = vunpack.c.h.b16 %v276
        %v353 = vunpack.c.l.b16 %v277
        %v354 = vunpack.c.h.b16 %v277
        %v355 = vunpack.c.l.b16 %v278
        %v356 = vunpack.c.h.b16 %v278
        %v357 = vunpack.c.l.b16 %v279
        %v358 = vunpack.c.l.b16 %v280
        %v359 = vunpack.c.h.b16 %v280
        %v360 = vunpack.c.l.b16 %v281
        %v361 = vunpack.c.h.b16 %v281
        %v362 = vunpack.c.l.b16 %v282
        %v363 = vunpack.c.h.b16 %v282
        %v364 = vunpack.c.l.b16 %v283
        %v365 = vpack.c.b16 %v344, %v337
        %v366 = vpack.c.b16 %v345, %v338
        %v367 = vpack.c.b16 %v346, %v339
        %v368 = vpack.c.b16 %v347, %v340
        %v369 = vpack.c.b16 %v348, %v341
        %v370 = vpack.c.b16 %v349, %v342
        %v371 = vpack.c.b16 %v350, %v343
        %v372 = vpack.c.b16 %v358, %v351
        %v373 = vpack.c.b16 %v359, %v352
        %v374 = vpack.c.b16 %v360, %v353
        %v375 = vpack.c.b16 %v361, %v354
        %v376 = vpack.c.b16 %v362, %v355
        %v377 = vpack.c.b16 %v363, %v356
        %v378 = vpack.c.b16 %v364, %v357
        %vm393 = vcmask 261120
        %v395 = vsel %vm393, %v267, 0
        %397 = vmatprep.subr.bf16.mxu0 %v366
        %398 = vmatpush1.bf16.msra.mxu0 %v365
        %399 = vmatprep.subr.bf16.mxu0 %v373
        %400 = vmatpush1.bf16.msra.mxu0 %v372
        %401 = vmatprep.subr.bf16.mxu0 0
        %402 = vmatpush1.bf16.msra.mxu0 0
        %403 = vmatprep.subr.bf16.mxu0 0
        %404 = vmatpush1.bf16.msra.mxu0 0
        %405 = vmatprep.subr.bf16.mxu0 0
        %406 = vmatpush1.bf16.msra.mxu0 0
        %407 = vmatprep.subr.bf16.mxu0 0
        %408 = vmatpush1.bf16.msra.mxu0 0
        %409 = vmatprep.subr.bf16.mxu0 0
        %410 = vmatpush1.bf16.msra.mxu0 0
        %411 = vmatprep.subr.bf16.mxu0 0
        %412 = vmatpush1.bf16.msra.mxu0 0
        %413 = vmatprep.subr.bf16.mxu0 0
        %414 = vmatpush1.bf16.msra.mxu0 0
        %415 = vmatprep.subr.bf16.mxu0 0
        %416 = vmatpush1.bf16.msra.mxu0 0
        %417 = vmatprep.subr.bf16.mxu0 0
        %418 = vmatpush1.bf16.msra.mxu0 0
        %419 = vmatprep.subr.bf16.mxu0 0
        %420 = vmatpush1.bf16.msra.mxu0 0
        %421 = vmatprep.subr.bf16.mxu0 0
        %422 = vmatpush1.bf16.msra.mxu0 0
        %423 = vmatprep.subr.bf16.mxu0 0
        %424 = vmatpush1.bf16.msra.mxu0 0
        %425 = vmatprep.subr.bf16.mxu0 0
        %426 = vmatpush1.bf16.msra.mxu0 0
        %427 = vmatprep.subr.bf16.mxu0 0
        %428 = vmatpush1.bf16.msra.mxu0 0
        %429 = vmatprep.mubr.bf16.mxu0 0
        %430 = vmatmul.mubr.bf16.gmra.mrb[0].mxu0 %v395
        %v431 = vpop.f32.mrb[0].mxu0
        %v432 = vadd.f32 %v289, %v431
        %v433 = vpop.f32.mrb[0].mxu0
        %v434 = vadd.f32 %v293, %v433
        %v435 = vpop.f32.mrb[0].mxu0
        %v436 = vpop.f32.mrb[0].mxu0
        %437 = vdwg.mxu0
        %438 = vmatprep.subr.bf16.mxu0 %v368
        %439 = vmatpush1.bf16.msra.mxu0 %v367
        %440 = vmatprep.subr.bf16.mxu0 %v375
        %441 = vmatpush1.bf16.msra.mxu0 %v374
        %442 = vmatprep.subr.bf16.mxu0 0
        %443 = vmatpush1.bf16.msra.mxu0 0
        %444 = vmatprep.subr.bf16.mxu0 0
        %445 = vmatpush1.bf16.msra.mxu0 0
        %446 = vmatprep.subr.bf16.mxu0 0
        %447 = vmatpush1.bf16.msra.mxu0 0
        %448 = vmatprep.subr.bf16.mxu0 0
        %449 = vmatpush1.bf16.msra.mxu0 0
        %450 = vmatprep.subr.bf16.mxu0 0
        %451 = vmatpush1.bf16.msra.mxu0 0
        %452 = vmatprep.subr.bf16.mxu0 0
        %453 = vmatpush1.bf16.msra.mxu0 0
        %454 = vmatprep.subr.bf16.mxu0 0
        %455 = vmatpush1.bf16.msra.mxu0 0
        %456 = vmatprep.subr.bf16.mxu0 0
        %457 = vmatpush1.bf16.msra.mxu0 0
        %458 = vmatprep.subr.bf16.mxu0 0
        %459 = vmatpush1.bf16.msra.mxu0 0
        %460 = vmatprep.subr.bf16.mxu0 0
        %461 = vmatpush1.bf16.msra.mxu0 0
        %462 = vmatprep.subr.bf16.mxu0 0
        %463 = vmatpush1.bf16.msra.mxu0 0
        %464 = vmatprep.subr.bf16.mxu0 0
        %465 = vmatpush1.bf16.msra.mxu0 0
        %466 = vmatprep.subr.bf16.mxu0 0
        %467 = vmatpush1.bf16.msra.mxu0 0
        %468 = vmatprep.subr.bf16.mxu0 0
        %469 = vmatpush1.bf16.msra.mxu0 0
        %470 = vmatprep.mubr.bf16.mxu0 0
        %471 = vmatmul.mubr.bf16.gmra.mrb[0].mxu0 %v395
        %v472 = vpop.f32.mrb[0].mxu0
        %v473 = vadd.f32 %v297, %v472
        %v474 = vpop.f32.mrb[0].mxu0
        %v475 = vadd.f32 %v301, %v474
        %v476 = vpop.f32.mrb[0].mxu0
        %v477 = vpop.f32.mrb[0].mxu0
        %478 = vdwg.mxu0
        %479 = vmatprep.subr.bf16.mxu0 %v370
        %480 = vmatpush1.bf16.msra.mxu0 %v369
        %481 = vmatprep.subr.bf16.mxu0 %v377
        %482 = vmatpush1.bf16.msra.mxu0 %v376
        %483 = vmatprep.subr.bf16.mxu0 0
        %484 = vmatpush1.bf16.msra.mxu0 0
        %485 = vmatprep.subr.bf16.mxu0 0
        %486 = vmatpush1.bf16.msra.mxu0 0
        %487 = vmatprep.subr.bf16.mxu0 0
        %488 = vmatpush1.bf16.msra.mxu0 0
        %489 = vmatprep.subr.bf16.mxu0 0
        %490 = vmatpush1.bf16.msra.mxu0 0
        %491 = vmatprep.subr.bf16.mxu0 0
        %492 = vmatpush1.bf16.msra.mxu0 0
        %493 = vmatprep.subr.bf16.mxu0 0
        %494 = vmatpush1.bf16.msra.mxu0 0
        %495 = vmatprep.subr.bf16.mxu0 0
        %496 = vmatpush1.bf16.msra.mxu0 0
        %497 = vmatprep.subr.bf16.mxu0 0
        %498 = vmatpush1.bf16.msra.mxu0 0
        %499 = vmatprep.subr.bf16.mxu0 0
        %500 = vmatpush1.bf16.msra.mxu0 0
        %501 = vmatprep.subr.bf16.mxu0 0
        %502 = vmatpush1.bf16.msra.mxu0 0
        %503 = vmatprep.subr.bf16.mxu0 0
        %504 = vmatpush1.bf16.msra.mxu0 0
        %505 = vmatprep.subr.bf16.mxu0 0
        %506 = vmatpush1.bf16.msra.mxu0 0
        %507 = vmatprep.subr.bf16.mxu0 0
        %508 = vmatpush1.bf16.msra.mxu0 0
        %509 = vmatprep.subr.bf16.mxu0 0
        %510 = vmatpush1.bf16.msra.mxu0 0
        %511 = vmatprep.mubr.bf16.mxu0 0
        %512 = vmatmul.mubr.bf16.gmra.mrb[0].mxu0 %v395
        %v513 = vpop.f32.mrb[0].mxu0
        %v514 = vadd.f32 %v305, %v513
        %v515 = vpop.f32.mrb[0].mxu0
        %v516 = vadd.f32 %v309, %v515
        %v517 = vpop.f32.mrb[0].mxu0
        %v518 = vpop.f32.mrb[0].mxu0
        %519 = vdwg.mxu0
        %520 = vmatprep.subr.bf16.mxu0 0
        %521 = vmatpush1.bf16.msra.mxu0 %v371
        %522 = vmatprep.subr.bf16.mxu0 0
        %523 = vmatpush1.bf16.msra.mxu0 %v378
        %524 = vmatprep.subr.bf16.mxu0 0
        %525 = vmatpush1.bf16.msra.mxu0 0
        %526 = vmatprep.subr.bf16.mxu0 0
        %527 = vmatpush1.bf16.msra.mxu0 0
        %528 = vmatprep.subr.bf16.mxu0 0
        %529 = vmatpush1.bf16.msra.mxu0 0
        %530 = vmatprep.subr.bf16.mxu0 0
        %531 = vmatpush1.bf16.msra.mxu0 0
        %532 = vmatprep.subr.bf16.mxu0 0
        %533 = vmatpush1.bf16.msra.mxu0 0
        %534 = vmatprep.subr.bf16.mxu0 0
        %535 = vmatpush1.bf16.msra.mxu0 0
        %536 = vmatprep.subr.bf16.mxu0 0
        %537 = vmatpush1.bf16.msra.mxu0 0
        %538 = vmatprep.subr.bf16.mxu0 0
        %539 = vmatpush1.bf16.msra.mxu0 0
        %540 = vmatprep.subr.bf16.mxu0 0
        %541 = vmatpush1.bf16.msra.mxu0 0
        %542 = vmatprep.subr.bf16.mxu0 0
        %543 = vmatpush1.bf16.msra.mxu0 0
        %544 = vmatprep.subr.bf16.mxu0 0
        %545 = vmatpush1.bf16.msra.mxu0 0
        %546 = vmatprep.subr.bf16.mxu0 0
        %547 = vmatpush1.bf16.msra.mxu0 0
        %548 = vmatprep.subr.bf16.mxu0 0
        %549 = vmatpush1.bf16.msra.mxu0 0
        %550 = vmatprep.subr.bf16.mxu0 0
        %551 = vmatpush1.bf16.msra.mxu0 0
        %552 = vmatprep.mubr.bf16.mxu0 0
        %553 = vmatmul.mubr.bf16.gmra.mrb[0].mxu0 %v395
        %v554 = vpop.f32.mrb[0].mxu0
        %v555 = vadd.f32 %v313, %v554
        %v556 = vpop.f32.mrb[0].mxu0
        %v557 = vpop.f32.mrb[0].mxu0
        %v558 = vpop.f32.mrb[0].mxu0
        %559 = vdwg.mxu0
        %v560 = vmul.f32 %v432, 0.01
        %v561 = vmul.f32 %v434, 0.01
        %v562 = vmul.f32 %v473, 0.01
        %v563 = vmul.f32 %v475, 0.01
        %v564 = vmul.f32 %v514, 0.01
        %v565 = vmul.f32 %v516, 0.01
        %v566 = vmul.f32 %v555, 0.01
        %v567 = vmax.f32 %v432, %v560
        %v568 = vmax.f32 %v434, %v561
        %v569 = vmax.f32 %v473, %v562
        %v570 = vmax.f32 %v475, %v563
        %v571 = vmax.f32 %v514, %v564
        %v572 = vmax.f32 %v516, %v565
        %v573 = vmax.f32 %v555, %v566
        %v574 = vpack.c.bf16 %v567, %v567
        %v575 = vpack.c.bf16 %v568, %v568
        %v576 = vpack.c.bf16 %v569, %v569
        %v577 = vpack.c.bf16 %v570, %v570
        %v578 = vpack.c.bf16 %v571, %v571
        %v579 = vpack.c.bf16 %v572, %v572
        %v580 = vpack.c.bf16 %v573, %v573
        %v588 = vcombine.low %v574, %v575
        %v589 = vcombine.low %v576, %v577
        %v590 = vcombine.low %v578, %v579
        %v592 = vunpack.c.l.s4 1966171168
        %v593 = vunpack.c.0.s8 %v592
        %v594 = vlaneseq
        %v595 = vshrl.u32 %v594, 7
        %v596 = vsub.s32 %v593, %v595
        %v597 = vrot.slane %v588, %v596
        %v599 = vunpack.c.l.s4 1966171168
        %v600 = vunpack.c.0.s8 %v599
        %v601 = vlaneseq
        %v602 = vshrl.u32 %v601, 7
        %v603 = vsub.s32 %v600, %v602
        %v604 = vrot.slane %v589, %v603
        %v606 = vunpack.c.l.s4 1966171168
        %v607 = vunpack.c.0.s8 %v606
        %v608 = vlaneseq
        %v609 = vshrl.u32 %v608, 7
        %v610 = vsub.s32 %v607, %v609
        %v611 = vrot.slane %v590, %v610
        %v613 = vunpack.c.l.s4 1966171168
        %v614 = vunpack.c.0.s8 %v613
        %v615 = vlaneseq
        %v616 = vshrl.u32 %v615, 7
        %v617 = vsub.s32 %v614, %v616
        %v618 = vrot.slane %v580, %v617
        %v619 = vcombine.low %v597, %v604
        %v620 = vcombine.low %v611, %v618
        %v622 = vunpack.c.l.s4 1966171168
        %v623 = vunpack.c.0.s8 %v622
        %v624 = vlaneseq
        %v625 = vshrl.u32 %v624, 7
        %v626 = vsub.s32 %v623, %v625
        %v627 = vrot.slane %v619, %v626
        %v629 = vunpack.c.l.s4 1966171168
        %v630 = vunpack.c.0.s8 %v629
        %v631 = vlaneseq
        %v632 = vshrl.u32 %v631, 7
        %v633 = vsub.s32 %v630, %v632
        %v634 = vrot.slane %v620, %v633
        %v635 = vcombine.low %v627, %v634
        %637 = vst [vmem:[%s264] sm:$0x7f] %v635
        %s638 = smul.u32 7, %s25
        %p639 = scmp.lt.s32.totalorder %s24, 0
        %s640 = scalar_select %p639, %s24, 0
        %p641 = scmp.lt.s32.totalorder %s638, 48
        %s642 = scalar_select %p641, %s638, 48
        %s643 = smul.addr %s640, 49
        %s644 = sadd.s32 %s642, %s643
        %s645 = scalar_lea.vmem %s3, %s644
        // Predicated region
        $region41: #{generator_forward.6} parent=31 // pred_check
          %p646 = pneg %p130
        $region42: #{generator_forward.6} parent=31 // pred_check_branch
          %648 = sbr.rel (%p646) target = $region44
        $region43: #{generator_forward.6} parent=31 // pred_region
          %s649 = smul.u32 7, %s25
        $region44: #{generator_forward.6} parent=31 // pred_fallthru
          _
      $region32: #{generator_forward.6} parent=5 // pred_fallthru
        _
      %p650 = scmp.le.s32.totalorder 2, %s15
      // Predicated region
      $region45: #{generator_forward.6} parent=5 // pred_check
        %p651 = pneg %p650
      $region46: #{generator_forward.6} parent=5 // pred_check_branch
        %653 = sbr.rel (%p651) target = $region48
      $region47: #{generator_forward.6} parent=5 // pred_region
        %s654 = ssub.s32 %s15, 2
        // Predicated region
        $region49: #{generator_forward.6} parent=47 // pred_check
          %p655 = pneg %p136
        $region50: #{generator_forward.6} parent=47 // pred_check_branch
          %657 = sbr.rel (%p655) target = $region52
        $region51: #{generator_forward.6} parent=47 // pred_region
          %s658 = smul.u32 7, %s27
          %p659 = scmp.lt.s32.totalorder %s26, 0
          %s660 = scalar_select %p659, %s26, 0
          %p661 = scmp.lt.s32.totalorder %s658, 48
          %s662 = scalar_select %p661, %s658, 48
          %s663 = smul.addr %s660, 49
          %s664 = sadd.s32 %s662, %s663
          %s665 = scalar_lea.vmem %s3, %s664
        $region52: #{generator_forward.6} parent=47 // pred_fallthru
          _
      $region48: #{generator_forward.6} parent=5 // pred_fallthru
        _
    $region6: #{generator_forward.6} parent=1 // loop_footer
      %s19 = sadd.s32 1, %s15
    $region7: #{generator_forward.6} parent=1 // loop_footer_branch
      %14 = sbr.rel target = $region3
    $region8: #{generator_forward.6} parent=1 // loop_exit
      _
    %666 = vsyncpa [#allocation3], 1
    %s667 = scalar_lea.sflag [#allocation3], 1
    %668 = vsyncpa %s667, 1
    %669 = vsyncpa [#allocation5], 1
    %s670 = scalar_lea.sflag [#allocation5], 1
    %671 = vsyncpa %s670, 1

// kernel: tile.23
$region0: #{tile.23}
  #allocation0 [shape = 's32[1]{0}', space=sflag, size = 0x4, scoped, tag = 'scoped memory for tile.23']
  %s0 = inlined_call_operand.vmem [shape: f32[64], index: 0, kind: input, shape index: {}]
  %s1 = inlined_call_operand.vmem [shape: f32[4,64], index: 1, kind: output, shape index: {}]
  // Predicated region
  $region2: #{tile.23} parent=0 // pred_check
    _
  $region3: #{tile.23} parent=0 // pred_check_branch
    %3 = sbr.rel (0) target = $region5
  $region4: #{tile.23} parent=0 // pred_region
    _
  $region5: #{tile.23} parent=0 // pred_fallthru
    _
  %v4 = vld [vmem:[%s0] ss:$0 sm:$0xff]
  %5 = vst [vmem:[%s1] sm:$0xf] %v4

// kernel: tile.24
$region0: #{tile.24}
  %s0 = inlined_call_operand.vmem [shape: f32[4,64], index: 0, kind: input, shape index: {}]
  %s1 = inlined_call_operand.vmem [shape: f32[1,256], index: 1, kind: output, shape index: {}]
  $region1: #{tile.24} parent=0
    #allocation0 [shape = 'u8[8192]{0}', space=vmem, size = 0x2000, scoped, tag = 'scoped mem for output reshape']
    #allocation1 [shape = 'u8[4096]{0}', space=vmem, size = 0x1000, scoped, tag = 'scoped mem for input reshape']
    %s3 = sshllo.u32 0, 4
    %v4 = vld [vmem:[%s0] sm:%s3]
    %5 = vst [vmem:[#allocation1] sm:%s3] %v4
    %s6 = smov 3
    %v7 = vld [vmem:[#allocation1] ss:$2 sm:%s6]
    %vm8 = vcmask 523264
    %9 = vst.msk [vmem:[#allocation0] ss:$8 sm:$0x3] %vm8, %v7
    %s10 = scalar_lea.vmem [#allocation1], 1
    %s11 = smov 3
    %v12 = vld [vmem:[%s10] ss:$2 sm:%s11]
    %13 = vrot.lane.b32.xlu0 %v12, 64
    %v14 = vpop.permute.xlu0 %13
    %vm15 = vcmask 1048064
    %16 = vst.msk [vmem:[#allocation0] ss:$8 sm:$0x3] %vm15, %v14
    %s18 = sshllo.u32 0, 1
    %v20 = vld [vmem:[#allocation0] sm:%s18]
    %s21 = sshllo.u32 0, 1
    %22 = vst [vmem:[%s1] sm:%s21] %v20
    %s23 = scalar_lea.vmem [#allocation0], 8
    %v24 = vld [vmem:[%s23] sm:%s18]
    %s25 = sshllo.u32 0, 1
    %s26 = scalar_lea.vmem %s1, 1
    %27 = vst [vmem:[%s26] sm:%s25] %v24

// kernel: generator_forward.8
$region0: #{generator_forward.8}
  #allocation0 [shape = 'u32[]', space=smem, size = 0x4, offset = 0x4, fixed_abs, tag = 'smem constant byte address 0x4 - core index']
  #allocation1 [shape = 'u32[144,128]{1,0:T(1,128)}', space=vmem, size = 0x12000, scoped, tag = 'internal scratch']
  %s0 = inlined_call_operand.vmem [shape: bf16[104,256], index: 0, kind: input, shape index: {}]
  %s1 = inlined_call_operand.vmem [shape: f32[1,256], index: 1, kind: input, shape index: {}]
  %s2 = inlined_call_operand.vmem [shape: f32[1,256], index: 2, kind: input, shape index: {}]
  %s3 = inlined_call_operand.vmem [shape: bf16[104,256], index: 3, kind: output, shape index: {}]
  %s4 = sld [smem:[#allocation0]]
  $region22: #{generator_forward.8} parent=0
    _
  %s6 = ssub.s32 1, %s4
  %s7 = scalar_select 0, %s6, %s4
  // Predicated region
  $region2: #{generator_forward.8} parent=0 // pred_check
    _
  $region3: #{generator_forward.8} parent=0 // pred_check_branch
    %9 = sbr.rel (0) target = $region5
  $region4: #{generator_forward.8} parent=0 // pred_region
    _
  $region5: #{generator_forward.8} parent=0 // pred_fallthru
    _
  // Predicated region
  $region6: #{generator_forward.8} parent=0 // pred_check
    _
  $region7: #{generator_forward.8} parent=0 // pred_check_branch
    %11 = sbr.rel (0) target = $region9
  $region8: #{generator_forward.8} parent=0 // pred_region
    _
  $region9: #{generator_forward.8} parent=0 // pred_fallthru
    _
  // Predicated region
  $region10: #{generator_forward.8} parent=0 // pred_check
    _
  $region11: #{generator_forward.8} parent=0 // pred_check_branch
    %13 = sbr.rel (0) target = $region13
  $region12: #{generator_forward.8} parent=0 // pred_region
    _
  $region13: #{generator_forward.8} parent=0 // pred_fallthru
    _
  %v14 = vld [vmem:[%s0] sm:$0xff]
  %v15 = vld [vmem:[%s0 + $0x8] sm:$0xff]
  %v16 = vld [vmem:[%s0 + $0x10] sm:$0xff]
  %v17 = vld [vmem:[%s0 + $0x18] sm:$0xff]
  %v18 = vld [vmem:[%s0 + $0x20] sm:$0xff]
  %v19 = vld [vmem:[%s0 + $0x28] sm:$0xff]
  %v20 = vld [vmem:[%s0 + $0x30] sm:$0xff]
  %v21 = vld [vmem:[%s0 + $0x38] sm:$0xff]
  %v22 = vld [vmem:[%s0 + $0x40] sm:$0xff]
  %v23 = vld [vmem:[%s0 + $0x48] sm:$0xff]
  %v24 = vld [vmem:[%s0 + $0x50] sm:$0xff]
  %v25 = vld [vmem:[%s0 + $0x58] sm:$0xff]
  %v26 = vld [vmem:[%s0 + $0x60] sm:$0xff]
  %v27 = vunpack.c.l.bf16 %v14
  %v28 = vunpack.c.h.bf16 %v14
  %v29 = vunpack.c.l.bf16 %v15
  %v30 = vunpack.c.h.bf16 %v15
  %v31 = vunpack.c.l.bf16 %v16
  %v32 = vunpack.c.h.bf16 %v16
  %v33 = vunpack.c.l.bf16 %v17
  %v34 = vunpack.c.h.bf16 %v17
  %v35 = vunpack.c.l.bf16 %v18
  %v36 = vunpack.c.h.bf16 %v18
  %v37 = vunpack.c.l.bf16 %v19
  %v38 = vunpack.c.h.bf16 %v19
  %v39 = vunpack.c.l.bf16 %v20
  %v40 = vunpack.c.h.bf16 %v20
  %v41 = vunpack.c.l.bf16 %v21
  %v42 = vunpack.c.h.bf16 %v21
  %v43 = vunpack.c.l.bf16 %v22
  %v44 = vunpack.c.h.bf16 %v22
  %v45 = vunpack.c.l.bf16 %v23
  %v46 = vunpack.c.h.bf16 %v23
  %v47 = vunpack.c.l.bf16 %v24
  %v48 = vunpack.c.h.bf16 %v24
  %v49 = vunpack.c.l.bf16 %v25
  %v50 = vunpack.c.h.bf16 %v25
  %v51 = vunpack.c.l.bf16 %v26
  %v52 = vunpack.c.h.bf16 %v26
  %v53 = vld [vmem:[%s1] sm:$0x3]
  %v55 = vlaneseq
  %v56 = vshrl.u32 %v55, 7
  %v57 = vsub.s32 0, %v56
  %v58 = vrot.slane %v53, %v57
  %v59 = vlaneseq
  %v60 = vshrl.u32 %v59, 7
  %v61 = vsub.s32 1, %v60
  %v62 = vrot.slane %v53, %v61
  %v65 = vmul.f32 %v27, %v58
  %v66 = vmul.f32 %v28, %v62
  %v67 = vmul.f32 %v29, %v58
  %v68 = vmul.f32 %v30, %v62
  %v69 = vmul.f32 %v31, %v58
  %v70 = vmul.f32 %v32, %v62
  %v71 = vmul.f32 %v33, %v58
  %v72 = vmul.f32 %v34, %v62
  %v73 = vmul.f32 %v35, %v58
  %v74 = vmul.f32 %v36, %v62
  %v75 = vmul.f32 %v37, %v58
  %v76 = vmul.f32 %v38, %v62
  %v77 = vmul.f32 %v39, %v58
  %v78 = vmul.f32 %v40, %v62
  %v79 = vmul.f32 %v41, %v58
  %v80 = vmul.f32 %v42, %v62
  %v81 = vmul.f32 %v43, %v58
  %v82 = vmul.f32 %v44, %v62
  %v83 = vmul.f32 %v45, %v58
  %v84 = vmul.f32 %v46, %v62
  %v85 = vmul.f32 %v47, %v58
  %v86 = vmul.f32 %v48, %v62
  %v87 = vmul.f32 %v49, %v58
  %v88 = vmul.f32 %v50, %v62
  %v89 = vmul.f32 %v51, %v58
  %v90 = vmul.f32 %v52, %v62
  %v91 = vld [vmem:[%s2] sm:$0x3]
  %v93 = vlaneseq
  %v94 = vshrl.u32 %v93, 7
  %v95 = vsub.s32 0, %v94
  %v96 = vrot.slane %v91, %v95
  %v97 = vlaneseq
  %v98 = vshrl.u32 %v97, 7
  %v99 = vsub.s32 1, %v98
  %v100 = vrot.slane %v91, %v99
  %v103 = vadd.f32 %v65, %v96
  %v104 = vadd.f32 %v66, %v100
  %v105 = vadd.f32 %v67, %v96
  %v106 = vadd.f32 %v68, %v100
  %v107 = vadd.f32 %v69, %v96
  %v108 = vadd.f32 %v70, %v100
  %v109 = vadd.f32 %v71, %v96
  %v110 = vadd.f32 %v72, %v100
  %v111 = vadd.f32 %v73, %v96
  %v112 = vadd.f32 %v74, %v100
  %v113 = vadd.f32 %v75, %v96
  %v114 = vadd.f32 %v76, %v100
  %v115 = vadd.f32 %v77, %v96
  %v116 = vadd.f32 %v78, %v100
  %v117 = vadd.f32 %v79, %v96
  %v118 = vadd.f32 %v80, %v100
  %v119 = vadd.f32 %v81, %v96
  %v120 = vadd.f32 %v82, %v100
  %v121 = vadd.f32 %v83, %v96
  %v122 = vadd.f32 %v84, %v100
  %v123 = vadd.f32 %v85, %v96
  %v124 = vadd.f32 %v86, %v100
  %v125 = vadd.f32 %v87, %v96
  %v126 = vadd.f32 %v88, %v100
  %v127 = vadd.f32 %v89, %v96
  %v128 = vadd.f32 %v90, %v100
  %v129 = vmul.f32 %v103, 0.01
  %v130 = vmul.f32 %v104, 0.01
  %v131 = vmul.f32 %v105, 0.01
  %v132 = vmul.f32 %v106, 0.01
  %v133 = vmul.f32 %v107, 0.01
  %v134 = vmul.f32 %v108, 0.01
  %v135 = vmul.f32 %v109, 0.01
  %v136 = vmul.f32 %v110, 0.01
  %v137 = vmul.f32 %v111, 0.01
  %v138 = vmul.f32 %v112, 0.01
  %v139 = vmul.f32 %v113, 0.01
  %v140 = vmul.f32 %v114, 0.01
  %v141 = vmul.f32 %v115, 0.01
  %v142 = vmul.f32 %v116, 0.01
  %v143 = vmul.f32 %v117, 0.01
  %v144 = vmul.f32 %v118, 0.01
  %v145 = vmul.f32 %v119, 0.01
  %v146 = vmul.f32 %v120, 0.01
  %v147 = vmul.f32 %v121, 0.01
  %v148 = vmul.f32 %v122, 0.01
  %v149 = vmul.f32 %v123, 0.01
  %v150 = vmul.f32 %v124, 0.01
  %v151 = vmul.f32 %v125, 0.01
  %v152 = vmul.f32 %v126, 0.01
  %v153 = vmul.f32 %v127, 0.01
  %v154 = vmul.f32 %v128, 0.01
  %v155 = vmax.f32 %v103, %v129
  %v156 = vmax.f32 %v104, %v130
  %v157 = vmax.f32 %v105, %v131
  %v158 = vmax.f32 %v106, %v132
  %v159 = vmax.f32 %v107, %v133
  %v160 = vmax.f32 %v108, %v134
  %v161 = vmax.f32 %v109, %v135
  %v162 = vmax.f32 %v110, %v136
  %v163 = vmax.f32 %v111, %v137
  %v164 = vmax.f32 %v112, %v138
  %v165 = vmax.f32 %v113, %v139
  %v166 = vmax.f32 %v114, %v140
  %v167 = vmax.f32 %v115, %v141
  %v168 = vmax.f32 %v116, %v142
  %v169 = vmax.f32 %v117, %v143
  %v170 = vmax.f32 %v118, %v144
  %v171 = vmax.f32 %v119, %v145
  %v172 = vmax.f32 %v120, %v146
  %v173 = vmax.f32 %v121, %v147
  %v174 = vmax.f32 %v122, %v148
  %v175 = vmax.f32 %v123, %v149
  %v176 = vmax.f32 %v124, %v150
  %v177 = vmax.f32 %v125, %v151
  %v178 = vmax.f32 %v126, %v152
  %v179 = vmax.f32 %v127, %v153
  %v180 = vmax.f32 %v128, %v154
  %v181 = vpack.c.bf16 %v157, %v155
  %v182 = vpack.c.bf16 %v158, %v156
  %v183 = vpack.c.bf16 %v161, %v159
  %v184 = vpack.c.bf16 %v162, %v160
  %v185 = vpack.c.bf16 %v165, %v163
  %v186 = vpack.c.bf16 %v166, %v164
  %v187 = vpack.c.bf16 %v169, %v167
  %v188 = vpack.c.bf16 %v170, %v168
  %v189 = vpack.c.bf16 %v173, %v171
  %v190 = vpack.c.bf16 %v174, %v172
  %v191 = vpack.c.bf16 %v177, %v175
  %v192 = vpack.c.bf16 %v178, %v176
  %v193 = vpack.c.bf16 %v179, %v179
  %v194 = vpack.c.bf16 %v180, %v180
  %v209 = vunpack.c.l.b16 %v181
  %v210 = vunpack.c.l.b16 %v182
  %v211 = vunpack.c.h.b16 %v181
  %v212 = vunpack.c.h.b16 %v182
  %v213 = vunpack.c.l.b16 %v183
  %v214 = vunpack.c.l.b16 %v184
  %v215 = vunpack.c.h.b16 %v183
  %v216 = vunpack.c.h.b16 %v184
  %v217 = vunpack.c.l.b16 %v185
  %v218 = vunpack.c.l.b16 %v186
  %v219 = vunpack.c.h.b16 %v185
  %v220 = vunpack.c.h.b16 %v186
  %v221 = vunpack.c.l.b16 %v187
  %v222 = vunpack.c.l.b16 %v188
  %v223 = vunpack.c.h.b16 %v187
  %v224 = vunpack.c.h.b16 %v188
  %v225 = vunpack.c.l.b16 %v189
  %v226 = vunpack.c.l.b16 %v190
  %v227 = vunpack.c.h.b16 %v189
  %v228 = vunpack.c.h.b16 %v190
  %v229 = vunpack.c.l.b16 %v191
  %v230 = vunpack.c.l.b16 %v192
  %v231 = vunpack.c.h.b16 %v191
  %v232 = vunpack.c.h.b16 %v192
  %v233 = vunpack.c.l.b16 %v193
  %v234 = vunpack.c.l.b16 %v194
  %v235 = vpack.c.b16 %v210, %v209
  %v236 = vpack.c.b16 %v212, %v211
  %v237 = vpack.c.b16 %v214, %v213
  %v238 = vpack.c.b16 %v216, %v215
  %v239 = vpack.c.b16 %v218, %v217
  %v240 = vpack.c.b16 %v220, %v219
  %v241 = vpack.c.b16 %v222, %v221
  %v242 = vpack.c.b16 %v224, %v223
  %v243 = vpack.c.b16 %v226, %v225
  %v244 = vpack.c.b16 %v228, %v227
  %v245 = vpack.c.b16 %v230, %v229
  %v246 = vpack.c.b16 %v232, %v231
  %v247 = vpack.c.b16 %v234, %v233
  %261 = vst [vmem:[%s3] sm:$0xff] %v235
  %262 = vst [vmem:[%s3 + $0x8] sm:$0xff] %v236
  %263 = vst [vmem:[%s3 + $0x10] sm:$0xff] %v237
  %264 = vst [vmem:[%s3 + $0x18] sm:$0xff] %v238
  %265 = vst [vmem:[%s3 + $0x20] sm:$0xff] %v239
  %266 = vst [vmem:[%s3 + $0x28] sm:$0xff] %v240
  %267 = vst [vmem:[%s3 + $0x30] sm:$0xff] %v241
  %268 = vst [vmem:[%s3 + $0x38] sm:$0xff] %v242
  %269 = vst [vmem:[%s3 + $0x40] sm:$0xff] %v243
  %270 = vst [vmem:[%s3 + $0x48] sm:$0xff] %v244
  %271 = vst [vmem:[%s3 + $0x50] sm:$0xff] %v245
  %272 = vst [vmem:[%s3 + $0x58] sm:$0xff] %v246
  %273 = vst [vmem:[%s3 + $0x60] sm:$0xff] %v247
  // Predicated region
  $region14: #{generator_forward.8} parent=0 // pred_check
    _
  $region15: #{generator_forward.8} parent=0 // pred_check_branch
    %275 = sbr.rel (0) target = $region17
  $region16: #{generator_forward.8} parent=0 // pred_region
    _
  $region17: #{generator_forward.8} parent=0 // pred_fallthru
    _
  // Predicated region
  $region18: #{generator_forward.8} parent=0 // pred_check
    _
  $region19: #{generator_forward.8} parent=0 // pred_check_branch
    %277 = sbr.rel (0) target = $region21
  $region20: #{generator_forward.8} parent=0 // pred_region
    _
  $region21: #{generator_forward.8} parent=0 // pred_fallthru
    _

// kernel: generator_forward.7
$region0: #{generator_forward.7}
  #allocation0 [shape = 'u32[]', space=smem, size = 0x4, offset = 0x4, fixed_abs, tag = 'smem constant byte address 0x4 - core index']
  #allocation1 [shape = 'u32[144,128]{1,0:T(1,128)}', space=vmem, size = 0x12000, scoped, tag = 'internal scratch']
  %s0 = inlined_call_operand.vmem [shape: bf16[104,1161], index: 0, kind: input, shape index: {}]
  %s1 = inlined_call_operand.vmem [shape: bf16[1161,256], index: 1, kind: input, shape index: {}]
  %s2 = inlined_call_operand.vmem [shape: bf16[104,256], index: 2, kind: output, shape index: {0}]
  %s3 = inlined_call_operand.vmem [shape: f32[1,8,256], index: 3, kind: output, shape index: {1}]
  %s4 = inlined_call_operand.vmem [shape: f32[1,8,256], index: 4, kind: output, shape index: {2}]
  %5 = xla_tuple %s2, %s3, %s4
  %s6 = sld [smem:[#allocation0]]
  $region135: #{generator_forward.7} parent=0
    _
  %s8 = ssub.s32 1, %s6
  %s9 = scalar_select 0, %s8, %s6
  $region1: #{generator_forward.7} parent=0
    #allocation2 [shape = 'u8[598016]{0}', space=vmem, size = 0x92000, scoped, tag = 'input window, operand 1']
    #allocation3 [shape = 'u8[53248]{0}', space=vmem, size = 0xd000, scoped, tag = 'output window, operand 0']
    loop: start=0, step=1, limit=4
    $region2: #{generator_forward.7} parent=1 // loop_pre_header
      _
    $region3: #{generator_forward.7} parent=1 // loop_header
      %s11 = sphi 0, %s15
      %p12 = scmp.ge.s32.totalorder %s11, 4
      %s18 = sphi 0, %s30
      %s19 = sphi 0, %s26
      %s20 = sphi 0, %s18
      %s21 = sphi 0, %s19
      %s22 = sphi 0, %s20
      %s23 = sphi 0, %s21
      %s33 = sphi 0, %s35
      %s36 = sphi 0, %s33
      %s37 = sphi 0, %s36
      %s53 = sphi 0, %s37
      %s59 = sphi 0, %s61
      %s62 = sphi 0, %s59
      %s63 = sphi 0, %s62
      %s79 = sphi 0, %s63
      %s87 = sphi 0, %s89
      %s90 = sphi 0, %s87
      %s91 = sphi 0, %s90
      %s107 = sphi 0, %s91
      %s115 = sphi 0, %s117
      %s118 = sphi 0, %s115
      %s119 = sphi 0, %s118
      %s135 = sphi 0, %s119
      %s143 = sphi 0, %s145
      %s146 = sphi 0, %s143
      %s147 = sphi 0, %s146
      %s163 = sphi 0, %s147
    $region4: #{generator_forward.7} parent=1 // loop_header_branch
      %14 = sbr.rel (%p12) target = $region8
    $region5: #{generator_forward.7} parent=1 // loop_body
      %s16 = ssub.s32 %s11, 1
      %s17 = ssub.s32 %s11, 2
      %s24 = sadd.s32 1, %s19
      %p25 = scmp.ge.s32.totalorder %s24, 2
      %s26 = scalar_select %p25, 0, %s24
      %s27 = sadd.s32 1, %s18
      %s28 = scalar_select %p25, %s27, %s18
      %p29 = scmp.ge.s32.totalorder %s28, 1
      %s30 = scalar_select %p29, 0, %s28
      %s31 = ssub.s32 %s18, %s30
      %p32 = scmp.eq.s32.totalorder %s31, 0
      %s34 = sadd.s32 %s33, 1
      %s35 = scalar_select %p32, %s33, %s34
      %p38 = pneg %p32
      %p39 = scmp.eq.s32.totalorder %s11, 1
      %p40 = por %p38, %p39
      %p41 = scmp.ne.s32.totalorder %s33, %s36
      %p42 = scmp.eq.s32.totalorder %s11, 0
      %p43 = por %p41, %p42
      %p44 = scmp.ne.s32.totalorder %s33, %s36
      %p45 = scmp.eq.s32.totalorder %s16, 1
      %p46 = por %p44, %p45
      %p47 = scmp.ne.s32.totalorder %s36, %s37
      %p48 = scmp.eq.s32.totalorder %s16, 0
      %p49 = por %p47, %p48
      %p50 = scmp.ne.s32.totalorder %s36, %s37
      %p51 = scmp.eq.s32.totalorder %s17, 1
      %p52 = por %p50, %p51
      %p54 = scmp.ne.s32.totalorder %s37, %s53
      %p55 = scmp.eq.s32.totalorder %s17, 0
      %p56 = por %p54, %p55
      %s57 = ssub.s32 %s19, %s26
      %p58 = scmp.eq.s32.totalorder %s57, 0
      %s60 = sadd.s32 %s59, 1
      %s61 = scalar_select %p58, %s59, %s60
      %p64 = pneg %p58
      %p65 = scmp.eq.s32.totalorder %s11, 1
      %p66 = por %p64, %p65
      %p67 = scmp.ne.s32.totalorder %s59, %s62
      %p68 = scmp.eq.s32.totalorder %s11, 0
      %p69 = por %p67, %p68
      %p70 = scmp.ne.s32.totalorder %s59, %s62
      %p71 = scmp.eq.s32.totalorder %s16, 1
      %p72 = por %p70, %p71
      %p73 = scmp.ne.s32.totalorder %s62, %s63
      %p74 = scmp.eq.s32.totalorder %s16, 0
      %p75 = por %p73, %p74
      %p76 = scmp.ne.s32.totalorder %s62, %s63
      %p77 = scmp.eq.s32.totalorder %s17, 1
      %p78 = por %p76, %p77
      %p80 = scmp.ne.s32.totalorder %s63, %s79
      %p81 = scmp.eq.s32.totalorder %s17, 0
      %p82 = por %p80, %p81
      %s83 = ssub.s32 %s18, %s30
      %s84 = ssub.s32 %s19, %s26
      %s85 = sor.u32 %s83, %s84
      %p86 = scmp.eq.s32.totalorder %s85, 0
      %s88 = sadd.s32 %s87, 1
      %s89 = scalar_select %p86, %s87, %s88
      %p92 = pneg %p86
      %p93 = scmp.eq.s32.totalorder %s11, 1
      %p94 = por %p92, %p93
      %p95 = scmp.ne.s32.totalorder %s87, %s90
      %p96 = scmp.eq.s32.totalorder %s11, 0
      %p97 = por %p95, %p96
      %p98 = scmp.ne.s32.totalorder %s87, %s90
      %p99 = scmp.eq.s32.totalorder %s16, 1
      %p100 = por %p98, %p99
      %p101 = scmp.ne.s32.totalorder %s90, %s91
      %p102 = scmp.eq.s32.totalorder %s16, 0
      %p103 = por %p101, %p102
      %p104 = scmp.ne.s32.totalorder %s90, %s91
      %p105 = scmp.eq.s32.totalorder %s17, 1
      %p106 = por %p104, %p105
      %p108 = scmp.ne.s32.totalorder %s91, %s107
      %p109 = scmp.eq.s32.totalorder %s17, 0
      %p110 = por %p108, %p109
      %s111 = ssub.s32 %s18, %s30
      %s112 = ssub.s32 %s19, %s26
      %s113 = sor.u32 %s111, %s112
      %p114 = scmp.eq.s32.totalorder %s113, 0
      %s116 = sadd.s32 %s115, 1
      %s117 = scalar_select %p114, %s115, %s116
      %p120 = pneg %p114
      %p121 = scmp.eq.s32.totalorder %s11, 1
      %p122 = por %p120, %p121
      %p123 = scmp.ne.s32.totalorder %s115, %s118
      %p124 = scmp.eq.s32.totalorder %s11, 0
      %p125 = por %p123, %p124
      %p126 = scmp.ne.s32.totalorder %s115, %s118
      %p127 = scmp.eq.s32.totalorder %s16, 1
      %p128 = por %p126, %p127
      %p129 = scmp.ne.s32.totalorder %s118, %s119
      %p130 = scmp.eq.s32.totalorder %s16, 0
      %p131 = por %p129, %p130
      %p132 = scmp.ne.s32.totalorder %s118, %s119
      %p133 = scmp.eq.s32.totalorder %s17, 1
      %p134 = por %p132, %p133
      %p136 = scmp.ne.s32.totalorder %s119, %s135
      %p137 = scmp.eq.s32.totalorder %s17, 0
      %p138 = por %p136, %p137
      %s139 = ssub.s32 %s18, %s30
      %s140 = ssub.s32 %s19, %s26
      %s141 = sor.u32 %s139, %s140
      %p142 = scmp.eq.s32.totalorder %s141, 0
      %s144 = sadd.s32 %s143, 1
      %s145 = scalar_select %p142, %s143, %s144
      %p148 = pneg %p142
      %p149 = scmp.eq.s32.totalorder %s11, 1
      %p150 = por %p148, %p149
      %p151 = scmp.ne.s32.totalorder %s143, %s146
      %p152 = scmp.eq.s32.totalorder %s11, 0
      %p153 = por %p151, %p152
      %p154 = scmp.ne.s32.totalorder %s143, %s146
      %p155 = scmp.eq.s32.totalorder %s16, 1
      %p156 = por %p154, %p155
      %p157 = scmp.ne.s32.totalorder %s146, %s147
      %p158 = scmp.eq.s32.totalorder %s16, 0
      %p159 = por %p157, %p158
      %p160 = scmp.ne.s32.totalorder %s146, %s147
      %p161 = scmp.eq.s32.totalorder %s17, 1
      %p162 = por %p160, %p161
      %p164 = scmp.ne.s32.totalorder %s147, %s163
      %p165 = scmp.eq.s32.totalorder %s17, 0
      %p166 = por %p164, %p165
      %p167 = scmp.le.s32.totalorder 1, %s11
      %p168 = scmp.lt.s32.totalorder %s11, 3
      %p169 = pnand %p167, %p168
      %p170 = pneg %p169
      // Predicated region
      $region9: #{generator_forward.7} parent=5 // pred_check
        _
      $region10: #{generator_forward.7} parent=5 // pred_check_branch
        %172 = sbr.rel (%p169) target = $region12
      $region11: #{generator_forward.7} parent=5 // pred_region
        %s173 = ssub.s32 %s11, 1
        // Predicated region
        $region13: #{generator_forward.7} parent=11 // pred_check
          %p174 = pneg %p49
        $region14: #{generator_forward.7} parent=11 // pred_check_branch
          %176 = sbr.rel (%p174) target = $region16
        $region15: #{generator_forward.7} parent=11 // pred_region
          %s177 = smul.u32 13, %s20
          %p178 = scmp.lt.s32.totalorder %s177, 12
          %s179 = scalar_select %p178, %s177, 12
          %s180 = smul.addr %s179, 10
          %s181 = smul.addr %s180, 4
          %s182 = scalar_lea.vmem %s0, %s181
          %s183 = smul.u32 13, %s20
        $region16: #{generator_forward.7} parent=11 // pred_fallthru
          _
      $region12: #{generator_forward.7} parent=5 // pred_fallthru
        _
      %p184 = scmp.lt.s32.totalorder %s11, 2
      // Predicated region
      $region17: #{generator_forward.7} parent=5 // pred_check
        %p185 = pneg %p184
      $region18: #{generator_forward.7} parent=5 // pred_check_branch
        %187 = sbr.rel (%p185) target = $region20
      $region19: #{generator_forward.7} parent=5 // pred_region
        // Predicated region
        $region21: #{generator_forward.7} parent=19 // pred_check
          %p188 = pneg %p69
        $region22: #{generator_forward.7} parent=19 // pred_check_branch
          %190 = sbr.rel (%p188) target = $region24
        $region23: #{generator_forward.7} parent=19 // pred_region
          %s191 = sand.u32 %s59, 1
          %s192 = sand.u32 %s59, 1
          %s193 = smul.addr %s192, 584
          %s194 = scalar_lea.vmem [#allocation2], %s193
          %s195 = smul.addr %s19, 4
          %s196 = scalar_lea.vmem %s1, %s195
          // Predicated region
          $region25: #{generator_forward.7} parent=23 // pred_check
            _
          $region26: #{generator_forward.7} parent=23 // pred_check_branch
            %198 = sbr.rel (0) target = $region28
          $region27: #{generator_forward.7} parent=23 // pred_region
            // Predicated region
            $region29: #{generator_forward.7} parent=27 // pred_check
              _
            $region30: #{generator_forward.7} parent=27 // pred_check_branch
              %200 = sbr.rel target = $region32
            $region31: #{generator_forward.7} parent=27 // pred_region
              // Predicated region
              $region44: #{generator_forward.7} parent=31 // pred_check
                _
              $region45: #{generator_forward.7} parent=31 // pred_check_branch
                %505 = sbr.rel (0) target = $region47
              $region46: #{generator_forward.7} parent=31 // pred_region
                loop: start=0, step=1, limit=1
                $region48: #{generator_forward.7} parent=46 // loop_pre_header
                  _
                $region49: #{generator_forward.7} parent=46 // loop_header
                  %s507 = sphi 0, %s511
                  %p508 = scmp.ge.s32.totalorder %s507, 1
                  %s512 = sphi %s196, %s196
                  %s513 = sphi %s194, %s194
                $region50: #{generator_forward.7} parent=46 // loop_header_branch
                  %510 = sbr.rel (%p508) target = $region54
                $region51: #{generator_forward.7} parent=46 // loop_body
                  _
                $region52: #{generator_forward.7} parent=46 // loop_footer
                  %s511 = sadd.s32 1, %s507
                $region53: #{generator_forward.7} parent=46 // loop_footer_branch
                  %506 = sbr.rel target = $region49
                $region54: #{generator_forward.7} parent=46 // loop_exit
                  _
                loop: start=0, step=1, limit=1
                $region55: #{generator_forward.7} parent=46 // loop_pre_header
                  _
                $region56: #{generator_forward.7} parent=46 // loop_header
                  %s516 = sphi 0, %s520
                  %p517 = scmp.ge.s32.totalorder %s516, 1
                  %s521 = sphi %s196, %s196
                  %s522 = sphi %s194, %s194
                $region57: #{generator_forward.7} parent=46 // loop_header_branch
                  %519 = sbr.rel (%p517) target = $region61
                $region58: #{generator_forward.7} parent=46 // loop_body
                  %v523 = vld [vmem:[%s521] sm:$0xf]
                  %524 = vst [vmem:[%s522] sm:$0xf] %v523
                  %v525 = vld [vmem:[%s521 + $0x8] sm:$0xf]
                  %526 = vst [vmem:[%s522 + $0x4] sm:$0xf] %v525
                  %v527 = vld [vmem:[%s521 + $0x10] sm:$0xf]
                  %528 = vst [vmem:[%s522 + $0x8] sm:$0xf] %v527
                  %v529 = vld [vmem:[%s521 + $0x18] sm:$0xf]
                  %530 = vst [vmem:[%s522 + $0xc] sm:$0xf] %v529
                  %v531 = vld [vmem:[%s521 + $0x20] sm:$0xf]
                  %532 = vst [vmem:[%s522 + $0x10] sm:$0xf] %v531
                  %v533 = vld [vmem:[%s521 + $0x28] sm:$0xf]
                  %534 = vst [vmem:[%s522 + $0x14] sm:$0xf] %v533
                  %v535 = vld [vmem:[%s521 + $0x30] sm:$0xf]
                  %536 = vst [vmem:[%s522 + $0x18] sm:$0xf] %v535
                  %v537 = vld [vmem:[%s521 + $0x38] sm:$0xf]
                  %538 = vst [vmem:[%s522 + $0x1c] sm:$0xf] %v537
                  %v539 = vld [vmem:[%s521 + $0x40] sm:$0xf]
                  %540 = vst [vmem:[%s522 + $0x20] sm:$0xf] %v539
                  %v541 = vld [vmem:[%s521 + $0x48] sm:$0xf]
                  %542 = vst [vmem:[%s522 + $0x24] sm:$0xf] %v541
                  %v543 = vld [vmem:[%s521 + $0x50] sm:$0xf]
                  %544 = vst [vmem:[%s522 + $0x28] sm:$0xf] %v543
                  %v545 = vld [vmem:[%s521 + $0x58] sm:$0xf]
                  %546 = vst [vmem:[%s522 + $0x2c] sm:$0xf] %v545
                  %v547 = vld [vmem:[%s521 + $0x60] sm:$0xf]
                  %548 = vst [vmem:[%s522 + $0x30] sm:$0xf] %v547
                  %v549 = vld [vmem:[%s521 + $0x68] sm:$0xf]
                  %550 = vst [vmem:[%s522 + $0x34] sm:$0xf] %v549
                  %v551 = vld [vmem:[%s521 + $0x70] sm:$0xf]
                  %552 = vst [vmem:[%s522 + $0x38] sm:$0xf] %v551
                  %v553 = vld [vmem:[%s521 + $0x78] sm:$0xf]
                  %554 = vst [vmem:[%s522 + $0x3c] sm:$0xf] %v553
                  %v555 = vld [vmem:[%s521 + $0x80] sm:$0xf]
                  %556 = vst [vmem:[%s522 + $0x40] sm:$0xf] %v555
                  %v557 = vld [vmem:[%s521 + $0x88] sm:$0xf]
                  %558 = vst [vmem:[%s522 + $0x44] sm:$0xf] %v557
                  %v559 = vld [vmem:[%s521 + $0x90] sm:$0xf]
                  %560 = vst [vmem:[%s522 + $0x48] sm:$0xf] %v559
                  %v561 = vld [vmem:[%s521 + $0x98] sm:$0xf]
                  %562 = vst [vmem:[%s522 + $0x4c] sm:$0xf] %v561
                  %v563 = vld [vmem:[%s521 + $0xa0] sm:$0xf]
                  %564 = vst [vmem:[%s522 + $0x50] sm:$0xf] %v563
                  %v565 = vld [vmem:[%s521 + $0xa8] sm:$0xf]
                  %566 = vst [vmem:[%s522 + $0x54] sm:$0xf] %v565
                  %v567 = vld [vmem:[%s521 + $0xb0] sm:$0xf]
                  %568 = vst [vmem:[%s522 + $0x58] sm:$0xf] %v567
                  %v569 = vld [vmem:[%s521 + $0xb8] sm:$0xf]
                  %570 = vst [vmem:[%s522 + $0x5c] sm:$0xf] %v569
                  %v571 = vld [vmem:[%s521 + $0xc0] sm:$0xf]
                  %572 = vst [vmem:[%s522 + $0x60] sm:$0xf] %v571
                  %v573 = vld [vmem:[%s521 + $0xc8] sm:$0xf]
                  %574 = vst [vmem:[%s522 + $0x64] sm:$0xf] %v573
                  %v575 = vld [vmem:[%s521 + $0xd0] sm:$0xf]
                  %576 = vst [vmem:[%s522 + $0x68] sm:$0xf] %v575
                  %v577 = vld [vmem:[%s521 + $0xd8] sm:$0xf]
                  %578 = vst [vmem:[%s522 + $0x6c] sm:$0xf] %v577
                  %v579 = vld [vmem:[%s521 + $0xe0] sm:$0xf]
                  %580 = vst [vmem:[%s522 + $0x70] sm:$0xf] %v579
                  %v581 = vld [vmem:[%s521 + $0xe8] sm:$0xf]
                  %582 = vst [vmem:[%s522 + $0x74] sm:$0xf] %v581
                  %v583 = vld [vmem:[%s521 + $0xf0] sm:$0xf]
                  %584 = vst [vmem:[%s522 + $0x78] sm:$0xf] %v583
                  %v585 = vld [vmem:[%s521 + $0xf8] sm:$0xf]
                  %586 = vst [vmem:[%s522 + $0x7c] sm:$0xf] %v585
                  %v587 = vld [vmem:[%s521 + $0x100] sm:$0xf]
                  %588 = vst [vmem:[%s522 + $0x80] sm:$0xf] %v587
                  %v589 = vld [vmem:[%s521 + $0x108] sm:$0xf]
                  %590 = vst [vmem:[%s522 + $0x84] sm:$0xf] %v589
                  %v591 = vld [vmem:[%s521 + $0x110] sm:$0xf]
                  %592 = vst [vmem:[%s522 + $0x88] sm:$0xf] %v591
                  %v593 = vld [vmem:[%s521 + $0x118] sm:$0xf]
                  %594 = vst [vmem:[%s522 + $0x8c] sm:$0xf] %v593
                  %v595 = vld [vmem:[%s521 + $0x120] sm:$0xf]
                  %596 = vst [vmem:[%s522 + $0x90] sm:$0xf] %v595
                  %v597 = vld [vmem:[%s521 + $0x128] sm:$0xf]
                  %598 = vst [vmem:[%s522 + $0x94] sm:$0xf] %v597
                  %v599 = vld [vmem:[%s521 + $0x130] sm:$0xf]
                  %600 = vst [vmem:[%s522 + $0x98] sm:$0xf] %v599
                  %v601 = vld [vmem:[%s521 + $0x138] sm:$0xf]
                  %602 = vst [vmem:[%s522 + $0x9c] sm:$0xf] %v601
                  %v603 = vld [vmem:[%s521 + $0x140] sm:$0xf]
                  %604 = vst [vmem:[%s522 + $0xa0] sm:$0xf] %v603
                  %v605 = vld [vmem:[%s521 + $0x148] sm:$0xf]
                  %606 = vst [vmem:[%s522 + $0xa4] sm:$0xf] %v605
                  %v607 = vld [vmem:[%s521 + $0x150] sm:$0xf]
                  %608 = vst [vmem:[%s522 + $0xa8] sm:$0xf] %v607
                  %v609 = vld [vmem:[%s521 + $0x158] sm:$0xf]
                  %610 = vst [vmem:[%s522 + $0xac] sm:$0xf] %v609
                  %v611 = vld [vmem:[%s521 + $0x160] sm:$0xf]
                  %612 = vst [vmem:[%s522 + $0xb0] sm:$0xf] %v611
                  %v613 = vld [vmem:[%s521 + $0x168] sm:$0xf]
                  %614 = vst [vmem:[%s522 + $0xb4] sm:$0xf] %v613
                  %v615 = vld [vmem:[%s521 + $0x170] sm:$0xf]
                  %616 = vst [vmem:[%s522 + $0xb8] sm:$0xf] %v615
                  %v617 = vld [vmem:[%s521 + $0x178] sm:$0xf]
                  %618 = vst [vmem:[%s522 + $0xbc] sm:$0xf] %v617
                  %v619 = vld [vmem:[%s521 + $0x180] sm:$0xf]
                  %620 = vst [vmem:[%s522 + $0xc0] sm:$0xf] %v619
                  %v621 = vld [vmem:[%s521 + $0x188] sm:$0xf]
                  %622 = vst [vmem:[%s522 + $0xc4] sm:$0xf] %v621
                  %v623 = vld [vmem:[%s521 + $0x190] sm:$0xf]
                  %624 = vst [vmem:[%s522 + $0xc8] sm:$0xf] %v623
                  %v625 = vld [vmem:[%s521 + $0x198] sm:$0xf]
                  %626 = vst [vmem:[%s522 + $0xcc] sm:$0xf] %v625
                  %v627 = vld [vmem:[%s521 + $0x1a0] sm:$0xf]
                  %628 = vst [vmem:[%s522 + $0xd0] sm:$0xf] %v627
                  %v629 = vld [vmem:[%s521 + $0x1a8] sm:$0xf]
                  %630 = vst [vmem:[%s522 + $0xd4] sm:$0xf] %v629
                  %v631 = vld [vmem:[%s521 + $0x1b0] sm:$0xf]
                  %632 = vst [vmem:[%s522 + $0xd8] sm:$0xf] %v631
                  %v633 = vld [vmem:[%s521 + $0x1b8] sm:$0xf]
                  %634 = vst [vmem:[%s522 + $0xdc] sm:$0xf] %v633
                  %v635 = vld [vmem:[%s521 + $0x1c0] sm:$0xf]
                  %636 = vst [vmem:[%s522 + $0xe0] sm:$0xf] %v635
                  %v637 = vld [vmem:[%s521 + $0x1c8] sm:$0xf]
                  %638 = vst [vmem:[%s522 + $0xe4] sm:$0xf] %v637
                  %v639 = vld [vmem:[%s521 + $0x1d0] sm:$0xf]
                  %640 = vst [vmem:[%s522 + $0xe8] sm:$0xf] %v639
                  %v641 = vld [vmem:[%s521 + $0x1d8] sm:$0xf]
                  %642 = vst [vmem:[%s522 + $0xec] sm:$0xf] %v641
                  %v643 = vld [vmem:[%s521 + $0x1e0] sm:$0xf]
                  %644 = vst [vmem:[%s522 + $0xf0] sm:$0xf] %v643
                  %v645 = vld [vmem:[%s521 + $0x1e8] sm:$0xf]
                  %646 = vst [vmem:[%s522 + $0xf4] sm:$0xf] %v645
                  %v647 = vld [vmem:[%s521 + $0x1f0] sm:$0xf]
                  %648 = vst [vmem:[%s522 + $0xf8] sm:$0xf] %v647
                  %v649 = vld [vmem:[%s521 + $0x1f8] sm:$0xf]
                  %650 = vst [vmem:[%s522 + $0xfc] sm:$0xf] %v649
                  %v651 = vld [vmem:[%s521 + $0x200] sm:$0xf]
                  %652 = vst [vmem:[%s522 + $0x100] sm:$0xf] %v651
                  %v653 = vld [vmem:[%s521 + $0x208] sm:$0xf]
                  %654 = vst [vmem:[%s522 + $0x104] sm:$0xf] %v653
                  %v655 = vld [vmem:[%s521 + $0x210] sm:$0xf]
                  %656 = vst [vmem:[%s522 + $0x108] sm:$0xf] %v655
                  %v657 = vld [vmem:[%s521 + $0x218] sm:$0xf]
                  %658 = vst [vmem:[%s522 + $0x10c] sm:$0xf] %v657
                  %v659 = vld [vmem:[%s521 + $0x220] sm:$0xf]
                  %660 = vst [vmem:[%s522 + $0x110] sm:$0xf] %v659
                  %v661 = vld [vmem:[%s521 + $0x228] sm:$0xf]
                  %662 = vst [vmem:[%s522 + $0x114] sm:$0xf] %v661
                  %v663 = vld [vmem:[%s521 + $0x230] sm:$0xf]
                  %664 = vst [vmem:[%s522 + $0x118] sm:$0xf] %v663
                  %v665 = vld [vmem:[%s521 + $0x238] sm:$0xf]
                  %666 = vst [vmem:[%s522 + $0x11c] sm:$0xf] %v665
                  %v667 = vld [vmem:[%s521 + $0x240] sm:$0xf]
                  %668 = vst [vmem:[%s522 + $0x120] sm:$0xf] %v667
                  %v669 = vld [vmem:[%s521 + $0x248] sm:$0xf]
                  %670 = vst [vmem:[%s522 + $0x124] sm:$0xf] %v669
                  %v671 = vld [vmem:[%s521 + $0x250] sm:$0xf]
                  %672 = vst [vmem:[%s522 + $0x128] sm:$0xf] %v671
                  %v673 = vld [vmem:[%s521 + $0x258] sm:$0xf]
                  %674 = vst [vmem:[%s522 + $0x12c] sm:$0xf] %v673
                  %v675 = vld [vmem:[%s521 + $0x260] sm:$0xf]
                  %676 = vst [vmem:[%s522 + $0x130] sm:$0xf] %v675
                  %v677 = vld [vmem:[%s521 + $0x268] sm:$0xf]
                  %678 = vst [vmem:[%s522 + $0x134] sm:$0xf] %v677
                  %v679 = vld [vmem:[%s521 + $0x270] sm:$0xf]
                  %680 = vst [vmem:[%s522 + $0x138] sm:$0xf] %v679
                  %v681 = vld [vmem:[%s521 + $0x278] sm:$0xf]
                  %682 = vst [vmem:[%s522 + $0x13c] sm:$0xf] %v681
                  %v683 = vld [vmem:[%s521 + $0x280] sm:$0xf]
                  %684 = vst [vmem:[%s522 + $0x140] sm:$0xf] %v683
                  %v685 = vld [vmem:[%s521 + $0x288] sm:$0xf]
                  %686 = vst [vmem:[%s522 + $0x144] sm:$0xf] %v685
                  %v687 = vld [vmem:[%s521 + $0x290] sm:$0xf]
                  %688 = vst [vmem:[%s522 + $0x148] sm:$0xf] %v687
                  %v689 = vld [vmem:[%s521 + $0x298] sm:$0xf]
                  %690 = vst [vmem:[%s522 + $0x14c] sm:$0xf] %v689
                  %v691 = vld [vmem:[%s521 + $0x2a0] sm:$0xf]
                  %692 = vst [vmem:[%s522 + $0x150] sm:$0xf] %v691
                  %v693 = vld [vmem:[%s521 + $0x2a8] sm:$0xf]
                  %694 = vst [vmem:[%s522 + $0x154] sm:$0xf] %v693
                  %v695 = vld [vmem:[%s521 + $0x2b0] sm:$0xf]
                  %696 = vst [vmem:[%s522 + $0x158] sm:$0xf] %v695
                  %v697 = vld [vmem:[%s521 + $0x2b8] sm:$0xf]
                  %698 = vst [vmem:[%s522 + $0x15c] sm:$0xf] %v697
                  %v699 = vld [vmem:[%s521 + $0x2c0] sm:$0xf]
                  %700 = vst [vmem:[%s522 + $0x160] sm:$0xf] %v699
                  %v701 = vld [vmem:[%s521 + $0x2c8] sm:$0xf]
                  %702 = vst [vmem:[%s522 + $0x164] sm:$0xf] %v701
                  %v703 = vld [vmem:[%s521 + $0x2d0] sm:$0xf]
                  %704 = vst [vmem:[%s522 + $0x168] sm:$0xf] %v703
                  %v705 = vld [vmem:[%s521 + $0x2d8] sm:$0xf]
                  %706 = vst [vmem:[%s522 + $0x16c] sm:$0xf] %v705
                  %v707 = vld [vmem:[%s521 + $0x2e0] sm:$0xf]
                  %708 = vst [vmem:[%s522 + $0x170] sm:$0xf] %v707
                  %v709 = vld [vmem:[%s521 + $0x2e8] sm:$0xf]
                  %710 = vst [vmem:[%s522 + $0x174] sm:$0xf] %v709
                  %v711 = vld [vmem:[%s521 + $0x2f0] sm:$0xf]
                  %712 = vst [vmem:[%s522 + $0x178] sm:$0xf] %v711
                  %v713 = vld [vmem:[%s521 + $0x2f8] sm:$0xf]
                  %714 = vst [vmem:[%s522 + $0x17c] sm:$0xf] %v713
                  %v715 = vld [vmem:[%s521 + $0x300] sm:$0xf]
                  %716 = vst [vmem:[%s522 + $0x180] sm:$0xf] %v715
                  %v717 = vld [vmem:[%s521 + $0x308] sm:$0xf]
                  %718 = vst [vmem:[%s522 + $0x184] sm:$0xf] %v717
                  %v719 = vld [vmem:[%s521 + $0x310] sm:$0xf]
                  %720 = vst [vmem:[%s522 + $0x188] sm:$0xf] %v719
                  %v721 = vld [vmem:[%s521 + $0x318] sm:$0xf]
                  %722 = vst [vmem:[%s522 + $0x18c] sm:$0xf] %v721
                  %v723 = vld [vmem:[%s521 + $0x320] sm:$0xf]
                  %724 = vst [vmem:[%s522 + $0x190] sm:$0xf] %v723
                  %v725 = vld [vmem:[%s521 + $0x328] sm:$0xf]
                  %726 = vst [vmem:[%s522 + $0x194] sm:$0xf] %v725
                  %v727 = vld [vmem:[%s521 + $0x330] sm:$0xf]
                  %728 = vst [vmem:[%s522 + $0x198] sm:$0xf] %v727
                  %v729 = vld [vmem:[%s521 + $0x338] sm:$0xf]
                  %730 = vst [vmem:[%s522 + $0x19c] sm:$0xf] %v729
                  %v731 = vld [vmem:[%s521 + $0x340] sm:$0xf]
                  %732 = vst [vmem:[%s522 + $0x1a0] sm:$0xf] %v731
                  %v733 = vld [vmem:[%s521 + $0x348] sm:$0xf]
                  %734 = vst [vmem:[%s522 + $0x1a4] sm:$0xf] %v733
                  %v735 = vld [vmem:[%s521 + $0x350] sm:$0xf]
                  %736 = vst [vmem:[%s522 + $0x1a8] sm:$0xf] %v735
                  %v737 = vld [vmem:[%s521 + $0x358] sm:$0xf]
                  %738 = vst [vmem:[%s522 + $0x1ac] sm:$0xf] %v737
                  %v739 = vld [vmem:[%s521 + $0x360] sm:$0xf]
                  %740 = vst [vmem:[%s522 + $0x1b0] sm:$0xf] %v739
                  %v741 = vld [vmem:[%s521 + $0x368] sm:$0xf]
                  %742 = vst [vmem:[%s522 + $0x1b4] sm:$0xf] %v741
                  %v743 = vld [vmem:[%s521 + $0x370] sm:$0xf]
                  %744 = vst [vmem:[%s522 + $0x1b8] sm:$0xf] %v743
                  %v745 = vld [vmem:[%s521 + $0x378] sm:$0xf]
                  %746 = vst [vmem:[%s522 + $0x1bc] sm:$0xf] %v745
                  %v747 = vld [vmem:[%s521 + $0x380] sm:$0xf]
                  %748 = vst [vmem:[%s522 + $0x1c0] sm:$0xf] %v747
                  %v749 = vld [vmem:[%s521 + $0x388] sm:$0xf]
                  %750 = vst [vmem:[%s522 + $0x1c4] sm:$0xf] %v749
                  %v751 = vld [vmem:[%s521 + $0x390] sm:$0xf]
                  %752 = vst [vmem:[%s522 + $0x1c8] sm:$0xf] %v751
                  %v753 = vld [vmem:[%s521 + $0x398] sm:$0xf]
                  %754 = vst [vmem:[%s522 + $0x1cc] sm:$0xf] %v753
                  %v755 = vld [vmem:[%s521 + $0x3a0] sm:$0xf]
                  %756 = vst [vmem:[%s522 + $0x1d0] sm:$0xf] %v755
                  %v757 = vld [vmem:[%s521 + $0x3a8] sm:$0xf]
                  %758 = vst [vmem:[%s522 + $0x1d4] sm:$0xf] %v757
                  %v759 = vld [vmem:[%s521 + $0x3b0] sm:$0xf]
                  %760 = vst [vmem:[%s522 + $0x1d8] sm:$0xf] %v759
                  %v761 = vld [vmem:[%s521 + $0x3b8] sm:$0xf]
                  %762 = vst [vmem:[%s522 + $0x1dc] sm:$0xf] %v761
                  %v763 = vld [vmem:[%s521 + $0x3c0] sm:$0xf]
                  %764 = vst [vmem:[%s522 + $0x1e0] sm:$0xf] %v763
                  %v765 = vld [vmem:[%s521 + $0x3c8] sm:$0xf]
                  %766 = vst [vmem:[%s522 + $0x1e4] sm:$0xf] %v765
                  %v767 = vld [vmem:[%s521 + $0x3d0] sm:$0xf]
                  %768 = vst [vmem:[%s522 + $0x1e8] sm:$0xf] %v767
                  %v769 = vld [vmem:[%s521 + $0x3d8] sm:$0xf]
                  %770 = vst [vmem:[%s522 + $0x1ec] sm:$0xf] %v769
                  %v771 = vld [vmem:[%s521 + $0x3e0] sm:$0xf]
                  %772 = vst [vmem:[%s522 + $0x1f0] sm:$0xf] %v771
                  %v773 = vld [vmem:[%s521 + $0x3e8] sm:$0xf]
                  %774 = vst [vmem:[%s522 + $0x1f4] sm:$0xf] %v773
                  %v775 = vld [vmem:[%s521 + $0x3f0] sm:$0xf]
                  %776 = vst [vmem:[%s522 + $0x1f8] sm:$0xf] %v775
                  %v777 = vld [vmem:[%s521 + $0x3f8] sm:$0xf]
                  %778 = vst [vmem:[%s522 + $0x1fc] sm:$0xf] %v777
                  %v779 = vld [vmem:[%s521 + $0x400] sm:$0xf]
                  %780 = vst [vmem:[%s522 + $0x200] sm:$0xf] %v779
                  %v781 = vld [vmem:[%s521 + $0x408] sm:$0xf]
                  %782 = vst [vmem:[%s522 + $0x204] sm:$0xf] %v781
                  %v783 = vld [vmem:[%s521 + $0x410] sm:$0xf]
                  %784 = vst [vmem:[%s522 + $0x208] sm:$0xf] %v783
                  %v785 = vld [vmem:[%s521 + $0x418] sm:$0xf]
                  %786 = vst [vmem:[%s522 + $0x20c] sm:$0xf] %v785
                  %v787 = vld [vmem:[%s521 + $0x420] sm:$0xf]
                  %788 = vst [vmem:[%s522 + $0x210] sm:$0xf] %v787
                  %v789 = vld [vmem:[%s521 + $0x428] sm:$0xf]
                  %790 = vst [vmem:[%s522 + $0x214] sm:$0xf] %v789
                  %v791 = vld [vmem:[%s521 + $0x430] sm:$0xf]
                  %792 = vst [vmem:[%s522 + $0x218] sm:$0xf] %v791
                  %v793 = vld [vmem:[%s521 + $0x438] sm:$0xf]
                  %794 = vst [vmem:[%s522 + $0x21c] sm:$0xf] %v793
                  %v795 = vld [vmem:[%s521 + $0x440] sm:$0xf]
                  %796 = vst [vmem:[%s522 + $0x220] sm:$0xf] %v795
                  %v797 = vld [vmem:[%s521 + $0x448] sm:$0xf]
                  %798 = vst [vmem:[%s522 + $0x224] sm:$0xf] %v797
                  %v799 = vld [vmem:[%s521 + $0x450] sm:$0xf]
                  %800 = vst [vmem:[%s522 + $0x228] sm:$0xf] %v799
                  %v801 = vld [vmem:[%s521 + $0x458] sm:$0xf]
                  %802 = vst [vmem:[%s522 + $0x22c] sm:$0xf] %v801
                  %v803 = vld [vmem:[%s521 + $0x460] sm:$0xf]
                  %804 = vst [vmem:[%s522 + $0x230] sm:$0xf] %v803
                  %v805 = vld [vmem:[%s521 + $0x468] sm:$0xf]
                  %806 = vst [vmem:[%s522 + $0x234] sm:$0xf] %v805
                  %v807 = vld [vmem:[%s521 + $0x470] sm:$0xf]
                  %808 = vst [vmem:[%s522 + $0x238] sm:$0xf] %v807
                  %v809 = vld [vmem:[%s521 + $0x478] sm:$0xf]
                  %810 = vst [vmem:[%s522 + $0x23c] sm:$0xf] %v809
                  %v811 = vld [vmem:[%s521 + $0x480] sm:$0xf]
                  %812 = vst [vmem:[%s522 + $0x240] sm:$0xf] %v811
                  %v813 = vld [vmem:[%s521 + $0x488] sm:$0xf]
                  %814 = vst [vmem:[%s522 + $0x244] sm:$0xf] %v813
                $region59: #{generator_forward.7} parent=46 // loop_footer
                  %s520 = sadd.s32 1, %s516
                $region60: #{generator_forward.7} parent=46 // loop_footer_branch
                  %515 = sbr.rel target = $region56
                $region61: #{generator_forward.7} parent=46 // loop_exit
                  _
              $region47: #{generator_forward.7} parent=31 // pred_fallthru
                _
            $region32: #{generator_forward.7} parent=27 // pred_fallthru
              _
            // Predicated region
            $region33: #{generator_forward.7} parent=27 // pred_check
              _
            $region34: #{generator_forward.7} parent=27 // pred_check_branch
              %202 = sbr.rel (0) target = $region36
            $region35: #{generator_forward.7} parent=27 // pred_region
              loop: start=0, step=1, limit=1
              $region37: #{generator_forward.7} parent=35 // loop_pre_header
                _
              $region38: #{generator_forward.7} parent=35 // loop_header
                %s205 = sphi 0, %s209
                %p206 = scmp.ge.s32.totalorder %s205, 1
                %s210 = sphi %s196, %s196
                %s211 = sphi %s194, %s194
              $region39: #{generator_forward.7} parent=35 // loop_header_branch
                %208 = sbr.rel (%p206) target = $region43
              $region40: #{generator_forward.7} parent=35 // loop_body
                %v212 = vld [vmem:[%s210] sm:$0xf]
                %213 = vst [vmem:[%s211] sm:$0xf] %v212
                %v214 = vld [vmem:[%s210 + $0x8] sm:$0xf]
                %215 = vst [vmem:[%s211 + $0x4] sm:$0xf] %v214
                %v216 = vld [vmem:[%s210 + $0x10] sm:$0xf]
                %217 = vst [vmem:[%s211 + $0x8] sm:$0xf] %v216
                %v218 = vld [vmem:[%s210 + $0x18] sm:$0xf]
                %219 = vst [vmem:[%s211 + $0xc] sm:$0xf] %v218
                %v220 = vld [vmem:[%s210 + $0x20] sm:$0xf]
                %221 = vst [vmem:[%s211 + $0x10] sm:$0xf] %v220
                %v222 = vld [vmem:[%s210 + $0x28] sm:$0xf]
                %223 = vst [vmem:[%s211 + $0x14] sm:$0xf] %v222
                %v224 = vld [vmem:[%s210 + $0x30] sm:$0xf]
                %225 = vst [vmem:[%s211 + $0x18] sm:$0xf] %v224
                %v226 = vld [vmem:[%s210 + $0x38] sm:$0xf]
                %227 = vst [vmem:[%s211 + $0x1c] sm:$0xf] %v226
                %v228 = vld [vmem:[%s210 + $0x40] sm:$0xf]
                %229 = vst [vmem:[%s211 + $0x20] sm:$0xf] %v228
                %v230 = vld [vmem:[%s210 + $0x48] sm:$0xf]
                %231 = vst [vmem:[%s211 + $0x24] sm:$0xf] %v230
                %v232 = vld [vmem:[%s210 + $0x50] sm:$0xf]
                %233 = vst [vmem:[%s211 + $0x28] sm:$0xf] %v232
                %v234 = vld [vmem:[%s210 + $0x58] sm:$0xf]
                %235 = vst [vmem:[%s211 + $0x2c] sm:$0xf] %v234
                %v236 = vld [vmem:[%s210 + $0x60] sm:$0xf]
                %237 = vst [vmem:[%s211 + $0x30] sm:$0xf] %v236
                %v238 = vld [vmem:[%s210 + $0x68] sm:$0xf]
                %239 = vst [vmem:[%s211 + $0x34] sm:$0xf] %v238
                %v240 = vld [vmem:[%s210 + $0x70] sm:$0xf]
                %241 = vst [vmem:[%s211 + $0x38] sm:$0xf] %v240
                %v242 = vld [vmem:[%s210 + $0x78] sm:$0xf]
                %243 = vst [vmem:[%s211 + $0x3c] sm:$0xf] %v242
                %v244 = vld [vmem:[%s210 + $0x80] sm:$0xf]
                %245 = vst [vmem:[%s211 + $0x40] sm:$0xf] %v244
                %v246 = vld [vmem:[%s210 + $0x88] sm:$0xf]
                %247 = vst [vmem:[%s211 + $0x44] sm:$0xf] %v246
                %v248 = vld [vmem:[%s210 + $0x90] sm:$0xf]
                %249 = vst [vmem:[%s211 + $0x48] sm:$0xf] %v248
                %v250 = vld [vmem:[%s210 + $0x98] sm:$0xf]
                %251 = vst [vmem:[%s211 + $0x4c] sm:$0xf] %v250
                %v252 = vld [vmem:[%s210 + $0xa0] sm:$0xf]
                %253 = vst [vmem:[%s211 + $0x50] sm:$0xf] %v252
                %v254 = vld [vmem:[%s210 + $0xa8] sm:$0xf]
                %255 = vst [vmem:[%s211 + $0x54] sm:$0xf] %v254
                %v256 = vld [vmem:[%s210 + $0xb0] sm:$0xf]
                %257 = vst [vmem:[%s211 + $0x58] sm:$0xf] %v256
                %v258 = vld [vmem:[%s210 + $0xb8] sm:$0xf]
                %259 = vst [vmem:[%s211 + $0x5c] sm:$0xf] %v258
                %v260 = vld [vmem:[%s210 + $0xc0] sm:$0xf]
                %261 = vst [vmem:[%s211 + $0x60] sm:$0xf] %v260
                %v262 = vld [vmem:[%s210 + $0xc8] sm:$0xf]
                %263 = vst [vmem:[%s211 + $0x64] sm:$0xf] %v262
                %v264 = vld [vmem:[%s210 + $0xd0] sm:$0xf]
                %265 = vst [vmem:[%s211 + $0x68] sm:$0xf] %v264
                %v266 = vld [vmem:[%s210 + $0xd8] sm:$0xf]
                %267 = vst [vmem:[%s211 + $0x6c] sm:$0xf] %v266
                %v268 = vld [vmem:[%s210 + $0xe0] sm:$0xf]
                %269 = vst [vmem:[%s211 + $0x70] sm:$0xf] %v268
                %v270 = vld [vmem:[%s210 + $0xe8] sm:$0xf]
                %271 = vst [vmem:[%s211 + $0x74] sm:$0xf] %v270
                %v272 = vld [vmem:[%s210 + $0xf0] sm:$0xf]
                %273 = vst [vmem:[%s211 + $0x78] sm:$0xf] %v272
                %v274 = vld [vmem:[%s210 + $0xf8] sm:$0xf]
                %275 = vst [vmem:[%s211 + $0x7c] sm:$0xf] %v274
                %v276 = vld [vmem:[%s210 + $0x100] sm:$0xf]
                %277 = vst [vmem:[%s211 + $0x80] sm:$0xf] %v276
                %v278 = vld [vmem:[%s210 + $0x108] sm:$0xf]
                %279 = vst [vmem:[%s211 + $0x84] sm:$0xf] %v278
                %v280 = vld [vmem:[%s210 + $0x110] sm:$0xf]
                %281 = vst [vmem:[%s211 + $0x88] sm:$0xf] %v280
                %v282 = vld [vmem:[%s210 + $0x118] sm:$0xf]
                %283 = vst [vmem:[%s211 + $0x8c] sm:$0xf] %v282
                %v284 = vld [vmem:[%s210 + $0x120] sm:$0xf]
                %285 = vst [vmem:[%s211 + $0x90] sm:$0xf] %v284
                %v286 = vld [vmem:[%s210 + $0x128] sm:$0xf]
                %287 = vst [vmem:[%s211 + $0x94] sm:$0xf] %v286
                %v288 = vld [vmem:[%s210 + $0x130] sm:$0xf]
                %289 = vst [vmem:[%s211 + $0x98] sm:$0xf] %v288
                %v290 = vld [vmem:[%s210 + $0x138] sm:$0xf]
                %291 = vst [vmem:[%s211 + $0x9c] sm:$0xf] %v290
                %v292 = vld [vmem:[%s210 + $0x140] sm:$0xf]
                %293 = vst [vmem:[%s211 + $0xa0] sm:$0xf] %v292
                %v294 = vld [vmem:[%s210 + $0x148] sm:$0xf]
                %295 = vst [vmem:[%s211 + $0xa4] sm:$0xf] %v294
                %v296 = vld [vmem:[%s210 + $0x150] sm:$0xf]
                %297 = vst [vmem:[%s211 + $0xa8] sm:$0xf] %v296
                %v298 = vld [vmem:[%s210 + $0x158] sm:$0xf]
                %299 = vst [vmem:[%s211 + $0xac] sm:$0xf] %v298
                %v300 = vld [vmem:[%s210 + $0x160] sm:$0xf]
                %301 = vst [vmem:[%s211 + $0xb0] sm:$0xf] %v300
                %v302 = vld [vmem:[%s210 + $0x168] sm:$0xf]
                %303 = vst [vmem:[%s211 + $0xb4] sm:$0xf] %v302
                %v304 = vld [vmem:[%s210 + $0x170] sm:$0xf]
                %305 = vst [vmem:[%s211 + $0xb8] sm:$0xf] %v304
                %v306 = vld [vmem:[%s210 + $0x178] sm:$0xf]
                %307 = vst [vmem:[%s211 + $0xbc] sm:$0xf] %v306
                %v308 = vld [vmem:[%s210 + $0x180] sm:$0xf]
                %309 = vst [vmem:[%s211 + $0xc0] sm:$0xf] %v308
                %v310 = vld [vmem:[%s210 + $0x188] sm:$0xf]
                %311 = vst [vmem:[%s211 + $0xc4] sm:$0xf] %v310
                %v312 = vld [vmem:[%s210 + $0x190] sm:$0xf]
                %313 = vst [vmem:[%s211 + $0xc8] sm:$0xf] %v312
                %v314 = vld [vmem:[%s210 + $0x198] sm:$0xf]
                %315 = vst [vmem:[%s211 + $0xcc] sm:$0xf] %v314
                %v316 = vld [vmem:[%s210 + $0x1a0] sm:$0xf]
                %317 = vst [vmem:[%s211 + $0xd0] sm:$0xf] %v316
                %v318 = vld [vmem:[%s210 + $0x1a8] sm:$0xf]
                %319 = vst [vmem:[%s211 + $0xd4] sm:$0xf] %v318
                %v320 = vld [vmem:[%s210 + $0x1b0] sm:$0xf]
                %321 = vst [vmem:[%s211 + $0xd8] sm:$0xf] %v320
                %v322 = vld [vmem:[%s210 + $0x1b8] sm:$0xf]
                %323 = vst [vmem:[%s211 + $0xdc] sm:$0xf] %v322
                %v324 = vld [vmem:[%s210 + $0x1c0] sm:$0xf]
                %325 = vst [vmem:[%s211 + $0xe0] sm:$0xf] %v324
                %v326 = vld [vmem:[%s210 + $0x1c8] sm:$0xf]
                %327 = vst [vmem:[%s211 + $0xe4] sm:$0xf] %v326
                %v328 = vld [vmem:[%s210 + $0x1d0] sm:$0xf]
                %329 = vst [vmem:[%s211 + $0xe8] sm:$0xf] %v328
                %v330 = vld [vmem:[%s210 + $0x1d8] sm:$0xf]
                %331 = vst [vmem:[%s211 + $0xec] sm:$0xf] %v330
                %v332 = vld [vmem:[%s210 + $0x1e0] sm:$0xf]
                %333 = vst [vmem:[%s211 + $0xf0] sm:$0xf] %v332
                %v334 = vld [vmem:[%s210 + $0x1e8] sm:$0xf]
                %335 = vst [vmem:[%s211 + $0xf4] sm:$0xf] %v334
                %v336 = vld [vmem:[%s210 + $0x1f0] sm:$0xf]
                %337 = vst [vmem:[%s211 + $0xf8] sm:$0xf] %v336
                %v338 = vld [vmem:[%s210 + $0x1f8] sm:$0xf]
                %339 = vst [vmem:[%s211 + $0xfc] sm:$0xf] %v338
                %v340 = vld [vmem:[%s210 + $0x200] sm:$0xf]
                %341 = vst [vmem:[%s211 + $0x100] sm:$0xf] %v340
                %v342 = vld [vmem:[%s210 + $0x208] sm:$0xf]
                %343 = vst [vmem:[%s211 + $0x104] sm:$0xf] %v342
                %v344 = vld [vmem:[%s210 + $0x210] sm:$0xf]
                %345 = vst [vmem:[%s211 + $0x108] sm:$0xf] %v344
                %v346 = vld [vmem:[%s210 + $0x218] sm:$0xf]
                %347 = vst [vmem:[%s211 + $0x10c] sm:$0xf] %v346
                %v348 = vld [vmem:[%s210 + $0x220] sm:$0xf]
                %349 = vst [vmem:[%s211 + $0x110] sm:$0xf] %v348
                %v350 = vld [vmem:[%s210 + $0x228] sm:$0xf]
                %351 = vst [vmem:[%s211 + $0x114] sm:$0xf] %v350
                %v352 = vld [vmem:[%s210 + $0x230] sm:$0xf]
                %353 = vst [vmem:[%s211 + $0x118] sm:$0xf] %v352
                %v354 = vld [vmem:[%s210 + $0x238] sm:$0xf]
                %355 = vst [vmem:[%s211 + $0x11c] sm:$0xf] %v354
                %v356 = vld [vmem:[%s210 + $0x240] sm:$0xf]
                %357 = vst [vmem:[%s211 + $0x120] sm:$0xf] %v356
                %v358 = vld [vmem:[%s210 + $0x248] sm:$0xf]
                %359 = vst [vmem:[%s211 + $0x124] sm:$0xf] %v358
                %v360 = vld [vmem:[%s210 + $0x250] sm:$0xf]
                %361 = vst [vmem:[%s211 + $0x128] sm:$0xf] %v360
                %v362 = vld [vmem:[%s210 + $0x258] sm:$0xf]
                %363 = vst [vmem:[%s211 + $0x12c] sm:$0xf] %v362
                %v364 = vld [vmem:[%s210 + $0x260] sm:$0xf]
                %365 = vst [vmem:[%s211 + $0x130] sm:$0xf] %v364
                %v366 = vld [vmem:[%s210 + $0x268] sm:$0xf]
                %367 = vst [vmem:[%s211 + $0x134] sm:$0xf] %v366
                %v368 = vld [vmem:[%s210 + $0x270] sm:$0xf]
                %369 = vst [vmem:[%s211 + $0x138] sm:$0xf] %v368
                %v370 = vld [vmem:[%s210 + $0x278] sm:$0xf]
                %371 = vst [vmem:[%s211 + $0x13c] sm:$0xf] %v370
                %v372 = vld [vmem:[%s210 + $0x280] sm:$0xf]
                %373 = vst [vmem:[%s211 + $0x140] sm:$0xf] %v372
                %v374 = vld [vmem:[%s210 + $0x288] sm:$0xf]
                %375 = vst [vmem:[%s211 + $0x144] sm:$0xf] %v374
                %v376 = vld [vmem:[%s210 + $0x290] sm:$0xf]
                %377 = vst [vmem:[%s211 + $0x148] sm:$0xf] %v376
                %v378 = vld [vmem:[%s210 + $0x298] sm:$0xf]
                %379 = vst [vmem:[%s211 + $0x14c] sm:$0xf] %v378
                %v380 = vld [vmem:[%s210 + $0x2a0] sm:$0xf]
                %381 = vst [vmem:[%s211 + $0x150] sm:$0xf] %v380
                %v382 = vld [vmem:[%s210 + $0x2a8] sm:$0xf]
                %383 = vst [vmem:[%s211 + $0x154] sm:$0xf] %v382
                %v384 = vld [vmem:[%s210 + $0x2b0] sm:$0xf]
                %385 = vst [vmem:[%s211 + $0x158] sm:$0xf] %v384
                %v386 = vld [vmem:[%s210 + $0x2b8] sm:$0xf]
                %387 = vst [vmem:[%s211 + $0x15c] sm:$0xf] %v386
                %v388 = vld [vmem:[%s210 + $0x2c0] sm:$0xf]
                %389 = vst [vmem:[%s211 + $0x160] sm:$0xf] %v388
                %v390 = vld [vmem:[%s210 + $0x2c8] sm:$0xf]
                %391 = vst [vmem:[%s211 + $0x164] sm:$0xf] %v390
                %v392 = vld [vmem:[%s210 + $0x2d0] sm:$0xf]
                %393 = vst [vmem:[%s211 + $0x168] sm:$0xf] %v392
                %v394 = vld [vmem:[%s210 + $0x2d8] sm:$0xf]
                %395 = vst [vmem:[%s211 + $0x16c] sm:$0xf] %v394
                %v396 = vld [vmem:[%s210 + $0x2e0] sm:$0xf]
                %397 = vst [vmem:[%s211 + $0x170] sm:$0xf] %v396
                %v398 = vld [vmem:[%s210 + $0x2e8] sm:$0xf]
                %399 = vst [vmem:[%s211 + $0x174] sm:$0xf] %v398
                %v400 = vld [vmem:[%s210 + $0x2f0] sm:$0xf]
                %401 = vst [vmem:[%s211 + $0x178] sm:$0xf] %v400
                %v402 = vld [vmem:[%s210 + $0x2f8] sm:$0xf]
                %403 = vst [vmem:[%s211 + $0x17c] sm:$0xf] %v402
                %v404 = vld [vmem:[%s210 + $0x300] sm:$0xf]
                %405 = vst [vmem:[%s211 + $0x180] sm:$0xf] %v404
                %v406 = vld [vmem:[%s210 + $0x308] sm:$0xf]
                %407 = vst [vmem:[%s211 + $0x184] sm:$0xf] %v406
                %v408 = vld [vmem:[%s210 + $0x310] sm:$0xf]
                %409 = vst [vmem:[%s211 + $0x188] sm:$0xf] %v408
                %v410 = vld [vmem:[%s210 + $0x318] sm:$0xf]
                %411 = vst [vmem:[%s211 + $0x18c] sm:$0xf] %v410
                %v412 = vld [vmem:[%s210 + $0x320] sm:$0xf]
                %413 = vst [vmem:[%s211 + $0x190] sm:$0xf] %v412
                %v414 = vld [vmem:[%s210 + $0x328] sm:$0xf]
                %415 = vst [vmem:[%s211 + $0x194] sm:$0xf] %v414
                %v416 = vld [vmem:[%s210 + $0x330] sm:$0xf]
                %417 = vst [vmem:[%s211 + $0x198] sm:$0xf] %v416
                %v418 = vld [vmem:[%s210 + $0x338] sm:$0xf]
                %419 = vst [vmem:[%s211 + $0x19c] sm:$0xf] %v418
                %v420 = vld [vmem:[%s210 + $0x340] sm:$0xf]
                %421 = vst [vmem:[%s211 + $0x1a0] sm:$0xf] %v420
                %v422 = vld [vmem:[%s210 + $0x348] sm:$0xf]
                %423 = vst [vmem:[%s211 + $0x1a4] sm:$0xf] %v422
                %v424 = vld [vmem:[%s210 + $0x350] sm:$0xf]
                %425 = vst [vmem:[%s211 + $0x1a8] sm:$0xf] %v424
                %v426 = vld [vmem:[%s210 + $0x358] sm:$0xf]
                %427 = vst [vmem:[%s211 + $0x1ac] sm:$0xf] %v426
                %v428 = vld [vmem:[%s210 + $0x360] sm:$0xf]
                %429 = vst [vmem:[%s211 + $0x1b0] sm:$0xf] %v428
                %v430 = vld [vmem:[%s210 + $0x368] sm:$0xf]
                %431 = vst [vmem:[%s211 + $0x1b4] sm:$0xf] %v430
                %v432 = vld [vmem:[%s210 + $0x370] sm:$0xf]
                %433 = vst [vmem:[%s211 + $0x1b8] sm:$0xf] %v432
                %v434 = vld [vmem:[%s210 + $0x378] sm:$0xf]
                %435 = vst [vmem:[%s211 + $0x1bc] sm:$0xf] %v434
                %v436 = vld [vmem:[%s210 + $0x380] sm:$0xf]
                %437 = vst [vmem:[%s211 + $0x1c0] sm:$0xf] %v436
                %v438 = vld [vmem:[%s210 + $0x388] sm:$0xf]
                %439 = vst [vmem:[%s211 + $0x1c4] sm:$0xf] %v438
                %v440 = vld [vmem:[%s210 + $0x390] sm:$0xf]
                %441 = vst [vmem:[%s211 + $0x1c8] sm:$0xf] %v440
                %v442 = vld [vmem:[%s210 + $0x398] sm:$0xf]
                %443 = vst [vmem:[%s211 + $0x1cc] sm:$0xf] %v442
                %v444 = vld [vmem:[%s210 + $0x3a0] sm:$0xf]
                %445 = vst [vmem:[%s211 + $0x1d0] sm:$0xf] %v444
                %v446 = vld [vmem:[%s210 + $0x3a8] sm:$0xf]
                %447 = vst [vmem:[%s211 + $0x1d4] sm:$0xf] %v446
                %v448 = vld [vmem:[%s210 + $0x3b0] sm:$0xf]
                %449 = vst [vmem:[%s211 + $0x1d8] sm:$0xf] %v448
                %v450 = vld [vmem:[%s210 + $0x3b8] sm:$0xf]
                %451 = vst [vmem:[%s211 + $0x1dc] sm:$0xf] %v450
                %v452 = vld [vmem:[%s210 + $0x3c0] sm:$0xf]
                %453 = vst [vmem:[%s211 + $0x1e0] sm:$0xf] %v452
                %v454 = vld [vmem:[%s210 + $0x3c8] sm:$0xf]
                %455 = vst [vmem:[%s211 + $0x1e4] sm:$0xf] %v454
                %v456 = vld [vmem:[%s210 + $0x3d0] sm:$0xf]
                %457 = vst [vmem:[%s211 + $0x1e8] sm:$0xf] %v456
                %v458 = vld [vmem:[%s210 + $0x3d8] sm:$0xf]
                %459 = vst [vmem:[%s211 + $0x1ec] sm:$0xf] %v458
                %v460 = vld [vmem:[%s210 + $0x3e0] sm:$0xf]
                %461 = vst [vmem:[%s211 + $0x1f0] sm:$0xf] %v460
                %v462 = vld [vmem:[%s210 + $0x3e8] sm:$0xf]
                %463 = vst [vmem:[%s211 + $0x1f4] sm:$0xf] %v462
                %v464 = vld [vmem:[%s210 + $0x3f0] sm:$0xf]
                %465 = vst [vmem:[%s211 + $0x1f8] sm:$0xf] %v464
                %v466 = vld [vmem:[%s210 + $0x3f8] sm:$0xf]
                %467 = vst [vmem:[%s211 + $0x1fc] sm:$0xf] %v466
                %v468 = vld [vmem:[%s210 + $0x400] sm:$0xf]
                %469 = vst [vmem:[%s211 + $0x200] sm:$0xf] %v468
                %v470 = vld [vmem:[%s210 + $0x408] sm:$0xf]
                %471 = vst [vmem:[%s211 + $0x204] sm:$0xf] %v470
                %v472 = vld [vmem:[%s210 + $0x410] sm:$0xf]
                %473 = vst [vmem:[%s211 + $0x208] sm:$0xf] %v472
                %v474 = vld [vmem:[%s210 + $0x418] sm:$0xf]
                %475 = vst [vmem:[%s211 + $0x20c] sm:$0xf] %v474
                %v476 = vld [vmem:[%s210 + $0x420] sm:$0xf]
                %477 = vst [vmem:[%s211 + $0x210] sm:$0xf] %v476
                %v478 = vld [vmem:[%s210 + $0x428] sm:$0xf]
                %479 = vst [vmem:[%s211 + $0x214] sm:$0xf] %v478
                %v480 = vld [vmem:[%s210 + $0x430] sm:$0xf]
                %481 = vst [vmem:[%s211 + $0x218] sm:$0xf] %v480
                %v482 = vld [vmem:[%s210 + $0x438] sm:$0xf]
                %483 = vst [vmem:[%s211 + $0x21c] sm:$0xf] %v482
                %v484 = vld [vmem:[%s210 + $0x440] sm:$0xf]
                %485 = vst [vmem:[%s211 + $0x220] sm:$0xf] %v484
                %v486 = vld [vmem:[%s210 + $0x448] sm:$0xf]
                %487 = vst [vmem:[%s211 + $0x224] sm:$0xf] %v486
                %v488 = vld [vmem:[%s210 + $0x450] sm:$0xf]
                %489 = vst [vmem:[%s211 + $0x228] sm:$0xf] %v488
                %v490 = vld [vmem:[%s210 + $0x458] sm:$0xf]
                %491 = vst [vmem:[%s211 + $0x22c] sm:$0xf] %v490
                %v492 = vld [vmem:[%s210 + $0x460] sm:$0xf]
                %493 = vst [vmem:[%s211 + $0x230] sm:$0xf] %v492
                %v494 = vld [vmem:[%s210 + $0x468] sm:$0xf]
                %495 = vst [vmem:[%s211 + $0x234] sm:$0xf] %v494
                %v496 = vld [vmem:[%s210 + $0x470] sm:$0xf]
                %497 = vst [vmem:[%s211 + $0x238] sm:$0xf] %v496
                %v498 = vld [vmem:[%s210 + $0x478] sm:$0xf]
                %499 = vst [vmem:[%s211 + $0x23c] sm:$0xf] %v498
                %v500 = vld [vmem:[%s210 + $0x480] sm:$0xf]
                %501 = vst [vmem:[%s211 + $0x240] sm:$0xf] %v500
                %v502 = vld [vmem:[%s210 + $0x488] sm:$0xf]
                %503 = vst [vmem:[%s211 + $0x244] sm:$0xf] %v502
              $region41: #{generator_forward.7} parent=35 // loop_footer
                %s209 = sadd.s32 1, %s205
              $region42: #{generator_forward.7} parent=35 // loop_footer_branch
                %204 = sbr.rel target = $region38
              $region43: #{generator_forward.7} parent=35 // loop_exit
                _
            $region36: #{generator_forward.7} parent=27 // pred_fallthru
              _
          $region28: #{generator_forward.7} parent=23 // pred_fallthru
            _
          %815 = vnop
        $region24: #{generator_forward.7} parent=19 // pred_fallthru
          _
      $region20: #{generator_forward.7} parent=5 // pred_fallthru
        _
      %p816 = scmp.le.s32.totalorder 1, %s11
      %p817 = scmp.lt.s32.totalorder %s11, 3
      %p818 = pnand %p816, %p817
      %p819 = pneg %p818
      // Predicated region
      $region62: #{generator_forward.7} parent=5 // pred_check
        _
      $region63: #{generator_forward.7} parent=5 // pred_check_branch
        %821 = sbr.rel (%p818) target = $region65
      $region64: #{generator_forward.7} parent=5 // pred_region
        %s822 = ssub.s32 %s11, 1
        %s823 = sand.u32 %s62, 1
        %s824 = sand.u32 %s62, 1
        %s825 = smul.addr %s824, 584
        %s826 = scalar_lea.vmem [#allocation2], %s825
        // Predicated region
        $region66: #{generator_forward.7} parent=64 // pred_check
          %p827 = pneg %p75
        $region67: #{generator_forward.7} parent=64 // pred_check_branch
          %829 = sbr.rel (%p827) target = $region69
        $region68: #{generator_forward.7} parent=64 // pred_region
          _
        $region69: #{generator_forward.7} parent=64 // pred_fallthru
          _
        %s830 = smul.u32 13, %s20
        %p831 = scmp.lt.s32.totalorder %s830, 12
        %s832 = scalar_select %p831, %s830, 12
        %s833 = smul.addr %s832, 10
        %s834 = smul.addr %s833, 4
        %s835 = scalar_lea.vmem %s0, %s834
        %p836 = pneg %p49
        %p837 = pneg %p46
        %s838 = sand.u32 %s62, 1
        %s839 = sand.u32 %s62, 1
        %s840 = smul.addr %s839, 584
        %s841 = scalar_lea.vmem [#allocation2], %s840
        %p842 = pneg %p75
        %p843 = pneg %p72
        %p844 = pneg %p103
        %p845 = pneg %p100
        %s846 = sand.u32 %s90, 1
        %s847 = sand.u32 %s90, 1
        %s848 = smul.addr %s847, 52
        %s849 = scalar_lea.vmem [#allocation3], %s848
        %p850 = pneg %p131
        %p851 = pneg %p128
        %p852 = scmp.lt.s32.totalorder %s20, 0
        %s853 = scalar_select %p852, %s20, 0
        %p854 = scmp.lt.s32.totalorder %s21, 1
        %s855 = scalar_select %p854, %s21, 1
        %s856 = smul.addr %s853, 2
        %s857 = sadd.s32 %s855, %s856
        %s858 = smul.addr %s857, 8
        %s859 = scalar_lea.vmem %s3, %s858
        %p860 = pneg %p159
        %p861 = pneg %p156
        %p862 = scmp.lt.s32.totalorder %s20, 0
        %s863 = scalar_select %p862, %s20, 0
        %p864 = scmp.lt.s32.totalorder %s21, 1
        %s865 = scalar_select %p864, %s21, 1
        %s866 = smul.addr %s863, 2
        %s867 = sadd.s32 %s865, %s866
        %s868 = smul.addr %s867, 8
        %s869 = scalar_lea.vmem %s4, %s868
        %s870 = smul.u32 13, %s20
        %p871 = scmp.lt.s32.totalorder %s870, 12
        %s872 = scalar_select %p871, %s870, 12
        %s873 = smul.addr %s872, 10
        %s874 = smul.addr %s873, 4
        %s875 = scalar_lea.vmem %s0, %s874
        %s876 = smul.u32 13, %s20
        %s877 = smul.u32 13, %s20
        %p878 = scmp.lt.s32.totalorder %s20, 0
        %s879 = scalar_select %p878, %s20, 0
        %p880 = scmp.lt.s32.totalorder %s21, 1
        %s881 = scalar_select %p880, %s21, 1
        %s882 = smul.addr %s879, 2
        %s883 = sadd.s32 %s881, %s882
        %s884 = smul.addr %s883, 8
        %s885 = scalar_lea.vmem %s3, %s884
        %p886 = scmp.lt.s32.totalorder %s20, 0
        %s887 = scalar_select %p886, %s20, 0
        %p888 = scmp.lt.s32.totalorder %s21, 1
        %s889 = scalar_select %p888, %s21, 1
        %s890 = smul.addr %s887, 2
        %s891 = sadd.s32 %s889, %s890
        %s892 = smul.addr %s891, 8
        %s893 = scalar_lea.vmem %s4, %s892
        %v895 = vld [vmem:[%s875] sm:$0xff]
        %v896 = vld [vmem:[%s875 + $0x8] sm:$0xff]
        %v897 = vld [vmem:[%s875 + $0x10] sm:$0xff]
        %v898 = vld [vmem:[%s875 + $0x18] sm:$0xff]
        %v899 = vld [vmem:[%s875 + $0x20] sm:$0xff]
        %v900 = vld [vmem:[%s875 + $0x28] sm:$0xff]
        %v901 = vld [vmem:[%s875 + $0x30] sm:$0xff]
        %v902 = vld [vmem:[%s875 + $0x38] sm:$0xff]
        %v903 = vld [vmem:[%s875 + $0x40] sm:$0xff]
        %v904 = vld [vmem:[%s875 + $0x48] sm:$0xff]
        %v905 = vld [vmem:[%s875 + $0x50] sm:$0xff]
        %v906 = vld [vmem:[%s875 + $0x58] sm:$0xff]
        %v907 = vld [vmem:[%s875 + $0x60] sm:$0xff]
        %v908 = vld [vmem:[%s875 + $0x68] sm:$0xff]
        %v909 = vld [vmem:[%s875 + $0x70] sm:$0xff]
        %v910 = vld [vmem:[%s875 + $0x78] sm:$0xff]
        %v911 = vld [vmem:[%s875 + $0x80] sm:$0xff]
        %v912 = vld [vmem:[%s875 + $0x88] sm:$0xff]
        %v913 = vld [vmem:[%s875 + $0x90] sm:$0xff]
        %v914 = vld [vmem:[%s875 + $0x98] sm:$0xff]
        %v915 = vld [vmem:[%s875 + $0xa0] sm:$0xff]
        %v916 = vld [vmem:[%s875 + $0xa8] sm:$0xff]
        %v917 = vld [vmem:[%s875 + $0xb0] sm:$0xff]
        %v918 = vld [vmem:[%s875 + $0xb8] sm:$0xff]
        %v919 = vld [vmem:[%s875 + $0xc0] sm:$0xff]
        %v920 = vld [vmem:[%s875 + $0xc8] sm:$0xff]
        %v921 = vld [vmem:[%s875 + $0xd0] sm:$0xff]
        %v922 = vld [vmem:[%s875 + $0xd8] sm:$0xff]
        %v923 = vld [vmem:[%s875 + $0xe0] sm:$0xff]
        %v924 = vld [vmem:[%s875 + $0xe8] sm:$0xff]
        %v925 = vld [vmem:[%s875 + $0xf0] sm:$0xff]
        %v926 = vld [vmem:[%s875 + $0xf8] sm:$0xff]
        %v927 = vld [vmem:[%s875 + $0x100] sm:$0xff]
        %v928 = vld [vmem:[%s875 + $0x108] sm:$0xff]
        %v929 = vld [vmem:[%s875 + $0x110] sm:$0xff]
        %v930 = vld [vmem:[%s875 + $0x118] sm:$0xff]
        %v931 = vld [vmem:[%s875 + $0x120] sm:$0xff]
        %v932 = vld [vmem:[%s875 + $0x128] sm:$0xff]
        %v933 = vld [vmem:[%s875 + $0x130] sm:$0xff]
        %v934 = vld [vmem:[%s875 + $0x138] sm:$0xff]
        %v935 = vld [vmem:[%s875 + $0x140] sm:$0xff]
        %v936 = vld [vmem:[%s875 + $0x148] sm:$0xff]
        %v937 = vld [vmem:[%s875 + $0x150] sm:$0xff]
        %v938 = vld [vmem:[%s875 + $0x158] sm:$0xff]
        %v939 = vld [vmem:[%s875 + $0x160] sm:$0xff]
        %v940 = vld [vmem:[%s875 + $0x168] sm:$0xff]
        %v941 = vld [vmem:[%s875 + $0x170] sm:$0xff]
        %v942 = vld [vmem:[%s875 + $0x178] sm:$0xff]
        %v943 = vld [vmem:[%s875 + $0x180] sm:$0xff]
        %v944 = vld [vmem:[%s875 + $0x188] sm:$0xff]
        %v945 = vld [vmem:[%s875 + $0x190] sm:$0xff]
        %v946 = vld [vmem:[%s875 + $0x198] sm:$0xff]
        %v947 = vld [vmem:[%s875 + $0x1a0] sm:$0xff]
        %v948 = vld [vmem:[%s875 + $0x1a8] sm:$0xff]
        %v949 = vld [vmem:[%s875 + $0x1b0] sm:$0xff]
        %v950 = vld [vmem:[%s875 + $0x1b8] sm:$0xff]
        %v951 = vld [vmem:[%s875 + $0x1c0] sm:$0xff]
        %v952 = vld [vmem:[%s875 + $0x1c8] sm:$0xff]
        %v953 = vld [vmem:[%s875 + $0x1d0] sm:$0xff]
        %v954 = vld [vmem:[%s875 + $0x1d8] sm:$0xff]
        %v955 = vld [vmem:[%s875 + $0x1e0] sm:$0xff]
        %v956 = vld [vmem:[%s875 + $0x1e8] sm:$0xff]
        %v957 = vld [vmem:[%s875 + $0x1f0] sm:$0xff]
        %v958 = vld [vmem:[%s875 + $0x1f8] sm:$0xff]
        %v959 = vld [vmem:[%s875 + $0x200] sm:$0xff]
        %v960 = vld [vmem:[%s826] sm:$0xf]
        %v961 = vld [vmem:[%s826 + $0x4] sm:$0xf]
        %v962 = vld [vmem:[%s826 + $0x8] sm:$0xf]
        %v963 = vld [vmem:[%s826 + $0xc] sm:$0xf]
        %v964 = vld [vmem:[%s826 + $0x10] sm:$0xf]
        %v965 = vld [vmem:[%s826 + $0x14] sm:$0xf]
        %v966 = vld [vmem:[%s826 + $0x18] sm:$0xf]
        %v967 = vld [vmem:[%s826 + $0x1c] sm:$0xf]
        %v968 = vld [vmem:[%s826 + $0x20] sm:$0xf]
        %v969 = vld [vmem:[%s826 + $0x24] sm:$0xf]
        %v970 = vld [vmem:[%s826 + $0x28] sm:$0xf]
        %v971 = vld [vmem:[%s826 + $0x2c] sm:$0xf]
        %v972 = vld [vmem:[%s826 + $0x30] sm:$0xf]
        %v973 = vld [vmem:[%s826 + $0x34] sm:$0xf]
        %v974 = vld [vmem:[%s826 + $0x38] sm:$0xf]
        %v975 = vld [vmem:[%s826 + $0x3c] sm:$0xf]
        %v976 = vld [vmem:[%s826 + $0x40] sm:$0xf]
        %v977 = vld [vmem:[%s826 + $0x44] sm:$0xf]
        %v978 = vld [vmem:[%s826 + $0x48] sm:$0xf]
        %v979 = vld [vmem:[%s826 + $0x4c] sm:$0xf]
        %v980 = vld [vmem:[%s826 + $0x50] sm:$0xf]
        %v981 = vld [vmem:[%s826 + $0x54] sm:$0xf]
        %v982 = vld [vmem:[%s826 + $0x58] sm:$0xf]
        %v983 = vld [vmem:[%s826 + $0x5c] sm:$0xf]
        %v984 = vld [vmem:[%s826 + $0x60] sm:$0xf]
        %v985 = vld [vmem:[%s826 + $0x64] sm:$0xf]
        %v986 = vld [vmem:[%s826 + $0x68] sm:$0xf]
        %v987 = vld [vmem:[%s826 + $0x6c] sm:$0xf]
        %v988 = vld [vmem:[%s826 + $0x70] sm:$0xf]
        %v989 = vld [vmem:[%s826 + $0x74] sm:$0xf]
        %v990 = vld [vmem:[%s826 + $0x78] sm:$0xf]
        %v991 = vld [vmem:[%s826 + $0x7c] sm:$0xf]
        %v992 = vld [vmem:[%s826 + $0x80] sm:$0xf]
        %v993 = vld [vmem:[%s826 + $0x84] sm:$0xf]
        %v994 = vld [vmem:[%s826 + $0x88] sm:$0xf]
        %v995 = vld [vmem:[%s826 + $0x8c] sm:$0xf]
        %v996 = vld [vmem:[%s826 + $0x90] sm:$0xf]
        %v997 = vld [vmem:[%s826 + $0x94] sm:$0xf]
        %v998 = vld [vmem:[%s826 + $0x98] sm:$0xf]
        %v999 = vld [vmem:[%s826 + $0x9c] sm:$0xf]
        %v1000 = vld [vmem:[%s826 + $0xa0] sm:$0xf]
        %v1001 = vld [vmem:[%s826 + $0xa4] sm:$0xf]
        %v1002 = vld [vmem:[%s826 + $0xa8] sm:$0xf]
        %v1003 = vld [vmem:[%s826 + $0xac] sm:$0xf]
        %v1004 = vld [vmem:[%s826 + $0xb0] sm:$0xf]
        %v1005 = vld [vmem:[%s826 + $0xb4] sm:$0xf]
        %v1006 = vld [vmem:[%s826 + $0xb8] sm:$0xf]
        %v1007 = vld [vmem:[%s826 + $0xbc] sm:$0xf]
        %v1008 = vld [vmem:[%s826 + $0xc0] sm:$0xf]
        %v1009 = vld [vmem:[%s826 + $0xc4] sm:$0xf]
        %v1010 = vld [vmem:[%s826 + $0xc8] sm:$0xf]
        %v1011 = vld [vmem:[%s826 + $0xcc] sm:$0xf]
        %v1012 = vld [vmem:[%s826 + $0xd0] sm:$0xf]
        %v1013 = vld [vmem:[%s826 + $0xd4] sm:$0xf]
        %v1014 = vld [vmem:[%s826 + $0xd8] sm:$0xf]
        %v1015 = vld [vmem:[%s826 + $0xdc] sm:$0xf]
        %v1016 = vld [vmem:[%s826 + $0xe0] sm:$0xf]
        %v1017 = vld [vmem:[%s826 + $0xe4] sm:$0xf]
        %v1018 = vld [vmem:[%s826 + $0xe8] sm:$0xf]
        %v1019 = vld [vmem:[%s826 + $0xec] sm:$0xf]
        %v1020 = vld [vmem:[%s826 + $0xf0] sm:$0xf]
        %v1021 = vld [vmem:[%s826 + $0xf4] sm:$0xf]
        %v1022 = vld [vmem:[%s826 + $0xf8] sm:$0xf]
        %v1023 = vld [vmem:[%s826 + $0xfc] sm:$0xf]
        %v1024 = vld [vmem:[%s826 + $0x100] sm:$0xf]
        %v1025 = vld [vmem:[%s826 + $0x104] sm:$0xf]
        %v1026 = vld [vmem:[%s826 + $0x108] sm:$0xf]
        %v1027 = vld [vmem:[%s826 + $0x10c] sm:$0xf]
        %v1028 = vld [vmem:[%s826 + $0x110] sm:$0xf]
        %v1029 = vld [vmem:[%s826 + $0x114] sm:$0xf]
        %v1030 = vld [vmem:[%s826 + $0x118] sm:$0xf]
        %v1031 = vld [vmem:[%s826 + $0x11c] sm:$0xf]
        %v1032 = vld [vmem:[%s826 + $0x120] sm:$0xf]
        %v1033 = vld [vmem:[%s826 + $0x124] sm:$0xf]
        %v1034 = vld [vmem:[%s826 + $0x128] sm:$0xf]
        %v1035 = vld [vmem:[%s826 + $0x12c] sm:$0xf]
        %v1036 = vld [vmem:[%s826 + $0x130] sm:$0xf]
        %v1037 = vld [vmem:[%s826 + $0x134] sm:$0xf]
        %v1038 = vld [vmem:[%s826 + $0x138] sm:$0xf]
        %v1039 = vld [vmem:[%s826 + $0x13c] sm:$0xf]
        %v1040 = vld [vmem:[%s826 + $0x140] sm:$0xf]
        %v1041 = vld [vmem:[%s826 + $0x144] sm:$0xf]
        %v1042 = vld [vmem:[%s826 + $0x148] sm:$0xf]
        %v1043 = vld [vmem:[%s826 + $0x14c] sm:$0xf]
        %v1044 = vld [vmem:[%s826 + $0x150] sm:$0xf]
        %v1045 = vld [vmem:[%s826 + $0x154] sm:$0xf]
        %v1046 = vld [vmem:[%s826 + $0x158] sm:$0xf]
        %v1047 = vld [vmem:[%s826 + $0x15c] sm:$0xf]
        %v1048 = vld [vmem:[%s826 + $0x160] sm:$0xf]
        %v1049 = vld [vmem:[%s826 + $0x164] sm:$0xf]
        %v1050 = vld [vmem:[%s826 + $0x168] sm:$0xf]
        %v1051 = vld [vmem:[%s826 + $0x16c] sm:$0xf]
        %v1052 = vld [vmem:[%s826 + $0x170] sm:$0xf]
        %v1053 = vld [vmem:[%s826 + $0x174] sm:$0xf]
        %v1054 = vld [vmem:[%s826 + $0x178] sm:$0xf]
        %v1055 = vld [vmem:[%s826 + $0x17c] sm:$0xf]
        %v1056 = vld [vmem:[%s826 + $0x180] sm:$0xf]
        %v1057 = vld [vmem:[%s826 + $0x184] sm:$0xf]
        %v1058 = vld [vmem:[%s826 + $0x188] sm:$0xf]
        %v1059 = vld [vmem:[%s826 + $0x18c] sm:$0xf]
        %v1060 = vld [vmem:[%s826 + $0x190] sm:$0xf]
        %v1061 = vld [vmem:[%s826 + $0x194] sm:$0xf]
        %v1062 = vld [vmem:[%s826 + $0x198] sm:$0xf]
        %v1063 = vld [vmem:[%s826 + $0x19c] sm:$0xf]
        %v1064 = vld [vmem:[%s826 + $0x1a0] sm:$0xf]
        %v1065 = vld [vmem:[%s826 + $0x1a4] sm:$0xf]
        %v1066 = vld [vmem:[%s826 + $0x1a8] sm:$0xf]
        %v1067 = vld [vmem:[%s826 + $0x1ac] sm:$0xf]
        %v1068 = vld [vmem:[%s826 + $0x1b0] sm:$0xf]
        %v1069 = vld [vmem:[%s826 + $0x1b4] sm:$0xf]
        %v1070 = vld [vmem:[%s826 + $0x1b8] sm:$0xf]
        %v1071 = vld [vmem:[%s826 + $0x1bc] sm:$0xf]
        %v1072 = vld [vmem:[%s826 + $0x1c0] sm:$0xf]
        %v1073 = vld [vmem:[%s826 + $0x1c4] sm:$0xf]
        %v1074 = vld [vmem:[%s826 + $0x1c8] sm:$0xf]
        %v1075 = vld [vmem:[%s826 + $0x1cc] sm:$0xf]
        %v1076 = vld [vmem:[%s826 + $0x1d0] sm:$0xf]
        %v1077 = vld [vmem:[%s826 + $0x1d4] sm:$0xf]
        %v1078 = vld [vmem:[%s826 + $0x1d8] sm:$0xf]
        %v1079 = vld [vmem:[%s826 + $0x1dc] sm:$0xf]
        %v1080 = vld [vmem:[%s826 + $0x1e0] sm:$0xf]
        %v1081 = vld [vmem:[%s826 + $0x1e4] sm:$0xf]
        %v1082 = vld [vmem:[%s826 + $0x1e8] sm:$0xf]
        %v1083 = vld [vmem:[%s826 + $0x1ec] sm:$0xf]
        %v1084 = vld [vmem:[%s826 + $0x1f0] sm:$0xf]
        %v1085 = vld [vmem:[%s826 + $0x1f4] sm:$0xf]
        %v1086 = vld [vmem:[%s826 + $0x1f8] sm:$0xf]
        %v1087 = vld [vmem:[%s826 + $0x1fc] sm:$0xf]
        %v1088 = vld [vmem:[%s826 + $0x200] sm:$0xf]
        %v1089 = vld [vmem:[%s826 + $0x204] sm:$0xf]
        %v1090 = vld [vmem:[%s826 + $0x208] sm:$0xf]
        %v1091 = vld [vmem:[%s826 + $0x20c] sm:$0xf]
        %v1092 = vld [vmem:[%s826 + $0x210] sm:$0xf]
        %v1093 = vld [vmem:[%s826 + $0x214] sm:$0xf]
        %v1094 = vld [vmem:[%s826 + $0x218] sm:$0xf]
        %v1095 = vld [vmem:[%s826 + $0x21c] sm:$0xf]
        %v1096 = vld [vmem:[%s826 + $0x220] sm:$0xf]
        %v1097 = vld [vmem:[%s826 + $0x224] sm:$0xf]
        %v1098 = vld [vmem:[%s826 + $0x228] sm:$0xf]
        %v1099 = vld [vmem:[%s826 + $0x22c] sm:$0xf]
        %v1100 = vld [vmem:[%s826 + $0x230] sm:$0xf]
        %v1101 = vld [vmem:[%s826 + $0x234] sm:$0xf]
        %v1102 = vld [vmem:[%s826 + $0x238] sm:$0xf]
        %v1103 = vld [vmem:[%s826 + $0x23c] sm:$0xf]
        %v1104 = vld [vmem:[%s826 + $0x240] sm:$0xf]
        %v1105 = vld [vmem:[%s826 + $0x244] sm:$0x1]
        %v1171 = vunpack.c.l.b16 %v895
        %v1172 = vunpack.c.h.b16 %v895
        %v1173 = vunpack.c.l.b16 %v896
        %v1174 = vunpack.c.h.b16 %v896
        %v1175 = vunpack.c.l.b16 %v897
        %v1176 = vunpack.c.h.b16 %v897
        %v1177 = vunpack.c.l.b16 %v898
        %v1178 = vunpack.c.h.b16 %v898
        %v1179 = vunpack.c.l.b16 %v899
        %v1180 = vunpack.c.h.b16 %v899
        %v1181 = vunpack.c.l.b16 %v900
        %v1182 = vunpack.c.h.b16 %v900
        %v1183 = vunpack.c.l.b16 %v901
        %v1184 = vunpack.c.h.b16 %v901
        %v1185 = vunpack.c.l.b16 %v902
        %v1186 = vunpack.c.h.b16 %v902
        %v1187 = vunpack.c.l.b16 %v903
        %v1188 = vunpack.c.h.b16 %v903
        %v1189 = vunpack.c.l.b16 %v904
        %v1190 = vunpack.c.h.b16 %v904
        %v1191 = vunpack.c.l.b16 %v905
        %v1192 = vunpack.c.h.b16 %v905
        %v1193 = vunpack.c.l.b16 %v906
        %v1194 = vunpack.c.h.b16 %v906
        %v1195 = vunpack.c.l.b16 %v907
        %v1196 = vunpack.c.h.b16 %v907
        %v1197 = vunpack.c.l.b16 %v908
        %v1198 = vunpack.c.h.b16 %v908
        %v1199 = vunpack.c.l.b16 %v909
        %v1200 = vunpack.c.h.b16 %v909
        %v1201 = vunpack.c.l.b16 %v910
        %v1202 = vunpack.c.h.b16 %v910
        %v1203 = vunpack.c.l.b16 %v911
        %v1204 = vunpack.c.h.b16 %v911
        %v1205 = vunpack.c.l.b16 %v912
        %v1206 = vunpack.c.h.b16 %v912
        %v1207 = vunpack.c.l.b16 %v913
        %v1208 = vunpack.c.h.b16 %v913
        %v1209 = vunpack.c.l.b16 %v914
        %v1210 = vunpack.c.h.b16 %v914
        %v1211 = vunpack.c.l.b16 %v915
        %v1212 = vunpack.c.h.b16 %v915
        %v1213 = vunpack.c.l.b16 %v916
        %v1214 = vunpack.c.h.b16 %v916
        %v1215 = vunpack.c.l.b16 %v917
        %v1216 = vunpack.c.h.b16 %v917
        %v1217 = vunpack.c.l.b16 %v918
        %v1218 = vunpack.c.h.b16 %v918
        %v1219 = vunpack.c.l.b16 %v919
        %v1220 = vunpack.c.h.b16 %v919
        %v1221 = vunpack.c.l.b16 %v920
        %v1222 = vunpack.c.h.b16 %v920
        %v1223 = vunpack.c.l.b16 %v921
        %v1224 = vunpack.c.h.b16 %v921
        %v1225 = vunpack.c.l.b16 %v922
        %v1226 = vunpack.c.h.b16 %v922
        %v1227 = vunpack.c.l.b16 %v923
        %v1228 = vunpack.c.h.b16 %v923
        %v1229 = vunpack.c.l.b16 %v924
        %v1230 = vunpack.c.h.b16 %v924
        %v1231 = vunpack.c.l.b16 %v925
        %v1232 = vunpack.c.h.b16 %v925
        %v1233 = vunpack.c.l.b16 %v926
        %v1234 = vunpack.c.h.b16 %v926
        %v1235 = vunpack.c.l.b16 %v927
        %v1236 = vunpack.c.h.b16 %v927
        %v1237 = vunpack.c.l.b16 %v928
        %v1238 = vunpack.c.h.b16 %v928
        %v1239 = vunpack.c.l.b16 %v929
        %v1240 = vunpack.c.h.b16 %v929
        %v1241 = vunpack.c.l.b16 %v930
        %v1242 = vunpack.c.h.b16 %v930
        %v1243 = vunpack.c.l.b16 %v931
        %v1244 = vunpack.c.h.b16 %v931
        %v1245 = vunpack.c.l.b16 %v932
        %v1246 = vunpack.c.h.b16 %v932
        %v1247 = vunpack.c.l.b16 %v933
        %v1248 = vunpack.c.h.b16 %v933
        %v1249 = vunpack.c.l.b16 %v934
        %v1250 = vunpack.c.h.b16 %v934
        %v1251 = vunpack.c.l.b16 %v935
        %v1252 = vunpack.c.h.b16 %v935
        %v1253 = vunpack.c.l.b16 %v936
        %v1254 = vunpack.c.h.b16 %v936
        %v1255 = vunpack.c.l.b16 %v937
        %v1256 = vunpack.c.h.b16 %v937
        %v1257 = vunpack.c.l.b16 %v938
        %v1258 = vunpack.c.h.b16 %v938
        %v1259 = vunpack.c.l.b16 %v939
        %v1260 = vunpack.c.h.b16 %v939
        %v1261 = vunpack.c.l.b16 %v940
        %v1262 = vunpack.c.h.b16 %v940
        %v1263 = vunpack.c.l.b16 %v941
        %v1264 = vunpack.c.h.b16 %v941
        %v1265 = vunpack.c.l.b16 %v942
        %v1266 = vunpack.c.h.b16 %v942
        %v1267 = vunpack.c.l.b16 %v943
        %v1268 = vunpack.c.h.b16 %v943
        %v1269 = vunpack.c.l.b16 %v944
        %v1270 = vunpack.c.h.b16 %v944
        %v1271 = vunpack.c.l.b16 %v945
        %v1272 = vunpack.c.h.b16 %v945
        %v1273 = vunpack.c.l.b16 %v946
        %v1274 = vunpack.c.h.b16 %v946
        %v1275 = vunpack.c.l.b16 %v947
        %v1276 = vunpack.c.h.b16 %v947
        %v1277 = vunpack.c.l.b16 %v948
        %v1278 = vunpack.c.h.b16 %v948
        %v1279 = vunpack.c.l.b16 %v949
        %v1280 = vunpack.c.h.b16 %v949
        %v1281 = vunpack.c.l.b16 %v950
        %v1282 = vunpack.c.h.b16 %v950
        %v1283 = vunpack.c.l.b16 %v951
        %v1284 = vunpack.c.h.b16 %v951
        %v1285 = vunpack.c.l.b16 %v952
        %v1286 = vunpack.c.h.b16 %v952
        %v1287 = vunpack.c.l.b16 %v953
        %v1288 = vunpack.c.h.b16 %v953
        %v1289 = vunpack.c.l.b16 %v954
        %v1290 = vunpack.c.h.b16 %v954
        %v1291 = vunpack.c.l.b16 %v955
        %v1292 = vunpack.c.h.b16 %v955
        %v1293 = vunpack.c.l.b16 %v956
        %v1294 = vunpack.c.h.b16 %v956
        %v1295 = vunpack.c.l.b16 %v957
        %v1296 = vunpack.c.h.b16 %v957
        %v1297 = vunpack.c.l.b16 %v958
        %v1298 = vunpack.c.h.b16 %v958
        %v1299 = vunpack.c.l.b16 %v959
        %v1300 = vunpack.c.h.b16 %v959
        %v1301 = vpack.c.b16 %v1181, %v1171
        %v1302 = vpack.c.b16 %v1182, %v1172
        %v1303 = vpack.c.b16 %v1183, %v1173
        %v1304 = vpack.c.b16 %v1184, %v1174
        %v1305 = vpack.c.b16 %v1185, %v1175
        %v1306 = vpack.c.b16 %v1186, %v1176
        %v1307 = vpack.c.b16 %v1187, %v1177
        %v1308 = vpack.c.b16 %v1188, %v1178
        %v1309 = vpack.c.b16 %v1189, %v1179
        %v1310 = vpack.c.b16 %v1190, %v1180
        %v1311 = vpack.c.b16 %v1201, %v1191
        %v1312 = vpack.c.b16 %v1202, %v1192
        %v1313 = vpack.c.b16 %v1203, %v1193
        %v1314 = vpack.c.b16 %v1204, %v1194
        %v1315 = vpack.c.b16 %v1205, %v1195
        %v1316 = vpack.c.b16 %v1206, %v1196
        %v1317 = vpack.c.b16 %v1207, %v1197
        %v1318 = vpack.c.b16 %v1208, %v1198
        %v1319 = vpack.c.b16 %v1209, %v1199
        %v1320 = vpack.c.b16 %v1210, %v1200
        %v1321 = vpack.c.b16 %v1221, %v1211
        %v1322 = vpack.c.b16 %v1222, %v1212
        %v1323 = vpack.c.b16 %v1223, %v1213
        %v1324 = vpack.c.b16 %v1224, %v1214
        %v1325 = vpack.c.b16 %v1225, %v1215
        %v1326 = vpack.c.b16 %v1226, %v1216
        %v1327 = vpack.c.b16 %v1227, %v1217
        %v1328 = vpack.c.b16 %v1228, %v1218
        %v1329 = vpack.c.b16 %v1229, %v1219
        %v1330 = vpack.c.b16 %v1230, %v1220
        %v1331 = vpack.c.b16 %v1241, %v1231
        %v1332 = vpack.c.b16 %v1242, %v1232
        %v1333 = vpack.c.b16 %v1243, %v1233
        %v1334 = vpack.c.b16 %v1244, %v1234
        %v1335 = vpack.c.b16 %v1245, %v1235
        %v1336 = vpack.c.b16 %v1246, %v1236
        %v1337 = vpack.c.b16 %v1247, %v1237
        %v1338 = vpack.c.b16 %v1248, %v1238
        %v1339 = vpack.c.b16 %v1249, %v1239
        %v1340 = vpack.c.b16 %v1250, %v1240
        %v1341 = vpack.c.b16 %v1261, %v1251
        %v1342 = vpack.c.b16 %v1262, %v1252
        %v1343 = vpack.c.b16 %v1263, %v1253
        %v1344 = vpack.c.b16 %v1264, %v1254
        %v1345 = vpack.c.b16 %v1265, %v1255
        %v1346 = vpack.c.b16 %v1266, %v1256
        %v1347 = vpack.c.b16 %v1267, %v1257
        %v1348 = vpack.c.b16 %v1268, %v1258
        %v1349 = vpack.c.b16 %v1269, %v1259
        %v1350 = vpack.c.b16 %v1270, %v1260
        %v1351 = vpack.c.b16 %v1281, %v1271
        %v1352 = vpack.c.b16 %v1282, %v1272
        %v1353 = vpack.c.b16 %v1283, %v1273
        %v1354 = vpack.c.b16 %v1284, %v1274
        %v1355 = vpack.c.b16 %v1285, %v1275
        %v1356 = vpack.c.b16 %v1286, %v1276
        %v1357 = vpack.c.b16 %v1287, %v1277
        %v1358 = vpack.c.b16 %v1288, %v1278
        %v1359 = vpack.c.b16 %v1289, %v1279
        %v1360 = vpack.c.b16 %v1290, %v1280
        %v1361 = vpack.c.b16 %v1291, %v1291
        %v1362 = vpack.c.b16 %v1292, %v1292
        %v1363 = vpack.c.b16 %v1293, %v1293
        %v1364 = vpack.c.b16 %v1294, %v1294
        %v1365 = vpack.c.b16 %v1295, %v1295
        %v1366 = vpack.c.b16 %v1296, %v1296
        %v1367 = vpack.c.b16 %v1297, %v1297
        %v1368 = vpack.c.b16 %v1298, %v1298
        %v1369 = vpack.c.b16 %v1299, %v1299
        %v1370 = vpack.c.b16 %v1300, %v1300
        %v1580 = vunpack.c.l.b16 %v960
        %v1581 = vunpack.c.l.b16 %v961
        %v1582 = vunpack.c.l.b16 %v962
        %v1583 = vunpack.c.l.b16 %v963
        %v1584 = vunpack.c.l.b16 %v964
        %v1585 = vunpack.c.l.b16 %v965
        %v1586 = vunpack.c.l.b16 %v966
        %v1587 = vunpack.c.l.b16 %v967
        %v1588 = vunpack.c.l.b16 %v968
        %v1589 = vunpack.c.l.b16 %v969
        %v1590 = vunpack.c.l.b16 %v970
        %v1591 = vunpack.c.l.b16 %v971
        %v1592 = vunpack.c.l.b16 %v972
        %v1593 = vunpack.c.l.b16 %v973
        %v1594 = vunpack.c.l.b16 %v974
        %v1595 = vunpack.c.l.b16 %v975
        %v1596 = vunpack.c.l.b16 %v976
        %v1597 = vunpack.c.l.b16 %v977
        %v1598 = vunpack.c.l.b16 %v978
        %v1599 = vunpack.c.l.b16 %v979
        %v1600 = vunpack.c.l.b16 %v980
        %v1601 = vunpack.c.l.b16 %v981
        %v1602 = vunpack.c.l.b16 %v982
        %v1603 = vunpack.c.l.b16 %v983
        %v1604 = vunpack.c.l.b16 %v984
        %v1605 = vunpack.c.l.b16 %v985
        %v1606 = vunpack.c.l.b16 %v986
        %v1607 = vunpack.c.l.b16 %v987
        %v1608 = vunpack.c.l.b16 %v988
        %v1609 = vunpack.c.l.b16 %v989
        %v1610 = vunpack.c.l.b16 %v990
        %v1611 = vunpack.c.l.b16 %v991
        %v1612 = vunpack.c.l.b16 %v992
        %v1613 = vunpack.c.l.b16 %v993
        %v1614 = vunpack.c.l.b16 %v994
        %v1615 = vunpack.c.l.b16 %v995
        %v1616 = vunpack.c.l.b16 %v996
        %v1617 = vunpack.c.l.b16 %v997
        %v1618 = vunpack.c.l.b16 %v998
        %v1619 = vunpack.c.l.b16 %v999
        %v1620 = vunpack.c.l.b16 %v1000
        %v1621 = vunpack.c.l.b16 %v1001
        %v1622 = vunpack.c.l.b16 %v1002
        %v1623 = vunpack.c.l.b16 %v1003
        %v1624 = vunpack.c.l.b16 %v1004
        %v1625 = vunpack.c.l.b16 %v1005
        %v1626 = vunpack.c.l.b16 %v1006
        %v1627 = vunpack.c.l.b16 %v1007
        %v1628 = vunpack.c.l.b16 %v1008
        %v1629 = vunpack.c.l.b16 %v1009
        %v1630 = vunpack.c.l.b16 %v1010
        %v1631 = vunpack.c.l.b16 %v1011
        %v1632 = vunpack.c.l.b16 %v1012
        %v1633 = vunpack.c.l.b16 %v1013
        %v1634 = vunpack.c.l.b16 %v1014
        %v1635 = vunpack.c.l.b16 %v1015
        %v1636 = vunpack.c.l.b16 %v1016
        %v1637 = vunpack.c.l.b16 %v1017
        %v1638 = vunpack.c.l.b16 %v1018
        %v1639 = vunpack.c.l.b16 %v1019
        %v1640 = vunpack.c.l.b16 %v1020
        %v1641 = vunpack.c.l.b16 %v1021
        %v1642 = vunpack.c.l.b16 %v1022
        %v1643 = vunpack.c.l.b16 %v1023
        %v1644 = vunpack.c.l.b16 %v1024
        %v1645 = vunpack.c.l.b16 %v1025
        %v1646 = vunpack.c.l.b16 %v1026
        %v1647 = vunpack.c.l.b16 %v1027
        %v1648 = vunpack.c.l.b16 %v1028
        %v1649 = vunpack.c.l.b16 %v1029
        %v1650 = vunpack.c.l.b16 %v1030
        %v1651 = vunpack.c.l.b16 %v1031
        %v1652 = vunpack.c.l.b16 %v1032
        %v1653 = vunpack.c.l.b16 %v1033
        %v1654 = vunpack.c.l.b16 %v1034
        %v1655 = vunpack.c.l.b16 %v1035
        %v1656 = vunpack.c.l.b16 %v1036
        %v1657 = vunpack.c.l.b16 %v1037
        %v1658 = vunpack.c.l.b16 %v1038
        %v1659 = vunpack.c.l.b16 %v1039
        %v1660 = vunpack.c.l.b16 %v1040
        %v1661 = vunpack.c.l.b16 %v1041
        %v1662 = vunpack.c.l.b16 %v1042
        %v1663 = vunpack.c.l.b16 %v1043
        %v1664 = vunpack.c.l.b16 %v1044
        %v1665 = vunpack.c.l.b16 %v1045
        %v1666 = vunpack.c.l.b16 %v1046
        %v1667 = vunpack.c.l.b16 %v1047
        %v1668 = vunpack.c.l.b16 %v1048
        %v1669 = vunpack.c.l.b16 %v1049
        %v1670 = vunpack.c.l.b16 %v1050
        %v1671 = vunpack.c.l.b16 %v1051
        %v1672 = vunpack.c.l.b16 %v1052
        %v1673 = vunpack.c.l.b16 %v1053
        %v1674 = vunpack.c.l.b16 %v1054
        %v1675 = vunpack.c.l.b16 %v1055
        %v1676 = vunpack.c.l.b16 %v1056
        %v1677 = vunpack.c.l.b16 %v1057
        %v1678 = vunpack.c.l.b16 %v1058
        %v1679 = vunpack.c.l.b16 %v1059
        %v1680 = vunpack.c.l.b16 %v1060
        %v1681 = vunpack.c.l.b16 %v1061
        %v1682 = vunpack.c.l.b16 %v1062
        %v1683 = vunpack.c.l.b16 %v1063
        %v1684 = vunpack.c.l.b16 %v1064
        %v1685 = vunpack.c.l.b16 %v1065
        %v1686 = vunpack.c.l.b16 %v1066
        %v1687 = vunpack.c.l.b16 %v1067
        %v1688 = vunpack.c.l.b16 %v1068
        %v1689 = vunpack.c.l.b16 %v1069
        %v1690 = vunpack.c.l.b16 %v1070
        %v1691 = vunpack.c.l.b16 %v1071
        %v1692 = vunpack.c.l.b16 %v1072
        %v1693 = vunpack.c.l.b16 %v1073
        %v1694 = vunpack.c.l.b16 %v1074
        %v1695 = vunpack.c.l.b16 %v1075
        %v1696 = vunpack.c.l.b16 %v1076
        %v1697 = vunpack.c.l.b16 %v1077
        %v1698 = vunpack.c.l.b16 %v1078
        %v1699 = vunpack.c.l.b16 %v1079
        %v1700 = vunpack.c.l.b16 %v1080
        %v1701 = vunpack.c.l.b16 %v1081
        %v1702 = vunpack.c.l.b16 %v1082
        %v1703 = vunpack.c.l.b16 %v1083
        %v1704 = vunpack.c.l.b16 %v1084
        %v1705 = vunpack.c.l.b16 %v1085
        %v1706 = vunpack.c.l.b16 %v1086
        %v1707 = vunpack.c.l.b16 %v1087
        %v1708 = vunpack.c.l.b16 %v1088
        %v1709 = vunpack.c.l.b16 %v1089
        %v1710 = vunpack.c.l.b16 %v1090
        %v1711 = vunpack.c.l.b16 %v1091
        %v1712 = vunpack.c.l.b16 %v1092
        %v1713 = vunpack.c.l.b16 %v1093
        %v1714 = vunpack.c.l.b16 %v1094
        %v1715 = vunpack.c.l.b16 %v1095
        %v1716 = vunpack.c.l.b16 %v1096
        %v1717 = vunpack.c.l.b16 %v1097
        %v1718 = vunpack.c.l.b16 %v1098
        %v1719 = vunpack.c.l.b16 %v1099
        %v1720 = vunpack.c.l.b16 %v1100
        %v1721 = vunpack.c.l.b16 %v1101
        %v1722 = vunpack.c.l.b16 %v1102
        %v1723 = vunpack.c.l.b16 %v1103
        %v1724 = vunpack.c.l.b16 %v1104
        %v1725 = vunpack.c.l.b16 %v1105
        %v1726 = vpack.c.b16 %v1581, %v1580
        %v1727 = vpack.c.b16 %v1583, %v1582
        %v1728 = vpack.c.b16 %v1585, %v1584
        %v1729 = vpack.c.b16 %v1587, %v1586
        %v1730 = vpack.c.b16 %v1589, %v1588
        %v1731 = vpack.c.b16 %v1591, %v1590
        %v1732 = vpack.c.b16 %v1593, %v1592
        %v1733 = vpack.c.b16 %v1595, %v1594
        %v1734 = vpack.c.b16 %v1597, %v1596
        %v1735 = vpack.c.b16 %v1599, %v1598
        %v1736 = vpack.c.b16 %v1601, %v1600
        %v1737 = vpack.c.b16 %v1603, %v1602
        %v1738 = vpack.c.b16 %v1605, %v1604
        %v1739 = vpack.c.b16 %v1607, %v1606
        %v1740 = vpack.c.b16 %v1609, %v1608
        %v1741 = vpack.c.b16 %v1611, %v1610
        %v1742 = vpack.c.b16 %v1613, %v1612
        %v1743 = vpack.c.b16 %v1615, %v1614
        %v1744 = vpack.c.b16 %v1617, %v1616
        %v1745 = vpack.c.b16 %v1619, %v1618
        %v1746 = vpack.c.b16 %v1621, %v1620
        %v1747 = vpack.c.b16 %v1623, %v1622
        %v1748 = vpack.c.b16 %v1625, %v1624
        %v1749 = vpack.c.b16 %v1627, %v1626
        %v1750 = vpack.c.b16 %v1629, %v1628
        %v1751 = vpack.c.b16 %v1631, %v1630
        %v1752 = vpack.c.b16 %v1633, %v1632
        %v1753 = vpack.c.b16 %v1635, %v1634
        %v1754 = vpack.c.b16 %v1637, %v1636
        %v1755 = vpack.c.b16 %v1639, %v1638
        %v1756 = vpack.c.b16 %v1641, %v1640
        %v1757 = vpack.c.b16 %v1643, %v1642
        %v1758 = vpack.c.b16 %v1645, %v1644
        %v1759 = vpack.c.b16 %v1647, %v1646
        %v1760 = vpack.c.b16 %v1649, %v1648
        %v1761 = vpack.c.b16 %v1651, %v1650
        %v1762 = vpack.c.b16 %v1653, %v1652
        %v1763 = vpack.c.b16 %v1655, %v1654
        %v1764 = vpack.c.b16 %v1657, %v1656
        %v1765 = vpack.c.b16 %v1659, %v1658
        %v1766 = vpack.c.b16 %v1661, %v1660
        %v1767 = vpack.c.b16 %v1663, %v1662
        %v1768 = vpack.c.b16 %v1665, %v1664
        %v1769 = vpack.c.b16 %v1667, %v1666
        %v1770 = vpack.c.b16 %v1669, %v1668
        %v1771 = vpack.c.b16 %v1671, %v1670
        %v1772 = vpack.c.b16 %v1673, %v1672
        %v1773 = vpack.c.b16 %v1675, %v1674
        %v1774 = vpack.c.b16 %v1677, %v1676
        %v1775 = vpack.c.b16 %v1679, %v1678
        %v1776 = vpack.c.b16 %v1681, %v1680
        %v1777 = vpack.c.b16 %v1683, %v1682
        %v1778 = vpack.c.b16 %v1685, %v1684
        %v1779 = vpack.c.b16 %v1687, %v1686
        %v1780 = vpack.c.b16 %v1689, %v1688
        %v1781 = vpack.c.b16 %v1691, %v1690
        %v1782 = vpack.c.b16 %v1693, %v1692
        %v1783 = vpack.c.b16 %v1695, %v1694
        %v1784 = vpack.c.b16 %v1697, %v1696
        %v1785 = vpack.c.b16 %v1699, %v1698
        %v1786 = vpack.c.b16 %v1701, %v1700
        %v1787 = vpack.c.b16 %v1703, %v1702
        %v1788 = vpack.c.b16 %v1705, %v1704
        %v1789 = vpack.c.b16 %v1707, %v1706
        %v1790 = vpack.c.b16 %v1709, %v1708
        %v1791 = vpack.c.b16 %v1711, %v1710
        %v1792 = vpack.c.b16 %v1713, %v1712
        %v1793 = vpack.c.b16 %v1715, %v1714
        %v1794 = vpack.c.b16 %v1717, %v1716
        %v1795 = vpack.c.b16 %v1719, %v1718
        %v1796 = vpack.c.b16 %v1721, %v1720
        %v1797 = vpack.c.b16 %v1723, %v1722
        %v1798 = vpack.c.b16 %v1725, %v1724
        %vm1871 = vcmask 72704
        %v1873 = vsel %vm1871, %v1310, 0
        %v1876 = vsel %vm1871, %v1320, 0
        %v1879 = vsel %vm1871, %v1330, 0
        %v1882 = vsel %vm1871, %v1340, 0
        %v1885 = vsel %vm1871, %v1350, 0
        %v1888 = vsel %vm1871, %v1360, 0
        %v1891 = vsel %vm1871, %v1370, 0
        %vm1893 = vcmask 1043456
        %vm1894 = vcmask 1044480
        %v1895 = vsel %vm1893, 4294967295, 65535
        %v1896 = vsel %vm1894, %v1895, 0
        %v1898 = vand.u32 %v1798, %v1896
        %1900 = vmatprep.subr.bf16.mxu0 0
        %1901 = vmatpush1.bf16.msra.mxu0 %v1726
        %1902 = vmatprep.subr.bf16.mxu0 0
        %1903 = vmatpush1.bf16.msra.mxu0 %v1727
        %1904 = vmatprep.subr.bf16.mxu0 0
        %1905 = vmatpush1.bf16.msra.mxu0 %v1728
        %1906 = vmatprep.subr.bf16.mxu0 0
        %1907 = vmatpush1.bf16.msra.mxu0 %v1729
        %1908 = vmatprep.subr.bf16.mxu0 0
        %1909 = vmatpush1.bf16.msra.mxu0 %v1730
        %1910 = vmatprep.subr.bf16.mxu0 0
        %1911 = vmatpush1.bf16.msra.mxu0 %v1731
        %1912 = vmatprep.subr.bf16.mxu0 0
        %1913 = vmatpush1.bf16.msra.mxu0 %v1732
        %1914 = vmatprep.subr.bf16.mxu0 0
        %1915 = vmatpush1.bf16.msra.mxu0 %v1733
        %1916 = vmatprep.subr.bf16.mxu0 0
        %1917 = vmatpush1.bf16.msra.mxu0 %v1734
        %1918 = vmatprep.subr.bf16.mxu0 0
        %1919 = vmatpush1.bf16.msra.mxu0 %v1735
        %1920 = vmatprep.subr.bf16.mxu0 0
        %1921 = vmatpush1.bf16.msra.mxu0 %v1736
        %1922 = vmatprep.subr.bf16.mxu0 0
        %1923 = vmatpush1.bf16.msra.mxu0 %v1737
        %1924 = vmatprep.subr.bf16.mxu0 0
        %1925 = vmatpush1.bf16.msra.mxu0 %v1738
        %1926 = vmatprep.subr.bf16.mxu0 0
        %1927 = vmatpush1.bf16.msra.mxu0 %v1739
        %1928 = vmatprep.subr.bf16.mxu0 0
        %1929 = vmatpush1.bf16.msra.mxu0 %v1740
        %1930 = vmatprep.subr.bf16.mxu0 0
        %1931 = vmatpush1.bf16.msra.mxu0 %v1741
        %1932 = vmatprep.mubr.bf16.mxu0 %v1302
        %1933 = vmatmul.mubr.bf16.gmra.mrb[0].mxu0 %v1301
        %v1934 = vpop.f32.mrb[0].mxu0
        %v1935 = vadd.f32 0.0, %v1934
        %v1936 = vpop.f32.mrb[0].mxu0
        %v1937 = vpop.f32.mrb[0].mxu0
        %v1938 = vadd.f32 0.0, %v1937
        %v1939 = vpop.f32.mrb[0].mxu0
        %1940 = vmatprep.mubr.bf16.mxu0 %v1312
        %1941 = vmatmul.mubr.bf16.gmra.mrb[0].mxu0 %v1311
        %v1942 = vpop.f32.mrb[0].mxu0
        %v1943 = vadd.f32 0.0, %v1942
        %v1944 = vpop.f32.mrb[0].mxu0
        %v1945 = vpop.f32.mrb[0].mxu0
        %v1946 = vadd.f32 0.0, %v1945
        %v1947 = vpop.f32.mrb[0].mxu0
        %1948 = vmatprep.mubr.bf16.mxu0 %v1322
        %1949 = vmatmul.mubr.bf16.gmra.mrb[0].mxu0 %v1321
        %v1950 = vpop.f32.mrb[0].mxu0
        %v1951 = vadd.f32 0.0, %v1950
        %v1952 = vpop.f32.mrb[0].mxu0
        %v1953 = vpop.f32.mrb[0].mxu0
        %v1954 = vadd.f32 0.0, %v1953
        %v1955 = vpop.f32.mrb[0].mxu0
        %1956 = vmatprep.mubr.bf16.mxu0 %v1332
        %1957 = vmatmul.mubr.bf16.gmra.mrb[0].mxu0 %v1331
        %v1958 = vpop.f32.mrb[0].mxu0
        %v1959 = vadd.f32 0.0, %v1958
        %v1960 = vpop.f32.mrb[0].mxu0
        %v1961 = vpop.f32.mrb[0].mxu0
        %v1962 = vadd.f32 0.0, %v1961
        %v1963 = vpop.f32.mrb[0].mxu0
        %1964 = vmatprep.mubr.bf16.mxu0 %v1342
        %1965 = vmatmul.mubr.bf16.gmra.mrb[0].mxu0 %v1341
        %v1966 = vpop.f32.mrb[0].mxu0
        %v1967 = vadd.f32 0.0, %v1966
        %v1968 = vpop.f32.mrb[0].mxu0
        %v1969 = vpop.f32.mrb[0].mxu0
        %v1970 = vadd.f32 0.0, %v1969
        %v1971 = vpop.f32.mrb[0].mxu0
        %1972 = vmatprep.mubr.bf16.mxu0 %v1352
        %1973 = vmatmul.mubr.bf16.gmra.mrb[0].mxu0 %v1351
        %v1974 = vpop.f32.mrb[0].mxu0
        %v1975 = vadd.f32 0.0, %v1974
        %v1976 = vpop.f32.mrb[0].mxu0
        %v1977 = vpop.f32.mrb[0].mxu0
        %v1978 = vadd.f32 0.0, %v1977
        %v1979 = vpop.f32.mrb[0].mxu0
        %1980 = vmatprep.mubr.bf16.mxu0 %v1362
        %1981 = vmatmul.mubr.bf16.gmra.mrb[0].mxu0 %v1361
        %v1982 = vpop.f32.mrb[0].mxu0
        %v1983 = vadd.f32 0.0, %v1982
        %v1984 = vpop.f32.mrb[0].mxu0
        %v1985 = vpop.f32.mrb[0].mxu0
        %v1986 = vpop.f32.mrb[0].mxu0
        %1987 = vdwg.mxu0
        %1988 = vmatprep.subr.bf16.mxu0 0
        %1989 = vmatpush1.bf16.msra.mxu0 %v1742
        %1990 = vmatprep.subr.bf16.mxu0 0
        %1991 = vmatpush1.bf16.msra.mxu0 %v1743
        %1992 = vmatprep.subr.bf16.mxu0 0
        %1993 = vmatpush1.bf16.msra.mxu0 %v1744
        %1994 = vmatprep.subr.bf16.mxu0 0
        %1995 = vmatpush1.bf16.msra.mxu0 %v1745
        %1996 = vmatprep.subr.bf16.mxu0 0
        %1997 = vmatpush1.bf16.msra.mxu0 %v1746
        %1998 = vmatprep.subr.bf16.mxu0 0
        %1999 = vmatpush1.bf16.msra.mxu0 %v1747
        %2000 = vmatprep.subr.bf16.mxu0 0
        %2001 = vmatpush1.bf16.msra.mxu0 %v1748
        %2002 = vmatprep.subr.bf16.mxu0 0
        %2003 = vmatpush1.bf16.msra.mxu0 %v1749
        %2004 = vmatprep.subr.bf16.mxu0 0
        %2005 = vmatpush1.bf16.msra.mxu0 %v1750
        %2006 = vmatprep.subr.bf16.mxu0 0
        %2007 = vmatpush1.bf16.msra.mxu0 %v1751
        %2008 = vmatprep.subr.bf16.mxu0 0
        %2009 = vmatpush1.bf16.msra.mxu0 %v1752
        %2010 = vmatprep.subr.bf16.mxu0 0
        %2011 = vmatpush1.bf16.msra.mxu0 %v1753
        %2012 = vmatprep.subr.bf16.mxu0 0
        %2013 = vmatpush1.bf16.msra.mxu0 %v1754
        %2014 = vmatprep.subr.bf16.mxu0 0
        %2015 = vmatpush1.bf16.msra.mxu0 %v1755
        %2016 = vmatprep.subr.bf16.mxu0 0
        %2017 = vmatpush1.bf16.msra.mxu0 %v1756
        %2018 = vmatprep.subr.bf16.mxu0 0
        %2019 = vmatpush1.bf16.msra.mxu0 %v1757
        %2020 = vmatprep.mubr.bf16.mxu0 %v1304
        %2021 = vmatmul.mubr.bf16.gmra.mrb[0].mxu0 %v1303
        %v2022 = vpop.f32.mrb[0].mxu0
        %v2023 = vadd.f32 %v1935, %v2022
        %v2024 = vpop.f32.mrb[0].mxu0
        %v2025 = vpop.f32.mrb[0].mxu0
        %v2026 = vadd.f32 %v1938, %v2025
        %v2027 = vpop.f32.mrb[0].mxu0
        %2028 = vmatprep.mubr.bf16.mxu0 %v1314
        %2029 = vmatmul.mubr.bf16.gmra.mrb[0].mxu0 %v1313
        %v2030 = vpop.f32.mrb[0].mxu0
        %v2031 = vadd.f32 %v1943, %v2030
        %v2032 = vpop.f32.mrb[0].mxu0
        %v2033 = vpop.f32.mrb[0].mxu0
        %v2034 = vadd.f32 %v1946, %v2033
        %v2035 = vpop.f32.mrb[0].mxu0
        %2036 = vmatprep.mubr.bf16.mxu0 %v1324
        %2037 = vmatmul.mubr.bf16.gmra.mrb[0].mxu0 %v1323
        %v2038 = vpop.f32.mrb[0].mxu0
        %v2039 = vadd.f32 %v1951, %v2038
        %v2040 = vpop.f32.mrb[0].mxu0
        %v2041 = vpop.f32.mrb[0].mxu0
        %v2042 = vadd.f32 %v1954, %v2041
        %v2043 = vpop.f32.mrb[0].mxu0
        %2044 = vmatprep.mubr.bf16.mxu0 %v1334
        %2045 = vmatmul.mubr.bf16.gmra.mrb[0].mxu0 %v1333
        %v2046 = vpop.f32.mrb[0].mxu0
        %v2047 = vadd.f32 %v1959, %v2046
        %v2048 = vpop.f32.mrb[0].mxu0
        %v2049 = vpop.f32.mrb[0].mxu0
        %v2050 = vadd.f32 %v1962, %v2049
        %v2051 = vpop.f32.mrb[0].mxu0
        %2052 = vmatprep.mubr.bf16.mxu0 %v1344
        %2053 = vmatmul.mubr.bf16.gmra.mrb[0].mxu0 %v1343
        %v2054 = vpop.f32.mrb[0].mxu0
        %v2055 = vadd.f32 %v1967, %v2054
        %v2056 = vpop.f32.mrb[0].mxu0
        %v2057 = vpop.f32.mrb[0].mxu0
        %v2058 = vadd.f32 %v1970, %v2057
        %v2059 = vpop.f32.mrb[0].mxu0
        %2060 = vmatprep.mubr.bf16.mxu0 %v1354
        %2061 = vmatmul.mubr.bf16.gmra.mrb[0].mxu0 %v1353
        %v2062 = vpop.f32.mrb[0].mxu0
        %v2063 = vadd.f32 %v1975, %v2062
        %v2064 = vpop.f32.mrb[0].mxu0
        %v2065 = vpop.f32.mrb[0].mxu0
        %v2066 = vadd.f32 %v1978, %v2065
        %v2067 = vpop.f32.mrb[0].mxu0
        %2068 = vmatprep.mubr.bf16.mxu0 %v1364
        %2069 = vmatmul.mubr.bf16.gmra.mrb[0].mxu0 %v1363
        %v2070 = vpop.f32.mrb[0].mxu0
        %v2071 = vadd.f32 %v1983, %v2070
        %v2072 = vpop.f32.mrb[0].mxu0
        %v2073 = vpop.f32.mrb[0].mxu0
        %v2074 = vpop.f32.mrb[0].mxu0
        %2075 = vdwg.mxu0
        %2076 = vmatprep.subr.bf16.mxu0 0
        %2077 = vmatpush1.bf16.msra.mxu0 %v1758
        %2078 = vmatprep.subr.bf16.mxu0 0
        %2079 = vmatpush1.bf16.msra.mxu0 %v1759
        %2080 = vmatprep.subr.bf16.mxu0 0
        %2081 = vmatpush1.bf16.msra.mxu0 %v1760
        %2082 = vmatprep.subr.bf16.mxu0 0
        %2083 = vmatpush1.bf16.msra.mxu0 %v1761
        %2084 = vmatprep.subr.bf16.mxu0 0
        %2085 = vmatpush1.bf16.msra.mxu0 %v1762
        %2086 = vmatprep.subr.bf16.mxu0 0
        %2087 = vmatpush1.bf16.msra.mxu0 %v1763
        %2088 = vmatprep.subr.bf16.mxu0 0
        %2089 = vmatpush1.bf16.msra.mxu0 %v1764
        %2090 = vmatprep.subr.bf16.mxu0 0
        %2091 = vmatpush1.bf16.msra.mxu0 %v1765
        %2092 = vmatprep.subr.bf16.mxu0 0
        %2093 = vmatpush1.bf16.msra.mxu0 %v1766
        %2094 = vmatprep.subr.bf16.mxu0 0
        %2095 = vmatpush1.bf16.msra.mxu0 %v1767
        %2096 = vmatprep.subr.bf16.mxu0 0
        %2097 = vmatpush1.bf16.msra.mxu0 %v1768
        %2098 = vmatprep.subr.bf16.mxu0 0
        %2099 = vmatpush1.bf16.msra.mxu0 %v1769
        %2100 = vmatprep.subr.bf16.mxu0 0
        %2101 = vmatpush1.bf16.msra.mxu0 %v1770
        %2102 = vmatprep.subr.bf16.mxu0 0
        %2103 = vmatpush1.bf16.msra.mxu0 %v1771
        %2104 = vmatprep.subr.bf16.mxu0 0
        %2105 = vmatpush1.bf16.msra.mxu0 %v1772
        %2106 = vmatprep.subr.bf16.mxu0 0
        %2107 = vmatpush1.bf16.msra.mxu0 %v1773
        %2108 = vmatprep.mubr.bf16.mxu0 %v1306
        %2109 = vmatmul.mubr.bf16.gmra.mrb[0].mxu0 %v1305
        %v2110 = vpop.f32.mrb[0].mxu0
        %v2111 = vadd.f32 %v2023, %v2110
        %v2112 = vpop.f32.mrb[0].mxu0
        %v2113 = vpop.f32.mrb[0].mxu0
        %v2114 = vadd.f32 %v2026, %v2113
        %v2115 = vpop.f32.mrb[0].mxu0
        %2116 = vmatprep.mubr.bf16.mxu0 %v1316
        %2117 = vmatmul.mubr.bf16.gmra.mrb[0].mxu0 %v1315
        %v2118 = vpop.f32.mrb[0].mxu0
        %v2119 = vadd.f32 %v2031, %v2118
        %v2120 = vpop.f32.mrb[0].mxu0
        %v2121 = vpop.f32.mrb[0].mxu0
        %v2122 = vadd.f32 %v2034, %v2121
        %v2123 = vpop.f32.mrb[0].mxu0
        %2124 = vmatprep.mubr.bf16.mxu0 %v1326
        %2125 = vmatmul.mubr.bf16.gmra.mrb[0].mxu0 %v1325
        %v2126 = vpop.f32.mrb[0].mxu0
        %v2127 = vadd.f32 %v2039, %v2126
        %v2128 = vpop.f32.mrb[0].mxu0
        %v2129 = vpop.f32.mrb[0].mxu0
        %v2130 = vadd.f32 %v2042, %v2129
        %v2131 = vpop.f32.mrb[0].mxu0
        %2132 = vmatprep.mubr.bf16.mxu0 %v1336
        %2133 = vmatmul.mubr.bf16.gmra.mrb[0].mxu0 %v1335
        %v2134 = vpop.f32.mrb[0].mxu0
        %v2135 = vadd.f32 %v2047, %v2134
        %v2136 = vpop.f32.mrb[0].mxu0
        %v2137 = vpop.f32.mrb[0].mxu0
        %v2138 = vadd.f32 %v2050, %v2137
        %v2139 = vpop.f32.mrb[0].mxu0
        %2140 = vmatprep.mubr.bf16.mxu0 %v1346
        %2141 = vmatmul.mubr.bf16.gmra.mrb[0].mxu0 %v1345
        %v2142 = vpop.f32.mrb[0].mxu0
        %v2143 = vadd.f32 %v2055, %v2142
        %v2144 = vpop.f32.mrb[0].mxu0
        %v2145 = vpop.f32.mrb[0].mxu0
        %v2146 = vadd.f32 %v2058, %v2145
        %v2147 = vpop.f32.mrb[0].mxu0
        %2148 = vmatprep.mubr.bf16.mxu0 %v1356
        %2149 = vmatmul.mubr.bf16.gmra.mrb[0].mxu0 %v1355
        %v2150 = vpop.f32.mrb[0].mxu0
        %v2151 = vadd.f32 %v2063, %v2150
        %v2152 = vpop.f32.mrb[0].mxu0
        %v2153 = vpop.f32.mrb[0].mxu0
        %v2154 = vadd.f32 %v2066, %v2153
        %v2155 = vpop.f32.mrb[0].mxu0
        %2156 = vmatprep.mubr.bf16.mxu0 %v1366
        %2157 = vmatmul.mubr.bf16.gmra.mrb[0].mxu0 %v1365
        %v2158 = vpop.f32.mrb[0].mxu0
        %v2159 = vadd.f32 %v2071, %v2158
        %v2160 = vpop.f32.mrb[0].mxu0
        %v2161 = vpop.f32.mrb[0].mxu0
        %v2162 = vpop.f32.mrb[0].mxu0
        %2163 = vdwg.mxu0
        %2164 = vmatprep.subr.bf16.mxu0 0
        %2165 = vmatpush1.bf16.msra.mxu0 %v1774
        %2166 = vmatprep.subr.bf16.mxu0 0
        %2167 = vmatpush1.bf16.msra.mxu0 %v1775
        %2168 = vmatprep.subr.bf16.mxu0 0
        %2169 = vmatpush1.bf16.msra.mxu0 %v1776
        %2170 = vmatprep.subr.bf16.mxu0 0
        %2171 = vmatpush1.bf16.msra.mxu0 %v1777
        %2172 = vmatprep.subr.bf16.mxu0 0
        %2173 = vmatpush1.bf16.msra.mxu0 %v1778
        %2174 = vmatprep.subr.bf16.mxu0 0
        %2175 = vmatpush1.bf16.msra.mxu0 %v1779
        %2176 = vmatprep.subr.bf16.mxu0 0
        %2177 = vmatpush1.bf16.msra.mxu0 %v1780
        %2178 = vmatprep.subr.bf16.mxu0 0
        %2179 = vmatpush1.bf16.msra.mxu0 %v1781
        %2180 = vmatprep.subr.bf16.mxu0 0
        %2181 = vmatpush1.bf16.msra.mxu0 %v1782
        %2182 = vmatprep.subr.bf16.mxu0 0
        %2183 = vmatpush1.bf16.msra.mxu0 %v1783
        %2184 = vmatprep.subr.bf16.mxu0 0
        %2185 = vmatpush1.bf16.msra.mxu0 %v1784
        %2186 = vmatprep.subr.bf16.mxu0 0
        %2187 = vmatpush1.bf16.msra.mxu0 %v1785
        %2188 = vmatprep.subr.bf16.mxu0 0
        %2189 = vmatpush1.bf16.msra.mxu0 %v1786
        %2190 = vmatprep.subr.bf16.mxu0 0
        %2191 = vmatpush1.bf16.msra.mxu0 %v1787
        %2192 = vmatprep.subr.bf16.mxu0 0
        %2193 = vmatpush1.bf16.msra.mxu0 %v1788
        %2194 = vmatprep.subr.bf16.mxu0 0
        %2195 = vmatpush1.bf16.msra.mxu0 %v1789
        %2196 = vmatprep.mubr.bf16.mxu0 %v1308
        %2197 = vmatmul.mubr.bf16.gmra.mrb[0].mxu0 %v1307
        %v2198 = vpop.f32.mrb[0].mxu0
        %v2199 = vadd.f32 %v2111, %v2198
        %v2200 = vpop.f32.mrb[0].mxu0
        %v2201 = vpop.f32.mrb[0].mxu0
        %v2202 = vadd.f32 %v2114, %v2201
        %v2203 = vpop.f32.mrb[0].mxu0
        %2204 = vmatprep.mubr.bf16.mxu0 %v1318
        %2205 = vmatmul.mubr.bf16.gmra.mrb[0].mxu0 %v1317
        %v2206 = vpop.f32.mrb[0].mxu0
        %v2207 = vadd.f32 %v2119, %v2206
        %v2208 = vpop.f32.mrb[0].mxu0
        %v2209 = vpop.f32.mrb[0].mxu0
        %v2210 = vadd.f32 %v2122, %v2209
        %v2211 = vpop.f32.mrb[0].mxu0
        %2212 = vmatprep.mubr.bf16.mxu0 %v1328
        %2213 = vmatmul.mubr.bf16.gmra.mrb[0].mxu0 %v1327
        %v2214 = vpop.f32.mrb[0].mxu0
        %v2215 = vadd.f32 %v2127, %v2214
        %v2216 = vpop.f32.mrb[0].mxu0
        %v2217 = vpop.f32.mrb[0].mxu0
        %v2218 = vadd.f32 %v2130, %v2217
        %v2219 = vpop.f32.mrb[0].mxu0
        %2220 = vmatprep.mubr.bf16.mxu0 %v1338
        %2221 = vmatmul.mubr.bf16.gmra.mrb[0].mxu0 %v1337
        %v2222 = vpop.f32.mrb[0].mxu0
        %v2223 = vadd.f32 %v2135, %v2222
        %v2224 = vpop.f32.mrb[0].mxu0
        %v2225 = vpop.f32.mrb[0].mxu0
        %v2226 = vadd.f32 %v2138, %v2225
        %v2227 = vpop.f32.mrb[0].mxu0
        %2228 = vmatprep.mubr.bf16.mxu0 %v1348
        %2229 = vmatmul.mubr.bf16.gmra.mrb[0].mxu0 %v1347
        %v2230 = vpop.f32.mrb[0].mxu0
        %v2231 = vadd.f32 %v2143, %v2230
        %v2232 = vpop.f32.mrb[0].mxu0
        %v2233 = vpop.f32.mrb[0].mxu0
        %v2234 = vadd.f32 %v2146, %v2233
        %v2235 = vpop.f32.mrb[0].mxu0
        %2236 = vmatprep.mubr.bf16.mxu0 %v1358
        %2237 = vmatmul.mubr.bf16.gmra.mrb[0].mxu0 %v1357
        %v2238 = vpop.f32.mrb[0].mxu0
        %v2239 = vadd.f32 %v2151, %v2238
        %v2240 = vpop.f32.mrb[0].mxu0
        %v2241 = vpop.f32.mrb[0].mxu0
        %v2242 = vadd.f32 %v2154, %v2241
        %v2243 = vpop.f32.mrb[0].mxu0
        %2244 = vmatprep.mubr.bf16.mxu0 %v1368
        %2245 = vmatmul.mubr.bf16.gmra.mrb[0].mxu0 %v1367
        %v2246 = vpop.f32.mrb[0].mxu0
        %v2247 = vadd.f32 %v2159, %v2246
        %v2248 = vpop.f32.mrb[0].mxu0
        %v2249 = vpop.f32.mrb[0].mxu0
        %v2250 = vpop.f32.mrb[0].mxu0
        %2251 = vdwg.mxu0
        %2252 = vmatprep.subr.bf16.mxu0 0
        %2253 = vmatpush1.bf16.msra.mxu0 %v1790
        %2254 = vmatprep.subr.bf16.mxu0 0
        %2255 = vmatpush1.bf16.msra.mxu0 %v1791
        %2256 = vmatprep.subr.bf16.mxu0 0
        %2257 = vmatpush1.bf16.msra.mxu0 %v1792
        %2258 = vmatprep.subr.bf16.mxu0 0
        %2259 = vmatpush1.bf16.msra.mxu0 %v1793
        %2260 = vmatprep.subr.bf16.mxu0 0
        %2261 = vmatpush1.bf16.msra.mxu0 %v1794
        %2262 = vmatprep.subr.bf16.mxu0 0
        %2263 = vmatpush1.bf16.msra.mxu0 %v1795
        %2264 = vmatprep.subr.bf16.mxu0 0
        %2265 = vmatpush1.bf16.msra.mxu0 %v1796
        %2266 = vmatprep.subr.bf16.mxu0 0
        %2267 = vmatpush1.bf16.msra.mxu0 %v1797
        %2268 = vmatprep.subr.bf16.mxu0 0
        %2269 = vmatpush1.bf16.msra.mxu0 %v1898
        %2270 = vmatprep.subr.bf16.mxu0 0
        %2271 = vmatpush1.bf16.msra.mxu0 0
        %2272 = vmatprep.subr.bf16.mxu0 0
        %2273 = vmatpush1.bf16.msra.mxu0 0
        %2274 = vmatprep.subr.bf16.mxu0 0
        %2275 = vmatpush1.bf16.msra.mxu0 0
        %2276 = vmatprep.subr.bf16.mxu0 0
        %2277 = vmatpush1.bf16.msra.mxu0 0
        %2278 = vmatprep.subr.bf16.mxu0 0
        %2279 = vmatpush1.bf16.msra.mxu0 0
        %2280 = vmatprep.subr.bf16.mxu0 0
        %2281 = vmatpush1.bf16.msra.mxu0 0
        %2282 = vmatprep.subr.bf16.mxu0 0
        %2283 = vmatpush1.bf16.msra.mxu0 0
        %2284 = vmatprep.mubr.bf16.mxu0 %v1873
        %2285 = vmatmul.mubr.bf16.gmra.mrb[0].mxu0 %v1309
        %v2286 = vpop.f32.mrb[0].mxu0
        %v2287 = vadd.f32 %v2199, %v2286
        %v2288 = vpop.f32.mrb[0].mxu0
        %v2289 = vpop.f32.mrb[0].mxu0
        %v2290 = vadd.f32 %v2202, %v2289
        %v2291 = vpop.f32.mrb[0].mxu0
        %2292 = vmatprep.mubr.bf16.mxu0 %v1876
        %2293 = vmatmul.mubr.bf16.gmra.mrb[0].mxu0 %v1319
        %v2294 = vpop.f32.mrb[0].mxu0
        %v2295 = vadd.f32 %v2207, %v2294
        %v2296 = vpop.f32.mrb[0].mxu0
        %v2297 = vpop.f32.mrb[0].mxu0
        %v2298 = vadd.f32 %v2210, %v2297
        %v2299 = vpop.f32.mrb[0].mxu0
        %2300 = vmatprep.mubr.bf16.mxu0 %v1879
        %2301 = vmatmul.mubr.bf16.gmra.mrb[0].mxu0 %v1329
        %v2302 = vpop.f32.mrb[0].mxu0
        %v2303 = vadd.f32 %v2215, %v2302
        %v2304 = vpop.f32.mrb[0].mxu0
        %v2305 = vpop.f32.mrb[0].mxu0
        %v2306 = vadd.f32 %v2218, %v2305
        %v2307 = vpop.f32.mrb[0].mxu0
        %2308 = vmatprep.mubr.bf16.mxu0 %v1882
        %2309 = vmatmul.mubr.bf16.gmra.mrb[0].mxu0 %v1339
        %v2310 = vpop.f32.mrb[0].mxu0
        %v2311 = vadd.f32 %v2223, %v2310
        %v2312 = vpop.f32.mrb[0].mxu0
        %v2313 = vpop.f32.mrb[0].mxu0
        %v2314 = vadd.f32 %v2226, %v2313
        %v2315 = vpop.f32.mrb[0].mxu0
        %2316 = vmatprep.mubr.bf16.mxu0 %v1885
        %2317 = vmatmul.mubr.bf16.gmra.mrb[0].mxu0 %v1349
        %v2318 = vpop.f32.mrb[0].mxu0
        %v2319 = vadd.f32 %v2231, %v2318
        %v2320 = vpop.f32.mrb[0].mxu0
        %v2321 = vpop.f32.mrb[0].mxu0
        %v2322 = vadd.f32 %v2234, %v2321
        %v2323 = vpop.f32.mrb[0].mxu0
        %2324 = vmatprep.mubr.bf16.mxu0 %v1888
        %2325 = vmatmul.mubr.bf16.gmra.mrb[0].mxu0 %v1359
        %v2326 = vpop.f32.mrb[0].mxu0
        %v2327 = vadd.f32 %v2239, %v2326
        %v2328 = vpop.f32.mrb[0].mxu0
        %v2329 = vpop.f32.mrb[0].mxu0
        %v2330 = vadd.f32 %v2242, %v2329
        %v2331 = vpop.f32.mrb[0].mxu0
        %2332 = vmatprep.mubr.bf16.mxu0 %v1891
        %2333 = vmatmul.mubr.bf16.gmra.mrb[0].mxu0 %v1369
        %v2334 = vpop.f32.mrb[0].mxu0
        %v2335 = vadd.f32 %v2247, %v2334
        %v2336 = vpop.f32.mrb[0].mxu0
        %v2337 = vpop.f32.mrb[0].mxu0
        %v2338 = vpop.f32.mrb[0].mxu0
        %2339 = vdwg.mxu0
        %v2340 = vpack.c.bf16 %v2290, %v2287
        %v2341 = vpack.c.bf16 %v2298, %v2295
        %v2342 = vpack.c.bf16 %v2306, %v2303
        %v2343 = vpack.c.bf16 %v2314, %v2311
        %v2344 = vpack.c.bf16 %v2322, %v2319
        %v2345 = vpack.c.bf16 %v2330, %v2327
        %v2346 = vpack.c.bf16 %v2335, %v2335
        %v2354 = vunpack.c.l.b16 %v2340
        %v2355 = vunpack.c.h.b16 %v2340
        %v2356 = vunpack.c.l.b16 %v2341
        %v2357 = vunpack.c.h.b16 %v2341
        %v2358 = vunpack.c.l.b16 %v2342
        %v2359 = vunpack.c.h.b16 %v2342
        %v2360 = vunpack.c.l.b16 %v2343
        %v2361 = vunpack.c.h.b16 %v2343
        %v2362 = vunpack.c.l.b16 %v2344
        %v2363 = vunpack.c.h.b16 %v2344
        %v2364 = vunpack.c.l.b16 %v2345
        %v2365 = vunpack.c.h.b16 %v2345
        %v2366 = vunpack.c.l.b16 %v2346
        %v2367 = vpack.c.b16 %v2354, %v2354
        %v2368 = vpack.c.b16 %v2355, %v2355
        %v2369 = vpack.c.b16 %v2356, %v2356
        %v2370 = vpack.c.b16 %v2357, %v2357
        %v2371 = vpack.c.b16 %v2358, %v2358
        %v2372 = vpack.c.b16 %v2359, %v2359
        %v2373 = vpack.c.b16 %v2360, %v2360
        %v2374 = vpack.c.b16 %v2361, %v2361
        %v2375 = vpack.c.b16 %v2362, %v2362
        %v2376 = vpack.c.b16 %v2363, %v2363
        %v2377 = vpack.c.b16 %v2364, %v2364
        %v2378 = vpack.c.b16 %v2365, %v2365
        %v2379 = vpack.c.b16 %v2366, %v2366
        %2393 = vst [vmem:[%s849] sm:$0xf] %v2367
        %2394 = vst [vmem:[%s849 + $0x4] sm:$0xf] %v2368
        %2395 = vst [vmem:[%s849 + $0x8] sm:$0xf] %v2369
        %2396 = vst [vmem:[%s849 + $0xc] sm:$0xf] %v2370
        %2397 = vst [vmem:[%s849 + $0x10] sm:$0xf] %v2371
        %2398 = vst [vmem:[%s849 + $0x14] sm:$0xf] %v2372
        %2399 = vst [vmem:[%s849 + $0x18] sm:$0xf] %v2373
        %2400 = vst [vmem:[%s849 + $0x1c] sm:$0xf] %v2374
        %2401 = vst [vmem:[%s849 + $0x20] sm:$0xf] %v2375
        %2402 = vst [vmem:[%s849 + $0x24] sm:$0xf] %v2376
        %2403 = vst [vmem:[%s849 + $0x28] sm:$0xf] %v2377
        %2404 = vst [vmem:[%s849 + $0x2c] sm:$0xf] %v2378
        %2405 = vst [vmem:[%s849 + $0x30] sm:$0xf] %v2379
        %v2406 = vadd.f32 %v2287, %v2290
        %v2407 = vadd.f32 %v2406, %v2295
        %v2408 = vadd.f32 %v2407, %v2298
        %v2409 = vadd.f32 %v2408, %v2303
        %v2410 = vadd.f32 %v2409, %v2306
        %v2411 = vadd.f32 %v2410, %v2311
        %v2412 = vadd.f32 %v2411, %v2314
        %v2413 = vadd.f32 %v2412, %v2319
        %v2414 = vadd.f32 %v2413, %v2322
        %v2415 = vadd.f32 %v2414, %v2327
        %v2416 = vadd.f32 %v2415, %v2330
        %v2417 = vadd.f32 %v2416, %v2335
        %v2418 = vrot.slane %v2417, 4
        %v2419 = vadd.f32 %v2417, %v2418
        %v2420 = vrot.slane %v2419, 2
        %v2421 = vadd.f32 %v2419, %v2420
        %v2422 = vrot.slane %v2421, 1
        %v2423 = vadd.f32 %v2421, %v2422
        %v2424 = vmul.f32 %v2287, %v2287
        %v2425 = vmul.f32 %v2290, %v2290
        %v2426 = vmul.f32 %v2295, %v2295
        %v2427 = vmul.f32 %v2298, %v2298
        %v2428 = vmul.f32 %v2303, %v2303
        %v2429 = vmul.f32 %v2306, %v2306
        %v2430 = vmul.f32 %v2311, %v2311
        %v2431 = vmul.f32 %v2314, %v2314
        %v2432 = vmul.f32 %v2319, %v2319
        %v2433 = vmul.f32 %v2322, %v2322
        %v2434 = vmul.f32 %v2327, %v2327
        %v2435 = vmul.f32 %v2330, %v2330
        %v2436 = vmul.f32 %v2335, %v2335
        %v2437 = vadd.f32 %v2424, %v2425
        %v2438 = vadd.f32 %v2437, %v2426
        %v2439 = vadd.f32 %v2438, %v2427
        %v2440 = vadd.f32 %v2439, %v2428
        %v2441 = vadd.f32 %v2440, %v2429
        %v2442 = vadd.f32 %v2441, %v2430
        %v2443 = vadd.f32 %v2442, %v2431
        %v2444 = vadd.f32 %v2443, %v2432
        %v2445 = vadd.f32 %v2444, %v2433
        %v2446 = vadd.f32 %v2445, %v2434
        %v2447 = vadd.f32 %v2446, %v2435
        %v2448 = vadd.f32 %v2447, %v2436
        %v2449 = vrot.slane %v2448, 4
        %v2450 = vadd.f32 %v2448, %v2449
        %v2451 = vrot.slane %v2450, 2
        %v2452 = vadd.f32 %v2450, %v2451
        %v2453 = vrot.slane %v2452, 1
        %v2454 = vadd.f32 %v2452, %v2453
        %2455 = vst [vmem:[%s885] sm:$0xff] %v2423
        %2456 = vst [vmem:[%s893] sm:$0xff] %v2454
        %s2457 = sand.u32 %s90, 1
        %s2458 = sand.u32 %s90, 1
        %s2459 = smul.addr %s2458, 52
        %s2460 = scalar_lea.vmem [#allocation3], %s2459
        %p2461 = scmp.lt.s32.totalorder %s20, 0
        %s2462 = scalar_select %p2461, %s20, 0
        %p2463 = scmp.lt.s32.totalorder %s21, 1
        %s2464 = scalar_select %p2463, %s21, 1
        %s2465 = smul.addr %s2462, 2
        %s2466 = sadd.s32 %s2464, %s2465
        %s2467 = smul.addr %s2466, 8
        %s2468 = scalar_lea.vmem %s3, %s2467
        %p2469 = scmp.lt.s32.totalorder %s20, 0
        %s2470 = scalar_select %p2469, %s20, 0
        %p2471 = scmp.lt.s32.totalorder %s21, 1
        %s2472 = scalar_select %p2471, %s21, 1
        %s2473 = smul.addr %s2470, 2
        %s2474 = sadd.s32 %s2472, %s2473
        %s2475 = smul.addr %s2474, 8
        %s2476 = scalar_lea.vmem %s4, %s2475
        // Predicated region
        $region70: #{generator_forward.7} parent=64 // pred_check
          %p2477 = pneg %p100
        $region71: #{generator_forward.7} parent=64 // pred_check_branch
          %2479 = sbr.rel (%p2477) target = $region73
        $region72: #{generator_forward.7} parent=64 // pred_region
          %s2480 = smul.u32 13, %s20
          %s2481 = smul.addr %s2480, 2
          %s2482 = sadd.s32 %s21, %s2481
          %s2483 = smul.addr %s2482, 4
          %s2484 = scalar_lea.vmem %s2, %s2483
          // Predicated region
          $region74: #{generator_forward.7} parent=72 // pred_check
            _
          $region75: #{generator_forward.7} parent=72 // pred_check_branch
            %2486 = sbr.rel (0) target = $region77
          $region76: #{generator_forward.7} parent=72 // pred_region
            // Predicated region
            $region78: #{generator_forward.7} parent=76 // pred_check
              _
            $region79: #{generator_forward.7} parent=76 // pred_check_branch
              %2488 = sbr.rel target = $region81
            $region80: #{generator_forward.7} parent=76 // pred_region
              // Predicated region
              $region93: #{generator_forward.7} parent=80 // pred_check
                _
              $region94: #{generator_forward.7} parent=80 // pred_check_branch
                %2527 = sbr.rel (0) target = $region96
              $region95: #{generator_forward.7} parent=80 // pred_region
                loop: start=0, step=1, limit=1
                $region97: #{generator_forward.7} parent=95 // loop_pre_header
                  _
                $region98: #{generator_forward.7} parent=95 // loop_header
                  %s2529 = sphi 0, %s2533
                  %p2530 = scmp.ge.s32.totalorder %s2529, 1
                  %s2534 = sphi %s2460, %s2460
                  %s2535 = sphi %s2484, %s2484
                $region99: #{generator_forward.7} parent=95 // loop_header_branch
                  %2532 = sbr.rel (%p2530) target = $region103
                $region100: #{generator_forward.7} parent=95 // loop_body
                  _
                $region101: #{generator_forward.7} parent=95 // loop_footer
                  %s2533 = sadd.s32 1, %s2529
                $region102: #{generator_forward.7} parent=95 // loop_footer_branch
                  %2528 = sbr.rel target = $region98
                $region103: #{generator_forward.7} parent=95 // loop_exit
                  _
                loop: start=0, step=1, limit=1
                $region104: #{generator_forward.7} parent=95 // loop_pre_header
                  _
                $region105: #{generator_forward.7} parent=95 // loop_header
                  %s2538 = sphi 0, %s2542
                  %p2539 = scmp.ge.s32.totalorder %s2538, 1
                  %s2543 = sphi %s2460, %s2460
                  %s2544 = sphi %s2484, %s2484
                $region106: #{generator_forward.7} parent=95 // loop_header_branch
                  %2541 = sbr.rel (%p2539) target = $region110
                $region107: #{generator_forward.7} parent=95 // loop_body
                  %v2545 = vld [vmem:[%s2543] sm:$0xf]
                  %2546 = vst [vmem:[%s2544] sm:$0xf] %v2545
                  %v2547 = vld [vmem:[%s2543 + $0x4] sm:$0xf]
                  %2548 = vst [vmem:[%s2544 + $0x8] sm:$0xf] %v2547
                  %v2549 = vld [vmem:[%s2543 + $0x8] sm:$0xf]
                  %2550 = vst [vmem:[%s2544 + $0x10] sm:$0xf] %v2549
                  %v2551 = vld [vmem:[%s2543 + $0xc] sm:$0xf]
                  %2552 = vst [vmem:[%s2544 + $0x18] sm:$0xf] %v2551
                  %v2553 = vld [vmem:[%s2543 + $0x10] sm:$0xf]
                  %2554 = vst [vmem:[%s2544 + $0x20] sm:$0xf] %v2553
                  %v2555 = vld [vmem:[%s2543 + $0x14] sm:$0xf]
                  %2556 = vst [vmem:[%s2544 + $0x28] sm:$0xf] %v2555
                  %v2557 = vld [vmem:[%s2543 + $0x18] sm:$0xf]
                  %2558 = vst [vmem:[%s2544 + $0x30] sm:$0xf] %v2557
                  %v2559 = vld [vmem:[%s2543 + $0x1c] sm:$0xf]
                  %2560 = vst [vmem:[%s2544 + $0x38] sm:$0xf] %v2559
                  %v2561 = vld [vmem:[%s2543 + $0x20] sm:$0xf]
                  %2562 = vst [vmem:[%s2544 + $0x40] sm:$0xf] %v2561
                  %v2563 = vld [vmem:[%s2543 + $0x24] sm:$0xf]
                  %2564 = vst [vmem:[%s2544 + $0x48] sm:$0xf] %v2563
                  %v2565 = vld [vmem:[%s2543 + $0x28] sm:$0xf]
                  %2566 = vst [vmem:[%s2544 + $0x50] sm:$0xf] %v2565
                  %v2567 = vld [vmem:[%s2543 + $0x2c] sm:$0xf]
                  %2568 = vst [vmem:[%s2544 + $0x58] sm:$0xf] %v2567
                  %v2569 = vld [vmem:[%s2543 + $0x30] sm:$0xf]
                  %2570 = vst [vmem:[%s2544 + $0x60] sm:$0xf] %v2569
                $region108: #{generator_forward.7} parent=95 // loop_footer
                  %s2542 = sadd.s32 1, %s2538
                $region109: #{generator_forward.7} parent=95 // loop_footer_branch
                  %2537 = sbr.rel target = $region105
                $region110: #{generator_forward.7} parent=95 // loop_exit
                  _
              $region96: #{generator_forward.7} parent=80 // pred_fallthru
                _
            $region81: #{generator_forward.7} parent=76 // pred_fallthru
              _
            // Predicated region
            $region82: #{generator_forward.7} parent=76 // pred_check
              _
            $region83: #{generator_forward.7} parent=76 // pred_check_branch
              %2490 = sbr.rel (0) target = $region85
            $region84: #{generator_forward.7} parent=76 // pred_region
              loop: start=0, step=1, limit=1
              $region86: #{generator_forward.7} parent=84 // loop_pre_header
                _
              $region87: #{generator_forward.7} parent=84 // loop_header
                %s2493 = sphi 0, %s2497
                %p2494 = scmp.ge.s32.totalorder %s2493, 1
                %s2498 = sphi %s2460, %s2460
                %s2499 = sphi %s2484, %s2484
              $region88: #{generator_forward.7} parent=84 // loop_header_branch
                %2496 = sbr.rel (%p2494) target = $region92
              $region89: #{generator_forward.7} parent=84 // loop_body
                %v2500 = vld [vmem:[%s2498] sm:$0xf]
                %2501 = vst [vmem:[%s2499] sm:$0xf] %v2500
                %v2502 = vld [vmem:[%s2498 + $0x4] sm:$0xf]
                %2503 = vst [vmem:[%s2499 + $0x8] sm:$0xf] %v2502
                %v2504 = vld [vmem:[%s2498 + $0x8] sm:$0xf]
                %2505 = vst [vmem:[%s2499 + $0x10] sm:$0xf] %v2504
                %v2506 = vld [vmem:[%s2498 + $0xc] sm:$0xf]
                %2507 = vst [vmem:[%s2499 + $0x18] sm:$0xf] %v2506
                %v2508 = vld [vmem:[%s2498 + $0x10] sm:$0xf]
                %2509 = vst [vmem:[%s2499 + $0x20] sm:$0xf] %v2508
                %v2510 = vld [vmem:[%s2498 + $0x14] sm:$0xf]
                %2511 = vst [vmem:[%s2499 + $0x28] sm:$0xf] %v2510
                %v2512 = vld [vmem:[%s2498 + $0x18] sm:$0xf]
                %2513 = vst [vmem:[%s2499 + $0x30] sm:$0xf] %v2512
                %v2514 = vld [vmem:[%s2498 + $0x1c] sm:$0xf]
                %2515 = vst [vmem:[%s2499 + $0x38] sm:$0xf] %v2514
                %v2516 = vld [vmem:[%s2498 + $0x20] sm:$0xf]
                %2517 = vst [vmem:[%s2499 + $0x40] sm:$0xf] %v2516
                %v2518 = vld [vmem:[%s2498 + $0x24] sm:$0xf]
                %2519 = vst [vmem:[%s2499 + $0x48] sm:$0xf] %v2518
                %v2520 = vld [vmem:[%s2498 + $0x28] sm:$0xf]
                %2521 = vst [vmem:[%s2499 + $0x50] sm:$0xf] %v2520
                %v2522 = vld [vmem:[%s2498 + $0x2c] sm:$0xf]
                %2523 = vst [vmem:[%s2499 + $0x58] sm:$0xf] %v2522
                %v2524 = vld [vmem:[%s2498 + $0x30] sm:$0xf]
                %2525 = vst [vmem:[%s2499 + $0x60] sm:$0xf] %v2524
              $region90: #{generator_forward.7} parent=84 // loop_footer
                %s2497 = sadd.s32 1, %s2493
              $region91: #{generator_forward.7} parent=84 // loop_footer_branch
                %2492 = sbr.rel target = $region87
              $region92: #{generator_forward.7} parent=84 // loop_exit
                _
            $region85: #{generator_forward.7} parent=76 // pred_fallthru
              _
          $region77: #{generator_forward.7} parent=72 // pred_fallthru
            _
          %2571 = vnop
        $region73: #{generator_forward.7} parent=64 // pred_fallthru
          _
        // Predicated region
        $region111: #{generator_forward.7} parent=64 // pred_check
          %p2572 = pneg %p128
        $region112: #{generator_forward.7} parent=64 // pred_check_branch
          %2574 = sbr.rel (%p2572) target = $region114
        $region113: #{generator_forward.7} parent=64 // pred_region
          _
        $region114: #{generator_forward.7} parent=64 // pred_fallthru
          _
        // Predicated region
        $region115: #{generator_forward.7} parent=64 // pred_check
          %p2575 = pneg %p156
        $region116: #{generator_forward.7} parent=64 // pred_check_branch
          %2577 = sbr.rel (%p2575) target = $region118
        $region117: #{generator_forward.7} parent=64 // pred_region
          _
        $region118: #{generator_forward.7} parent=64 // pred_fallthru
          _
      $region65: #{generator_forward.7} parent=5 // pred_fallthru
        _
      %p2578 = scmp.le.s32.totalorder 2, %s11
      // Predicated region
      $region119: #{generator_forward.7} parent=5 // pred_check
        %p2579 = pneg %p2578
      $region120: #{generator_forward.7} parent=5 // pred_check_branch
        %2581 = sbr.rel (%p2579) target = $region122
      $region121: #{generator_forward.7} parent=5 // pred_region
        %s2582 = ssub.s32 %s11, 2
        // Predicated region
        $region123: #{generator_forward.7} parent=121 // pred_check
          %p2583 = pneg %p106
        $region124: #{generator_forward.7} parent=121 // pred_check_branch
          %2585 = sbr.rel (%p2583) target = $region126
        $region125: #{generator_forward.7} parent=121 // pred_region
          %s2586 = sand.u32 %s91, 1
          %s2587 = sand.u32 %s91, 1
          %s2588 = smul.addr %s2587, 52
          %s2589 = scalar_lea.vmem [#allocation3], %s2588
        $region126: #{generator_forward.7} parent=121 // pred_fallthru
          _
        // Predicated region
        $region127: #{generator_forward.7} parent=121 // pred_check
          %p2590 = pneg %p134
        $region128: #{generator_forward.7} parent=121 // pred_check_branch
          %2592 = sbr.rel (%p2590) target = $region130
        $region129: #{generator_forward.7} parent=121 // pred_region
          %p2593 = scmp.lt.s32.totalorder %s22, 0
          %s2594 = scalar_select %p2593, %s22, 0
          %p2595 = scmp.lt.s32.totalorder %s23, 1
          %s2596 = scalar_select %p2595, %s23, 1
          %s2597 = smul.addr %s2594, 2
          %s2598 = sadd.s32 %s2596, %s2597
          %s2599 = smul.addr %s2598, 8
          %s2600 = scalar_lea.vmem %s3, %s2599
        $region130: #{generator_forward.7} parent=121 // pred_fallthru
          _
        // Predicated region
        $region131: #{generator_forward.7} parent=121 // pred_check
          %p2601 = pneg %p162
        $region132: #{generator_forward.7} parent=121 // pred_check_branch
          %2603 = sbr.rel (%p2601) target = $region134
        $region133: #{generator_forward.7} parent=121 // pred_region
          %p2604 = scmp.lt.s32.totalorder %s22, 0
          %s2605 = scalar_select %p2604, %s22, 0
          %p2606 = scmp.lt.s32.totalorder %s23, 1
          %s2607 = scalar_select %p2606, %s23, 1
          %s2608 = smul.addr %s2605, 2
          %s2609 = sadd.s32 %s2607, %s2608
          %s2610 = smul.addr %s2609, 8
          %s2611 = scalar_lea.vmem %s4, %s2610
        $region134: #{generator_forward.7} parent=121 // pred_fallthru
          _
      $region122: #{generator_forward.7} parent=5 // pred_fallthru
        _
    $region6: #{generator_forward.7} parent=1 // loop_footer
      %s15 = sadd.s32 1, %s11
    $region7: #{generator_forward.7} parent=1 // loop_footer_branch
      %10 = sbr.rel target = $region3
    $region8: #{generator_forward.7} parent=1 // loop_exit
      _

// kernel: generator_forward.9
$region0: #{generator_forward.9}
  #allocation0 [shape = 'u32[]', space=smem, size = 0x4, offset = 0x4, fixed_abs, tag = 'smem constant byte address 0x4 - core index']
  #allocation1 [shape = 'u32[144,128]{1,0:T(1,128)}', space=vmem, size = 0x12000, scoped, tag = 'internal scratch']
  %s0 = inlined_call_operand.vmem [shape: bf16[392,576], index: 0, kind: input, shape index: {}]
  %s1 = inlined_call_operand.vmem [shape: bf16[576,128], index: 1, kind: input, shape index: {}]
  %s2 = inlined_call_operand.vmem [shape: bf16[392,128], index: 2, kind: output, shape index: {0}]
  %s3 = inlined_call_operand.vmem [shape: f32[1,8,128], index: 3, kind: output, shape index: {1}]
  %s4 = inlined_call_operand.vmem [shape: f32[1,8,128], index: 4, kind: output, shape index: {2}]
  %5 = xla_tuple %s2, %s3, %s4
  %s6 = sld [smem:[#allocation0]]
  $region34: #{generator_forward.9} parent=0
    _
  %s8 = ssub.s32 1, %s6
  %s9 = scalar_select 0, %s8, %s6
  // Predicated region
  $region2: #{generator_forward.9} parent=0 // pred_check
    _
  $region3: #{generator_forward.9} parent=0 // pred_check_branch
    %11 = sbr.rel (0) target = $region5
  $region4: #{generator_forward.9} parent=0 // pred_region
    _
  $region5: #{generator_forward.9} parent=0 // pred_fallthru
    _
  // Predicated region
  $region6: #{generator_forward.9} parent=0 // pred_check
    _
  $region7: #{generator_forward.9} parent=0 // pred_check_branch
    %13 = sbr.rel (0) target = $region9
  $region8: #{generator_forward.9} parent=0 // pred_region
    _
  $region9: #{generator_forward.9} parent=0 // pred_fallthru
    _
  %v15 = vld [vmem:[%s0] sm:$0xff]
  %v16 = vld [vmem:[%s0 + $0x8] sm:$0xff]
  %v17 = vld [vmem:[%s0 + $0x10] sm:$0xf]
  %v18 = vld [vmem:[%s0 + $0x14] sm:$0xff]
  %v19 = vld [vmem:[%s0 + $0x1c] sm:$0xff]
  %v20 = vld [vmem:[%s0 + $0x24] sm:$0xf]
  %v21 = vld [vmem:[%s0 + $0x28] sm:$0xff]
  %v22 = vld [vmem:[%s0 + $0x30] sm:$0xff]
  %v23 = vld [vmem:[%s0 + $0x38] sm:$0xf]
  %v24 = vld [vmem:[%s0 + $0x3c] sm:$0xff]
  %v25 = vld [vmem:[%s0 + $0x44] sm:$0xff]
  %v26 = vld [vmem:[%s0 + $0x4c] sm:$0xf]
  %v27 = vld [vmem:[%s0 + $0x50] sm:$0xff]
  %v28 = vld [vmem:[%s0 + $0x58] sm:$0xff]
  %v29 = vld [vmem:[%s0 + $0x60] sm:$0xf]
  %v30 = vld [vmem:[%s0 + $0x64] sm:$0xff]
  %v31 = vld [vmem:[%s0 + $0x6c] sm:$0xff]
  %v32 = vld [vmem:[%s0 + $0x74] sm:$0xf]
  %v33 = vld [vmem:[%s0 + $0x78] sm:$0xff]
  %v34 = vld [vmem:[%s0 + $0x80] sm:$0xff]
  %v35 = vld [vmem:[%s0 + $0x88] sm:$0xf]
  %v36 = vld [vmem:[%s0 + $0x8c] sm:$0xff]
  %v37 = vld [vmem:[%s0 + $0x94] sm:$0xff]
  %v38 = vld [vmem:[%s0 + $0x9c] sm:$0xf]
  %v39 = vld [vmem:[%s0 + $0xa0] sm:$0xff]
  %v40 = vld [vmem:[%s0 + $0xa8] sm:$0xff]
  %v41 = vld [vmem:[%s0 + $0xb0] sm:$0xf]
  %v42 = vld [vmem:[%s0 + $0xb4] sm:$0xff]
  %v43 = vld [vmem:[%s0 + $0xbc] sm:$0xff]
  %v44 = vld [vmem:[%s0 + $0xc4] sm:$0xf]
  %v45 = vld [vmem:[%s0 + $0xc8] sm:$0xff]
  %v46 = vld [vmem:[%s0 + $0xd0] sm:$0xff]
  %v47 = vld [vmem:[%s0 + $0xd8] sm:$0xf]
  %v48 = vld [vmem:[%s0 + $0xdc] sm:$0xff]
  %v49 = vld [vmem:[%s0 + $0xe4] sm:$0xff]
  %v50 = vld [vmem:[%s0 + $0xec] sm:$0xf]
  %v51 = vld [vmem:[%s0 + $0xf0] sm:$0xff]
  %v52 = vld [vmem:[%s0 + $0xf8] sm:$0xff]
  %v53 = vld [vmem:[%s0 + $0x100] sm:$0xf]
  %v54 = vld [vmem:[%s0 + $0x104] sm:$0xff]
  %v55 = vld [vmem:[%s0 + $0x10c] sm:$0xff]
  %v56 = vld [vmem:[%s0 + $0x114] sm:$0xf]
  %v57 = vld [vmem:[%s0 + $0x118] sm:$0xff]
  %v58 = vld [vmem:[%s0 + $0x120] sm:$0xff]
  %v59 = vld [vmem:[%s0 + $0x128] sm:$0xf]
  %v60 = vld [vmem:[%s0 + $0x12c] sm:$0xff]
  %v61 = vld [vmem:[%s0 + $0x134] sm:$0xff]
  %v62 = vld [vmem:[%s0 + $0x13c] sm:$0xf]
  %v63 = vld [vmem:[%s0 + $0x140] sm:$0xff]
  %v64 = vld [vmem:[%s0 + $0x148] sm:$0xff]
  %v65 = vld [vmem:[%s0 + $0x150] sm:$0xf]
  %v66 = vld [vmem:[%s0 + $0x154] sm:$0xff]
  %v67 = vld [vmem:[%s0 + $0x15c] sm:$0xff]
  %v68 = vld [vmem:[%s0 + $0x164] sm:$0xf]
  %v69 = vld [vmem:[%s0 + $0x168] sm:$0xff]
  %v70 = vld [vmem:[%s0 + $0x170] sm:$0xff]
  %v71 = vld [vmem:[%s0 + $0x178] sm:$0xf]
  %v72 = vld [vmem:[%s0 + $0x17c] sm:$0xff]
  %v73 = vld [vmem:[%s0 + $0x184] sm:$0xff]
  %v74 = vld [vmem:[%s0 + $0x18c] sm:$0xf]
  %v75 = vld [vmem:[%s0 + $0x190] sm:$0xff]
  %v76 = vld [vmem:[%s0 + $0x198] sm:$0xff]
  %v77 = vld [vmem:[%s0 + $0x1a0] sm:$0xf]
  %v78 = vld [vmem:[%s0 + $0x1a4] sm:$0xff]
  %v79 = vld [vmem:[%s0 + $0x1ac] sm:$0xff]
  %v80 = vld [vmem:[%s0 + $0x1b4] sm:$0xf]
  %v81 = vld [vmem:[%s0 + $0x1b8] sm:$0xff]
  %v82 = vld [vmem:[%s0 + $0x1c0] sm:$0xff]
  %v83 = vld [vmem:[%s0 + $0x1c8] sm:$0xf]
  %v84 = vld [vmem:[%s0 + $0x1cc] sm:$0xff]
  %v85 = vld [vmem:[%s0 + $0x1d4] sm:$0xff]
  %v86 = vld [vmem:[%s0 + $0x1dc] sm:$0xf]
  %v87 = vld [vmem:[%s0 + $0x1e0] sm:$0xff]
  %v88 = vld [vmem:[%s0 + $0x1e8] sm:$0xff]
  %v89 = vld [vmem:[%s0 + $0x1f0] sm:$0xf]
  %v90 = vld [vmem:[%s0 + $0x1f4] sm:$0xff]
  %v91 = vld [vmem:[%s0 + $0x1fc] sm:$0xff]
  %v92 = vld [vmem:[%s0 + $0x204] sm:$0xf]
  %v93 = vld [vmem:[%s0 + $0x208] sm:$0xff]
  %v94 = vld [vmem:[%s0 + $0x210] sm:$0xff]
  %v95 = vld [vmem:[%s0 + $0x218] sm:$0xf]
  %v96 = vld [vmem:[%s0 + $0x21c] sm:$0xff]
  %v97 = vld [vmem:[%s0 + $0x224] sm:$0xff]
  %v98 = vld [vmem:[%s0 + $0x22c] sm:$0xf]
  %v99 = vld [vmem:[%s0 + $0x230] sm:$0xff]
  %v100 = vld [vmem:[%s0 + $0x238] sm:$0xff]
  %v101 = vld [vmem:[%s0 + $0x240] sm:$0xf]
  %v102 = vld [vmem:[%s0 + $0x244] sm:$0xff]
  %v103 = vld [vmem:[%s0 + $0x24c] sm:$0xff]
  %v104 = vld [vmem:[%s0 + $0x254] sm:$0xf]
  %v105 = vld [vmem:[%s0 + $0x258] sm:$0xff]
  %v106 = vld [vmem:[%s0 + $0x260] sm:$0xff]
  %v107 = vld [vmem:[%s0 + $0x268] sm:$0xf]
  %v108 = vld [vmem:[%s0 + $0x26c] sm:$0xff]
  %v109 = vld [vmem:[%s0 + $0x274] sm:$0xff]
  %v110 = vld [vmem:[%s0 + $0x27c] sm:$0xf]
  %v111 = vld [vmem:[%s0 + $0x280] sm:$0xff]
  %v112 = vld [vmem:[%s0 + $0x288] sm:$0xff]
  %v113 = vld [vmem:[%s0 + $0x290] sm:$0xf]
  %v114 = vld [vmem:[%s0 + $0x294] sm:$0xff]
  %v115 = vld [vmem:[%s0 + $0x29c] sm:$0xff]
  %v116 = vld [vmem:[%s0 + $0x2a4] sm:$0xf]
  %v117 = vld [vmem:[%s0 + $0x2a8] sm:$0xff]
  %v118 = vld [vmem:[%s0 + $0x2b0] sm:$0xff]
  %v119 = vld [vmem:[%s0 + $0x2b8] sm:$0xf]
  %v120 = vld [vmem:[%s0 + $0x2bc] sm:$0xff]
  %v121 = vld [vmem:[%s0 + $0x2c4] sm:$0xff]
  %v122 = vld [vmem:[%s0 + $0x2cc] sm:$0xf]
  %v123 = vld [vmem:[%s0 + $0x2d0] sm:$0xff]
  %v124 = vld [vmem:[%s0 + $0x2d8] sm:$0xff]
  %v125 = vld [vmem:[%s0 + $0x2e0] sm:$0xf]
  %v126 = vld [vmem:[%s0 + $0x2e4] sm:$0xff]
  %v127 = vld [vmem:[%s0 + $0x2ec] sm:$0xff]
  %v128 = vld [vmem:[%s0 + $0x2f4] sm:$0xf]
  %v129 = vld [vmem:[%s0 + $0x2f8] sm:$0xff]
  %v130 = vld [vmem:[%s0 + $0x300] sm:$0xff]
  %v131 = vld [vmem:[%s0 + $0x308] sm:$0xf]
  %v132 = vld [vmem:[%s0 + $0x30c] sm:$0xff]
  %v133 = vld [vmem:[%s0 + $0x314] sm:$0xff]
  %v134 = vld [vmem:[%s0 + $0x31c] sm:$0xf]
  %v135 = vld [vmem:[%s0 + $0x320] sm:$0xff]
  %v136 = vld [vmem:[%s0 + $0x328] sm:$0xff]
  %v137 = vld [vmem:[%s0 + $0x330] sm:$0xf]
  %v138 = vld [vmem:[%s0 + $0x334] sm:$0xff]
  %v139 = vld [vmem:[%s0 + $0x33c] sm:$0xff]
  %v140 = vld [vmem:[%s0 + $0x344] sm:$0xf]
  %v141 = vld [vmem:[%s0 + $0x348] sm:$0xff]
  %v142 = vld [vmem:[%s0 + $0x350] sm:$0xff]
  %v143 = vld [vmem:[%s0 + $0x358] sm:$0xf]
  %v144 = vld [vmem:[%s0 + $0x35c] sm:$0xff]
  %v145 = vld [vmem:[%s0 + $0x364] sm:$0xff]
  %v146 = vld [vmem:[%s0 + $0x36c] sm:$0xf]
  %v147 = vld [vmem:[%s0 + $0x370] sm:$0xff]
  %v148 = vld [vmem:[%s0 + $0x378] sm:$0xff]
  %v149 = vld [vmem:[%s0 + $0x380] sm:$0xf]
  %v150 = vld [vmem:[%s0 + $0x384] sm:$0xff]
  %v151 = vld [vmem:[%s0 + $0x38c] sm:$0xff]
  %v152 = vld [vmem:[%s0 + $0x394] sm:$0xf]
  %v153 = vld [vmem:[%s0 + $0x398] sm:$0xff]
  %v154 = vld [vmem:[%s0 + $0x3a0] sm:$0xff]
  %v155 = vld [vmem:[%s0 + $0x3a8] sm:$0xf]
  %v156 = vld [vmem:[%s0 + $0x3ac] sm:$0xff]
  %v157 = vld [vmem:[%s0 + $0x3b4] sm:$0xff]
  %v158 = vld [vmem:[%s0 + $0x3bc] sm:$0xf]
  %v159 = vld [vmem:[%s0 + $0x3c0] sm:$0xff]
  %v160 = vld [vmem:[%s0 + $0x3c8] sm:$0xff]
  %v161 = vld [vmem:[%s0 + $0x3d0] sm:$0xf]
  %v162 = vld [vmem:[%s1] sm:$0xf]
  %v163 = vld [vmem:[%s1 + $0x4] sm:$0xf]
  %v164 = vld [vmem:[%s1 + $0x8] sm:$0xf]
  %v165 = vld [vmem:[%s1 + $0xc] sm:$0xf]
  %v166 = vld [vmem:[%s1 + $0x10] sm:$0xf]
  %v167 = vld [vmem:[%s1 + $0x14] sm:$0xf]
  %v168 = vld [vmem:[%s1 + $0x18] sm:$0xf]
  %v169 = vld [vmem:[%s1 + $0x1c] sm:$0xf]
  %v170 = vld [vmem:[%s1 + $0x20] sm:$0xf]
  %v171 = vld [vmem:[%s1 + $0x24] sm:$0xf]
  %v172 = vld [vmem:[%s1 + $0x28] sm:$0xf]
  %v173 = vld [vmem:[%s1 + $0x2c] sm:$0xf]
  %v174 = vld [vmem:[%s1 + $0x30] sm:$0xf]
  %v175 = vld [vmem:[%s1 + $0x34] sm:$0xf]
  %v176 = vld [vmem:[%s1 + $0x38] sm:$0xf]
  %v177 = vld [vmem:[%s1 + $0x3c] sm:$0xf]
  %v178 = vld [vmem:[%s1 + $0x40] sm:$0xf]
  %v179 = vld [vmem:[%s1 + $0x44] sm:$0xf]
  %v180 = vld [vmem:[%s1 + $0x48] sm:$0xf]
  %v181 = vld [vmem:[%s1 + $0x4c] sm:$0xf]
  %v182 = vld [vmem:[%s1 + $0x50] sm:$0xf]
  %v183 = vld [vmem:[%s1 + $0x54] sm:$0xf]
  %v184 = vld [vmem:[%s1 + $0x58] sm:$0xf]
  %v185 = vld [vmem:[%s1 + $0x5c] sm:$0xf]
  %v186 = vld [vmem:[%s1 + $0x60] sm:$0xf]
  %v187 = vld [vmem:[%s1 + $0x64] sm:$0xf]
  %v188 = vld [vmem:[%s1 + $0x68] sm:$0xf]
  %v189 = vld [vmem:[%s1 + $0x6c] sm:$0xf]
  %v190 = vld [vmem:[%s1 + $0x70] sm:$0xf]
  %v191 = vld [vmem:[%s1 + $0x74] sm:$0xf]
  %v192 = vld [vmem:[%s1 + $0x78] sm:$0xf]
  %v193 = vld [vmem:[%s1 + $0x7c] sm:$0xf]
  %v194 = vld [vmem:[%s1 + $0x80] sm:$0xf]
  %v195 = vld [vmem:[%s1 + $0x84] sm:$0xf]
  %v196 = vld [vmem:[%s1 + $0x88] sm:$0xf]
  %v197 = vld [vmem:[%s1 + $0x8c] sm:$0xf]
  %v198 = vld [vmem:[%s1 + $0x90] sm:$0xf]
  %v199 = vld [vmem:[%s1 + $0x94] sm:$0xf]
  %v200 = vld [vmem:[%s1 + $0x98] sm:$0xf]
  %v201 = vld [vmem:[%s1 + $0x9c] sm:$0xf]
  %v202 = vld [vmem:[%s1 + $0xa0] sm:$0xf]
  %v203 = vld [vmem:[%s1 + $0xa4] sm:$0xf]
  %v204 = vld [vmem:[%s1 + $0xa8] sm:$0xf]
  %v205 = vld [vmem:[%s1 + $0xac] sm:$0xf]
  %v206 = vld [vmem:[%s1 + $0xb0] sm:$0xf]
  %v207 = vld [vmem:[%s1 + $0xb4] sm:$0xf]
  %v208 = vld [vmem:[%s1 + $0xb8] sm:$0xf]
  %v209 = vld [vmem:[%s1 + $0xbc] sm:$0xf]
  %v210 = vld [vmem:[%s1 + $0xc0] sm:$0xf]
  %v211 = vld [vmem:[%s1 + $0xc4] sm:$0xf]
  %v212 = vld [vmem:[%s1 + $0xc8] sm:$0xf]
  %v213 = vld [vmem:[%s1 + $0xcc] sm:$0xf]
  %v214 = vld [vmem:[%s1 + $0xd0] sm:$0xf]
  %v215 = vld [vmem:[%s1 + $0xd4] sm:$0xf]
  %v216 = vld [vmem:[%s1 + $0xd8] sm:$0xf]
  %v217 = vld [vmem:[%s1 + $0xdc] sm:$0xf]
  %v218 = vld [vmem:[%s1 + $0xe0] sm:$0xf]
  %v219 = vld [vmem:[%s1 + $0xe4] sm:$0xf]
  %v220 = vld [vmem:[%s1 + $0xe8] sm:$0xf]
  %v221 = vld [vmem:[%s1 + $0xec] sm:$0xf]
  %v222 = vld [vmem:[%s1 + $0xf0] sm:$0xf]
  %v223 = vld [vmem:[%s1 + $0xf4] sm:$0xf]
  %v224 = vld [vmem:[%s1 + $0xf8] sm:$0xf]
  %v225 = vld [vmem:[%s1 + $0xfc] sm:$0xf]
  %v226 = vld [vmem:[%s1 + $0x100] sm:$0xf]
  %v227 = vld [vmem:[%s1 + $0x104] sm:$0xf]
  %v228 = vld [vmem:[%s1 + $0x108] sm:$0xf]
  %v229 = vld [vmem:[%s1 + $0x10c] sm:$0xf]
  %v230 = vld [vmem:[%s1 + $0x110] sm:$0xf]
  %v231 = vld [vmem:[%s1 + $0x114] sm:$0xf]
  %v232 = vld [vmem:[%s1 + $0x118] sm:$0xf]
  %v233 = vld [vmem:[%s1 + $0x11c] sm:$0xf]
  %v381 = vunpack.c.l.b16 %v15
  %v382 = vunpack.c.h.b16 %v15
  %v383 = vunpack.c.l.b16 %v16
  %v384 = vunpack.c.h.b16 %v16
  %v385 = vunpack.c.l.b16 %v17
  %v386 = vunpack.c.l.b16 %v18
  %v387 = vunpack.c.h.b16 %v18
  %v388 = vunpack.c.l.b16 %v19
  %v389 = vunpack.c.h.b16 %v19
  %v390 = vunpack.c.l.b16 %v20
  %v391 = vunpack.c.l.b16 %v21
  %v392 = vunpack.c.h.b16 %v21
  %v393 = vunpack.c.l.b16 %v22
  %v394 = vunpack.c.h.b16 %v22
  %v395 = vunpack.c.l.b16 %v23
  %v396 = vunpack.c.l.b16 %v24
  %v397 = vunpack.c.h.b16 %v24
  %v398 = vunpack.c.l.b16 %v25
  %v399 = vunpack.c.h.b16 %v25
  %v400 = vunpack.c.l.b16 %v26
  %v401 = vunpack.c.l.b16 %v27
  %v402 = vunpack.c.h.b16 %v27
  %v403 = vunpack.c.l.b16 %v28
  %v404 = vunpack.c.h.b16 %v28
  %v405 = vunpack.c.l.b16 %v29
  %v406 = vunpack.c.l.b16 %v30
  %v407 = vunpack.c.h.b16 %v30
  %v408 = vunpack.c.l.b16 %v31
  %v409 = vunpack.c.h.b16 %v31
  %v410 = vunpack.c.l.b16 %v32
  %v411 = vunpack.c.l.b16 %v33
  %v412 = vunpack.c.h.b16 %v33
  %v413 = vunpack.c.l.b16 %v34
  %v414 = vunpack.c.h.b16 %v34
  %v415 = vunpack.c.l.b16 %v35
  %v416 = vunpack.c.l.b16 %v36
  %v417 = vunpack.c.h.b16 %v36
  %v418 = vunpack.c.l.b16 %v37
  %v419 = vunpack.c.h.b16 %v37
  %v420 = vunpack.c.l.b16 %v38
  %v421 = vunpack.c.l.b16 %v39
  %v422 = vunpack.c.h.b16 %v39
  %v423 = vunpack.c.l.b16 %v40
  %v424 = vunpack.c.h.b16 %v40
  %v425 = vunpack.c.l.b16 %v41
  %v426 = vunpack.c.l.b16 %v42
  %v427 = vunpack.c.h.b16 %v42
  %v428 = vunpack.c.l.b16 %v43
  %v429 = vunpack.c.h.b16 %v43
  %v430 = vunpack.c.l.b16 %v44
  %v431 = vunpack.c.l.b16 %v45
  %v432 = vunpack.c.h.b16 %v45
  %v433 = vunpack.c.l.b16 %v46
  %v434 = vunpack.c.h.b16 %v46
  %v435 = vunpack.c.l.b16 %v47
  %v436 = vunpack.c.l.b16 %v48
  %v437 = vunpack.c.h.b16 %v48
  %v438 = vunpack.c.l.b16 %v49
  %v439 = vunpack.c.h.b16 %v49
  %v440 = vunpack.c.l.b16 %v50
  %v441 = vunpack.c.l.b16 %v51
  %v442 = vunpack.c.h.b16 %v51
  %v443 = vunpack.c.l.b16 %v52
  %v444 = vunpack.c.h.b16 %v52
  %v445 = vunpack.c.l.b16 %v53
  %v446 = vunpack.c.l.b16 %v54
  %v447 = vunpack.c.h.b16 %v54
  %v448 = vunpack.c.l.b16 %v55
  %v449 = vunpack.c.h.b16 %v55
  %v450 = vunpack.c.l.b16 %v56
  %v451 = vunpack.c.l.b16 %v57
  %v452 = vunpack.c.h.b16 %v57
  %v453 = vunpack.c.l.b16 %v58
  %v454 = vunpack.c.h.b16 %v58
  %v455 = vunpack.c.l.b16 %v59
  %v456 = vunpack.c.l.b16 %v60
  %v457 = vunpack.c.h.b16 %v60
  %v458 = vunpack.c.l.b16 %v61
  %v459 = vunpack.c.h.b16 %v61
  %v460 = vunpack.c.l.b16 %v62
  %v461 = vunpack.c.l.b16 %v63
  %v462 = vunpack.c.h.b16 %v63
  %v463 = vunpack.c.l.b16 %v64
  %v464 = vunpack.c.h.b16 %v64
  %v465 = vunpack.c.l.b16 %v65
  %v466 = vunpack.c.l.b16 %v66
  %v467 = vunpack.c.h.b16 %v66
  %v468 = vunpack.c.l.b16 %v67
  %v469 = vunpack.c.h.b16 %v67
  %v470 = vunpack.c.l.b16 %v68
  %v471 = vunpack.c.l.b16 %v69
  %v472 = vunpack.c.h.b16 %v69
  %v473 = vunpack.c.l.b16 %v70
  %v474 = vunpack.c.h.b16 %v70
  %v475 = vunpack.c.l.b16 %v71
  %v476 = vunpack.c.l.b16 %v72
  %v477 = vunpack.c.h.b16 %v72
  %v478 = vunpack.c.l.b16 %v73
  %v479 = vunpack.c.h.b16 %v73
  %v480 = vunpack.c.l.b16 %v74
  %v481 = vunpack.c.l.b16 %v75
  %v482 = vunpack.c.h.b16 %v75
  %v483 = vunpack.c.l.b16 %v76
  %v484 = vunpack.c.h.b16 %v76
  %v485 = vunpack.c.l.b16 %v77
  %v486 = vunpack.c.l.b16 %v78
  %v487 = vunpack.c.h.b16 %v78
  %v488 = vunpack.c.l.b16 %v79
  %v489 = vunpack.c.h.b16 %v79
  %v490 = vunpack.c.l.b16 %v80
  %v491 = vunpack.c.l.b16 %v81
  %v492 = vunpack.c.h.b16 %v81
  %v493 = vunpack.c.l.b16 %v82
  %v494 = vunpack.c.h.b16 %v82
  %v495 = vunpack.c.l.b16 %v83
  %v496 = vunpack.c.l.b16 %v84
  %v497 = vunpack.c.h.b16 %v84
  %v498 = vunpack.c.l.b16 %v85
  %v499 = vunpack.c.h.b16 %v85
  %v500 = vunpack.c.l.b16 %v86
  %v501 = vunpack.c.l.b16 %v87
  %v502 = vunpack.c.h.b16 %v87
  %v503 = vunpack.c.l.b16 %v88
  %v504 = vunpack.c.h.b16 %v88
  %v505 = vunpack.c.l.b16 %v89
  %v506 = vunpack.c.l.b16 %v90
  %v507 = vunpack.c.h.b16 %v90
  %v508 = vunpack.c.l.b16 %v91
  %v509 = vunpack.c.h.b16 %v91
  %v510 = vunpack.c.l.b16 %v92
  %v511 = vunpack.c.l.b16 %v93
  %v512 = vunpack.c.h.b16 %v93
  %v513 = vunpack.c.l.b16 %v94
  %v514 = vunpack.c.h.b16 %v94
  %v515 = vunpack.c.l.b16 %v95
  %v516 = vunpack.c.l.b16 %v96
  %v517 = vunpack.c.h.b16 %v96
  %v518 = vunpack.c.l.b16 %v97
  %v519 = vunpack.c.h.b16 %v97
  %v520 = vunpack.c.l.b16 %v98
  %v521 = vunpack.c.l.b16 %v99
  %v522 = vunpack.c.h.b16 %v99
  %v523 = vunpack.c.l.b16 %v100
  %v524 = vunpack.c.h.b16 %v100
  %v525 = vunpack.c.l.b16 %v101
  %v526 = vunpack.c.l.b16 %v102
  %v527 = vunpack.c.h.b16 %v102
  %v528 = vunpack.c.l.b16 %v103
  %v529 = vunpack.c.h.b16 %v103
  %v530 = vunpack.c.l.b16 %v104
  %v531 = vunpack.c.l.b16 %v105
  %v532 = vunpack.c.h.b16 %v105
  %v533 = vunpack.c.l.b16 %v106
  %v534 = vunpack.c.h.b16 %v106
  %v535 = vunpack.c.l.b16 %v107
  %v536 = vunpack.c.l.b16 %v108
  %v537 = vunpack.c.h.b16 %v108
  %v538 = vunpack.c.l.b16 %v109
  %v539 = vunpack.c.h.b16 %v109
  %v540 = vunpack.c.l.b16 %v110
  %v541 = vunpack.c.l.b16 %v111
  %v542 = vunpack.c.h.b16 %v111
  %v543 = vunpack.c.l.b16 %v112
  %v544 = vunpack.c.h.b16 %v112
  %v545 = vunpack.c.l.b16 %v113
  %v546 = vunpack.c.l.b16 %v114
  %v547 = vunpack.c.h.b16 %v114
  %v548 = vunpack.c.l.b16 %v115
  %v549 = vunpack.c.h.b16 %v115
  %v550 = vunpack.c.l.b16 %v116
  %v551 = vunpack.c.l.b16 %v117
  %v552 = vunpack.c.h.b16 %v117
  %v553 = vunpack.c.l.b16 %v118
  %v554 = vunpack.c.h.b16 %v118
  %v555 = vunpack.c.l.b16 %v119
  %v556 = vunpack.c.l.b16 %v120
  %v557 = vunpack.c.h.b16 %v120
  %v558 = vunpack.c.l.b16 %v121
  %v559 = vunpack.c.h.b16 %v121
  %v560 = vunpack.c.l.b16 %v122
  %v561 = vunpack.c.l.b16 %v123
  %v562 = vunpack.c.h.b16 %v123
  %v563 = vunpack.c.l.b16 %v124
  %v564 = vunpack.c.h.b16 %v124
  %v565 = vunpack.c.l.b16 %v125
  %v566 = vunpack.c.l.b16 %v126
  %v567 = vunpack.c.h.b16 %v126
  %v568 = vunpack.c.l.b16 %v127
  %v569 = vunpack.c.h.b16 %v127
  %v570 = vunpack.c.l.b16 %v128
  %v571 = vunpack.c.l.b16 %v129
  %v572 = vunpack.c.h.b16 %v129
  %v573 = vunpack.c.l.b16 %v130
  %v574 = vunpack.c.h.b16 %v130
  %v575 = vunpack.c.l.b16 %v131
  %v576 = vunpack.c.l.b16 %v132
  %v577 = vunpack.c.h.b16 %v132
  %v578 = vunpack.c.l.b16 %v133
  %v579 = vunpack.c.h.b16 %v133
  %v580 = vunpack.c.l.b16 %v134
  %v581 = vunpack.c.l.b16 %v135
  %v582 = vunpack.c.h.b16 %v135
  %v583 = vunpack.c.l.b16 %v136
  %v584 = vunpack.c.h.b16 %v136
  %v585 = vunpack.c.l.b16 %v137
  %v586 = vunpack.c.l.b16 %v138
  %v587 = vunpack.c.h.b16 %v138
  %v588 = vunpack.c.l.b16 %v139
  %v589 = vunpack.c.h.b16 %v139
  %v590 = vunpack.c.l.b16 %v140
  %v591 = vunpack.c.l.b16 %v141
  %v592 = vunpack.c.h.b16 %v141
  %v593 = vunpack.c.l.b16 %v142
  %v594 = vunpack.c.h.b16 %v142
  %v595 = vunpack.c.l.b16 %v143
  %v596 = vunpack.c.l.b16 %v144
  %v597 = vunpack.c.h.b16 %v144
  %v598 = vunpack.c.l.b16 %v145
  %v599 = vunpack.c.h.b16 %v145
  %v600 = vunpack.c.l.b16 %v146
  %v601 = vunpack.c.l.b16 %v147
  %v602 = vunpack.c.h.b16 %v147
  %v603 = vunpack.c.l.b16 %v148
  %v604 = vunpack.c.h.b16 %v148
  %v605 = vunpack.c.l.b16 %v149
  %v606 = vunpack.c.l.b16 %v150
  %v607 = vunpack.c.h.b16 %v150
  %v608 = vunpack.c.l.b16 %v151
  %v609 = vunpack.c.h.b16 %v151
  %v610 = vunpack.c.l.b16 %v152
  %v611 = vunpack.c.l.b16 %v153
  %v612 = vunpack.c.h.b16 %v153
  %v613 = vunpack.c.l.b16 %v154
  %v614 = vunpack.c.h.b16 %v154
  %v615 = vunpack.c.l.b16 %v155
  %v616 = vunpack.c.l.b16 %v156
  %v617 = vunpack.c.h.b16 %v156
  %v618 = vunpack.c.l.b16 %v157
  %v619 = vunpack.c.h.b16 %v157
  %v620 = vunpack.c.l.b16 %v158
  %v621 = vunpack.c.l.b16 %v159
  %v622 = vunpack.c.h.b16 %v159
  %v623 = vunpack.c.l.b16 %v160
  %v624 = vunpack.c.h.b16 %v160
  %v625 = vunpack.c.l.b16 %v161
  %v626 = vpack.c.b16 %v386, %v381
  %v627 = vpack.c.b16 %v387, %v382
  %v628 = vpack.c.b16 %v388, %v383
  %v629 = vpack.c.b16 %v389, %v384
  %v630 = vpack.c.b16 %v390, %v385
  %v631 = vpack.c.b16 %v396, %v391
  %v632 = vpack.c.b16 %v397, %v392
  %v633 = vpack.c.b16 %v398, %v393
  %v634 = vpack.c.b16 %v399, %v394
  %v635 = vpack.c.b16 %v400, %v395
  %v636 = vpack.c.b16 %v406, %v401
  %v637 = vpack.c.b16 %v407, %v402
  %v638 = vpack.c.b16 %v408, %v403
  %v639 = vpack.c.b16 %v409, %v404
  %v640 = vpack.c.b16 %v410, %v405
  %v641 = vpack.c.b16 %v416, %v411
  %v642 = vpack.c.b16 %v417, %v412
  %v643 = vpack.c.b16 %v418, %v413
  %v644 = vpack.c.b16 %v419, %v414
  %v645 = vpack.c.b16 %v420, %v415
  %v646 = vpack.c.b16 %v426, %v421
  %v647 = vpack.c.b16 %v427, %v422
  %v648 = vpack.c.b16 %v428, %v423
  %v649 = vpack.c.b16 %v429, %v424
  %v650 = vpack.c.b16 %v430, %v425
  %v651 = vpack.c.b16 %v436, %v431
  %v652 = vpack.c.b16 %v437, %v432
  %v653 = vpack.c.b16 %v438, %v433
  %v654 = vpack.c.b16 %v439, %v434
  %v655 = vpack.c.b16 %v440, %v435
  %v656 = vpack.c.b16 %v446, %v441
  %v657 = vpack.c.b16 %v447, %v442
  %v658 = vpack.c.b16 %v448, %v443
  %v659 = vpack.c.b16 %v449, %v444
  %v660 = vpack.c.b16 %v450, %v445
  %v661 = vpack.c.b16 %v456, %v451
  %v662 = vpack.c.b16 %v457, %v452
  %v663 = vpack.c.b16 %v458, %v453
  %v664 = vpack.c.b16 %v459, %v454
  %v665 = vpack.c.b16 %v460, %v455
  %v666 = vpack.c.b16 %v466, %v461
  %v667 = vpack.c.b16 %v467, %v462
  %v668 = vpack.c.b16 %v468, %v463
  %v669 = vpack.c.b16 %v469, %v464
  %v670 = vpack.c.b16 %v470, %v465
  %v671 = vpack.c.b16 %v476, %v471
  %v672 = vpack.c.b16 %v477, %v472
  %v673 = vpack.c.b16 %v478, %v473
  %v674 = vpack.c.b16 %v479, %v474
  %v675 = vpack.c.b16 %v480, %v475
  %v676 = vpack.c.b16 %v486, %v481
  %v677 = vpack.c.b16 %v487, %v482
  %v678 = vpack.c.b16 %v488, %v483
  %v679 = vpack.c.b16 %v489, %v484
  %v680 = vpack.c.b16 %v490, %v485
  %v681 = vpack.c.b16 %v496, %v491
  %v682 = vpack.c.b16 %v497, %v492
  %v683 = vpack.c.b16 %v498, %v493
  %v684 = vpack.c.b16 %v499, %v494
  %v685 = vpack.c.b16 %v500, %v495
  %v686 = vpack.c.b16 %v506, %v501
  %v687 = vpack.c.b16 %v507, %v502
  %v688 = vpack.c.b16 %v508, %v503
  %v689 = vpack.c.b16 %v509, %v504
  %v690 = vpack.c.b16 %v510, %v505
  %v691 = vpack.c.b16 %v516, %v511
  %v692 = vpack.c.b16 %v517, %v512
  %v693 = vpack.c.b16 %v518, %v513
  %v694 = vpack.c.b16 %v519, %v514
  %v695 = vpack.c.b16 %v520, %v515
  %v696 = vpack.c.b16 %v526, %v521
  %v697 = vpack.c.b16 %v527, %v522
  %v698 = vpack.c.b16 %v528, %v523
  %v699 = vpack.c.b16 %v529, %v524
  %v700 = vpack.c.b16 %v530, %v525
  %v701 = vpack.c.b16 %v536, %v531
  %v702 = vpack.c.b16 %v537, %v532
  %v703 = vpack.c.b16 %v538, %v533
  %v704 = vpack.c.b16 %v539, %v534
  %v705 = vpack.c.b16 %v540, %v535
  %v706 = vpack.c.b16 %v546, %v541
  %v707 = vpack.c.b16 %v547, %v542
  %v708 = vpack.c.b16 %v548, %v543
  %v709 = vpack.c.b16 %v549, %v544
  %v710 = vpack.c.b16 %v550, %v545
  %v711 = vpack.c.b16 %v556, %v551
  %v712 = vpack.c.b16 %v557, %v552
  %v713 = vpack.c.b16 %v558, %v553
  %v714 = vpack.c.b16 %v559, %v554
  %v715 = vpack.c.b16 %v560, %v555
  %v716 = vpack.c.b16 %v566, %v561
  %v717 = vpack.c.b16 %v567, %v562
  %v718 = vpack.c.b16 %v568, %v563
  %v719 = vpack.c.b16 %v569, %v564
  %v720 = vpack.c.b16 %v570, %v565
  %v721 = vpack.c.b16 %v576, %v571
  %v722 = vpack.c.b16 %v577, %v572
  %v723 = vpack.c.b16 %v578, %v573
  %v724 = vpack.c.b16 %v579, %v574
  %v725 = vpack.c.b16 %v580, %v575
  %v726 = vpack.c.b16 %v586, %v581
  %v727 = vpack.c.b16 %v587, %v582
  %v728 = vpack.c.b16 %v588, %v583
  %v729 = vpack.c.b16 %v589, %v584
  %v730 = vpack.c.b16 %v590, %v585
  %v731 = vpack.c.b16 %v596, %v591
  %v732 = vpack.c.b16 %v597, %v592
  %v733 = vpack.c.b16 %v598, %v593
  %v734 = vpack.c.b16 %v599, %v594
  %v735 = vpack.c.b16 %v600, %v595
  %v736 = vpack.c.b16 %v606, %v601
  %v737 = vpack.c.b16 %v607, %v602
  %v738 = vpack.c.b16 %v608, %v603
  %v739 = vpack.c.b16 %v609, %v604
  %v740 = vpack.c.b16 %v610, %v605
  %v741 = vpack.c.b16 %v616, %v611
  %v742 = vpack.c.b16 %v617, %v612
  %v743 = vpack.c.b16 %v618, %v613
  %v744 = vpack.c.b16 %v619, %v614
  %v745 = vpack.c.b16 %v620, %v615
  %v746 = vpack.c.b16 %v621, %v621
  %v747 = vpack.c.b16 %v622, %v622
  %v748 = vpack.c.b16 %v623, %v623
  %v749 = vpack.c.b16 %v624, %v624
  %v750 = vpack.c.b16 %v625, %v625
  %v923 = vunpack.c.l.b16 %v162
  %v924 = vunpack.c.l.b16 %v163
  %v925 = vunpack.c.l.b16 %v164
  %v926 = vunpack.c.l.b16 %v165
  %v927 = vunpack.c.l.b16 %v166
  %v928 = vunpack.c.l.b16 %v167
  %v929 = vunpack.c.l.b16 %v168
  %v930 = vunpack.c.l.b16 %v169
  %v931 = vunpack.c.l.b16 %v170
  %v932 = vunpack.c.l.b16 %v171
  %v933 = vunpack.c.l.b16 %v172
  %v934 = vunpack.c.l.b16 %v173
  %v935 = vunpack.c.l.b16 %v174
  %v936 = vunpack.c.l.b16 %v175
  %v937 = vunpack.c.l.b16 %v176
  %v938 = vunpack.c.l.b16 %v177
  %v939 = vunpack.c.l.b16 %v178
  %v940 = vunpack.c.l.b16 %v179
  %v941 = vunpack.c.l.b16 %v180
  %v942 = vunpack.c.l.b16 %v181
  %v943 = vunpack.c.l.b16 %v182
  %v944 = vunpack.c.l.b16 %v183
  %v945 = vunpack.c.l.b16 %v184
  %v946 = vunpack.c.l.b16 %v185
  %v947 = vunpack.c.l.b16 %v186
  %v948 = vunpack.c.l.b16 %v187
  %v949 = vunpack.c.l.b16 %v188
  %v950 = vunpack.c.l.b16 %v189
  %v951 = vunpack.c.l.b16 %v190
  %v952 = vunpack.c.l.b16 %v191
  %v953 = vunpack.c.l.b16 %v192
  %v954 = vunpack.c.l.b16 %v193
  %v955 = vunpack.c.l.b16 %v194
  %v956 = vunpack.c.l.b16 %v195
  %v957 = vunpack.c.l.b16 %v196
  %v958 = vunpack.c.l.b16 %v197
  %v959 = vunpack.c.l.b16 %v198
  %v960 = vunpack.c.l.b16 %v199
  %v961 = vunpack.c.l.b16 %v200
  %v962 = vunpack.c.l.b16 %v201
  %v963 = vunpack.c.l.b16 %v202
  %v964 = vunpack.c.l.b16 %v203
  %v965 = vunpack.c.l.b16 %v204
  %v966 = vunpack.c.l.b16 %v205
  %v967 = vunpack.c.l.b16 %v206
  %v968 = vunpack.c.l.b16 %v207
  %v969 = vunpack.c.l.b16 %v208
  %v970 = vunpack.c.l.b16 %v209
  %v971 = vunpack.c.l.b16 %v210
  %v972 = vunpack.c.l.b16 %v211
  %v973 = vunpack.c.l.b16 %v212
  %v974 = vunpack.c.l.b16 %v213
  %v975 = vunpack.c.l.b16 %v214
  %v976 = vunpack.c.l.b16 %v215
  %v977 = vunpack.c.l.b16 %v216
  %v978 = vunpack.c.l.b16 %v217
  %v979 = vunpack.c.l.b16 %v218
  %v980 = vunpack.c.l.b16 %v219
  %v981 = vunpack.c.l.b16 %v220
  %v982 = vunpack.c.l.b16 %v221
  %v983 = vunpack.c.l.b16 %v222
  %v984 = vunpack.c.l.b16 %v223
  %v985 = vunpack.c.l.b16 %v224
  %v986 = vunpack.c.l.b16 %v225
  %v987 = vunpack.c.l.b16 %v226
  %v988 = vunpack.c.l.b16 %v227
  %v989 = vunpack.c.l.b16 %v228
  %v990 = vunpack.c.l.b16 %v229
  %v991 = vunpack.c.l.b16 %v230
  %v992 = vunpack.c.l.b16 %v231
  %v993 = vunpack.c.l.b16 %v232
  %v994 = vunpack.c.l.b16 %v233
  %v995 = vpack.c.b16 %v924, %v923
  %v996 = vpack.c.b16 %v926, %v925
  %v997 = vpack.c.b16 %v928, %v927
  %v998 = vpack.c.b16 %v930, %v929
  %v999 = vpack.c.b16 %v932, %v931
  %v1000 = vpack.c.b16 %v934, %v933
  %v1001 = vpack.c.b16 %v936, %v935
  %v1002 = vpack.c.b16 %v938, %v937
  %v1003 = vpack.c.b16 %v940, %v939
  %v1004 = vpack.c.b16 %v942, %v941
  %v1005 = vpack.c.b16 %v944, %v943
  %v1006 = vpack.c.b16 %v946, %v945
  %v1007 = vpack.c.b16 %v948, %v947
  %v1008 = vpack.c.b16 %v950, %v949
  %v1009 = vpack.c.b16 %v952, %v951
  %v1010 = vpack.c.b16 %v954, %v953
  %v1011 = vpack.c.b16 %v956, %v955
  %v1012 = vpack.c.b16 %v958, %v957
  %v1013 = vpack.c.b16 %v960, %v959
  %v1014 = vpack.c.b16 %v962, %v961
  %v1015 = vpack.c.b16 %v964, %v963
  %v1016 = vpack.c.b16 %v966, %v965
  %v1017 = vpack.c.b16 %v968, %v967
  %v1018 = vpack.c.b16 %v970, %v969
  %v1019 = vpack.c.b16 %v972, %v971
  %v1020 = vpack.c.b16 %v974, %v973
  %v1021 = vpack.c.b16 %v976, %v975
  %v1022 = vpack.c.b16 %v978, %v977
  %v1023 = vpack.c.b16 %v980, %v979
  %v1024 = vpack.c.b16 %v982, %v981
  %v1025 = vpack.c.b16 %v984, %v983
  %v1026 = vpack.c.b16 %v986, %v985
  %v1027 = vpack.c.b16 %v988, %v987
  %v1028 = vpack.c.b16 %v990, %v989
  %v1029 = vpack.c.b16 %v992, %v991
  %v1030 = vpack.c.b16 %v994, %v993
  %vm1067 = vcmask 523264
  %v1069 = vsel %vm1067, %v630, 0
  %v1072 = vsel %vm1067, %v635, 0
  %v1075 = vsel %vm1067, %v640, 0
  %v1078 = vsel %vm1067, %v645, 0
  %v1081 = vsel %vm1067, %v650, 0
  %v1084 = vsel %vm1067, %v655, 0
  %v1087 = vsel %vm1067, %v660, 0
  %v1090 = vsel %vm1067, %v665, 0
  %v1093 = vsel %vm1067, %v670, 0
  %v1096 = vsel %vm1067, %v675, 0
  %v1099 = vsel %vm1067, %v680, 0
  %v1102 = vsel %vm1067, %v685, 0
  %v1105 = vsel %vm1067, %v690, 0
  %v1108 = vsel %vm1067, %v695, 0
  %v1111 = vsel %vm1067, %v700, 0
  %v1114 = vsel %vm1067, %v705, 0
  %v1117 = vsel %vm1067, %v710, 0
  %v1120 = vsel %vm1067, %v715, 0
  %v1123 = vsel %vm1067, %v720, 0
  %v1126 = vsel %vm1067, %v725, 0
  %v1129 = vsel %vm1067, %v730, 0
  %v1132 = vsel %vm1067, %v735, 0
  %v1135 = vsel %vm1067, %v740, 0
  %v1138 = vsel %vm1067, %v745, 0
  %v1141 = vsel %vm1067, %v750, 0
  %1143 = vmatprep.subr.bf16.mxu0 0
  %1144 = vmatpush1.bf16.msra.mxu0 %v995
  %1145 = vmatprep.subr.bf16.mxu0 0
  %1146 = vmatpush1.bf16.msra.mxu0 %v996
  %1147 = vmatprep.subr.bf16.mxu0 0
  %1148 = vmatpush1.bf16.msra.mxu0 %v997
  %1149 = vmatprep.subr.bf16.mxu0 0
  %1150 = vmatpush1.bf16.msra.mxu0 %v998
  %1151 = vmatprep.subr.bf16.mxu0 0
  %1152 = vmatpush1.bf16.msra.mxu0 %v999
  %1153 = vmatprep.subr.bf16.mxu0 0
  %1154 = vmatpush1.bf16.msra.mxu0 %v1000
  %1155 = vmatprep.subr.bf16.mxu0 0
  %1156 = vmatpush1.bf16.msra.mxu0 %v1001
  %1157 = vmatprep.subr.bf16.mxu0 0
  %1158 = vmatpush1.bf16.msra.mxu0 %v1002
  %1159 = vmatprep.subr.bf16.mxu0 0
  %1160 = vmatpush1.bf16.msra.mxu0 %v1003
  %1161 = vmatprep.subr.bf16.mxu0 0
  %1162 = vmatpush1.bf16.msra.mxu0 %v1004
  %1163 = vmatprep.subr.bf16.mxu0 0
  %1164 = vmatpush1.bf16.msra.mxu0 %v1005
  %1165 = vmatprep.subr.bf16.mxu0 0
  %1166 = vmatpush1.bf16.msra.mxu0 %v1006
  %1167 = vmatprep.subr.bf16.mxu0 0
  %1168 = vmatpush1.bf16.msra.mxu0 %v1007
  %1169 = vmatprep.subr.bf16.mxu0 0
  %1170 = vmatpush1.bf16.msra.mxu0 %v1008
  %1171 = vmatprep.subr.bf16.mxu0 0
  %1172 = vmatpush1.bf16.msra.mxu0 %v1009
  %1173 = vmatprep.subr.bf16.mxu0 0
  %1174 = vmatpush1.bf16.msra.mxu0 %v1010
  %1175 = vmatprep.mubr.bf16.mxu0 %v627
  %1176 = vmatmul.mubr.bf16.gmra.mrb[0].mxu0 %v626
  %v1177 = vpop.f32.mrb[0].mxu0
  %v1178 = vadd.f32 0.0, %v1177
  %v1179 = vpop.f32.mrb[0].mxu0
  %v1180 = vpop.f32.mrb[0].mxu0
  %v1181 = vadd.f32 0.0, %v1180
  %v1182 = vpop.f32.mrb[0].mxu0
  %1183 = vmatprep.mubr.bf16.mxu0 %v632
  %1184 = vmatmul.mubr.bf16.gmra.mrb[0].mxu0 %v631
  %v1185 = vpop.f32.mrb[0].mxu0
  %v1186 = vadd.f32 0.0, %v1185
  %v1187 = vpop.f32.mrb[0].mxu0
  %v1188 = vpop.f32.mrb[0].mxu0
  %v1189 = vadd.f32 0.0, %v1188
  %v1190 = vpop.f32.mrb[0].mxu0
  %1191 = vmatprep.mubr.bf16.mxu0 %v637
  %1192 = vmatmul.mubr.bf16.gmra.mrb[0].mxu0 %v636
  %v1193 = vpop.f32.mrb[0].mxu0
  %v1194 = vadd.f32 0.0, %v1193
  %v1195 = vpop.f32.mrb[0].mxu0
  %v1196 = vpop.f32.mrb[0].mxu0
  %v1197 = vadd.f32 0.0, %v1196
  %v1198 = vpop.f32.mrb[0].mxu0
  %1199 = vmatprep.mubr.bf16.mxu0 %v642
  %1200 = vmatmul.mubr.bf16.gmra.mrb[0].mxu0 %v641
  %v1201 = vpop.f32.mrb[0].mxu0
  %v1202 = vadd.f32 0.0, %v1201
  %v1203 = vpop.f32.mrb[0].mxu0
  %v1204 = vpop.f32.mrb[0].mxu0
  %v1205 = vadd.f32 0.0, %v1204
  %v1206 = vpop.f32.mrb[0].mxu0
  %1207 = vmatprep.mubr.bf16.mxu0 %v647
  %1208 = vmatmul.mubr.bf16.gmra.mrb[0].mxu0 %v646
  %v1209 = vpop.f32.mrb[0].mxu0
  %v1210 = vadd.f32 0.0, %v1209
  %v1211 = vpop.f32.mrb[0].mxu0
  %v1212 = vpop.f32.mrb[0].mxu0
  %v1213 = vadd.f32 0.0, %v1212
  %v1214 = vpop.f32.mrb[0].mxu0
  %1215 = vmatprep.mubr.bf16.mxu0 %v652
  %1216 = vmatmul.mubr.bf16.gmra.mrb[0].mxu0 %v651
  %v1217 = vpop.f32.mrb[0].mxu0
  %v1218 = vadd.f32 0.0, %v1217
  %v1219 = vpop.f32.mrb[0].mxu0
  %v1220 = vpop.f32.mrb[0].mxu0
  %v1221 = vadd.f32 0.0, %v1220
  %v1222 = vpop.f32.mrb[0].mxu0
  %1223 = vmatprep.mubr.bf16.mxu0 %v657
  %1224 = vmatmul.mubr.bf16.gmra.mrb[0].mxu0 %v656
  %v1225 = vpop.f32.mrb[0].mxu0
  %v1226 = vadd.f32 0.0, %v1225
  %v1227 = vpop.f32.mrb[0].mxu0
  %v1228 = vpop.f32.mrb[0].mxu0
  %v1229 = vadd.f32 0.0, %v1228
  %v1230 = vpop.f32.mrb[0].mxu0
  %1231 = vmatprep.mubr.bf16.mxu0 %v662
  %1232 = vmatmul.mubr.bf16.gmra.mrb[0].mxu0 %v661
  %v1233 = vpop.f32.mrb[0].mxu0
  %v1234 = vadd.f32 0.0, %v1233
  %v1235 = vpop.f32.mrb[0].mxu0
  %v1236 = vpop.f32.mrb[0].mxu0
  %v1237 = vadd.f32 0.0, %v1236
  %v1238 = vpop.f32.mrb[0].mxu0
  %1239 = vmatprep.mubr.bf16.mxu0 %v667
  %1240 = vmatmul.mubr.bf16.gmra.mrb[0].mxu0 %v666
  %v1241 = vpop.f32.mrb[0].mxu0
  %v1242 = vadd.f32 0.0, %v1241
  %v1243 = vpop.f32.mrb[0].mxu0
  %v1244 = vpop.f32.mrb[0].mxu0
  %v1245 = vadd.f32 0.0, %v1244
  %v1246 = vpop.f32.mrb[0].mxu0
  %1247 = vmatprep.mubr.bf16.mxu0 %v672
  %1248 = vmatmul.mubr.bf16.gmra.mrb[0].mxu0 %v671
  %v1249 = vpop.f32.mrb[0].mxu0
  %v1250 = vadd.f32 0.0, %v1249
  %v1251 = vpop.f32.mrb[0].mxu0
  %v1252 = vpop.f32.mrb[0].mxu0
  %v1253 = vadd.f32 0.0, %v1252
  %v1254 = vpop.f32.mrb[0].mxu0
  %1255 = vmatprep.mubr.bf16.mxu0 %v677
  %1256 = vmatmul.mubr.bf16.gmra.mrb[0].mxu0 %v676
  %v1257 = vpop.f32.mrb[0].mxu0
  %v1258 = vadd.f32 0.0, %v1257
  %v1259 = vpop.f32.mrb[0].mxu0
  %v1260 = vpop.f32.mrb[0].mxu0
  %v1261 = vadd.f32 0.0, %v1260
  %v1262 = vpop.f32.mrb[0].mxu0
  %1263 = vmatprep.mubr.bf16.mxu0 %v682
  %1264 = vmatmul.mubr.bf16.gmra.mrb[0].mxu0 %v681
  %v1265 = vpop.f32.mrb[0].mxu0
  %v1266 = vadd.f32 0.0, %v1265
  %v1267 = vpop.f32.mrb[0].mxu0
  %v1268 = vpop.f32.mrb[0].mxu0
  %v1269 = vadd.f32 0.0, %v1268
  %v1270 = vpop.f32.mrb[0].mxu0
  %1271 = vmatprep.mubr.bf16.mxu0 %v687
  %1272 = vmatmul.mubr.bf16.gmra.mrb[0].mxu0 %v686
  %v1273 = vpop.f32.mrb[0].mxu0
  %v1274 = vadd.f32 0.0, %v1273
  %v1275 = vpop.f32.mrb[0].mxu0
  %v1276 = vpop.f32.mrb[0].mxu0
  %v1277 = vadd.f32 0.0, %v1276
  %v1278 = vpop.f32.mrb[0].mxu0
  %1279 = vmatprep.mubr.bf16.mxu0 %v692
  %1280 = vmatmul.mubr.bf16.gmra.mrb[0].mxu0 %v691
  %v1281 = vpop.f32.mrb[0].mxu0
  %v1282 = vadd.f32 0.0, %v1281
  %v1283 = vpop.f32.mrb[0].mxu0
  %v1284 = vpop.f32.mrb[0].mxu0
  %v1285 = vadd.f32 0.0, %v1284
  %v1286 = vpop.f32.mrb[0].mxu0
  %1287 = vmatprep.mubr.bf16.mxu0 %v697
  %1288 = vmatmul.mubr.bf16.gmra.mrb[0].mxu0 %v696
  %v1289 = vpop.f32.mrb[0].mxu0
  %v1290 = vadd.f32 0.0, %v1289
  %v1291 = vpop.f32.mrb[0].mxu0
  %v1292 = vpop.f32.mrb[0].mxu0
  %v1293 = vadd.f32 0.0, %v1292
  %v1294 = vpop.f32.mrb[0].mxu0
  %1295 = vmatprep.mubr.bf16.mxu0 %v702
  %1296 = vmatmul.mubr.bf16.gmra.mrb[0].mxu0 %v701
  %v1297 = vpop.f32.mrb[0].mxu0
  %v1298 = vadd.f32 0.0, %v1297
  %v1299 = vpop.f32.mrb[0].mxu0
  %v1300 = vpop.f32.mrb[0].mxu0
  %v1301 = vadd.f32 0.0, %v1300
  %v1302 = vpop.f32.mrb[0].mxu0
  %1303 = vmatprep.mubr.bf16.mxu0 %v707
  %1304 = vmatmul.mubr.bf16.gmra.mrb[0].mxu0 %v706
  %v1305 = vpop.f32.mrb[0].mxu0
  %v1306 = vadd.f32 0.0, %v1305
  %v1307 = vpop.f32.mrb[0].mxu0
  %v1308 = vpop.f32.mrb[0].mxu0
  %v1309 = vadd.f32 0.0, %v1308
  %v1310 = vpop.f32.mrb[0].mxu0
  %1311 = vmatprep.mubr.bf16.mxu0 %v712
  %1312 = vmatmul.mubr.bf16.gmra.mrb[0].mxu0 %v711
  %v1313 = vpop.f32.mrb[0].mxu0
  %v1314 = vadd.f32 0.0, %v1313
  %v1315 = vpop.f32.mrb[0].mxu0
  %v1316 = vpop.f32.mrb[0].mxu0
  %v1317 = vadd.f32 0.0, %v1316
  %v1318 = vpop.f32.mrb[0].mxu0
  %1319 = vmatprep.mubr.bf16.mxu0 %v717
  %1320 = vmatmul.mubr.bf16.gmra.mrb[0].mxu0 %v716
  %v1321 = vpop.f32.mrb[0].mxu0
  %v1322 = vadd.f32 0.0, %v1321
  %v1323 = vpop.f32.mrb[0].mxu0
  %v1324 = vpop.f32.mrb[0].mxu0
  %v1325 = vadd.f32 0.0, %v1324
  %v1326 = vpop.f32.mrb[0].mxu0
  %1327 = vmatprep.mubr.bf16.mxu0 %v722
  %1328 = vmatmul.mubr.bf16.gmra.mrb[0].mxu0 %v721
  %v1329 = vpop.f32.mrb[0].mxu0
  %v1330 = vadd.f32 0.0, %v1329
  %v1331 = vpop.f32.mrb[0].mxu0
  %v1332 = vpop.f32.mrb[0].mxu0
  %v1333 = vadd.f32 0.0, %v1332
  %v1334 = vpop.f32.mrb[0].mxu0
  %1335 = vmatprep.mubr.bf16.mxu0 %v727
  %1336 = vmatmul.mubr.bf16.gmra.mrb[0].mxu0 %v726
  %v1337 = vpop.f32.mrb[0].mxu0
  %v1338 = vadd.f32 0.0, %v1337
  %v1339 = vpop.f32.mrb[0].mxu0
  %v1340 = vpop.f32.mrb[0].mxu0
  %v1341 = vadd.f32 0.0, %v1340
  %v1342 = vpop.f32.mrb[0].mxu0
  %1343 = vmatprep.mubr.bf16.mxu0 %v732
  %1344 = vmatmul.mubr.bf16.gmra.mrb[0].mxu0 %v731
  %v1345 = vpop.f32.mrb[0].mxu0
  %v1346 = vadd.f32 0.0, %v1345
  %v1347 = vpop.f32.mrb[0].mxu0
  %v1348 = vpop.f32.mrb[0].mxu0
  %v1349 = vadd.f32 0.0, %v1348
  %v1350 = vpop.f32.mrb[0].mxu0
  %1351 = vmatprep.mubr.bf16.mxu0 %v737
  %1352 = vmatmul.mubr.bf16.gmra.mrb[0].mxu0 %v736
  %v1353 = vpop.f32.mrb[0].mxu0
  %v1354 = vadd.f32 0.0, %v1353
  %v1355 = vpop.f32.mrb[0].mxu0
  %v1356 = vpop.f32.mrb[0].mxu0
  %v1357 = vadd.f32 0.0, %v1356
  %v1358 = vpop.f32.mrb[0].mxu0
  %1359 = vmatprep.mubr.bf16.mxu0 %v742
  %1360 = vmatmul.mubr.bf16.gmra.mrb[0].mxu0 %v741
  %v1361 = vpop.f32.mrb[0].mxu0
  %v1362 = vadd.f32 0.0, %v1361
  %v1363 = vpop.f32.mrb[0].mxu0
  %v1364 = vpop.f32.mrb[0].mxu0
  %v1365 = vadd.f32 0.0, %v1364
  %v1366 = vpop.f32.mrb[0].mxu0
  %1367 = vmatprep.mubr.bf16.mxu0 %v747
  %1368 = vmatmul.mubr.bf16.gmra.mrb[0].mxu0 %v746
  %v1369 = vpop.f32.mrb[0].mxu0
  %v1370 = vadd.f32 0.0, %v1369
  %v1371 = vpop.f32.mrb[0].mxu0
  %v1372 = vpop.f32.mrb[0].mxu0
  %v1373 = vpop.f32.mrb[0].mxu0
  %1374 = vdwg.mxu0
  %1375 = vmatprep.subr.bf16.mxu0 0
  %1376 = vmatpush1.bf16.msra.mxu0 %v1011
  %1377 = vmatprep.subr.bf16.mxu0 0
  %1378 = vmatpush1.bf16.msra.mxu0 %v1012
  %1379 = vmatprep.subr.bf16.mxu0 0
  %1380 = vmatpush1.bf16.msra.mxu0 %v1013
  %1381 = vmatprep.subr.bf16.mxu0 0
  %1382 = vmatpush1.bf16.msra.mxu0 %v1014
  %1383 = vmatprep.subr.bf16.mxu0 0
  %1384 = vmatpush1.bf16.msra.mxu0 %v1015
  %1385 = vmatprep.subr.bf16.mxu0 0
  %1386 = vmatpush1.bf16.msra.mxu0 %v1016
  %1387 = vmatprep.subr.bf16.mxu0 0
  %1388 = vmatpush1.bf16.msra.mxu0 %v1017
  %1389 = vmatprep.subr.bf16.mxu0 0
  %1390 = vmatpush1.bf16.msra.mxu0 %v1018
  %1391 = vmatprep.subr.bf16.mxu0 0
  %1392 = vmatpush1.bf16.msra.mxu0 %v1019
  %1393 = vmatprep.subr.bf16.mxu0 0
  %1394 = vmatpush1.bf16.msra.mxu0 %v1020
  %1395 = vmatprep.subr.bf16.mxu0 0
  %1396 = vmatpush1.bf16.msra.mxu0 %v1021
  %1397 = vmatprep.subr.bf16.mxu0 0
  %1398 = vmatpush1.bf16.msra.mxu0 %v1022
  %1399 = vmatprep.subr.bf16.mxu0 0
  %1400 = vmatpush1.bf16.msra.mxu0 %v1023
  %1401 = vmatprep.subr.bf16.mxu0 0
  %1402 = vmatpush1.bf16.msra.mxu0 %v1024
  %1403 = vmatprep.subr.bf16.mxu0 0
  %1404 = vmatpush1.bf16.msra.mxu0 %v1025
  %1405 = vmatprep.subr.bf16.mxu0 0
  %1406 = vmatpush1.bf16.msra.mxu0 %v1026
  %1407 = vmatprep.mubr.bf16.mxu0 %v629
  %1408 = vmatmul.mubr.bf16.gmra.mrb[0].mxu0 %v628
  %v1409 = vpop.f32.mrb[0].mxu0
  %v1410 = vadd.f32 %v1178, %v1409
  %v1411 = vpop.f32.mrb[0].mxu0
  %v1412 = vpop.f32.mrb[0].mxu0
  %v1413 = vadd.f32 %v1181, %v1412
  %v1414 = vpop.f32.mrb[0].mxu0
  %1415 = vmatprep.mubr.bf16.mxu0 %v634
  %1416 = vmatmul.mubr.bf16.gmra.mrb[0].mxu0 %v633
  %v1417 = vpop.f32.mrb[0].mxu0
  %v1418 = vadd.f32 %v1186, %v1417
  %v1419 = vpop.f32.mrb[0].mxu0
  %v1420 = vpop.f32.mrb[0].mxu0
  %v1421 = vadd.f32 %v1189, %v1420
  %v1422 = vpop.f32.mrb[0].mxu0
  %1423 = vmatprep.mubr.bf16.mxu0 %v639
  %1424 = vmatmul.mubr.bf16.gmra.mrb[0].mxu0 %v638
  %v1425 = vpop.f32.mrb[0].mxu0
  %v1426 = vadd.f32 %v1194, %v1425
  %v1427 = vpop.f32.mrb[0].mxu0
  %v1428 = vpop.f32.mrb[0].mxu0
  %v1429 = vadd.f32 %v1197, %v1428
  %v1430 = vpop.f32.mrb[0].mxu0
  %1431 = vmatprep.mubr.bf16.mxu0 %v644
  %1432 = vmatmul.mubr.bf16.gmra.mrb[0].mxu0 %v643
  %v1433 = vpop.f32.mrb[0].mxu0
  %v1434 = vadd.f32 %v1202, %v1433
  %v1435 = vpop.f32.mrb[0].mxu0
  %v1436 = vpop.f32.mrb[0].mxu0
  %v1437 = vadd.f32 %v1205, %v1436
  %v1438 = vpop.f32.mrb[0].mxu0
  %1439 = vmatprep.mubr.bf16.mxu0 %v649
  %1440 = vmatmul.mubr.bf16.gmra.mrb[0].mxu0 %v648
  %v1441 = vpop.f32.mrb[0].mxu0
  %v1442 = vadd.f32 %v1210, %v1441
  %v1443 = vpop.f32.mrb[0].mxu0
  %v1444 = vpop.f32.mrb[0].mxu0
  %v1445 = vadd.f32 %v1213, %v1444
  %v1446 = vpop.f32.mrb[0].mxu0
  %1447 = vmatprep.mubr.bf16.mxu0 %v654
  %1448 = vmatmul.mubr.bf16.gmra.mrb[0].mxu0 %v653
  %v1449 = vpop.f32.mrb[0].mxu0
  %v1450 = vadd.f32 %v1218, %v1449
  %v1451 = vpop.f32.mrb[0].mxu0
  %v1452 = vpop.f32.mrb[0].mxu0
  %v1453 = vadd.f32 %v1221, %v1452
  %v1454 = vpop.f32.mrb[0].mxu0
  %1455 = vmatprep.mubr.bf16.mxu0 %v659
  %1456 = vmatmul.mubr.bf16.gmra.mrb[0].mxu0 %v658
  %v1457 = vpop.f32.mrb[0].mxu0
  %v1458 = vadd.f32 %v1226, %v1457
  %v1459 = vpop.f32.mrb[0].mxu0
  %v1460 = vpop.f32.mrb[0].mxu0
  %v1461 = vadd.f32 %v1229, %v1460
  %v1462 = vpop.f32.mrb[0].mxu0
  %1463 = vmatprep.mubr.bf16.mxu0 %v664
  %1464 = vmatmul.mubr.bf16.gmra.mrb[0].mxu0 %v663
  %v1465 = vpop.f32.mrb[0].mxu0
  %v1466 = vadd.f32 %v1234, %v1465
  %v1467 = vpop.f32.mrb[0].mxu0
  %v1468 = vpop.f32.mrb[0].mxu0
  %v1469 = vadd.f32 %v1237, %v1468
  %v1470 = vpop.f32.mrb[0].mxu0
  %1471 = vmatprep.mubr.bf16.mxu0 %v669
  %1472 = vmatmul.mubr.bf16.gmra.mrb[0].mxu0 %v668
  %v1473 = vpop.f32.mrb[0].mxu0
  %v1474 = vadd.f32 %v1242, %v1473
  %v1475 = vpop.f32.mrb[0].mxu0
  %v1476 = vpop.f32.mrb[0].mxu0
  %v1477 = vadd.f32 %v1245, %v1476
  %v1478 = vpop.f32.mrb[0].mxu0
  %1479 = vmatprep.mubr.bf16.mxu0 %v674
  %1480 = vmatmul.mubr.bf16.gmra.mrb[0].mxu0 %v673
  %v1481 = vpop.f32.mrb[0].mxu0
  %v1482 = vadd.f32 %v1250, %v1481
  %v1483 = vpop.f32.mrb[0].mxu0
  %v1484 = vpop.f32.mrb[0].mxu0
  %v1485 = vadd.f32 %v1253, %v1484
  %v1486 = vpop.f32.mrb[0].mxu0
  %1487 = vmatprep.mubr.bf16.mxu0 %v679
  %1488 = vmatmul.mubr.bf16.gmra.mrb[0].mxu0 %v678
  %v1489 = vpop.f32.mrb[0].mxu0
  %v1490 = vadd.f32 %v1258, %v1489
  %v1491 = vpop.f32.mrb[0].mxu0
  %v1492 = vpop.f32.mrb[0].mxu0
  %v1493 = vadd.f32 %v1261, %v1492
  %v1494 = vpop.f32.mrb[0].mxu0
  %1495 = vmatprep.mubr.bf16.mxu0 %v684
  %1496 = vmatmul.mubr.bf16.gmra.mrb[0].mxu0 %v683
  %v1497 = vpop.f32.mrb[0].mxu0
  %v1498 = vadd.f32 %v1266, %v1497
  %v1499 = vpop.f32.mrb[0].mxu0
  %v1500 = vpop.f32.mrb[0].mxu0
  %v1501 = vadd.f32 %v1269, %v1500
  %v1502 = vpop.f32.mrb[0].mxu0
  %1503 = vmatprep.mubr.bf16.mxu0 %v689
  %1504 = vmatmul.mubr.bf16.gmra.mrb[0].mxu0 %v688
  %v1505 = vpop.f32.mrb[0].mxu0
  %v1506 = vadd.f32 %v1274, %v1505
  %v1507 = vpop.f32.mrb[0].mxu0
  %v1508 = vpop.f32.mrb[0].mxu0
  %v1509 = vadd.f32 %v1277, %v1508
  %v1510 = vpop.f32.mrb[0].mxu0
  %1511 = vmatprep.mubr.bf16.mxu0 %v694
  %1512 = vmatmul.mubr.bf16.gmra.mrb[0].mxu0 %v693
  %v1513 = vpop.f32.mrb[0].mxu0
  %v1514 = vadd.f32 %v1282, %v1513
  %v1515 = vpop.f32.mrb[0].mxu0
  %v1516 = vpop.f32.mrb[0].mxu0
  %v1517 = vadd.f32 %v1285, %v1516
  %v1518 = vpop.f32.mrb[0].mxu0
  %1519 = vmatprep.mubr.bf16.mxu0 %v699
  %1520 = vmatmul.mubr.bf16.gmra.mrb[0].mxu0 %v698
  %v1521 = vpop.f32.mrb[0].mxu0
  %v1522 = vadd.f32 %v1290, %v1521
  %v1523 = vpop.f32.mrb[0].mxu0
  %v1524 = vpop.f32.mrb[0].mxu0
  %v1525 = vadd.f32 %v1293, %v1524
  %v1526 = vpop.f32.mrb[0].mxu0
  %1527 = vmatprep.mubr.bf16.mxu0 %v704
  %1528 = vmatmul.mubr.bf16.gmra.mrb[0].mxu0 %v703
  %v1529 = vpop.f32.mrb[0].mxu0
  %v1530 = vadd.f32 %v1298, %v1529
  %v1531 = vpop.f32.mrb[0].mxu0
  %v1532 = vpop.f32.mrb[0].mxu0
  %v1533 = vadd.f32 %v1301, %v1532
  %v1534 = vpop.f32.mrb[0].mxu0
  %1535 = vmatprep.mubr.bf16.mxu0 %v709
  %1536 = vmatmul.mubr.bf16.gmra.mrb[0].mxu0 %v708
  %v1537 = vpop.f32.mrb[0].mxu0
  %v1538 = vadd.f32 %v1306, %v1537
  %v1539 = vpop.f32.mrb[0].mxu0
  %v1540 = vpop.f32.mrb[0].mxu0
  %v1541 = vadd.f32 %v1309, %v1540
  %v1542 = vpop.f32.mrb[0].mxu0
  %1543 = vmatprep.mubr.bf16.mxu0 %v714
  %1544 = vmatmul.mubr.bf16.gmra.mrb[0].mxu0 %v713
  %v1545 = vpop.f32.mrb[0].mxu0
  %v1546 = vadd.f32 %v1314, %v1545
  %v1547 = vpop.f32.mrb[0].mxu0
  %v1548 = vpop.f32.mrb[0].mxu0
  %v1549 = vadd.f32 %v1317, %v1548
  %v1550 = vpop.f32.mrb[0].mxu0
  %1551 = vmatprep.mubr.bf16.mxu0 %v719
  %1552 = vmatmul.mubr.bf16.gmra.mrb[0].mxu0 %v718
  %v1553 = vpop.f32.mrb[0].mxu0
  %v1554 = vadd.f32 %v1322, %v1553
  %v1555 = vpop.f32.mrb[0].mxu0
  %v1556 = vpop.f32.mrb[0].mxu0
  %v1557 = vadd.f32 %v1325, %v1556
  %v1558 = vpop.f32.mrb[0].mxu0
  %1559 = vmatprep.mubr.bf16.mxu0 %v724
  %1560 = vmatmul.mubr.bf16.gmra.mrb[0].mxu0 %v723
  %v1561 = vpop.f32.mrb[0].mxu0
  %v1562 = vadd.f32 %v1330, %v1561
  %v1563 = vpop.f32.mrb[0].mxu0
  %v1564 = vpop.f32.mrb[0].mxu0
  %v1565 = vadd.f32 %v1333, %v1564
  %v1566 = vpop.f32.mrb[0].mxu0
  %1567 = vmatprep.mubr.bf16.mxu0 %v729
  %1568 = vmatmul.mubr.bf16.gmra.mrb[0].mxu0 %v728
  %v1569 = vpop.f32.mrb[0].mxu0
  %v1570 = vadd.f32 %v1338, %v1569
  %v1571 = vpop.f32.mrb[0].mxu0
  %v1572 = vpop.f32.mrb[0].mxu0
  %v1573 = vadd.f32 %v1341, %v1572
  %v1574 = vpop.f32.mrb[0].mxu0
  %1575 = vmatprep.mubr.bf16.mxu0 %v734
  %1576 = vmatmul.mubr.bf16.gmra.mrb[0].mxu0 %v733
  %v1577 = vpop.f32.mrb[0].mxu0
  %v1578 = vadd.f32 %v1346, %v1577
  %v1579 = vpop.f32.mrb[0].mxu0
  %v1580 = vpop.f32.mrb[0].mxu0
  %v1581 = vadd.f32 %v1349, %v1580
  %v1582 = vpop.f32.mrb[0].mxu0
  %1583 = vmatprep.mubr.bf16.mxu0 %v739
  %1584 = vmatmul.mubr.bf16.gmra.mrb[0].mxu0 %v738
  %v1585 = vpop.f32.mrb[0].mxu0
  %v1586 = vadd.f32 %v1354, %v1585
  %v1587 = vpop.f32.mrb[0].mxu0
  %v1588 = vpop.f32.mrb[0].mxu0
  %v1589 = vadd.f32 %v1357, %v1588
  %v1590 = vpop.f32.mrb[0].mxu0
  %1591 = vmatprep.mubr.bf16.mxu0 %v744
  %1592 = vmatmul.mubr.bf16.gmra.mrb[0].mxu0 %v743
  %v1593 = vpop.f32.mrb[0].mxu0
  %v1594 = vadd.f32 %v1362, %v1593
  %v1595 = vpop.f32.mrb[0].mxu0
  %v1596 = vpop.f32.mrb[0].mxu0
  %v1597 = vadd.f32 %v1365, %v1596
  %v1598 = vpop.f32.mrb[0].mxu0
  %1599 = vmatprep.mubr.bf16.mxu0 %v749
  %1600 = vmatmul.mubr.bf16.gmra.mrb[0].mxu0 %v748
  %v1601 = vpop.f32.mrb[0].mxu0
  %v1602 = vadd.f32 %v1370, %v1601
  %v1603 = vpop.f32.mrb[0].mxu0
  %v1604 = vpop.f32.mrb[0].mxu0
  %v1605 = vpop.f32.mrb[0].mxu0
  %1606 = vdwg.mxu0
  %1607 = vmatprep.subr.bf16.mxu0 0
  %1608 = vmatpush1.bf16.msra.mxu0 %v1027
  %1609 = vmatprep.subr.bf16.mxu0 0
  %1610 = vmatpush1.bf16.msra.mxu0 %v1028
  %1611 = vmatprep.subr.bf16.mxu0 0
  %1612 = vmatpush1.bf16.msra.mxu0 %v1029
  %1613 = vmatprep.subr.bf16.mxu0 0
  %1614 = vmatpush1.bf16.msra.mxu0 %v1030
  %1615 = vmatprep.subr.bf16.mxu0 0
  %1616 = vmatpush1.bf16.msra.mxu0 0
  %1617 = vmatprep.subr.bf16.mxu0 0
  %1618 = vmatpush1.bf16.msra.mxu0 0
  %1619 = vmatprep.subr.bf16.mxu0 0
  %1620 = vmatpush1.bf16.msra.mxu0 0
  %1621 = vmatprep.subr.bf16.mxu0 0
  %1622 = vmatpush1.bf16.msra.mxu0 0
  %1623 = vmatprep.subr.bf16.mxu0 0
  %1624 = vmatpush1.bf16.msra.mxu0 0
  %1625 = vmatprep.subr.bf16.mxu0 0
  %1626 = vmatpush1.bf16.msra.mxu0 0
  %1627 = vmatprep.subr.bf16.mxu0 0
  %1628 = vmatpush1.bf16.msra.mxu0 0
  %1629 = vmatprep.subr.bf16.mxu0 0
  %1630 = vmatpush1.bf16.msra.mxu0 0
  %1631 = vmatprep.subr.bf16.mxu0 0
  %1632 = vmatpush1.bf16.msra.mxu0 0
  %1633 = vmatprep.subr.bf16.mxu0 0
  %1634 = vmatpush1.bf16.msra.mxu0 0
  %1635 = vmatprep.subr.bf16.mxu0 0
  %1636 = vmatpush1.bf16.msra.mxu0 0
  %1637 = vmatprep.subr.bf16.mxu0 0
  %1638 = vmatpush1.bf16.msra.mxu0 0
  %1639 = vmatprep.mubr.bf16.mxu0 0
  %1640 = vmatmul.mubr.bf16.gmra.mrb[0].mxu0 %v1069
  %v1641 = vpop.f32.mrb[0].mxu0
  %v1642 = vadd.f32 %v1410, %v1641
  %v1643 = vpop.f32.mrb[0].mxu0
  %v1644 = vpop.f32.mrb[0].mxu0
  %v1645 = vadd.f32 %v1413, %v1644
  %v1646 = vpop.f32.mrb[0].mxu0
  %1647 = vmatprep.mubr.bf16.mxu0 0
  %1648 = vmatmul.mubr.bf16.gmra.mrb[0].mxu0 %v1072
  %v1649 = vpop.f32.mrb[0].mxu0
  %v1650 = vadd.f32 %v1418, %v1649
  %v1651 = vpop.f32.mrb[0].mxu0
  %v1652 = vpop.f32.mrb[0].mxu0
  %v1653 = vadd.f32 %v1421, %v1652
  %v1654 = vpop.f32.mrb[0].mxu0
  %1655 = vmatprep.mubr.bf16.mxu0 0
  %1656 = vmatmul.mubr.bf16.gmra.mrb[0].mxu0 %v1075
  %v1657 = vpop.f32.mrb[0].mxu0
  %v1658 = vadd.f32 %v1426, %v1657
  %v1659 = vpop.f32.mrb[0].mxu0
  %v1660 = vpop.f32.mrb[0].mxu0
  %v1661 = vadd.f32 %v1429, %v1660
  %v1662 = vpop.f32.mrb[0].mxu0
  %1663 = vmatprep.mubr.bf16.mxu0 0
  %1664 = vmatmul.mubr.bf16.gmra.mrb[0].mxu0 %v1078
  %v1665 = vpop.f32.mrb[0].mxu0
  %v1666 = vadd.f32 %v1434, %v1665
  %v1667 = vpop.f32.mrb[0].mxu0
  %v1668 = vpop.f32.mrb[0].mxu0
  %v1669 = vadd.f32 %v1437, %v1668
  %v1670 = vpop.f32.mrb[0].mxu0
  %1671 = vmatprep.mubr.bf16.mxu0 0
  %1672 = vmatmul.mubr.bf16.gmra.mrb[0].mxu0 %v1081
  %v1673 = vpop.f32.mrb[0].mxu0
  %v1674 = vadd.f32 %v1442, %v1673
  %v1675 = vpop.f32.mrb[0].mxu0
  %v1676 = vpop.f32.mrb[0].mxu0
  %v1677 = vadd.f32 %v1445, %v1676
  %v1678 = vpop.f32.mrb[0].mxu0
  %1679 = vmatprep.mubr.bf16.mxu0 0
  %1680 = vmatmul.mubr.bf16.gmra.mrb[0].mxu0 %v1084
  %v1681 = vpop.f32.mrb[0].mxu0
  %v1682 = vadd.f32 %v1450, %v1681
  %v1683 = vpop.f32.mrb[0].mxu0
  %v1684 = vpop.f32.mrb[0].mxu0
  %v1685 = vadd.f32 %v1453, %v1684
  %v1686 = vpop.f32.mrb[0].mxu0
  %1687 = vmatprep.mubr.bf16.mxu0 0
  %1688 = vmatmul.mubr.bf16.gmra.mrb[0].mxu0 %v1087
  %v1689 = vpop.f32.mrb[0].mxu0
  %v1690 = vadd.f32 %v1458, %v1689
  %v1691 = vpop.f32.mrb[0].mxu0
  %v1692 = vpop.f32.mrb[0].mxu0
  %v1693 = vadd.f32 %v1461, %v1692
  %v1694 = vpop.f32.mrb[0].mxu0
  %1695 = vmatprep.mubr.bf16.mxu0 0
  %1696 = vmatmul.mubr.bf16.gmra.mrb[0].mxu0 %v1090
  %v1697 = vpop.f32.mrb[0].mxu0
  %v1698 = vadd.f32 %v1466, %v1697
  %v1699 = vpop.f32.mrb[0].mxu0
  %v1700 = vpop.f32.mrb[0].mxu0
  %v1701 = vadd.f32 %v1469, %v1700
  %v1702 = vpop.f32.mrb[0].mxu0
  %1703 = vmatprep.mubr.bf16.mxu0 0
  %1704 = vmatmul.mubr.bf16.gmra.mrb[0].mxu0 %v1093
  %v1705 = vpop.f32.mrb[0].mxu0
  %v1706 = vadd.f32 %v1474, %v1705
  %v1707 = vpop.f32.mrb[0].mxu0
  %v1708 = vpop.f32.mrb[0].mxu0
  %v1709 = vadd.f32 %v1477, %v1708
  %v1710 = vpop.f32.mrb[0].mxu0
  %1711 = vmatprep.mubr.bf16.mxu0 0
  %1712 = vmatmul.mubr.bf16.gmra.mrb[0].mxu0 %v1096
  %v1713 = vpop.f32.mrb[0].mxu0
  %v1714 = vadd.f32 %v1482, %v1713
  %v1715 = vpop.f32.mrb[0].mxu0
  %v1716 = vpop.f32.mrb[0].mxu0
  %v1717 = vadd.f32 %v1485, %v1716
  %v1718 = vpop.f32.mrb[0].mxu0
  %1719 = vmatprep.mubr.bf16.mxu0 0
  %1720 = vmatmul.mubr.bf16.gmra.mrb[0].mxu0 %v1099
  %v1721 = vpop.f32.mrb[0].mxu0
  %v1722 = vadd.f32 %v1490, %v1721
  %v1723 = vpop.f32.mrb[0].mxu0
  %v1724 = vpop.f32.mrb[0].mxu0
  %v1725 = vadd.f32 %v1493, %v1724
  %v1726 = vpop.f32.mrb[0].mxu0
  %1727 = vmatprep.mubr.bf16.mxu0 0
  %1728 = vmatmul.mubr.bf16.gmra.mrb[0].mxu0 %v1102
  %v1729 = vpop.f32.mrb[0].mxu0
  %v1730 = vadd.f32 %v1498, %v1729
  %v1731 = vpop.f32.mrb[0].mxu0
  %v1732 = vpop.f32.mrb[0].mxu0
  %v1733 = vadd.f32 %v1501, %v1732
  %v1734 = vpop.f32.mrb[0].mxu0
  %1735 = vmatprep.mubr.bf16.mxu0 0
  %1736 = vmatmul.mubr.bf16.gmra.mrb[0].mxu0 %v1105
  %v1737 = vpop.f32.mrb[0].mxu0
  %v1738 = vadd.f32 %v1506, %v1737
  %v1739 = vpop.f32.mrb[0].mxu0
  %v1740 = vpop.f32.mrb[0].mxu0
  %v1741 = vadd.f32 %v1509, %v1740
  %v1742 = vpop.f32.mrb[0].mxu0
  %1743 = vmatprep.mubr.bf16.mxu0 0
  %1744 = vmatmul.mubr.bf16.gmra.mrb[0].mxu0 %v1108
  %v1745 = vpop.f32.mrb[0].mxu0
  %v1746 = vadd.f32 %v1514, %v1745
  %v1747 = vpop.f32.mrb[0].mxu0
  %v1748 = vpop.f32.mrb[0].mxu0
  %v1749 = vadd.f32 %v1517, %v1748
  %v1750 = vpop.f32.mrb[0].mxu0
  %1751 = vmatprep.mubr.bf16.mxu0 0
  %1752 = vmatmul.mubr.bf16.gmra.mrb[0].mxu0 %v1111
  %v1753 = vpop.f32.mrb[0].mxu0
  %v1754 = vadd.f32 %v1522, %v1753
  %v1755 = vpop.f32.mrb[0].mxu0
  %v1756 = vpop.f32.mrb[0].mxu0
  %v1757 = vadd.f32 %v1525, %v1756
  %v1758 = vpop.f32.mrb[0].mxu0
  %1759 = vmatprep.mubr.bf16.mxu0 0
  %1760 = vmatmul.mubr.bf16.gmra.mrb[0].mxu0 %v1114
  %v1761 = vpop.f32.mrb[0].mxu0
  %v1762 = vadd.f32 %v1530, %v1761
  %v1763 = vpop.f32.mrb[0].mxu0
  %v1764 = vpop.f32.mrb[0].mxu0
  %v1765 = vadd.f32 %v1533, %v1764
  %v1766 = vpop.f32.mrb[0].mxu0
  %1767 = vmatprep.mubr.bf16.mxu0 0
  %1768 = vmatmul.mubr.bf16.gmra.mrb[0].mxu0 %v1117
  %v1769 = vpop.f32.mrb[0].mxu0
  %v1770 = vadd.f32 %v1538, %v1769
  %v1771 = vpop.f32.mrb[0].mxu0
  %v1772 = vpop.f32.mrb[0].mxu0
  %v1773 = vadd.f32 %v1541, %v1772
  %v1774 = vpop.f32.mrb[0].mxu0
  %1775 = vmatprep.mubr.bf16.mxu0 0
  %1776 = vmatmul.mubr.bf16.gmra.mrb[0].mxu0 %v1120
  %v1777 = vpop.f32.mrb[0].mxu0
  %v1778 = vadd.f32 %v1546, %v1777
  %v1779 = vpop.f32.mrb[0].mxu0
  %v1780 = vpop.f32.mrb[0].mxu0
  %v1781 = vadd.f32 %v1549, %v1780
  %v1782 = vpop.f32.mrb[0].mxu0
  %1783 = vmatprep.mubr.bf16.mxu0 0
  %1784 = vmatmul.mubr.bf16.gmra.mrb[0].mxu0 %v1123
  %v1785 = vpop.f32.mrb[0].mxu0
  %v1786 = vadd.f32 %v1554, %v1785
  %v1787 = vpop.f32.mrb[0].mxu0
  %v1788 = vpop.f32.mrb[0].mxu0
  %v1789 = vadd.f32 %v1557, %v1788
  %v1790 = vpop.f32.mrb[0].mxu0
  %1791 = vmatprep.mubr.bf16.mxu0 0
  %1792 = vmatmul.mubr.bf16.gmra.mrb[0].mxu0 %v1126
  %v1793 = vpop.f32.mrb[0].mxu0
  %v1794 = vadd.f32 %v1562, %v1793
  %v1795 = vpop.f32.mrb[0].mxu0
  %v1796 = vpop.f32.mrb[0].mxu0
  %v1797 = vadd.f32 %v1565, %v1796
  %v1798 = vpop.f32.mrb[0].mxu0
  %1799 = vmatprep.mubr.bf16.mxu0 0
  %1800 = vmatmul.mubr.bf16.gmra.mrb[0].mxu0 %v1129
  %v1801 = vpop.f32.mrb[0].mxu0
  %v1802 = vadd.f32 %v1570, %v1801
  %v1803 = vpop.f32.mrb[0].mxu0
  %v1804 = vpop.f32.mrb[0].mxu0
  %v1805 = vadd.f32 %v1573, %v1804
  %v1806 = vpop.f32.mrb[0].mxu0
  %1807 = vmatprep.mubr.bf16.mxu0 0
  %1808 = vmatmul.mubr.bf16.gmra.mrb[0].mxu0 %v1132
  %v1809 = vpop.f32.mrb[0].mxu0
  %v1810 = vadd.f32 %v1578, %v1809
  %v1811 = vpop.f32.mrb[0].mxu0
  %v1812 = vpop.f32.mrb[0].mxu0
  %v1813 = vadd.f32 %v1581, %v1812
  %v1814 = vpop.f32.mrb[0].mxu0
  %1815 = vmatprep.mubr.bf16.mxu0 0
  %1816 = vmatmul.mubr.bf16.gmra.mrb[0].mxu0 %v1135
  %v1817 = vpop.f32.mrb[0].mxu0
  %v1818 = vadd.f32 %v1586, %v1817
  %v1819 = vpop.f32.mrb[0].mxu0
  %v1820 = vpop.f32.mrb[0].mxu0
  %v1821 = vadd.f32 %v1589, %v1820
  %v1822 = vpop.f32.mrb[0].mxu0
  %1823 = vmatprep.mubr.bf16.mxu0 0
  %1824 = vmatmul.mubr.bf16.gmra.mrb[0].mxu0 %v1138
  %v1825 = vpop.f32.mrb[0].mxu0
  %v1826 = vadd.f32 %v1594, %v1825
  %v1827 = vpop.f32.mrb[0].mxu0
  %v1828 = vpop.f32.mrb[0].mxu0
  %v1829 = vadd.f32 %v1597, %v1828
  %v1830 = vpop.f32.mrb[0].mxu0
  %1831 = vmatprep.mubr.bf16.mxu0 0
  %1832 = vmatmul.mubr.bf16.gmra.mrb[0].mxu0 %v1141
  %v1833 = vpop.f32.mrb[0].mxu0
  %v1834 = vadd.f32 %v1602, %v1833
  %v1835 = vpop.f32.mrb[0].mxu0
  %v1836 = vpop.f32.mrb[0].mxu0
  %v1837 = vpop.f32.mrb[0].mxu0
  %1838 = vdwg.mxu0
  %v1839 = vpack.c.bf16 %v1645, %v1642
  %v1840 = vpack.c.bf16 %v1653, %v1650
  %v1841 = vpack.c.bf16 %v1661, %v1658
  %v1842 = vpack.c.bf16 %v1669, %v1666
  %v1843 = vpack.c.bf16 %v1677, %v1674
  %v1844 = vpack.c.bf16 %v1685, %v1682
  %v1845 = vpack.c.bf16 %v1693, %v1690
  %v1846 = vpack.c.bf16 %v1701, %v1698
  %v1847 = vpack.c.bf16 %v1709, %v1706
  %v1848 = vpack.c.bf16 %v1717, %v1714
  %v1849 = vpack.c.bf16 %v1725, %v1722
  %v1850 = vpack.c.bf16 %v1733, %v1730
  %v1851 = vpack.c.bf16 %v1741, %v1738
  %v1852 = vpack.c.bf16 %v1749, %v1746
  %v1853 = vpack.c.bf16 %v1757, %v1754
  %v1854 = vpack.c.bf16 %v1765, %v1762
  %v1855 = vpack.c.bf16 %v1773, %v1770
  %v1856 = vpack.c.bf16 %v1781, %v1778
  %v1857 = vpack.c.bf16 %v1789, %v1786
  %v1858 = vpack.c.bf16 %v1797, %v1794
  %v1859 = vpack.c.bf16 %v1805, %v1802
  %v1860 = vpack.c.bf16 %v1813, %v1810
  %v1861 = vpack.c.bf16 %v1821, %v1818
  %v1862 = vpack.c.bf16 %v1829, %v1826
  %v1863 = vpack.c.bf16 %v1834, %v1834
  %v1889 = vunpack.c.l.b16 %v1839
  %v1890 = vunpack.c.h.b16 %v1839
  %v1891 = vunpack.c.l.b16 %v1840
  %v1892 = vunpack.c.h.b16 %v1840
  %v1893 = vunpack.c.l.b16 %v1841
  %v1894 = vunpack.c.h.b16 %v1841
  %v1895 = vunpack.c.l.b16 %v1842
  %v1896 = vunpack.c.h.b16 %v1842
  %v1897 = vunpack.c.l.b16 %v1843
  %v1898 = vunpack.c.h.b16 %v1843
  %v1899 = vunpack.c.l.b16 %v1844
  %v1900 = vunpack.c.h.b16 %v1844
  %v1901 = vunpack.c.l.b16 %v1845
  %v1902 = vunpack.c.h.b16 %v1845
  %v1903 = vunpack.c.l.b16 %v1846
  %v1904 = vunpack.c.h.b16 %v1846
  %v1905 = vunpack.c.l.b16 %v1847
  %v1906 = vunpack.c.h.b16 %v1847
  %v1907 = vunpack.c.l.b16 %v1848
  %v1908 = vunpack.c.h.b16 %v1848
  %v1909 = vunpack.c.l.b16 %v1849
  %v1910 = vunpack.c.h.b16 %v1849
  %v1911 = vunpack.c.l.b16 %v1850
  %v1912 = vunpack.c.h.b16 %v1850
  %v1913 = vunpack.c.l.b16 %v1851
  %v1914 = vunpack.c.h.b16 %v1851
  %v1915 = vunpack.c.l.b16 %v1852
  %v1916 = vunpack.c.h.b16 %v1852
  %v1917 = vunpack.c.l.b16 %v1853
  %v1918 = vunpack.c.h.b16 %v1853
  %v1919 = vunpack.c.l.b16 %v1854
  %v1920 = vunpack.c.h.b16 %v1854
  %v1921 = vunpack.c.l.b16 %v1855
  %v1922 = vunpack.c.h.b16 %v1855
  %v1923 = vunpack.c.l.b16 %v1856
  %v1924 = vunpack.c.h.b16 %v1856
  %v1925 = vunpack.c.l.b16 %v1857
  %v1926 = vunpack.c.h.b16 %v1857
  %v1927 = vunpack.c.l.b16 %v1858
  %v1928 = vunpack.c.h.b16 %v1858
  %v1929 = vunpack.c.l.b16 %v1859
  %v1930 = vunpack.c.h.b16 %v1859
  %v1931 = vunpack.c.l.b16 %v1860
  %v1932 = vunpack.c.h.b16 %v1860
  %v1933 = vunpack.c.l.b16 %v1861
  %v1934 = vunpack.c.h.b16 %v1861
  %v1935 = vunpack.c.l.b16 %v1862
  %v1936 = vunpack.c.h.b16 %v1862
  %v1937 = vunpack.c.l.b16 %v1863
  %v1938 = vpack.c.b16 %v1889, %v1889
  %v1939 = vpack.c.b16 %v1890, %v1890
  %v1940 = vpack.c.b16 %v1891, %v1891
  %v1941 = vpack.c.b16 %v1892, %v1892
  %v1942 = vpack.c.b16 %v1893, %v1893
  %v1943 = vpack.c.b16 %v1894, %v1894
  %v1944 = vpack.c.b16 %v1895, %v1895
  %v1945 = vpack.c.b16 %v1896, %v1896
  %v1946 = vpack.c.b16 %v1897, %v1897
  %v1947 = vpack.c.b16 %v1898, %v1898
  %v1948 = vpack.c.b16 %v1899, %v1899
  %v1949 = vpack.c.b16 %v1900, %v1900
  %v1950 = vpack.c.b16 %v1901, %v1901
  %v1951 = vpack.c.b16 %v1902, %v1902
  %v1952 = vpack.c.b16 %v1903, %v1903
  %v1953 = vpack.c.b16 %v1904, %v1904
  %v1954 = vpack.c.b16 %v1905, %v1905
  %v1955 = vpack.c.b16 %v1906, %v1906
  %v1956 = vpack.c.b16 %v1907, %v1907
  %v1957 = vpack.c.b16 %v1908, %v1908
  %v1958 = vpack.c.b16 %v1909, %v1909
  %v1959 = vpack.c.b16 %v1910, %v1910
  %v1960 = vpack.c.b16 %v1911, %v1911
  %v1961 = vpack.c.b16 %v1912, %v1912
  %v1962 = vpack.c.b16 %v1913, %v1913
  %v1963 = vpack.c.b16 %v1914, %v1914
  %v1964 = vpack.c.b16 %v1915, %v1915
  %v1965 = vpack.c.b16 %v1916, %v1916
  %v1966 = vpack.c.b16 %v1917, %v1917
  %v1967 = vpack.c.b16 %v1918, %v1918
  %v1968 = vpack.c.b16 %v1919, %v1919
  %v1969 = vpack.c.b16 %v1920, %v1920
  %v1970 = vpack.c.b16 %v1921, %v1921
  %v1971 = vpack.c.b16 %v1922, %v1922
  %v1972 = vpack.c.b16 %v1923, %v1923
  %v1973 = vpack.c.b16 %v1924, %v1924
  %v1974 = vpack.c.b16 %v1925, %v1925
  %v1975 = vpack.c.b16 %v1926, %v1926
  %v1976 = vpack.c.b16 %v1927, %v1927
  %v1977 = vpack.c.b16 %v1928, %v1928
  %v1978 = vpack.c.b16 %v1929, %v1929
  %v1979 = vpack.c.b16 %v1930, %v1930
  %v1980 = vpack.c.b16 %v1931, %v1931
  %v1981 = vpack.c.b16 %v1932, %v1932
  %v1982 = vpack.c.b16 %v1933, %v1933
  %v1983 = vpack.c.b16 %v1934, %v1934
  %v1984 = vpack.c.b16 %v1935, %v1935
  %v1985 = vpack.c.b16 %v1936, %v1936
  %v1986 = vpack.c.b16 %v1937, %v1937
  %2036 = vst [vmem:[%s2] sm:$0xf] %v1938
  %2037 = vst [vmem:[%s2 + $0x4] sm:$0xf] %v1939
  %2038 = vst [vmem:[%s2 + $0x8] sm:$0xf] %v1940
  %2039 = vst [vmem:[%s2 + $0xc] sm:$0xf] %v1941
  %2040 = vst [vmem:[%s2 + $0x10] sm:$0xf] %v1942
  %2041 = vst [vmem:[%s2 + $0x14] sm:$0xf] %v1943
  %2042 = vst [vmem:[%s2 + $0x18] sm:$0xf] %v1944
  %2043 = vst [vmem:[%s2 + $0x1c] sm:$0xf] %v1945
  %2044 = vst [vmem:[%s2 + $0x20] sm:$0xf] %v1946
  %2045 = vst [vmem:[%s2 + $0x24] sm:$0xf] %v1947
  %2046 = vst [vmem:[%s2 + $0x28] sm:$0xf] %v1948
  %2047 = vst [vmem:[%s2 + $0x2c] sm:$0xf] %v1949
  %2048 = vst [vmem:[%s2 + $0x30] sm:$0xf] %v1950
  %2049 = vst [vmem:[%s2 + $0x34] sm:$0xf] %v1951
  %2050 = vst [vmem:[%s2 + $0x38] sm:$0xf] %v1952
  %2051 = vst [vmem:[%s2 + $0x3c] sm:$0xf] %v1953
  %2052 = vst [vmem:[%s2 + $0x40] sm:$0xf] %v1954
  %2053 = vst [vmem:[%s2 + $0x44] sm:$0xf] %v1955
  %2054 = vst [vmem:[%s2 + $0x48] sm:$0xf] %v1956
  %2055 = vst [vmem:[%s2 + $0x4c] sm:$0xf] %v1957
  %2056 = vst [vmem:[%s2 + $0x50] sm:$0xf] %v1958
  %2057 = vst [vmem:[%s2 + $0x54] sm:$0xf] %v1959
  %2058 = vst [vmem:[%s2 + $0x58] sm:$0xf] %v1960
  %2059 = vst [vmem:[%s2 + $0x5c] sm:$0xf] %v1961
  %2060 = vst [vmem:[%s2 + $0x60] sm:$0xf] %v1962
  %2061 = vst [vmem:[%s2 + $0x64] sm:$0xf] %v1963
  %2062 = vst [vmem:[%s2 + $0x68] sm:$0xf] %v1964
  %2063 = vst [vmem:[%s2 + $0x6c] sm:$0xf] %v1965
  %2064 = vst [vmem:[%s2 + $0x70] sm:$0xf] %v1966
  %2065 = vst [vmem:[%s2 + $0x74] sm:$0xf] %v1967
  %2066 = vst [vmem:[%s2 + $0x78] sm:$0xf] %v1968
  %2067 = vst [vmem:[%s2 + $0x7c] sm:$0xf] %v1969
  %2068 = vst [vmem:[%s2 + $0x80] sm:$0xf] %v1970
  %2069 = vst [vmem:[%s2 + $0x84] sm:$0xf] %v1971
  %2070 = vst [vmem:[%s2 + $0x88] sm:$0xf] %v1972
  %2071 = vst [vmem:[%s2 + $0x8c] sm:$0xf] %v1973
  %2072 = vst [vmem:[%s2 + $0x90] sm:$0xf] %v1974
  %2073 = vst [vmem:[%s2 + $0x94] sm:$0xf] %v1975
  %2074 = vst [vmem:[%s2 + $0x98] sm:$0xf] %v1976
  %2075 = vst [vmem:[%s2 + $0x9c] sm:$0xf] %v1977
  %2076 = vst [vmem:[%s2 + $0xa0] sm:$0xf] %v1978
  %2077 = vst [vmem:[%s2 + $0xa4] sm:$0xf] %v1979
  %2078 = vst [vmem:[%s2 + $0xa8] sm:$0xf] %v1980
  %2079 = vst [vmem:[%s2 + $0xac] sm:$0xf] %v1981
  %2080 = vst [vmem:[%s2 + $0xb0] sm:$0xf] %v1982
  %2081 = vst [vmem:[%s2 + $0xb4] sm:$0xf] %v1983
  %2082 = vst [vmem:[%s2 + $0xb8] sm:$0xf] %v1984
  %2083 = vst [vmem:[%s2 + $0xbc] sm:$0xf] %v1985
  %2084 = vst [vmem:[%s2 + $0xc0] sm:$0xf] %v1986
  %v2085 = vadd.f32 %v1642, %v1645
  %v2086 = vadd.f32 %v2085, %v1650
  %v2087 = vadd.f32 %v2086, %v1653
  %v2088 = vadd.f32 %v2087, %v1658
  %v2089 = vadd.f32 %v2088, %v1661
  %v2090 = vadd.f32 %v2089, %v1666
  %v2091 = vadd.f32 %v2090, %v1669
  %v2092 = vadd.f32 %v2091, %v1674
  %v2093 = vadd.f32 %v2092, %v1677
  %v2094 = vadd.f32 %v2093, %v1682
  %v2095 = vadd.f32 %v2094, %v1685
  %v2096 = vadd.f32 %v2095, %v1690
  %v2097 = vadd.f32 %v2096, %v1693
  %v2098 = vadd.f32 %v2097, %v1698
  %v2099 = vadd.f32 %v2098, %v1701
  %v2100 = vadd.f32 %v2099, %v1706
  %v2101 = vadd.f32 %v2100, %v1709
  %v2102 = vadd.f32 %v2101, %v1714
  %v2103 = vadd.f32 %v2102, %v1717
  %v2104 = vadd.f32 %v2103, %v1722
  %v2105 = vadd.f32 %v2104, %v1725
  %v2106 = vadd.f32 %v2105, %v1730
  %v2107 = vadd.f32 %v2106, %v1733
  %v2108 = vadd.f32 %v2107, %v1738
  %v2109 = vadd.f32 %v2108, %v1741
  %v2110 = vadd.f32 %v2109, %v1746
  %v2111 = vadd.f32 %v2110, %v1749
  %v2112 = vadd.f32 %v2111, %v1754
  %v2113 = vadd.f32 %v2112, %v1757
  %v2114 = vadd.f32 %v2113, %v1762
  %v2115 = vadd.f32 %v2114, %v1765
  %v2116 = vadd.f32 %v2115, %v1770
  %v2117 = vadd.f32 %v2116, %v1773
  %v2118 = vadd.f32 %v2117, %v1778
  %v2119 = vadd.f32 %v2118, %v1781
  %v2120 = vadd.f32 %v2119, %v1786
  %v2121 = vadd.f32 %v2120, %v1789
  %v2122 = vadd.f32 %v2121, %v1794
  %v2123 = vadd.f32 %v2122, %v1797
  %v2124 = vadd.f32 %v2123, %v1802
  %v2125 = vadd.f32 %v2124, %v1805
  %v2126 = vadd.f32 %v2125, %v1810
  %v2127 = vadd.f32 %v2126, %v1813
  %v2128 = vadd.f32 %v2127, %v1818
  %v2129 = vadd.f32 %v2128, %v1821
  %v2130 = vadd.f32 %v2129, %v1826
  %v2131 = vadd.f32 %v2130, %v1829
  %v2132 = vadd.f32 %v2131, %v1834
  %v2133 = vrot.slane %v2132, 4
  %v2134 = vadd.f32 %v2132, %v2133
  %v2135 = vrot.slane %v2134, 2
  %v2136 = vadd.f32 %v2134, %v2135
  %v2137 = vrot.slane %v2136, 1
  %v2138 = vadd.f32 %v2136, %v2137
  %v2139 = vmul.f32 %v1642, %v1642
  %v2140 = vmul.f32 %v1645, %v1645
  %v2141 = vmul.f32 %v1650, %v1650
  %v2142 = vmul.f32 %v1653, %v1653
  %v2143 = vmul.f32 %v1658, %v1658
  %v2144 = vmul.f32 %v1661, %v1661
  %v2145 = vmul.f32 %v1666, %v1666
  %v2146 = vmul.f32 %v1669, %v1669
  %v2147 = vmul.f32 %v1674, %v1674
  %v2148 = vmul.f32 %v1677, %v1677
  %v2149 = vmul.f32 %v1682, %v1682
  %v2150 = vmul.f32 %v1685, %v1685
  %v2151 = vmul.f32 %v1690, %v1690
  %v2152 = vmul.f32 %v1693, %v1693
  %v2153 = vmul.f32 %v1698, %v1698
  %v2154 = vmul.f32 %v1701, %v1701
  %v2155 = vmul.f32 %v1706, %v1706
  %v2156 = vmul.f32 %v1709, %v1709
  %v2157 = vmul.f32 %v1714, %v1714
  %v2158 = vmul.f32 %v1717, %v1717
  %v2159 = vmul.f32 %v1722, %v1722
  %v2160 = vmul.f32 %v1725, %v1725
  %v2161 = vmul.f32 %v1730, %v1730
  %v2162 = vmul.f32 %v1733, %v1733
  %v2163 = vmul.f32 %v1738, %v1738
  %v2164 = vmul.f32 %v1741, %v1741
  %v2165 = vmul.f32 %v1746, %v1746
  %v2166 = vmul.f32 %v1749, %v1749
  %v2167 = vmul.f32 %v1754, %v1754
  %v2168 = vmul.f32 %v1757, %v1757
  %v2169 = vmul.f32 %v1762, %v1762
  %v2170 = vmul.f32 %v1765, %v1765
  %v2171 = vmul.f32 %v1770, %v1770
  %v2172 = vmul.f32 %v1773, %v1773
  %v2173 = vmul.f32 %v1778, %v1778
  %v2174 = vmul.f32 %v1781, %v1781
  %v2175 = vmul.f32 %v1786, %v1786
  %v2176 = vmul.f32 %v1789, %v1789
  %v2177 = vmul.f32 %v1794, %v1794
  %v2178 = vmul.f32 %v1797, %v1797
  %v2179 = vmul.f32 %v1802, %v1802
  %v2180 = vmul.f32 %v1805, %v1805
  %v2181 = vmul.f32 %v1810, %v1810
  %v2182 = vmul.f32 %v1813, %v1813
  %v2183 = vmul.f32 %v1818, %v1818
  %v2184 = vmul.f32 %v1821, %v1821
  %v2185 = vmul.f32 %v1826, %v1826
  %v2186 = vmul.f32 %v1829, %v1829
  %v2187 = vmul.f32 %v1834, %v1834
  %v2188 = vadd.f32 %v2139, %v2140
  %v2189 = vadd.f32 %v2188, %v2141
  %v2190 = vadd.f32 %v2189, %v2142
  %v2191 = vadd.f32 %v2190, %v2143
  %v2192 = vadd.f32 %v2191, %v2144
  %v2193 = vadd.f32 %v2192, %v2145
  %v2194 = vadd.f32 %v2193, %v2146
  %v2195 = vadd.f32 %v2194, %v2147
  %v2196 = vadd.f32 %v2195, %v2148
  %v2197 = vadd.f32 %v2196, %v2149
  %v2198 = vadd.f32 %v2197, %v2150
  %v2199 = vadd.f32 %v2198, %v2151
  %v2200 = vadd.f32 %v2199, %v2152
  %v2201 = vadd.f32 %v2200, %v2153
  %v2202 = vadd.f32 %v2201, %v2154
  %v2203 = vadd.f32 %v2202, %v2155
  %v2204 = vadd.f32 %v2203, %v2156
  %v2205 = vadd.f32 %v2204, %v2157
  %v2206 = vadd.f32 %v2205, %v2158
  %v2207 = vadd.f32 %v2206, %v2159
  %v2208 = vadd.f32 %v2207, %v2160
  %v2209 = vadd.f32 %v2208, %v2161
  %v2210 = vadd.f32 %v2209, %v2162
  %v2211 = vadd.f32 %v2210, %v2163
  %v2212 = vadd.f32 %v2211, %v2164
  %v2213 = vadd.f32 %v2212, %v2165
  %v2214 = vadd.f32 %v2213, %v2166
  %v2215 = vadd.f32 %v2214, %v2167
  %v2216 = vadd.f32 %v2215, %v2168
  %v2217 = vadd.f32 %v2216, %v2169
  %v2218 = vadd.f32 %v2217, %v2170
  %v2219 = vadd.f32 %v2218, %v2171
  %v2220 = vadd.f32 %v2219, %v2172
  %v2221 = vadd.f32 %v2220, %v2173
  %v2222 = vadd.f32 %v2221, %v2174
  %v2223 = vadd.f32 %v2222, %v2175
  %v2224 = vadd.f32 %v2223, %v2176
  %v2225 = vadd.f32 %v2224, %v2177
  %v2226 = vadd.f32 %v2225, %v2178
  %v2227 = vadd.f32 %v2226, %v2179
  %v2228 = vadd.f32 %v2227, %v2180
  %v2229 = vadd.f32 %v2228, %v2181
  %v2230 = vadd.f32 %v2229, %v2182
  %v2231 = vadd.f32 %v2230, %v2183
  %v2232 = vadd.f32 %v2231, %v2184
  %v2233 = vadd.f32 %v2232, %v2185
  %v2234 = vadd.f32 %v2233, %v2186
  %v2235 = vadd.f32 %v2234, %v2187
  %v2236 = vrot.slane %v2235, 4
  %v2237 = vadd.f32 %v2235, %v2236
  %v2238 = vrot.slane %v2237, 2
  %v2239 = vadd.f32 %v2237, %v2238
  %v2240 = vrot.slane %v2239, 1
  %v2241 = vadd.f32 %v2239, %v2240
  %2242 = vst [vmem:[%s3] sm:$0xff] %v2138
  %2243 = vst [vmem:[%s4] sm:$0xff] %v2241
  // Predicated region
  $region10: #{generator_forward.9} parent=0 // pred_check
    _
  $region11: #{generator_forward.9} parent=0 // pred_check_branch
    %2245 = sbr.rel (0) target = $region13
  $region12: #{generator_forward.9} parent=0 // pred_region
    _
  $region13: #{generator_forward.9} parent=0 // pred_fallthru
    _
  // Predicated region
  $region14: #{generator_forward.9} parent=0 // pred_check
    _
  $region15: #{generator_forward.9} parent=0 // pred_check_branch
    %2247 = sbr.rel (0) target = $region17
  $region16: #{generator_forward.9} parent=0 // pred_region
    _
  $region17: #{generator_forward.9} parent=0 // pred_fallthru
    _
  // Predicated region
  $region18: #{generator_forward.9} parent=0 // pred_check
    _
  $region19: #{generator_forward.9} parent=0 // pred_check_branch
    %2249 = sbr.rel (0) target = $region21
  $region20: #{generator_forward.9} parent=0 // pred_region
    _
  $region21: #{generator_forward.9} parent=0 // pred_fallthru
    _
  // Predicated region
  $region22: #{generator_forward.9} parent=0 // pred_check
    _
  $region23: #{generator_forward.9} parent=0 // pred_check_branch
    %2251 = sbr.rel (0) target = $region25
  $region24: #{generator_forward.9} parent=0 // pred_region
    _
  $region25: #{generator_forward.9} parent=0 // pred_fallthru
    _
  // Predicated region
  $region26: #{generator_forward.9} parent=0 // pred_check
    _
  $region27: #{generator_forward.9} parent=0 // pred_check_branch
    %2253 = sbr.rel (0) target = $region29
  $region28: #{generator_forward.9} parent=0 // pred_region
    _
  $region29: #{generator_forward.9} parent=0 // pred_fallthru
    _
  // Predicated region
  $region30: #{generator_forward.9} parent=0 // pred_check
    _
  $region31: #{generator_forward.9} parent=0 // pred_check_branch
    %2255 = sbr.rel (0) target = $region33
  $region32: #{generator_forward.9} parent=0 // pred_region
    _
  $region33: #{generator_forward.9} parent=0 // pred_fallthru
    _

// kernel: tile.33
$region0: #{tile.33}
  #allocation0 [shape = 's32[1]{0}', space=sflag, size = 0x4, scoped, tag = 'scoped memory for tile.33']
  %s0 = inlined_call_operand.vmem [shape: f32[32], index: 0, kind: input, shape index: {}]
  %s1 = inlined_call_operand.vmem [shape: f32[4,32], index: 1, kind: output, shape index: {}]
  // Predicated region
  $region2: #{tile.33} parent=0 // pred_check
    _
  $region3: #{tile.33} parent=0 // pred_check_branch
    %3 = sbr.rel (0) target = $region5
  $region4: #{tile.33} parent=0 // pred_region
    _
  $region5: #{tile.33} parent=0 // pred_fallthru
    _
  %v4 = vld [vmem:[%s0] ss:$0 sm:$0xff]
  %5 = vst [vmem:[%s1] sm:$0xf] %v4

// kernel: tile.34
$region0: #{tile.34}
  %s0 = inlined_call_operand.vmem [shape: f32[4,32], index: 0, kind: input, shape index: {}]
  %s1 = inlined_call_operand.vmem [shape: f32[1,128], index: 1, kind: output, shape index: {}]
  $region1: #{tile.34} parent=0
    #allocation0 [shape = 'u8[4096]{0}', space=vmem, size = 0x1000, scoped, tag = 'scoped mem for output reshape']
    #allocation1 [shape = 'u8[4096]{0}', space=vmem, size = 0x1000, scoped, tag = 'scoped mem for input reshape']
    %s3 = sshllo.u32 0, 4
    %v4 = vld [vmem:[%s0] sm:%s3]
    %5 = vst [vmem:[#allocation1] sm:%s3] %v4
    %v6 = vld [vmem:[#allocation1] sm:$0x1]
    %vm7 = vcmask 261120
    %8 = vst.msk [vmem:[#allocation0] sm:$0x1] %vm7, %v6
    %s9 = scalar_lea.vmem [#allocation1], 3
    %v10 = vld [vmem:[%s9] sm:$0x1]
    %11 = vrot.lane.b32.xlu0 %v10, 96
    %v12 = vpop.permute.xlu0 %11
    %vm13 = vcmask 1048320
    %14 = vst.msk [vmem:[#allocation0] sm:$0x1] %vm13, %v12
    %s15 = scalar_lea.vmem [#allocation1], 2
    %v16 = vld [vmem:[%s15] sm:$0x1]
    %17 = vrot.lane.b32.xlu0 %v16, 64
    %v18 = vpop.permute.xlu0 %17
    %vm19 = vcmask 785920
    %20 = vst.msk [vmem:[#allocation0] sm:$0x1] %vm19, %v18
    %s21 = scalar_lea.vmem [#allocation1], 1
    %v22 = vld [vmem:[%s21] sm:$0x1]
    %23 = vrot.lane.b32.xlu0 %v22, 32
    %v24 = vpop.permute.xlu0 %23
    %vm25 = vcmask 523520
    %26 = vst.msk [vmem:[#allocation0] sm:$0x1] %vm25, %v24
    %s28 = sshllo.u32 0, 1
    %v30 = vld [vmem:[#allocation0] sm:%s28]
    %s31 = sshllo.u32 0, 1
    %32 = vst [vmem:[%s1] sm:%s31] %v30

// kernel: generator_forward.10
$region0: #{generator_forward.10}
  #allocation0 [shape = 'u32[]', space=smem, size = 0x4, offset = 0x4, fixed_abs, tag = 'smem constant byte address 0x4 - core index']
  #allocation1 [shape = 'u32[144,128]{1,0:T(1,128)}', space=vmem, size = 0x12000, scoped, tag = 'internal scratch']
  %s0 = inlined_call_operand.vmem [shape: bf16[392,128], index: 0, kind: input, shape index: {}]
  %s1 = inlined_call_operand.vmem [shape: f32[1,128], index: 1, kind: input, shape index: {}]
  %s2 = inlined_call_operand.vmem [shape: f32[1,128], index: 2, kind: input, shape index: {}]
  %s3 = inlined_call_operand.vmem [shape: bf16[392,128], index: 3, kind: output, shape index: {}]
  %s4 = sld [smem:[#allocation0]]
  $region22: #{generator_forward.10} parent=0
    _
  %s6 = ssub.s32 1, %s4
  %s7 = scalar_select 0, %s6, %s4
  // Predicated region
  $region2: #{generator_forward.10} parent=0 // pred_check
    _
  $region3: #{generator_forward.10} parent=0 // pred_check_branch
    %9 = sbr.rel (0) target = $region5
  $region4: #{generator_forward.10} parent=0 // pred_region
    _
  $region5: #{generator_forward.10} parent=0 // pred_fallthru
    _
  // Predicated region
  $region6: #{generator_forward.10} parent=0 // pred_check
    _
  $region7: #{generator_forward.10} parent=0 // pred_check_branch
    %11 = sbr.rel (0) target = $region9
  $region8: #{generator_forward.10} parent=0 // pred_region
    _
  $region9: #{generator_forward.10} parent=0 // pred_fallthru
    _
  // Predicated region
  $region10: #{generator_forward.10} parent=0 // pred_check
    _
  $region11: #{generator_forward.10} parent=0 // pred_check_branch
    %13 = sbr.rel (0) target = $region13
  $region12: #{generator_forward.10} parent=0 // pred_region
    _
  $region13: #{generator_forward.10} parent=0 // pred_fallthru
    _
  %v14 = vld [vmem:[%s0] sm:$0xf]
  %v15 = vld [vmem:[%s0 + $0x4] sm:$0xf]
  %v16 = vld [vmem:[%s0 + $0x8] sm:$0xf]
  %v17 = vld [vmem:[%s0 + $0xc] sm:$0xf]
  %v18 = vld [vmem:[%s0 + $0x10] sm:$0xf]
  %v19 = vld [vmem:[%s0 + $0x14] sm:$0xf]
  %v20 = vld [vmem:[%s0 + $0x18] sm:$0xf]
  %v21 = vld [vmem:[%s0 + $0x1c] sm:$0xf]
  %v22 = vld [vmem:[%s0 + $0x20] sm:$0xf]
  %v23 = vld [vmem:[%s0 + $0x24] sm:$0xf]
  %v24 = vld [vmem:[%s0 + $0x28] sm:$0xf]
  %v25 = vld [vmem:[%s0 + $0x2c] sm:$0xf]
  %v26 = vld [vmem:[%s0 + $0x30] sm:$0xf]
  %v27 = vld [vmem:[%s0 + $0x34] sm:$0xf]
  %v28 = vld [vmem:[%s0 + $0x38] sm:$0xf]
  %v29 = vld [vmem:[%s0 + $0x3c] sm:$0xf]
  %v30 = vld [vmem:[%s0 + $0x40] sm:$0xf]
  %v31 = vld [vmem:[%s0 + $0x44] sm:$0xf]
  %v32 = vld [vmem:[%s0 + $0x48] sm:$0xf]
  %v33 = vld [vmem:[%s0 + $0x4c] sm:$0xf]
  %v34 = vld [vmem:[%s0 + $0x50] sm:$0xf]
  %v35 = vld [vmem:[%s0 + $0x54] sm:$0xf]
  %v36 = vld [vmem:[%s0 + $0x58] sm:$0xf]
  %v37 = vld [vmem:[%s0 + $0x5c] sm:$0xf]
  %v38 = vld [vmem:[%s0 + $0x60] sm:$0xf]
  %v39 = vld [vmem:[%s0 + $0x64] sm:$0xf]
  %v40 = vld [vmem:[%s0 + $0x68] sm:$0xf]
  %v41 = vld [vmem:[%s0 + $0x6c] sm:$0xf]
  %v42 = vld [vmem:[%s0 + $0x70] sm:$0xf]
  %v43 = vld [vmem:[%s0 + $0x74] sm:$0xf]
  %v44 = vld [vmem:[%s0 + $0x78] sm:$0xf]
  %v45 = vld [vmem:[%s0 + $0x7c] sm:$0xf]
  %v46 = vld [vmem:[%s0 + $0x80] sm:$0xf]
  %v47 = vld [vmem:[%s0 + $0x84] sm:$0xf]
  %v48 = vld [vmem:[%s0 + $0x88] sm:$0xf]
  %v49 = vld [vmem:[%s0 + $0x8c] sm:$0xf]
  %v50 = vld [vmem:[%s0 + $0x90] sm:$0xf]
  %v51 = vld [vmem:[%s0 + $0x94] sm:$0xf]
  %v52 = vld [vmem:[%s0 + $0x98] sm:$0xf]
  %v53 = vld [vmem:[%s0 + $0x9c] sm:$0xf]
  %v54 = vld [vmem:[%s0 + $0xa0] sm:$0xf]
  %v55 = vld [vmem:[%s0 + $0xa4] sm:$0xf]
  %v56 = vld [vmem:[%s0 + $0xa8] sm:$0xf]
  %v57 = vld [vmem:[%s0 + $0xac] sm:$0xf]
  %v58 = vld [vmem:[%s0 + $0xb0] sm:$0xf]
  %v59 = vld [vmem:[%s0 + $0xb4] sm:$0xf]
  %v60 = vld [vmem:[%s0 + $0xb8] sm:$0xf]
  %v61 = vld [vmem:[%s0 + $0xbc] sm:$0xf]
  %v62 = vld [vmem:[%s0 + $0xc0] sm:$0xf]
  %v63 = vunpack.c.l.bf16 %v14
  %v64 = vunpack.c.l.bf16 %v15
  %v65 = vunpack.c.l.bf16 %v16
  %v66 = vunpack.c.l.bf16 %v17
  %v67 = vunpack.c.l.bf16 %v18
  %v68 = vunpack.c.l.bf16 %v19
  %v69 = vunpack.c.l.bf16 %v20
  %v70 = vunpack.c.l.bf16 %v21
  %v71 = vunpack.c.l.bf16 %v22
  %v72 = vunpack.c.l.bf16 %v23
  %v73 = vunpack.c.l.bf16 %v24
  %v74 = vunpack.c.l.bf16 %v25
  %v75 = vunpack.c.l.bf16 %v26
  %v76 = vunpack.c.l.bf16 %v27
  %v77 = vunpack.c.l.bf16 %v28
  %v78 = vunpack.c.l.bf16 %v29
  %v79 = vunpack.c.l.bf16 %v30
  %v80 = vunpack.c.l.bf16 %v31
  %v81 = vunpack.c.l.bf16 %v32
  %v82 = vunpack.c.l.bf16 %v33
  %v83 = vunpack.c.l.bf16 %v34
  %v84 = vunpack.c.l.bf16 %v35
  %v85 = vunpack.c.l.bf16 %v36
  %v86 = vunpack.c.l.bf16 %v37
  %v87 = vunpack.c.l.bf16 %v38
  %v88 = vunpack.c.l.bf16 %v39
  %v89 = vunpack.c.l.bf16 %v40
  %v90 = vunpack.c.l.bf16 %v41
  %v91 = vunpack.c.l.bf16 %v42
  %v92 = vunpack.c.l.bf16 %v43
  %v93 = vunpack.c.l.bf16 %v44
  %v94 = vunpack.c.l.bf16 %v45
  %v95 = vunpack.c.l.bf16 %v46
  %v96 = vunpack.c.l.bf16 %v47
  %v97 = vunpack.c.l.bf16 %v48
  %v98 = vunpack.c.l.bf16 %v49
  %v99 = vunpack.c.l.bf16 %v50
  %v100 = vunpack.c.l.bf16 %v51
  %v101 = vunpack.c.l.bf16 %v52
  %v102 = vunpack.c.l.bf16 %v53
  %v103 = vunpack.c.l.bf16 %v54
  %v104 = vunpack.c.l.bf16 %v55
  %v105 = vunpack.c.l.bf16 %v56
  %v106 = vunpack.c.l.bf16 %v57
  %v107 = vunpack.c.l.bf16 %v58
  %v108 = vunpack.c.l.bf16 %v59
  %v109 = vunpack.c.l.bf16 %v60
  %v110 = vunpack.c.l.bf16 %v61
  %v111 = vunpack.c.l.bf16 %v62
  %v112 = vld [vmem:[%s1] sm:$0x1]
  %v114 = vlaneseq
  %v115 = vshrl.u32 %v114, 7
  %v116 = vsub.s32 0, %v115
  %v117 = vrot.slane %v112, %v116
  %v119 = vmul.f32 %v63, %v117
  %v120 = vmul.f32 %v64, %v117
  %v121 = vmul.f32 %v65, %v117
  %v122 = vmul.f32 %v66, %v117
  %v123 = vmul.f32 %v67, %v117
  %v124 = vmul.f32 %v68, %v117
  %v125 = vmul.f32 %v69, %v117
  %v126 = vmul.f32 %v70, %v117
  %v127 = vmul.f32 %v71, %v117
  %v128 = vmul.f32 %v72, %v117
  %v129 = vmul.f32 %v73, %v117
  %v130 = vmul.f32 %v74, %v117
  %v131 = vmul.f32 %v75, %v117
  %v132 = vmul.f32 %v76, %v117
  %v133 = vmul.f32 %v77, %v117
  %v134 = vmul.f32 %v78, %v117
  %v135 = vmul.f32 %v79, %v117
  %v136 = vmul.f32 %v80, %v117
  %v137 = vmul.f32 %v81, %v117
  %v138 = vmul.f32 %v82, %v117
  %v139 = vmul.f32 %v83, %v117
  %v140 = vmul.f32 %v84, %v117
  %v141 = vmul.f32 %v85, %v117
  %v142 = vmul.f32 %v86, %v117
  %v143 = vmul.f32 %v87, %v117
  %v144 = vmul.f32 %v88, %v117
  %v145 = vmul.f32 %v89, %v117
  %v146 = vmul.f32 %v90, %v117
  %v147 = vmul.f32 %v91, %v117
  %v148 = vmul.f32 %v92, %v117
  %v149 = vmul.f32 %v93, %v117
  %v150 = vmul.f32 %v94, %v117
  %v151 = vmul.f32 %v95, %v117
  %v152 = vmul.f32 %v96, %v117
  %v153 = vmul.f32 %v97, %v117
  %v154 = vmul.f32 %v98, %v117
  %v155 = vmul.f32 %v99, %v117
  %v156 = vmul.f32 %v100, %v117
  %v157 = vmul.f32 %v101, %v117
  %v158 = vmul.f32 %v102, %v117
  %v159 = vmul.f32 %v103, %v117
  %v160 = vmul.f32 %v104, %v117
  %v161 = vmul.f32 %v105, %v117
  %v162 = vmul.f32 %v106, %v117
  %v163 = vmul.f32 %v107, %v117
  %v164 = vmul.f32 %v108, %v117
  %v165 = vmul.f32 %v109, %v117
  %v166 = vmul.f32 %v110, %v117
  %v167 = vmul.f32 %v111, %v117
  %v168 = vld [vmem:[%s2] sm:$0x1]
  %v170 = vlaneseq
  %v171 = vshrl.u32 %v170, 7
  %v172 = vsub.s32 0, %v171
  %v173 = vrot.slane %v168, %v172
  %v175 = vadd.f32 %v119, %v173
  %v176 = vadd.f32 %v120, %v173
  %v177 = vadd.f32 %v121, %v173
  %v178 = vadd.f32 %v122, %v173
  %v179 = vadd.f32 %v123, %v173
  %v180 = vadd.f32 %v124, %v173
  %v181 = vadd.f32 %v125, %v173
  %v182 = vadd.f32 %v126, %v173
  %v183 = vadd.f32 %v127, %v173
  %v184 = vadd.f32 %v128, %v173
  %v185 = vadd.f32 %v129, %v173
  %v186 = vadd.f32 %v130, %v173
  %v187 = vadd.f32 %v131, %v173
  %v188 = vadd.f32 %v132, %v173
  %v189 = vadd.f32 %v133, %v173
  %v190 = vadd.f32 %v134, %v173
  %v191 = vadd.f32 %v135, %v173
  %v192 = vadd.f32 %v136, %v173
  %v193 = vadd.f32 %v137, %v173
  %v194 = vadd.f32 %v138, %v173
  %v195 = vadd.f32 %v139, %v173
  %v196 = vadd.f32 %v140, %v173
  %v197 = vadd.f32 %v141, %v173
  %v198 = vadd.f32 %v142, %v173
  %v199 = vadd.f32 %v143, %v173
  %v200 = vadd.f32 %v144, %v173
  %v201 = vadd.f32 %v145, %v173
  %v202 = vadd.f32 %v146, %v173
  %v203 = vadd.f32 %v147, %v173
  %v204 = vadd.f32 %v148, %v173
  %v205 = vadd.f32 %v149, %v173
  %v206 = vadd.f32 %v150, %v173
  %v207 = vadd.f32 %v151, %v173
  %v208 = vadd.f32 %v152, %v173
  %v209 = vadd.f32 %v153, %v173
  %v210 = vadd.f32 %v154, %v173
  %v211 = vadd.f32 %v155, %v173
  %v212 = vadd.f32 %v156, %v173
  %v213 = vadd.f32 %v157, %v173
  %v214 = vadd.f32 %v158, %v173
  %v215 = vadd.f32 %v159, %v173
  %v216 = vadd.f32 %v160, %v173
  %v217 = vadd.f32 %v161, %v173
  %v218 = vadd.f32 %v162, %v173
  %v219 = vadd.f32 %v163, %v173
  %v220 = vadd.f32 %v164, %v173
  %v221 = vadd.f32 %v165, %v173
  %v222 = vadd.f32 %v166, %v173
  %v223 = vadd.f32 %v167, %v173
  %v224 = vmul.f32 %v175, 0.01
  %v225 = vmul.f32 %v176, 0.01
  %v226 = vmul.f32 %v177, 0.01
  %v227 = vmul.f32 %v178, 0.01
  %v228 = vmul.f32 %v179, 0.01
  %v229 = vmul.f32 %v180, 0.01
  %v230 = vmul.f32 %v181, 0.01
  %v231 = vmul.f32 %v182, 0.01
  %v232 = vmul.f32 %v183, 0.01
  %v233 = vmul.f32 %v184, 0.01
  %v234 = vmul.f32 %v185, 0.01
  %v235 = vmul.f32 %v186, 0.01
  %v236 = vmul.f32 %v187, 0.01
  %v237 = vmul.f32 %v188, 0.01
  %v238 = vmul.f32 %v189, 0.01
  %v239 = vmul.f32 %v190, 0.01
  %v240 = vmul.f32 %v191, 0.01
  %v241 = vmul.f32 %v192, 0.01
  %v242 = vmul.f32 %v193, 0.01
  %v243 = vmul.f32 %v194, 0.01
  %v244 = vmul.f32 %v195, 0.01
  %v245 = vmul.f32 %v196, 0.01
  %v246 = vmul.f32 %v197, 0.01
  %v247 = vmul.f32 %v198, 0.01
  %v248 = vmul.f32 %v199, 0.01
  %v249 = vmul.f32 %v200, 0.01
  %v250 = vmul.f32 %v201, 0.01
  %v251 = vmul.f32 %v202, 0.01
  %v252 = vmul.f32 %v203, 0.01
  %v253 = vmul.f32 %v204, 0.01
  %v254 = vmul.f32 %v205, 0.01
  %v255 = vmul.f32 %v206, 0.01
  %v256 = vmul.f32 %v207, 0.01
  %v257 = vmul.f32 %v208, 0.01
  %v258 = vmul.f32 %v209, 0.01
  %v259 = vmul.f32 %v210, 0.01
  %v260 = vmul.f32 %v211, 0.01
  %v261 = vmul.f32 %v212, 0.01
  %v262 = vmul.f32 %v213, 0.01
  %v263 = vmul.f32 %v214, 0.01
  %v264 = vmul.f32 %v215, 0.01
  %v265 = vmul.f32 %v216, 0.01
  %v266 = vmul.f32 %v217, 0.01
  %v267 = vmul.f32 %v218, 0.01
  %v268 = vmul.f32 %v219, 0.01
  %v269 = vmul.f32 %v220, 0.01
  %v270 = vmul.f32 %v221, 0.01
  %v271 = vmul.f32 %v222, 0.01
  %v272 = vmul.f32 %v223, 0.01
  %v273 = vmax.f32 %v175, %v224
  %v274 = vmax.f32 %v176, %v225
  %v275 = vmax.f32 %v177, %v226
  %v276 = vmax.f32 %v178, %v227
  %v277 = vmax.f32 %v179, %v228
  %v278 = vmax.f32 %v180, %v229
  %v279 = vmax.f32 %v181, %v230
  %v280 = vmax.f32 %v182, %v231
  %v281 = vmax.f32 %v183, %v232
  %v282 = vmax.f32 %v184, %v233
  %v283 = vmax.f32 %v185, %v234
  %v284 = vmax.f32 %v186, %v235
  %v285 = vmax.f32 %v187, %v236
  %v286 = vmax.f32 %v188, %v237
  %v287 = vmax.f32 %v189, %v238
  %v288 = vmax.f32 %v190, %v239
  %v289 = vmax.f32 %v191, %v240
  %v290 = vmax.f32 %v192, %v241
  %v291 = vmax.f32 %v193, %v242
  %v292 = vmax.f32 %v194, %v243
  %v293 = vmax.f32 %v195, %v244
  %v294 = vmax.f32 %v196, %v245
  %v295 = vmax.f32 %v197, %v246
  %v296 = vmax.f32 %v198, %v247
  %v297 = vmax.f32 %v199, %v248
  %v298 = vmax.f32 %v200, %v249
  %v299 = vmax.f32 %v201, %v250
  %v300 = vmax.f32 %v202, %v251
  %v301 = vmax.f32 %v203, %v252
  %v302 = vmax.f32 %v204, %v253
  %v303 = vmax.f32 %v205, %v254
  %v304 = vmax.f32 %v206, %v255
  %v305 = vmax.f32 %v207, %v256
  %v306 = vmax.f32 %v208, %v257
  %v307 = vmax.f32 %v209, %v258
  %v308 = vmax.f32 %v210, %v259
  %v309 = vmax.f32 %v211, %v260
  %v310 = vmax.f32 %v212, %v261
  %v311 = vmax.f32 %v213, %v262
  %v312 = vmax.f32 %v214, %v263
  %v313 = vmax.f32 %v215, %v264
  %v314 = vmax.f32 %v216, %v265
  %v315 = vmax.f32 %v217, %v266
  %v316 = vmax.f32 %v218, %v267
  %v317 = vmax.f32 %v219, %v268
  %v318 = vmax.f32 %v220, %v269
  %v319 = vmax.f32 %v221, %v270
  %v320 = vmax.f32 %v222, %v271
  %v321 = vmax.f32 %v223, %v272
  %v322 = vpack.c.bf16 %v274, %v273
  %v323 = vpack.c.bf16 %v276, %v275
  %v324 = vpack.c.bf16 %v278, %v277
  %v325 = vpack.c.bf16 %v280, %v279
  %v326 = vpack.c.bf16 %v282, %v281
  %v327 = vpack.c.bf16 %v284, %v283
  %v328 = vpack.c.bf16 %v286, %v285
  %v329 = vpack.c.bf16 %v288, %v287
  %v330 = vpack.c.bf16 %v290, %v289
  %v331 = vpack.c.bf16 %v292, %v291
  %v332 = vpack.c.bf16 %v294, %v293
  %v333 = vpack.c.bf16 %v296, %v295
  %v334 = vpack.c.bf16 %v298, %v297
  %v335 = vpack.c.bf16 %v300, %v299
  %v336 = vpack.c.bf16 %v302, %v301
  %v337 = vpack.c.bf16 %v304, %v303
  %v338 = vpack.c.bf16 %v306, %v305
  %v339 = vpack.c.bf16 %v308, %v307
  %v340 = vpack.c.bf16 %v310, %v309
  %v341 = vpack.c.bf16 %v312, %v311
  %v342 = vpack.c.bf16 %v314, %v313
  %v343 = vpack.c.bf16 %v316, %v315
  %v344 = vpack.c.bf16 %v318, %v317
  %v345 = vpack.c.bf16 %v320, %v319
  %v346 = vpack.c.bf16 %v321, %v321
  %v372 = vunpack.c.l.b16 %v322
  %v373 = vunpack.c.h.b16 %v322
  %v374 = vunpack.c.l.b16 %v323
  %v375 = vunpack.c.h.b16 %v323
  %v376 = vunpack.c.l.b16 %v324
  %v377 = vunpack.c.h.b16 %v324
  %v378 = vunpack.c.l.b16 %v325
  %v379 = vunpack.c.h.b16 %v325
  %v380 = vunpack.c.l.b16 %v326
  %v381 = vunpack.c.h.b16 %v326
  %v382 = vunpack.c.l.b16 %v327
  %v383 = vunpack.c.h.b16 %v327
  %v384 = vunpack.c.l.b16 %v328
  %v385 = vunpack.c.h.b16 %v328
  %v386 = vunpack.c.l.b16 %v329
  %v387 = vunpack.c.h.b16 %v329
  %v388 = vunpack.c.l.b16 %v330
  %v389 = vunpack.c.h.b16 %v330
  %v390 = vunpack.c.l.b16 %v331
  %v391 = vunpack.c.h.b16 %v331
  %v392 = vunpack.c.l.b16 %v332
  %v393 = vunpack.c.h.b16 %v332
  %v394 = vunpack.c.l.b16 %v333
  %v395 = vunpack.c.h.b16 %v333
  %v396 = vunpack.c.l.b16 %v334
  %v397 = vunpack.c.h.b16 %v334
  %v398 = vunpack.c.l.b16 %v335
  %v399 = vunpack.c.h.b16 %v335
  %v400 = vunpack.c.l.b16 %v336
  %v401 = vunpack.c.h.b16 %v336
  %v402 = vunpack.c.l.b16 %v337
  %v403 = vunpack.c.h.b16 %v337
  %v404 = vunpack.c.l.b16 %v338
  %v405 = vunpack.c.h.b16 %v338
  %v406 = vunpack.c.l.b16 %v339
  %v407 = vunpack.c.h.b16 %v339
  %v408 = vunpack.c.l.b16 %v340
  %v409 = vunpack.c.h.b16 %v340
  %v410 = vunpack.c.l.b16 %v341
  %v411 = vunpack.c.h.b16 %v341
  %v412 = vunpack.c.l.b16 %v342
  %v413 = vunpack.c.h.b16 %v342
  %v414 = vunpack.c.l.b16 %v343
  %v415 = vunpack.c.h.b16 %v343
  %v416 = vunpack.c.l.b16 %v344
  %v417 = vunpack.c.h.b16 %v344
  %v418 = vunpack.c.l.b16 %v345
  %v419 = vunpack.c.h.b16 %v345
  %v420 = vunpack.c.l.b16 %v346
  %v421 = vpack.c.b16 %v372, %v372
  %v422 = vpack.c.b16 %v373, %v373
  %v423 = vpack.c.b16 %v374, %v374
  %v424 = vpack.c.b16 %v375, %v375
  %v425 = vpack.c.b16 %v376, %v376
  %v426 = vpack.c.b16 %v377, %v377
  %v427 = vpack.c.b16 %v378, %v378
  %v428 = vpack.c.b16 %v379, %v379
  %v429 = vpack.c.b16 %v380, %v380
  %v430 = vpack.c.b16 %v381, %v381
  %v431 = vpack.c.b16 %v382, %v382
  %v432 = vpack.c.b16 %v383, %v383
  %v433 = vpack.c.b16 %v384, %v384
  %v434 = vpack.c.b16 %v385, %v385
  %v435 = vpack.c.b16 %v386, %v386
  %v436 = vpack.c.b16 %v387, %v387
  %v437 = vpack.c.b16 %v388, %v388
  %v438 = vpack.c.b16 %v389, %v389
  %v439 = vpack.c.b16 %v390, %v390
  %v440 = vpack.c.b16 %v391, %v391
  %v441 = vpack.c.b16 %v392, %v392
  %v442 = vpack.c.b16 %v393, %v393
  %v443 = vpack.c.b16 %v394, %v394
  %v444 = vpack.c.b16 %v395, %v395
  %v445 = vpack.c.b16 %v396, %v396
  %v446 = vpack.c.b16 %v397, %v397
  %v447 = vpack.c.b16 %v398, %v398
  %v448 = vpack.c.b16 %v399, %v399
  %v449 = vpack.c.b16 %v400, %v400
  %v450 = vpack.c.b16 %v401, %v401
  %v451 = vpack.c.b16 %v402, %v402
  %v452 = vpack.c.b16 %v403, %v403
  %v453 = vpack.c.b16 %v404, %v404
  %v454 = vpack.c.b16 %v405, %v405
  %v455 = vpack.c.b16 %v406, %v406
  %v456 = vpack.c.b16 %v407, %v407
  %v457 = vpack.c.b16 %v408, %v408
  %v458 = vpack.c.b16 %v409, %v409
  %v459 = vpack.c.b16 %v410, %v410
  %v460 = vpack.c.b16 %v411, %v411
  %v461 = vpack.c.b16 %v412, %v412
  %v462 = vpack.c.b16 %v413, %v413
  %v463 = vpack.c.b16 %v414, %v414
  %v464 = vpack.c.b16 %v415, %v415
  %v465 = vpack.c.b16 %v416, %v416
  %v466 = vpack.c.b16 %v417, %v417
  %v467 = vpack.c.b16 %v418, %v418
  %v468 = vpack.c.b16 %v419, %v419
  %v469 = vpack.c.b16 %v420, %v420
  %519 = vst [vmem:[%s3] sm:$0xf] %v421
  %520 = vst [vmem:[%s3 + $0x4] sm:$0xf] %v422
  %521 = vst [vmem:[%s3 + $0x8] sm:$0xf] %v423
  %522 = vst [vmem:[%s3 + $0xc] sm:$0xf] %v424
  %523 = vst [vmem:[%s3 + $0x10] sm:$0xf] %v425
  %524 = vst [vmem:[%s3 + $0x14] sm:$0xf] %v426
  %525 = vst [vmem:[%s3 + $0x18] sm:$0xf] %v427
  %526 = vst [vmem:[%s3 + $0x1c] sm:$0xf] %v428
  %527 = vst [vmem:[%s3 + $0x20] sm:$0xf] %v429
  %528 = vst [vmem:[%s3 + $0x24] sm:$0xf] %v430
  %529 = vst [vmem:[%s3 + $0x28] sm:$0xf] %v431
  %530 = vst [vmem:[%s3 + $0x2c] sm:$0xf] %v432
  %531 = vst [vmem:[%s3 + $0x30] sm:$0xf] %v433
  %532 = vst [vmem:[%s3 + $0x34] sm:$0xf] %v434
  %533 = vst [vmem:[%s3 + $0x38] sm:$0xf] %v435
  %534 = vst [vmem:[%s3 + $0x3c] sm:$0xf] %v436
  %535 = vst [vmem:[%s3 + $0x40] sm:$0xf] %v437
  %536 = vst [vmem:[%s3 + $0x44] sm:$0xf] %v438
  %537 = vst [vmem:[%s3 + $0x48] sm:$0xf] %v439
  %538 = vst [vmem:[%s3 + $0x4c] sm:$0xf] %v440
  %539 = vst [vmem:[%s3 + $0x50] sm:$0xf] %v441
  %540 = vst [vmem:[%s3 + $0x54] sm:$0xf] %v442
  %541 = vst [vmem:[%s3 + $0x58] sm:$0xf] %v443
  %542 = vst [vmem:[%s3 + $0x5c] sm:$0xf] %v444
  %543 = vst [vmem:[%s3 + $0x60] sm:$0xf] %v445
  %544 = vst [vmem:[%s3 + $0x64] sm:$0xf] %v446
  %545 = vst [vmem:[%s3 + $0x68] sm:$0xf] %v447
  %546 = vst [vmem:[%s3 + $0x6c] sm:$0xf] %v448
  %547 = vst [vmem:[%s3 + $0x70] sm:$0xf] %v449
  %548 = vst [vmem:[%s3 + $0x74] sm:$0xf] %v450
  %549 = vst [vmem:[%s3 + $0x78] sm:$0xf] %v451
  %550 = vst [vmem:[%s3 + $0x7c] sm:$0xf] %v452
  %551 = vst [vmem:[%s3 + $0x80] sm:$0xf] %v453
  %552 = vst [vmem:[%s3 + $0x84] sm:$0xf] %v454
  %553 = vst [vmem:[%s3 + $0x88] sm:$0xf] %v455
  %554 = vst [vmem:[%s3 + $0x8c] sm:$0xf] %v456
  %555 = vst [vmem:[%s3 + $0x90] sm:$0xf] %v457
  %556 = vst [vmem:[%s3 + $0x94] sm:$0xf] %v458
  %557 = vst [vmem:[%s3 + $0x98] sm:$0xf] %v459
  %558 = vst [vmem:[%s3 + $0x9c] sm:$0xf] %v460
  %559 = vst [vmem:[%s3 + $0xa0] sm:$0xf] %v461
  %560 = vst [vmem:[%s3 + $0xa4] sm:$0xf] %v462
  %561 = vst [vmem:[%s3 + $0xa8] sm:$0xf] %v463
  %562 = vst [vmem:[%s3 + $0xac] sm:$0xf] %v464
  %563 = vst [vmem:[%s3 + $0xb0] sm:$0xf] %v465
  %564 = vst [vmem:[%s3 + $0xb4] sm:$0xf] %v466
  %565 = vst [vmem:[%s3 + $0xb8] sm:$0xf] %v467
  %566 = vst [vmem:[%s3 + $0xbc] sm:$0xf] %v468
  %567 = vst [vmem:[%s3 + $0xc0] sm:$0xf] %v469
  // Predicated region
  $region14: #{generator_forward.10} parent=0 // pred_check
    _
  $region15: #{generator_forward.10} parent=0 // pred_check_branch
    %569 = sbr.rel (0) target = $region17
  $region16: #{generator_forward.10} parent=0 // pred_region
    _
  $region17: #{generator_forward.10} parent=0 // pred_fallthru
    _
  // Predicated region
  $region18: #{generator_forward.10} parent=0 // pred_check
    _
  $region19: #{generator_forward.10} parent=0 // pred_check_branch
    %571 = sbr.rel (0) target = $region21
  $region20: #{generator_forward.10} parent=0 // pred_region
    _
  $region21: #{generator_forward.10} parent=0 // pred_fallthru
    _

// kernel: generator_forward.11
$region0: #{generator_forward.11}
  #allocation0 [shape = 'u32[]', space=smem, size = 0x4, offset = 0x4, fixed_abs, tag = 'smem constant byte address 0x4 - core index']
  #allocation1 [shape = 'u32[144,128]{1,0:T(1,128)}', space=vmem, size = 0x12000, scoped, tag = 'internal scratch']
  #allocation2 [shape = 'f32[1]{0:T(128)S(6)}', space=smem, size = 0x200, scoped, tag = 'scoped memory for generator_forward.11']
  %s0 = inlined_call_operand.vmem [shape: bf16[2,30,30,32], index: 0, kind: input, shape index: {}]
  %s1 = inlined_call_operand.vmem [shape: f32[9,1,1,32], index: 1, kind: input, shape index: {}]
  %s2 = inlined_call_operand.<no memory space> [shape: f32[1], index: 2, kind: input, shape index: {}]
  %s3 = inlined_call_operand.vmem [shape: f32[2,28,28], index: 3, kind: output, shape index: {}]
  %s4 = sld [smem:[#allocation0]]
  $region45: #{generator_forward.11} parent=0
    _
  %s6 = ssub.s32 1, %s4
  %s7 = scalar_select 0, %s6, %s4
  %8 = sst [smem:[#allocation2]] %s2
  loop: start=0, step=1, limit=4
  $region2: #{generator_forward.11} parent=0 // loop_pre_header
    _
  $region3: #{generator_forward.11} parent=0 // loop_header
    %s10 = sphi 0, %s14
    %p11 = scmp.ge.s32.totalorder %s10, 4
    %s20 = sphi 0, %s22
    %s23 = sphi 0, %s20
    %s24 = sphi 0, %s23
    %s40 = sphi 0, %s24
    %s44 = sphi 0, %s44
    %s46 = sphi 0, %s44
    %s47 = sphi 0, %s46
    %s61 = sphi 0, %s47
    %s65 = sphi 0, %s65
    %s67 = sphi 0, %s65
    %s68 = sphi 0, %s67
    %s82 = sphi 0, %s68
    %s88 = sphi 0, %s90
    %s91 = sphi 0, %s88
    %s92 = sphi 0, %s91
    %s108 = sphi 0, %s92
  $region4: #{generator_forward.11} parent=0 // loop_header_branch
    %13 = sbr.rel (%p11) target = $region8
  $region5: #{generator_forward.11} parent=0 // loop_body
    %s15 = ssub.s32 %s10, 1
    %s16 = ssub.s32 %s10, 2
    %s17 = sadd.s32 %s10, 1
    %s18 = ssub.s32 %s10, %s17
    %p19 = scmp.eq.s32.totalorder %s18, 0
    %s21 = sadd.s32 %s20, 1
    %s22 = scalar_select %p19, %s20, %s21
    %p25 = pneg %p19
    %p26 = scmp.eq.s32.totalorder %s10, 1
    %p27 = por %p25, %p26
    %p28 = scmp.ne.s32.totalorder %s20, %s23
    %p29 = scmp.eq.s32.totalorder %s10, 0
    %p30 = por %p28, %p29
    %p31 = scmp.ne.s32.totalorder %s20, %s23
    %p32 = scmp.eq.s32.totalorder %s15, 1
    %p33 = por %p31, %p32
    %p34 = scmp.ne.s32.totalorder %s23, %s24
    %p35 = scmp.eq.s32.totalorder %s15, 0
    %p36 = por %p34, %p35
    %p37 = scmp.ne.s32.totalorder %s23, %s24
    %p38 = scmp.eq.s32.totalorder %s16, 1
    %p39 = por %p37, %p38
    %p41 = scmp.ne.s32.totalorder %s24, %s40
    %p42 = scmp.eq.s32.totalorder %s16, 0
    %p43 = por %p41, %p42
    %s45 = sadd.s32 %s44, 1
    %p48 = scmp.eq.s32.totalorder %s10, 1
    %p49 = scmp.ne.s32.totalorder %s44, %s46
    %p50 = scmp.eq.s32.totalorder %s10, 0
    %p51 = por %p49, %p50
    %p52 = scmp.ne.s32.totalorder %s44, %s46
    %p53 = scmp.eq.s32.totalorder %s15, 1
    %p54 = por %p52, %p53
    %p55 = scmp.ne.s32.totalorder %s46, %s47
    %p56 = scmp.eq.s32.totalorder %s15, 0
    %p57 = por %p55, %p56
    %p58 = scmp.ne.s32.totalorder %s46, %s47
    %p59 = scmp.eq.s32.totalorder %s16, 1
    %p60 = por %p58, %p59
    %p62 = scmp.ne.s32.totalorder %s47, %s61
    %p63 = scmp.eq.s32.totalorder %s16, 0
    %p64 = por %p62, %p63
    %s66 = sadd.s32 %s65, 1
    %p69 = scmp.eq.s32.totalorder %s10, 1
    %p70 = scmp.ne.s32.totalorder %s65, %s67
    %p71 = scmp.eq.s32.totalorder %s10, 0
    %p72 = por %p70, %p71
    %p73 = scmp.ne.s32.totalorder %s65, %s67
    %p74 = scmp.eq.s32.totalorder %s15, 1
    %p75 = por %p73, %p74
    %p76 = scmp.ne.s32.totalorder %s67, %s68
    %p77 = scmp.eq.s32.totalorder %s15, 0
    %p78 = por %p76, %p77
    %p79 = scmp.ne.s32.totalorder %s67, %s68
    %p80 = scmp.eq.s32.totalorder %s16, 1
    %p81 = por %p79, %p80
    %p83 = scmp.ne.s32.totalorder %s68, %s82
    %p84 = scmp.eq.s32.totalorder %s16, 0
    %p85 = por %p83, %p84
    %s86 = ssub.s32 %s10, %s17
    %p87 = scmp.eq.s32.totalorder %s86, 0
    %s89 = sadd.s32 %s88, 1
    %s90 = scalar_select %p87, %s88, %s89
    %p93 = pneg %p87
    %p94 = scmp.eq.s32.totalorder %s10, 1
    %p95 = por %p93, %p94
    %p96 = scmp.ne.s32.totalorder %s88, %s91
    %p97 = scmp.eq.s32.totalorder %s10, 0
    %p98 = por %p96, %p97
    %p99 = scmp.ne.s32.totalorder %s88, %s91
    %p100 = scmp.eq.s32.totalorder %s15, 1
    %p101 = por %p99, %p100
    %p102 = scmp.ne.s32.totalorder %s91, %s92
    %p103 = scmp.eq.s32.totalorder %s15, 0
    %p104 = por %p102, %p103
    %p105 = scmp.ne.s32.totalorder %s91, %s92
    %p106 = scmp.eq.s32.totalorder %s16, 1
    %p107 = por %p105, %p106
    %p109 = scmp.ne.s32.totalorder %s92, %s108
    %p110 = scmp.eq.s32.totalorder %s16, 0
    %p111 = por %p109, %p110
    %p112 = scmp.le.s32.totalorder 1, %s10
    %p113 = scmp.lt.s32.totalorder %s10, 3
    %p114 = pnand %p112, %p113
    %p115 = pneg %p114
    // Predicated region
    $region9: #{generator_forward.11} parent=5 // pred_check
      _
    $region10: #{generator_forward.11} parent=5 // pred_check_branch
      %117 = sbr.rel (%p114) target = $region12
    $region11: #{generator_forward.11} parent=5 // pred_region
      %s118 = ssub.s32 %s10, 1
      // Predicated region
      $region13: #{generator_forward.11} parent=11 // pred_check
        %p119 = pneg %p57
      $region14: #{generator_forward.11} parent=11 // pred_check_branch
        %121 = sbr.rel (%p119) target = $region16
      $region15: #{generator_forward.11} parent=11 // pred_region
        _
      $region16: #{generator_forward.11} parent=11 // pred_fallthru
        _
      // Predicated region
      $region17: #{generator_forward.11} parent=11 // pred_check
        %p122 = pneg %p78
      $region18: #{generator_forward.11} parent=11 // pred_check_branch
        %124 = sbr.rel (%p122) target = $region20
      $region19: #{generator_forward.11} parent=11 // pred_region
        _
      $region20: #{generator_forward.11} parent=11 // pred_fallthru
        _
    $region12: #{generator_forward.11} parent=5 // pred_fallthru
      _
    %p125 = scmp.lt.s32.totalorder %s10, 2
    // Predicated region
    $region21: #{generator_forward.11} parent=5 // pred_check
      %p126 = pneg %p125
    $region22: #{generator_forward.11} parent=5 // pred_check_branch
      %128 = sbr.rel (%p126) target = $region24
    $region23: #{generator_forward.11} parent=5 // pred_region
      // Predicated region
      $region25: #{generator_forward.11} parent=23 // pred_check
        %p129 = pneg %p30
      $region26: #{generator_forward.11} parent=23 // pred_check_branch
        %131 = sbr.rel (%p129) target = $region28
      $region27: #{generator_forward.11} parent=23 // pred_region
        %p132 = scmp.lt.s32.totalorder %s10, 1
        %s133 = scalar_select %p132, %s10, 1
        %s134 = smul.addr %s133, 120
        %s135 = smul.addr %s134, 4
        %s136 = scalar_lea.vmem %s0, %s135
      $region28: #{generator_forward.11} parent=23 // pred_fallthru
        _
    $region24: #{generator_forward.11} parent=5 // pred_fallthru
      _
    %p137 = scmp.le.s32.totalorder 1, %s10
    %p138 = scmp.lt.s32.totalorder %s10, 3
    %p139 = pnand %p137, %p138
    %p140 = pneg %p139
    // Predicated region
    $region29: #{generator_forward.11} parent=5 // pred_check
      _
    $region30: #{generator_forward.11} parent=5 // pred_check_branch
      %142 = sbr.rel (%p139) target = $region32
    $region31: #{generator_forward.11} parent=5 // pred_region
      %s143 = ssub.s32 %s10, 1
      %p144 = scmp.lt.s32.totalorder %s15, 1
      %s145 = scalar_select %p144, %s15, 1
      %s146 = smul.addr %s145, 120
      %s147 = smul.addr %s146, 4
      %s148 = scalar_lea.vmem %s0, %s147
      %p149 = pneg %p36
      %p150 = pneg %p33
      %p151 = pneg %p57
      %p152 = pneg %p54
      %p153 = pneg %p78
      %p154 = pneg %p75
      %p155 = pneg %p104
      %p156 = pneg %p101
      %p157 = scmp.lt.s32.totalorder %s15, 1
      %s158 = scalar_select %p157, %s15, 1
      %s159 = smul.addr %s158, 4
      %s160 = smul.addr %s159, 8
      %s161 = scalar_lea.vmem %s3, %s160
      %p162 = scmp.lt.s32.totalorder %s15, 1
      %s163 = scalar_select %p162, %s15, 1
      %s164 = smul.addr %s163, 120
      %s165 = smul.addr %s164, 4
      %s166 = scalar_lea.vmem %s0, %s165
      %p167 = scmp.lt.s32.totalorder %s15, 1
      %s168 = scalar_select %p167, %s15, 1
      %s169 = smul.addr %s168, 4
      %s170 = smul.addr %s169, 8
      %s171 = scalar_lea.vmem %s3, %s170
      %v172 = vld [vmem:[%s166] sm:$0xf]
      %v173 = vld [vmem:[%s166 + $0x4] sm:$0xf]
      %v174 = vld [vmem:[%s166 + $0x8] sm:$0xf]
      %v175 = vld [vmem:[%s166 + $0xc] sm:$0x7]
      %v176 = vld [vmem:[%s166 + $0x10] sm:$0xf]
      %v177 = vld [vmem:[%s166 + $0x14] sm:$0xf]
      %v178 = vld [vmem:[%s166 + $0x18] sm:$0xf]
      %v179 = vld [vmem:[%s166 + $0x1c] sm:$0x7]
      %v180 = vld [vmem:[%s166 + $0x20] sm:$0xf]
      %v181 = vld [vmem:[%s166 + $0x24] sm:$0xf]
      %v182 = vld [vmem:[%s166 + $0x28] sm:$0xf]
      %v183 = vld [vmem:[%s166 + $0x2c] sm:$0x7]
      %v184 = vld [vmem:[%s166 + $0x30] sm:$0xf]
      %v185 = vld [vmem:[%s166 + $0x34] sm:$0xf]
      %v186 = vld [vmem:[%s166 + $0x38] sm:$0xf]
      %v187 = vld [vmem:[%s166 + $0x3c] sm:$0x7]
      %v188 = vld [vmem:[%s166 + $0x40] sm:$0xf]
      %v189 = vld [vmem:[%s166 + $0x44] sm:$0xf]
      %v190 = vld [vmem:[%s166 + $0x48] sm:$0xf]
      %v191 = vld [vmem:[%s166 + $0x4c] sm:$0x7]
      %v192 = vld [vmem:[%s166 + $0x50] sm:$0xf]
      %v193 = vld [vmem:[%s166 + $0x54] sm:$0xf]
      %v194 = vld [vmem:[%s166 + $0x58] sm:$0xf]
      %v195 = vld [vmem:[%s166 + $0x5c] sm:$0x7]
      %v196 = vld [vmem:[%s166 + $0x60] sm:$0xf]
      %v197 = vld [vmem:[%s166 + $0x64] sm:$0xf]
      %v198 = vld [vmem:[%s166 + $0x68] sm:$0xf]
      %v199 = vld [vmem:[%s166 + $0x6c] sm:$0x7]
      %v200 = vld [vmem:[%s166 + $0x70] sm:$0xf]
      %v201 = vld [vmem:[%s166 + $0x74] sm:$0xf]
      %v202 = vld [vmem:[%s166 + $0x78] sm:$0xf]
      %v203 = vld [vmem:[%s166 + $0x7c] sm:$0x7]
      %v204 = vld [vmem:[%s166 + $0x80] sm:$0xf]
      %v205 = vld [vmem:[%s166 + $0x84] sm:$0xf]
      %v206 = vld [vmem:[%s166 + $0x88] sm:$0xf]
      %v207 = vld [vmem:[%s166 + $0x8c] sm:$0x7]
      %v208 = vld [vmem:[%s166 + $0x90] sm:$0xf]
      %v209 = vld [vmem:[%s166 + $0x94] sm:$0xf]
      %v210 = vld [vmem:[%s166 + $0x98] sm:$0xf]
      %v211 = vld [vmem:[%s166 + $0x9c] sm:$0x7]
      %v212 = vld [vmem:[%s166 + $0xa0] sm:$0xf]
      %v213 = vld [vmem:[%s166 + $0xa4] sm:$0xf]
      %v214 = vld [vmem:[%s166 + $0xa8] sm:$0xf]
      %v215 = vld [vmem:[%s166 + $0xac] sm:$0x7]
      %v216 = vld [vmem:[%s166 + $0xb0] sm:$0xf]
      %v217 = vld [vmem:[%s166 + $0xb4] sm:$0xf]
      %v218 = vld [vmem:[%s166 + $0xb8] sm:$0xf]
      %v219 = vld [vmem:[%s166 + $0xbc] sm:$0x7]
      %v220 = vld [vmem:[%s166 + $0xc0] sm:$0xf]
      %v221 = vld [vmem:[%s166 + $0xc4] sm:$0xf]
      %v222 = vld [vmem:[%s166 + $0xc8] sm:$0xf]
      %v223 = vld [vmem:[%s166 + $0xcc] sm:$0x7]
      %v224 = vld [vmem:[%s166 + $0xd0] sm:$0xf]
      %v225 = vld [vmem:[%s166 + $0xd4] sm:$0xf]
      %v226 = vld [vmem:[%s166 + $0xd8] sm:$0xf]
      %v227 = vld [vmem:[%s166 + $0xdc] sm:$0x7]
      %v228 = vld [vmem:[%s166 + $0xe0] sm:$0xf]
      %v229 = vld [vmem:[%s166 + $0xe4] sm:$0xf]
      %v230 = vld [vmem:[%s166 + $0xe8] sm:$0xf]
      %v231 = vld [vmem:[%s166 + $0xec] sm:$0x7]
      %v232 = vld [vmem:[%s166 + $0xf0] sm:$0xf]
      %v233 = vld [vmem:[%s166 + $0xf4] sm:$0xf]
      %v234 = vld [vmem:[%s166 + $0xf8] sm:$0xf]
      %v235 = vld [vmem:[%s166 + $0xfc] sm:$0x7]
      %v236 = vld [vmem:[%s166 + $0x100] sm:$0xf]
      %v237 = vld [vmem:[%s166 + $0x104] sm:$0xf]
      %v238 = vld [vmem:[%s166 + $0x108] sm:$0xf]
      %v239 = vld [vmem:[%s166 + $0x10c] sm:$0x7]
      %v240 = vld [vmem:[%s166 + $0x110] sm:$0xf]
      %v241 = vld [vmem:[%s166 + $0x114] sm:$0xf]
      %v242 = vld [vmem:[%s166 + $0x118] sm:$0xf]
      %v243 = vld [vmem:[%s166 + $0x11c] sm:$0x7]
      %v244 = vld [vmem:[%s166 + $0x120] sm:$0xf]
      %v245 = vld [vmem:[%s166 + $0x124] sm:$0xf]
      %v246 = vld [vmem:[%s166 + $0x128] sm:$0xf]
      %v247 = vld [vmem:[%s166 + $0x12c] sm:$0x7]
      %v248 = vld [vmem:[%s166 + $0x130] sm:$0xf]
      %v249 = vld [vmem:[%s166 + $0x134] sm:$0xf]
      %v250 = vld [vmem:[%s166 + $0x138] sm:$0xf]
      %v251 = vld [vmem:[%s166 + $0x13c] sm:$0x7]
      %v252 = vld [vmem:[%s166 + $0x140] sm:$0xf]
      %v253 = vld [vmem:[%s166 + $0x144] sm:$0xf]
      %v254 = vld [vmem:[%s166 + $0x148] sm:$0xf]
      %v255 = vld [vmem:[%s166 + $0x14c] sm:$0x7]
      %v256 = vld [vmem:[%s166 + $0x150] sm:$0xf]
      %v257 = vld [vmem:[%s166 + $0x154] sm:$0xf]
      %v258 = vld [vmem:[%s166 + $0x158] sm:$0xf]
      %v259 = vld [vmem:[%s166 + $0x15c] sm:$0x7]
      %v260 = vld [vmem:[%s166 + $0x160] sm:$0xf]
      %v261 = vld [vmem:[%s166 + $0x164] sm:$0xf]
      %v262 = vld [vmem:[%s166 + $0x168] sm:$0xf]
      %v263 = vld [vmem:[%s166 + $0x16c] sm:$0x7]
      %v264 = vld [vmem:[%s166 + $0x170] sm:$0xf]
      %v265 = vld [vmem:[%s166 + $0x174] sm:$0xf]
      %v266 = vld [vmem:[%s166 + $0x178] sm:$0xf]
      %v267 = vld [vmem:[%s166 + $0x17c] sm:$0x7]
      %v268 = vld [vmem:[%s166 + $0x180] sm:$0xf]
      %v269 = vld [vmem:[%s166 + $0x184] sm:$0xf]
      %v270 = vld [vmem:[%s166 + $0x188] sm:$0xf]
      %v271 = vld [vmem:[%s166 + $0x18c] sm:$0x7]
      %v272 = vld [vmem:[%s166 + $0x190] sm:$0xf]
      %v273 = vld [vmem:[%s166 + $0x194] sm:$0xf]
      %v274 = vld [vmem:[%s166 + $0x198] sm:$0xf]
      %v275 = vld [vmem:[%s166 + $0x19c] sm:$0x7]
      %v276 = vld [vmem:[%s166 + $0x1a0] sm:$0xf]
      %v277 = vld [vmem:[%s166 + $0x1a4] sm:$0xf]
      %v278 = vld [vmem:[%s166 + $0x1a8] sm:$0xf]
      %v279 = vld [vmem:[%s166 + $0x1ac] sm:$0x7]
      %v280 = vld [vmem:[%s166 + $0x1b0] sm:$0xf]
      %v281 = vld [vmem:[%s166 + $0x1b4] sm:$0xf]
      %v282 = vld [vmem:[%s166 + $0x1b8] sm:$0xf]
      %v283 = vld [vmem:[%s166 + $0x1bc] sm:$0x7]
      %v284 = vld [vmem:[%s166 + $0x1c0] sm:$0xf]
      %v285 = vld [vmem:[%s166 + $0x1c4] sm:$0xf]
      %v286 = vld [vmem:[%s166 + $0x1c8] sm:$0xf]
      %v287 = vld [vmem:[%s166 + $0x1cc] sm:$0x7]
      %v288 = vld [vmem:[%s166 + $0x1d0] sm:$0xf]
      %v289 = vld [vmem:[%s166 + $0x1d4] sm:$0xf]
      %v290 = vld [vmem:[%s166 + $0x1d8] sm:$0xf]
      %v291 = vld [vmem:[%s166 + $0x1dc] sm:$0x7]
      %v292 = vunpack.c.l.bf16 %v172
      %v293 = vunpack.c.l.bf16 %v173
      %v294 = vunpack.c.l.bf16 %v174
      %v295 = vunpack.c.l.bf16 %v175
      %v296 = vunpack.c.l.bf16 %v176
      %v297 = vunpack.c.l.bf16 %v177
      %v298 = vunpack.c.l.bf16 %v178
      %v299 = vunpack.c.l.bf16 %v179
      %v300 = vunpack.c.l.bf16 %v180
      %v301 = vunpack.c.l.bf16 %v181
      %v302 = vunpack.c.l.bf16 %v182
      %v303 = vunpack.c.l.bf16 %v183
      %v304 = vunpack.c.l.bf16 %v184
      %v305 = vunpack.c.l.bf16 %v185
      %v306 = vunpack.c.l.bf16 %v186
      %v307 = vunpack.c.l.bf16 %v187
      %v308 = vunpack.c.l.bf16 %v188
      %v309 = vunpack.c.l.bf16 %v189
      %v310 = vunpack.c.l.bf16 %v190
      %v311 = vunpack.c.l.bf16 %v191
      %v312 = vunpack.c.l.bf16 %v192
      %v313 = vunpack.c.l.bf16 %v193
      %v314 = vunpack.c.l.bf16 %v194
      %v315 = vunpack.c.l.bf16 %v195
      %v316 = vunpack.c.l.bf16 %v196
      %v317 = vunpack.c.l.bf16 %v197
      %v318 = vunpack.c.l.bf16 %v198
      %v319 = vunpack.c.l.bf16 %v199
      %v320 = vunpack.c.l.bf16 %v200
      %v321 = vunpack.c.l.bf16 %v201
      %v322 = vunpack.c.l.bf16 %v202
      %v323 = vunpack.c.l.bf16 %v203
      %v324 = vunpack.c.l.bf16 %v204
      %v325 = vunpack.c.l.bf16 %v205
      %v326 = vunpack.c.l.bf16 %v206
      %v327 = vunpack.c.l.bf16 %v207
      %v328 = vunpack.c.l.bf16 %v208
      %v329 = vunpack.c.l.bf16 %v209
      %v330 = vunpack.c.l.bf16 %v210
      %v331 = vunpack.c.l.bf16 %v211
      %v332 = vunpack.c.l.bf16 %v212
      %v333 = vunpack.c.l.bf16 %v213
      %v334 = vunpack.c.l.bf16 %v214
      %v335 = vunpack.c.l.bf16 %v215
      %v336 = vunpack.c.l.bf16 %v216
      %v337 = vunpack.c.l.bf16 %v217
      %v338 = vunpack.c.l.bf16 %v218
      %v339 = vunpack.c.l.bf16 %v219
      %v340 = vunpack.c.l.bf16 %v220
      %v341 = vunpack.c.l.bf16 %v221
      %v342 = vunpack.c.l.bf16 %v222
      %v343 = vunpack.c.l.bf16 %v223
      %v344 = vunpack.c.l.bf16 %v224
      %v345 = vunpack.c.l.bf16 %v225
      %v346 = vunpack.c.l.bf16 %v226
      %v347 = vunpack.c.l.bf16 %v227
      %v348 = vunpack.c.l.bf16 %v228
      %v349 = vunpack.c.l.bf16 %v229
      %v350 = vunpack.c.l.bf16 %v230
      %v351 = vunpack.c.l.bf16 %v231
      %v352 = vunpack.c.l.bf16 %v232
      %v353 = vunpack.c.l.bf16 %v233
      %v354 = vunpack.c.l.bf16 %v234
      %v355 = vunpack.c.l.bf16 %v235
      %v356 = vunpack.c.l.bf16 %v236
      %v357 = vunpack.c.l.bf16 %v237
      %v358 = vunpack.c.l.bf16 %v238
      %v359 = vunpack.c.l.bf16 %v239
      %v360 = vunpack.c.l.bf16 %v240
      %v361 = vunpack.c.l.bf16 %v241
      %v362 = vunpack.c.l.bf16 %v242
      %v363 = vunpack.c.l.bf16 %v243
      %v364 = vunpack.c.l.bf16 %v244
      %v365 = vunpack.c.l.bf16 %v245
      %v366 = vunpack.c.l.bf16 %v246
      %v367 = vunpack.c.l.bf16 %v247
      %v368 = vunpack.c.l.bf16 %v248
      %v369 = vunpack.c.l.bf16 %v249
      %v370 = vunpack.c.l.bf16 %v250
      %v371 = vunpack.c.l.bf16 %v251
      %v372 = vunpack.c.l.bf16 %v252
      %v373 = vunpack.c.l.bf16 %v253
      %v374 = vunpack.c.l.bf16 %v254
      %v375 = vunpack.c.l.bf16 %v255
      %v376 = vunpack.c.l.bf16 %v256
      %v377 = vunpack.c.l.bf16 %v257
      %v378 = vunpack.c.l.bf16 %v258
      %v379 = vunpack.c.l.bf16 %v259
      %v380 = vunpack.c.l.bf16 %v260
      %v381 = vunpack.c.l.bf16 %v261
      %v382 = vunpack.c.l.bf16 %v262
      %v383 = vunpack.c.l.bf16 %v263
      %v384 = vunpack.c.l.bf16 %v264
      %v385 = vunpack.c.l.bf16 %v265
      %v386 = vunpack.c.l.bf16 %v266
      %v387 = vunpack.c.l.bf16 %v267
      %v388 = vunpack.c.l.bf16 %v268
      %v389 = vunpack.c.l.bf16 %v269
      %v390 = vunpack.c.l.bf16 %v270
      %v391 = vunpack.c.l.bf16 %v271
      %v392 = vunpack.c.l.bf16 %v272
      %v393 = vunpack.c.l.bf16 %v273
      %v394 = vunpack.c.l.bf16 %v274
      %v395 = vunpack.c.l.bf16 %v275
      %v396 = vunpack.c.l.bf16 %v276
      %v397 = vunpack.c.l.bf16 %v277
      %v398 = vunpack.c.l.bf16 %v278
      %v399 = vunpack.c.l.bf16 %v279
      %v400 = vunpack.c.l.bf16 %v280
      %v401 = vunpack.c.l.bf16 %v281
      %v402 = vunpack.c.l.bf16 %v282
      %v403 = vunpack.c.l.bf16 %v283
      %v404 = vunpack.c.l.bf16 %v284
      %v405 = vunpack.c.l.bf16 %v285
      %v406 = vunpack.c.l.bf16 %v286
      %v407 = vunpack.c.l.bf16 %v287
      %v408 = vunpack.c.l.bf16 %v288
      %v409 = vunpack.c.l.bf16 %v289
      %v410 = vunpack.c.l.bf16 %v290
      %v411 = vunpack.c.l.bf16 %v291
      %v412 = vld [vmem:[%s1] sm:$0x1]
      %v413 = vld [vmem:[%s1 + $0x1] sm:$0x1]
      %v414 = vld [vmem:[%s1 + $0x2] sm:$0x1]
      %v415 = vld [vmem:[%s1 + $0x3] sm:$0x1]
      %v416 = vld [vmem:[%s1 + $0x4] sm:$0x1]
      %v417 = vld [vmem:[%s1 + $0x5] sm:$0x1]
      %v418 = vld [vmem:[%s1 + $0x6] sm:$0x1]
      %v419 = vld [vmem:[%s1 + $0x7] sm:$0x1]
      %v420 = vld [vmem:[%s1 + $0x8] sm:$0x1]
      %v422 = vlaneseq
      %v423 = vshrl.u32 %v422, 7
      %v424 = vsub.s32 0, %v423
      %v425 = vrot.slane %v412, %v424
      %v427 = vmul.f32 %v292, %v425
      %v428 = vmul.f32 %v293, %v425
      %v429 = vmul.f32 %v294, %v425
      %v430 = vmul.f32 %v295, %v425
      %v431 = vmul.f32 %v296, %v425
      %v432 = vmul.f32 %v297, %v425
      %v433 = vmul.f32 %v298, %v425
      %v434 = vmul.f32 %v299, %v425
      %v435 = vmul.f32 %v300, %v425
      %v436 = vmul.f32 %v301, %v425
      %v437 = vmul.f32 %v302, %v425
      %v438 = vmul.f32 %v303, %v425
      %v439 = vmul.f32 %v304, %v425
      %v440 = vmul.f32 %v305, %v425
      %v441 = vmul.f32 %v306, %v425
      %v442 = vmul.f32 %v307, %v425
      %v443 = vmul.f32 %v308, %v425
      %v444 = vmul.f32 %v309, %v425
      %v445 = vmul.f32 %v310, %v425
      %v446 = vmul.f32 %v311, %v425
      %v447 = vmul.f32 %v312, %v425
      %v448 = vmul.f32 %v313, %v425
      %v449 = vmul.f32 %v314, %v425
      %v450 = vmul.f32 %v315, %v425
      %v451 = vmul.f32 %v316, %v425
      %v452 = vmul.f32 %v317, %v425
      %v453 = vmul.f32 %v318, %v425
      %v454 = vmul.f32 %v319, %v425
      %v455 = vmul.f32 %v320, %v425
      %v456 = vmul.f32 %v321, %v425
      %v457 = vmul.f32 %v322, %v425
      %v458 = vmul.f32 %v323, %v425
      %v459 = vmul.f32 %v324, %v425
      %v460 = vmul.f32 %v325, %v425
      %v461 = vmul.f32 %v326, %v425
      %v462 = vmul.f32 %v327, %v425
      %v463 = vmul.f32 %v328, %v425
      %v464 = vmul.f32 %v329, %v425
      %v465 = vmul.f32 %v330, %v425
      %v466 = vmul.f32 %v331, %v425
      %v467 = vmul.f32 %v332, %v425
      %v468 = vmul.f32 %v333, %v425
      %v469 = vmul.f32 %v334, %v425
      %v470 = vmul.f32 %v335, %v425
      %v471 = vmul.f32 %v336, %v425
      %v472 = vmul.f32 %v337, %v425
      %v473 = vmul.f32 %v338, %v425
      %v474 = vmul.f32 %v339, %v425
      %v475 = vmul.f32 %v340, %v425
      %v476 = vmul.f32 %v341, %v425
      %v477 = vmul.f32 %v342, %v425
      %v478 = vmul.f32 %v343, %v425
      %v479 = vmul.f32 %v344, %v425
      %v480 = vmul.f32 %v345, %v425
      %v481 = vmul.f32 %v346, %v425
      %v482 = vmul.f32 %v347, %v425
      %v483 = vmul.f32 %v348, %v425
      %v484 = vmul.f32 %v349, %v425
      %v485 = vmul.f32 %v350, %v425
      %v486 = vmul.f32 %v351, %v425
      %v487 = vmul.f32 %v352, %v425
      %v488 = vmul.f32 %v353, %v425
      %v489 = vmul.f32 %v354, %v425
      %v490 = vmul.f32 %v355, %v425
      %v491 = vmul.f32 %v356, %v425
      %v492 = vmul.f32 %v357, %v425
      %v493 = vmul.f32 %v358, %v425
      %v494 = vmul.f32 %v359, %v425
      %v495 = vmul.f32 %v360, %v425
      %v496 = vmul.f32 %v361, %v425
      %v497 = vmul.f32 %v362, %v425
      %v498 = vmul.f32 %v363, %v425
      %v499 = vmul.f32 %v364, %v425
      %v500 = vmul.f32 %v365, %v425
      %v501 = vmul.f32 %v366, %v425
      %v502 = vmul.f32 %v367, %v425
      %v503 = vmul.f32 %v368, %v425
      %v504 = vmul.f32 %v369, %v425
      %v505 = vmul.f32 %v370, %v425
      %v506 = vmul.f32 %v371, %v425
      %v507 = vmul.f32 %v372, %v425
      %v508 = vmul.f32 %v373, %v425
      %v509 = vmul.f32 %v374, %v425
      %v510 = vmul.f32 %v375, %v425
      %v511 = vmul.f32 %v376, %v425
      %v512 = vmul.f32 %v377, %v425
      %v513 = vmul.f32 %v378, %v425
      %v514 = vmul.f32 %v379, %v425
      %v515 = vmul.f32 %v380, %v425
      %v516 = vmul.f32 %v381, %v425
      %v517 = vmul.f32 %v382, %v425
      %v518 = vmul.f32 %v383, %v425
      %v519 = vmul.f32 %v384, %v425
      %v520 = vmul.f32 %v385, %v425
      %v521 = vmul.f32 %v386, %v425
      %v522 = vmul.f32 %v387, %v425
      %v523 = vmul.f32 %v388, %v425
      %v524 = vmul.f32 %v389, %v425
      %v525 = vmul.f32 %v390, %v425
      %v526 = vmul.f32 %v391, %v425
      %v527 = vmul.f32 %v392, %v425
      %v528 = vmul.f32 %v393, %v425
      %v529 = vmul.f32 %v394, %v425
      %v530 = vmul.f32 %v395, %v425
      %v531 = vmul.f32 %v396, %v425
      %v532 = vmul.f32 %v397, %v425
      %v533 = vmul.f32 %v398, %v425
      %v534 = vmul.f32 %v399, %v425
      %v535 = vmul.f32 %v400, %v425
      %v536 = vmul.f32 %v401, %v425
      %v537 = vmul.f32 %v402, %v425
      %v538 = vmul.f32 %v403, %v425
      %v539 = vadd.f32 %v427, 0.0
      %v540 = vadd.f32 %v428, 0.0
      %v541 = vadd.f32 %v429, 0.0
      %v542 = vadd.f32 %v430, 0.0
      %v543 = vadd.f32 %v431, 0.0
      %v544 = vadd.f32 %v432, 0.0
      %v545 = vadd.f32 %v433, 0.0
      %v546 = vadd.f32 %v434, 0.0
      %v547 = vadd.f32 %v435, 0.0
      %v548 = vadd.f32 %v436, 0.0
      %v549 = vadd.f32 %v437, 0.0
      %v550 = vadd.f32 %v438, 0.0
      %v551 = vadd.f32 %v439, 0.0
      %v552 = vadd.f32 %v440, 0.0
      %v553 = vadd.f32 %v441, 0.0
      %v554 = vadd.f32 %v442, 0.0
      %v555 = vadd.f32 %v443, 0.0
      %v556 = vadd.f32 %v444, 0.0
      %v557 = vadd.f32 %v445, 0.0
      %v558 = vadd.f32 %v446, 0.0
      %v559 = vadd.f32 %v447, 0.0
      %v560 = vadd.f32 %v448, 0.0
      %v561 = vadd.f32 %v449, 0.0
      %v562 = vadd.f32 %v450, 0.0
      %v563 = vadd.f32 %v451, 0.0
      %v564 = vadd.f32 %v452, 0.0
      %v565 = vadd.f32 %v453, 0.0
      %v566 = vadd.f32 %v454, 0.0
      %v567 = vadd.f32 %v455, 0.0
      %v568 = vadd.f32 %v456, 0.0
      %v569 = vadd.f32 %v457, 0.0
      %v570 = vadd.f32 %v458, 0.0
      %v571 = vadd.f32 %v459, 0.0
      %v572 = vadd.f32 %v460, 0.0
      %v573 = vadd.f32 %v461, 0.0
      %v574 = vadd.f32 %v462, 0.0
      %v575 = vadd.f32 %v463, 0.0
      %v576 = vadd.f32 %v464, 0.0
      %v577 = vadd.f32 %v465, 0.0
      %v578 = vadd.f32 %v466, 0.0
      %v579 = vadd.f32 %v467, 0.0
      %v580 = vadd.f32 %v468, 0.0
      %v581 = vadd.f32 %v469, 0.0
      %v582 = vadd.f32 %v470, 0.0
      %v583 = vadd.f32 %v471, 0.0
      %v584 = vadd.f32 %v472, 0.0
      %v585 = vadd.f32 %v473, 0.0
      %v586 = vadd.f32 %v474, 0.0
      %v587 = vadd.f32 %v475, 0.0
      %v588 = vadd.f32 %v476, 0.0
      %v589 = vadd.f32 %v477, 0.0
      %v590 = vadd.f32 %v478, 0.0
      %v591 = vadd.f32 %v479, 0.0
      %v592 = vadd.f32 %v480, 0.0
      %v593 = vadd.f32 %v481, 0.0
      %v594 = vadd.f32 %v482, 0.0
      %v595 = vadd.f32 %v483, 0.0
      %v596 = vadd.f32 %v484, 0.0
      %v597 = vadd.f32 %v485, 0.0
      %v598 = vadd.f32 %v486, 0.0
      %v599 = vadd.f32 %v487, 0.0
      %v600 = vadd.f32 %v488, 0.0
      %v601 = vadd.f32 %v489, 0.0
      %v602 = vadd.f32 %v490, 0.0
      %v603 = vadd.f32 %v491, 0.0
      %v604 = vadd.f32 %v492, 0.0
      %v605 = vadd.f32 %v493, 0.0
      %v606 = vadd.f32 %v494, 0.0
      %v607 = vadd.f32 %v495, 0.0
      %v608 = vadd.f32 %v496, 0.0
      %v609 = vadd.f32 %v497, 0.0
      %v610 = vadd.f32 %v498, 0.0
      %v611 = vadd.f32 %v499, 0.0
      %v612 = vadd.f32 %v500, 0.0
      %v613 = vadd.f32 %v501, 0.0
      %v614 = vadd.f32 %v502, 0.0
      %v615 = vadd.f32 %v503, 0.0
      %v616 = vadd.f32 %v504, 0.0
      %v617 = vadd.f32 %v505, 0.0
      %v618 = vadd.f32 %v506, 0.0
      %v619 = vadd.f32 %v507, 0.0
      %v620 = vadd.f32 %v508, 0.0
      %v621 = vadd.f32 %v509, 0.0
      %v622 = vadd.f32 %v510, 0.0
      %v623 = vadd.f32 %v511, 0.0
      %v624 = vadd.f32 %v512, 0.0
      %v625 = vadd.f32 %v513, 0.0
      %v626 = vadd.f32 %v514, 0.0
      %v627 = vadd.f32 %v515, 0.0
      %v628 = vadd.f32 %v516, 0.0
      %v629 = vadd.f32 %v517, 0.0
      %v630 = vadd.f32 %v518, 0.0
      %v631 = vadd.f32 %v519, 0.0
      %v632 = vadd.f32 %v520, 0.0
      %v633 = vadd.f32 %v521, 0.0
      %v634 = vadd.f32 %v522, 0.0
      %v635 = vadd.f32 %v523, 0.0
      %v636 = vadd.f32 %v524, 0.0
      %v637 = vadd.f32 %v525, 0.0
      %v638 = vadd.f32 %v526, 0.0
      %v639 = vadd.f32 %v527, 0.0
      %v640 = vadd.f32 %v528, 0.0
      %v641 = vadd.f32 %v529, 0.0
      %v642 = vadd.f32 %v530, 0.0
      %v643 = vadd.f32 %v531, 0.0
      %v644 = vadd.f32 %v532, 0.0
      %v645 = vadd.f32 %v533, 0.0
      %v646 = vadd.f32 %v534, 0.0
      %v647 = vadd.f32 %v535, 0.0
      %v648 = vadd.f32 %v536, 0.0
      %v649 = vadd.f32 %v537, 0.0
      %v650 = vadd.f32 %v538, 0.0
      %v652 = vlaneseq
      %v653 = vshrl.u32 %v652, 7
      %v654 = vsub.s32 0, %v653
      %v655 = vrot.slane %v415, %v654
      %v657 = vmul.f32 %v296, %v655
      %v658 = vmul.f32 %v297, %v655
      %v659 = vmul.f32 %v298, %v655
      %v660 = vmul.f32 %v299, %v655
      %v661 = vmul.f32 %v300, %v655
      %v662 = vmul.f32 %v301, %v655
      %v663 = vmul.f32 %v302, %v655
      %v664 = vmul.f32 %v303, %v655
      %v665 = vmul.f32 %v304, %v655
      %v666 = vmul.f32 %v305, %v655
      %v667 = vmul.f32 %v306, %v655
      %v668 = vmul.f32 %v307, %v655
      %v669 = vmul.f32 %v308, %v655
      %v670 = vmul.f32 %v309, %v655
      %v671 = vmul.f32 %v310, %v655
      %v672 = vmul.f32 %v311, %v655
      %v673 = vmul.f32 %v312, %v655
      %v674 = vmul.f32 %v313, %v655
      %v675 = vmul.f32 %v314, %v655
      %v676 = vmul.f32 %v315, %v655
      %v677 = vmul.f32 %v316, %v655
      %v678 = vmul.f32 %v317, %v655
      %v679 = vmul.f32 %v318, %v655
      %v680 = vmul.f32 %v319, %v655
      %v681 = vmul.f32 %v320, %v655
      %v682 = vmul.f32 %v321, %v655
      %v683 = vmul.f32 %v322, %v655
      %v684 = vmul.f32 %v323, %v655
      %v685 = vmul.f32 %v324, %v655
      %v686 = vmul.f32 %v325, %v655
      %v687 = vmul.f32 %v326, %v655
      %v688 = vmul.f32 %v327, %v655
      %v689 = vmul.f32 %v328, %v655
      %v690 = vmul.f32 %v329, %v655
      %v691 = vmul.f32 %v330, %v655
      %v692 = vmul.f32 %v331, %v655
      %v693 = vmul.f32 %v332, %v655
      %v694 = vmul.f32 %v333, %v655
      %v695 = vmul.f32 %v334, %v655
      %v696 = vmul.f32 %v335, %v655
      %v697 = vmul.f32 %v336, %v655
      %v698 = vmul.f32 %v337, %v655
      %v699 = vmul.f32 %v338, %v655
      %v700 = vmul.f32 %v339, %v655
      %v701 = vmul.f32 %v340, %v655
      %v702 = vmul.f32 %v341, %v655
      %v703 = vmul.f32 %v342, %v655
      %v704 = vmul.f32 %v343, %v655
      %v705 = vmul.f32 %v344, %v655
      %v706 = vmul.f32 %v345, %v655
      %v707 = vmul.f32 %v346, %v655
      %v708 = vmul.f32 %v347, %v655
      %v709 = vmul.f32 %v348, %v655
      %v710 = vmul.f32 %v349, %v655
      %v711 = vmul.f32 %v350, %v655
      %v712 = vmul.f32 %v351, %v655
      %v713 = vmul.f32 %v352, %v655
      %v714 = vmul.f32 %v353, %v655
      %v715 = vmul.f32 %v354, %v655
      %v716 = vmul.f32 %v355, %v655
      %v717 = vmul.f32 %v356, %v655
      %v718 = vmul.f32 %v357, %v655
      %v719 = vmul.f32 %v358, %v655
      %v720 = vmul.f32 %v359, %v655
      %v721 = vmul.f32 %v360, %v655
      %v722 = vmul.f32 %v361, %v655
      %v723 = vmul.f32 %v362, %v655
      %v724 = vmul.f32 %v363, %v655
      %v725 = vmul.f32 %v364, %v655
      %v726 = vmul.f32 %v365, %v655
      %v727 = vmul.f32 %v366, %v655
      %v728 = vmul.f32 %v367, %v655
      %v729 = vmul.f32 %v368, %v655
      %v730 = vmul.f32 %v369, %v655
      %v731 = vmul.f32 %v370, %v655
      %v732 = vmul.f32 %v371, %v655
      %v733 = vmul.f32 %v372, %v655
      %v734 = vmul.f32 %v373, %v655
      %v735 = vmul.f32 %v374, %v655
      %v736 = vmul.f32 %v375, %v655
      %v737 = vmul.f32 %v376, %v655
      %v738 = vmul.f32 %v377, %v655
      %v739 = vmul.f32 %v378, %v655
      %v740 = vmul.f32 %v379, %v655
      %v741 = vmul.f32 %v380, %v655
      %v742 = vmul.f32 %v381, %v655
      %v743 = vmul.f32 %v382, %v655
      %v744 = vmul.f32 %v383, %v655
      %v745 = vmul.f32 %v384, %v655
      %v746 = vmul.f32 %v385, %v655
      %v747 = vmul.f32 %v386, %v655
      %v748 = vmul.f32 %v387, %v655
      %v749 = vmul.f32 %v388, %v655
      %v750 = vmul.f32 %v389, %v655
      %v751 = vmul.f32 %v390, %v655
      %v752 = vmul.f32 %v391, %v655
      %v753 = vmul.f32 %v392, %v655
      %v754 = vmul.f32 %v393, %v655
      %v755 = vmul.f32 %v394, %v655
      %v756 = vmul.f32 %v395, %v655
      %v757 = vmul.f32 %v396, %v655
      %v758 = vmul.f32 %v397, %v655
      %v759 = vmul.f32 %v398, %v655
      %v760 = vmul.f32 %v399, %v655
      %v761 = vmul.f32 %v400, %v655
      %v762 = vmul.f32 %v401, %v655
      %v763 = vmul.f32 %v402, %v655
      %v764 = vmul.f32 %v403, %v655
      %v765 = vmul.f32 %v404, %v655
      %v766 = vmul.f32 %v405, %v655
      %v767 = vmul.f32 %v406, %v655
      %v768 = vmul.f32 %v407, %v655
      %v769 = vadd.f32 %v539, %v657
      %v770 = vadd.f32 %v540, %v658
      %v771 = vadd.f32 %v541, %v659
      %v772 = vadd.f32 %v542, %v660
      %v773 = vadd.f32 %v543, %v661
      %v774 = vadd.f32 %v544, %v662
      %v775 = vadd.f32 %v545, %v663
      %v776 = vadd.f32 %v546, %v664
      %v777 = vadd.f32 %v547, %v665
      %v778 = vadd.f32 %v548, %v666
      %v779 = vadd.f32 %v549, %v667
      %v780 = vadd.f32 %v550, %v668
      %v781 = vadd.f32 %v551, %v669
      %v782 = vadd.f32 %v552, %v670
      %v783 = vadd.f32 %v553, %v671
      %v784 = vadd.f32 %v554, %v672
      %v785 = vadd.f32 %v555, %v673
      %v786 = vadd.f32 %v556, %v674
      %v787 = vadd.f32 %v557, %v675
      %v788 = vadd.f32 %v558, %v676
      %v789 = vadd.f32 %v559, %v677
      %v790 = vadd.f32 %v560, %v678
      %v791 = vadd.f32 %v561, %v679
      %v792 = vadd.f32 %v562, %v680
      %v793 = vadd.f32 %v563, %v681
      %v794 = vadd.f32 %v564, %v682
      %v795 = vadd.f32 %v565, %v683
      %v796 = vadd.f32 %v566, %v684
      %v797 = vadd.f32 %v567, %v685
      %v798 = vadd.f32 %v568, %v686
      %v799 = vadd.f32 %v569, %v687
      %v800 = vadd.f32 %v570, %v688
      %v801 = vadd.f32 %v571, %v689
      %v802 = vadd.f32 %v572, %v690
      %v803 = vadd.f32 %v573, %v691
      %v804 = vadd.f32 %v574, %v692
      %v805 = vadd.f32 %v575, %v693
      %v806 = vadd.f32 %v576, %v694
      %v807 = vadd.f32 %v577, %v695
      %v808 = vadd.f32 %v578, %v696
      %v809 = vadd.f32 %v579, %v697
      %v810 = vadd.f32 %v580, %v698
      %v811 = vadd.f32 %v581, %v699
      %v812 = vadd.f32 %v582, %v700
      %v813 = vadd.f32 %v583, %v701
      %v814 = vadd.f32 %v584, %v702
      %v815 = vadd.f32 %v585, %v703
      %v816 = vadd.f32 %v586, %v704
      %v817 = vadd.f32 %v587, %v705
      %v818 = vadd.f32 %v588, %v706
      %v819 = vadd.f32 %v589, %v707
      %v820 = vadd.f32 %v590, %v708
      %v821 = vadd.f32 %v591, %v709
      %v822 = vadd.f32 %v592, %v710
      %v823 = vadd.f32 %v593, %v711
      %v824 = vadd.f32 %v594, %v712
      %v825 = vadd.f32 %v595, %v713
      %v826 = vadd.f32 %v596, %v714
      %v827 = vadd.f32 %v597, %v715
      %v828 = vadd.f32 %v598, %v716
      %v829 = vadd.f32 %v599, %v717
      %v830 = vadd.f32 %v600, %v718
      %v831 = vadd.f32 %v601, %v719
      %v832 = vadd.f32 %v602, %v720
      %v833 = vadd.f32 %v603, %v721
      %v834 = vadd.f32 %v604, %v722
      %v835 = vadd.f32 %v605, %v723
      %v836 = vadd.f32 %v606, %v724
      %v837 = vadd.f32 %v607, %v725
      %v838 = vadd.f32 %v608, %v726
      %v839 = vadd.f32 %v609, %v727
      %v840 = vadd.f32 %v610, %v728
      %v841 = vadd.f32 %v611, %v729
      %v842 = vadd.f32 %v612, %v730
      %v843 = vadd.f32 %v613, %v731
      %v844 = vadd.f32 %v614, %v732
      %v845 = vadd.f32 %v615, %v733
      %v846 = vadd.f32 %v616, %v734
      %v847 = vadd.f32 %v617, %v735
      %v848 = vadd.f32 %v618, %v736
      %v849 = vadd.f32 %v619, %v737
      %v850 = vadd.f32 %v620, %v738
      %v851 = vadd.f32 %v621, %v739
      %v852 = vadd.f32 %v622, %v740
      %v853 = vadd.f32 %v623, %v741
      %v854 = vadd.f32 %v624, %v742
      %v855 = vadd.f32 %v625, %v743
      %v856 = vadd.f32 %v626, %v744
      %v857 = vadd.f32 %v627, %v745
      %v858 = vadd.f32 %v628, %v746
      %v859 = vadd.f32 %v629, %v747
      %v860 = vadd.f32 %v630, %v748
      %v861 = vadd.f32 %v631, %v749
      %v862 = vadd.f32 %v632, %v750
      %v863 = vadd.f32 %v633, %v751
      %v864 = vadd.f32 %v634, %v752
      %v865 = vadd.f32 %v635, %v753
      %v866 = vadd.f32 %v636, %v754
      %v867 = vadd.f32 %v637, %v755
      %v868 = vadd.f32 %v638, %v756
      %v869 = vadd.f32 %v639, %v757
      %v870 = vadd.f32 %v640, %v758
      %v871 = vadd.f32 %v641, %v759
      %v872 = vadd.f32 %v642, %v760
      %v873 = vadd.f32 %v643, %v761
      %v874 = vadd.f32 %v644, %v762
      %v875 = vadd.f32 %v645, %v763
      %v876 = vadd.f32 %v646, %v764
      %v877 = vadd.f32 %v647, %v765
      %v878 = vadd.f32 %v648, %v766
      %v879 = vadd.f32 %v649, %v767
      %v880 = vadd.f32 %v650, %v768
      %v882 = vlaneseq
      %v883 = vshrl.u32 %v882, 7
      %v884 = vsub.s32 0, %v883
      %v885 = vrot.slane %v418, %v884
      %v887 = vmul.f32 %v300, %v885
      %v888 = vmul.f32 %v301, %v885
      %v889 = vmul.f32 %v302, %v885
      %v890 = vmul.f32 %v303, %v885
      %v891 = vmul.f32 %v304, %v885
      %v892 = vmul.f32 %v305, %v885
      %v893 = vmul.f32 %v306, %v885
      %v894 = vmul.f32 %v307, %v885
      %v895 = vmul.f32 %v308, %v885
      %v896 = vmul.f32 %v309, %v885
      %v897 = vmul.f32 %v310, %v885
      %v898 = vmul.f32 %v311, %v885
      %v899 = vmul.f32 %v312, %v885
      %v900 = vmul.f32 %v313, %v885
      %v901 = vmul.f32 %v314, %v885
      %v902 = vmul.f32 %v315, %v885
      %v903 = vmul.f32 %v316, %v885
      %v904 = vmul.f32 %v317, %v885
      %v905 = vmul.f32 %v318, %v885
      %v906 = vmul.f32 %v319, %v885
      %v907 = vmul.f32 %v320, %v885
      %v908 = vmul.f32 %v321, %v885
      %v909 = vmul.f32 %v322, %v885
      %v910 = vmul.f32 %v323, %v885
      %v911 = vmul.f32 %v324, %v885
      %v912 = vmul.f32 %v325, %v885
      %v913 = vmul.f32 %v326, %v885
      %v914 = vmul.f32 %v327, %v885
      %v915 = vmul.f32 %v328, %v885
      %v916 = vmul.f32 %v329, %v885
      %v917 = vmul.f32 %v330, %v885
      %v918 = vmul.f32 %v331, %v885
      %v919 = vmul.f32 %v332, %v885
      %v920 = vmul.f32 %v333, %v885
      %v921 = vmul.f32 %v334, %v885
      %v922 = vmul.f32 %v335, %v885
      %v923 = vmul.f32 %v336, %v885
      %v924 = vmul.f32 %v337, %v885
      %v925 = vmul.f32 %v338, %v885
      %v926 = vmul.f32 %v339, %v885
      %v927 = vmul.f32 %v340, %v885
      %v928 = vmul.f32 %v341, %v885
      %v929 = vmul.f32 %v342, %v885
      %v930 = vmul.f32 %v343, %v885
      %v931 = vmul.f32 %v344, %v885
      %v932 = vmul.f32 %v345, %v885
      %v933 = vmul.f32 %v346, %v885
      %v934 = vmul.f32 %v347, %v885
      %v935 = vmul.f32 %v348, %v885
      %v936 = vmul.f32 %v349, %v885
      %v937 = vmul.f32 %v350, %v885
      %v938 = vmul.f32 %v351, %v885
      %v939 = vmul.f32 %v352, %v885
      %v940 = vmul.f32 %v353, %v885
      %v941 = vmul.f32 %v354, %v885
      %v942 = vmul.f32 %v355, %v885
      %v943 = vmul.f32 %v356, %v885
      %v944 = vmul.f32 %v357, %v885
      %v945 = vmul.f32 %v358, %v885
      %v946 = vmul.f32 %v359, %v885
      %v947 = vmul.f32 %v360, %v885
      %v948 = vmul.f32 %v361, %v885
      %v949 = vmul.f32 %v362, %v885
      %v950 = vmul.f32 %v363, %v885
      %v951 = vmul.f32 %v364, %v885
      %v952 = vmul.f32 %v365, %v885
      %v953 = vmul.f32 %v366, %v885
      %v954 = vmul.f32 %v367, %v885
      %v955 = vmul.f32 %v368, %v885
      %v956 = vmul.f32 %v369, %v885
      %v957 = vmul.f32 %v370, %v885
      %v958 = vmul.f32 %v371, %v885
      %v959 = vmul.f32 %v372, %v885
      %v960 = vmul.f32 %v373, %v885
      %v961 = vmul.f32 %v374, %v885
      %v962 = vmul.f32 %v375, %v885
      %v963 = vmul.f32 %v376, %v885
      %v964 = vmul.f32 %v377, %v885
      %v965 = vmul.f32 %v378, %v885
      %v966 = vmul.f32 %v379, %v885
      %v967 = vmul.f32 %v380, %v885
      %v968 = vmul.f32 %v381, %v885
      %v969 = vmul.f32 %v382, %v885
      %v970 = vmul.f32 %v383, %v885
      %v971 = vmul.f32 %v384, %v885
      %v972 = vmul.f32 %v385, %v885
      %v973 = vmul.f32 %v386, %v885
      %v974 = vmul.f32 %v387, %v885
      %v975 = vmul.f32 %v388, %v885
      %v976 = vmul.f32 %v389, %v885
      %v977 = vmul.f32 %v390, %v885
      %v978 = vmul.f32 %v391, %v885
      %v979 = vmul.f32 %v392, %v885
      %v980 = vmul.f32 %v393, %v885
      %v981 = vmul.f32 %v394, %v885
      %v982 = vmul.f32 %v395, %v885
      %v983 = vmul.f32 %v396, %v885
      %v984 = vmul.f32 %v397, %v885
      %v985 = vmul.f32 %v398, %v885
      %v986 = vmul.f32 %v399, %v885
      %v987 = vmul.f32 %v400, %v885
      %v988 = vmul.f32 %v401, %v885
      %v989 = vmul.f32 %v402, %v885
      %v990 = vmul.f32 %v403, %v885
      %v991 = vmul.f32 %v404, %v885
      %v992 = vmul.f32 %v405, %v885
      %v993 = vmul.f32 %v406, %v885
      %v994 = vmul.f32 %v407, %v885
      %v995 = vmul.f32 %v408, %v885
      %v996 = vmul.f32 %v409, %v885
      %v997 = vmul.f32 %v410, %v885
      %v998 = vmul.f32 %v411, %v885
      %v999 = vadd.f32 %v769, %v887
      %v1000 = vadd.f32 %v770, %v888
      %v1001 = vadd.f32 %v771, %v889
      %v1002 = vadd.f32 %v772, %v890
      %v1003 = vadd.f32 %v773, %v891
      %v1004 = vadd.f32 %v774, %v892
      %v1005 = vadd.f32 %v775, %v893
      %v1006 = vadd.f32 %v776, %v894
      %v1007 = vadd.f32 %v777, %v895
      %v1008 = vadd.f32 %v778, %v896
      %v1009 = vadd.f32 %v779, %v897
      %v1010 = vadd.f32 %v780, %v898
      %v1011 = vadd.f32 %v781, %v899
      %v1012 = vadd.f32 %v782, %v900
      %v1013 = vadd.f32 %v783, %v901
      %v1014 = vadd.f32 %v784, %v902
      %v1015 = vadd.f32 %v785, %v903
      %v1016 = vadd.f32 %v786, %v904
      %v1017 = vadd.f32 %v787, %v905
      %v1018 = vadd.f32 %v788, %v906
      %v1019 = vadd.f32 %v789, %v907
      %v1020 = vadd.f32 %v790, %v908
      %v1021 = vadd.f32 %v791, %v909
      %v1022 = vadd.f32 %v792, %v910
      %v1023 = vadd.f32 %v793, %v911
      %v1024 = vadd.f32 %v794, %v912
      %v1025 = vadd.f32 %v795, %v913
      %v1026 = vadd.f32 %v796, %v914
      %v1027 = vadd.f32 %v797, %v915
      %v1028 = vadd.f32 %v798, %v916
      %v1029 = vadd.f32 %v799, %v917
      %v1030 = vadd.f32 %v800, %v918
      %v1031 = vadd.f32 %v801, %v919
      %v1032 = vadd.f32 %v802, %v920
      %v1033 = vadd.f32 %v803, %v921
      %v1034 = vadd.f32 %v804, %v922
      %v1035 = vadd.f32 %v805, %v923
      %v1036 = vadd.f32 %v806, %v924
      %v1037 = vadd.f32 %v807, %v925
      %v1038 = vadd.f32 %v808, %v926
      %v1039 = vadd.f32 %v809, %v927
      %v1040 = vadd.f32 %v810, %v928
      %v1041 = vadd.f32 %v811, %v929
      %v1042 = vadd.f32 %v812, %v930
      %v1043 = vadd.f32 %v813, %v931
      %v1044 = vadd.f32 %v814, %v932
      %v1045 = vadd.f32 %v815, %v933
      %v1046 = vadd.f32 %v816, %v934
      %v1047 = vadd.f32 %v817, %v935
      %v1048 = vadd.f32 %v818, %v936
      %v1049 = vadd.f32 %v819, %v937
      %v1050 = vadd.f32 %v820, %v938
      %v1051 = vadd.f32 %v821, %v939
      %v1052 = vadd.f32 %v822, %v940
      %v1053 = vadd.f32 %v823, %v941
      %v1054 = vadd.f32 %v824, %v942
      %v1055 = vadd.f32 %v825, %v943
      %v1056 = vadd.f32 %v826, %v944
      %v1057 = vadd.f32 %v827, %v945
      %v1058 = vadd.f32 %v828, %v946
      %v1059 = vadd.f32 %v829, %v947
      %v1060 = vadd.f32 %v830, %v948
      %v1061 = vadd.f32 %v831, %v949
      %v1062 = vadd.f32 %v832, %v950
      %v1063 = vadd.f32 %v833, %v951
      %v1064 = vadd.f32 %v834, %v952
      %v1065 = vadd.f32 %v835, %v953
      %v1066 = vadd.f32 %v836, %v954
      %v1067 = vadd.f32 %v837, %v955
      %v1068 = vadd.f32 %v838, %v956
      %v1069 = vadd.f32 %v839, %v957
      %v1070 = vadd.f32 %v840, %v958
      %v1071 = vadd.f32 %v841, %v959
      %v1072 = vadd.f32 %v842, %v960
      %v1073 = vadd.f32 %v843, %v961
      %v1074 = vadd.f32 %v844, %v962
      %v1075 = vadd.f32 %v845, %v963
      %v1076 = vadd.f32 %v846, %v964
      %v1077 = vadd.f32 %v847, %v965
      %v1078 = vadd.f32 %v848, %v966
      %v1079 = vadd.f32 %v849, %v967
      %v1080 = vadd.f32 %v850, %v968
      %v1081 = vadd.f32 %v851, %v969
      %v1082 = vadd.f32 %v852, %v970
      %v1083 = vadd.f32 %v853, %v971
      %v1084 = vadd.f32 %v854, %v972
      %v1085 = vadd.f32 %v855, %v973
      %v1086 = vadd.f32 %v856, %v974
      %v1087 = vadd.f32 %v857, %v975
      %v1088 = vadd.f32 %v858, %v976
      %v1089 = vadd.f32 %v859, %v977
      %v1090 = vadd.f32 %v860, %v978
      %v1091 = vadd.f32 %v861, %v979
      %v1092 = vadd.f32 %v862, %v980
      %v1093 = vadd.f32 %v863, %v981
      %v1094 = vadd.f32 %v864, %v982
      %v1095 = vadd.f32 %v865, %v983
      %v1096 = vadd.f32 %v866, %v984
      %v1097 = vadd.f32 %v867, %v985
      %v1098 = vadd.f32 %v868, %v986
      %v1099 = vadd.f32 %v869, %v987
      %v1100 = vadd.f32 %v870, %v988
      %v1101 = vadd.f32 %v871, %v989
      %v1102 = vadd.f32 %v872, %v990
      %v1103 = vadd.f32 %v873, %v991
      %v1104 = vadd.f32 %v874, %v992
      %v1105 = vadd.f32 %v875, %v993
      %v1106 = vadd.f32 %v876, %v994
      %v1107 = vadd.f32 %v877, %v995
      %v1108 = vadd.f32 %v878, %v996
      %v1109 = vadd.f32 %v879, %v997
      %v1110 = vadd.f32 %v880, %v998
      %v1112 = vlaneseq
      %v1113 = vshrl.u32 %v1112, 7
      %v1114 = vsub.s32 0, %v1113
      %v1115 = vrot.slane %v413, %v1114
      %v1117 = vmul.f32 %v292, %v1115
      %v1118 = vmul.f32 %v293, %v1115
      %v1119 = vmul.f32 %v294, %v1115
      %v1120 = vmul.f32 %v295, %v1115
      %v1121 = vmul.f32 %v296, %v1115
      %v1122 = vmul.f32 %v297, %v1115
      %v1123 = vmul.f32 %v298, %v1115
      %v1124 = vmul.f32 %v299, %v1115
      %v1125 = vmul.f32 %v300, %v1115
      %v1126 = vmul.f32 %v301, %v1115
      %v1127 = vmul.f32 %v302, %v1115
      %v1128 = vmul.f32 %v303, %v1115
      %v1129 = vmul.f32 %v304, %v1115
      %v1130 = vmul.f32 %v305, %v1115
      %v1131 = vmul.f32 %v306, %v1115
      %v1132 = vmul.f32 %v307, %v1115
      %v1133 = vmul.f32 %v308, %v1115
      %v1134 = vmul.f32 %v309, %v1115
      %v1135 = vmul.f32 %v310, %v1115
      %v1136 = vmul.f32 %v311, %v1115
      %v1137 = vmul.f32 %v312, %v1115
      %v1138 = vmul.f32 %v313, %v1115
      %v1139 = vmul.f32 %v314, %v1115
      %v1140 = vmul.f32 %v315, %v1115
      %v1141 = vmul.f32 %v316, %v1115
      %v1142 = vmul.f32 %v317, %v1115
      %v1143 = vmul.f32 %v318, %v1115
      %v1144 = vmul.f32 %v319, %v1115
      %v1145 = vmul.f32 %v320, %v1115
      %v1146 = vmul.f32 %v321, %v1115
      %v1147 = vmul.f32 %v322, %v1115
      %v1148 = vmul.f32 %v323, %v1115
      %v1149 = vmul.f32 %v324, %v1115
      %v1150 = vmul.f32 %v325, %v1115
      %v1151 = vmul.f32 %v326, %v1115
      %v1152 = vmul.f32 %v327, %v1115
      %v1153 = vmul.f32 %v328, %v1115
      %v1154 = vmul.f32 %v329, %v1115
      %v1155 = vmul.f32 %v330, %v1115
      %v1156 = vmul.f32 %v331, %v1115
      %v1157 = vmul.f32 %v332, %v1115
      %v1158 = vmul.f32 %v333, %v1115
      %v1159 = vmul.f32 %v334, %v1115
      %v1160 = vmul.f32 %v335, %v1115
      %v1161 = vmul.f32 %v336, %v1115
      %v1162 = vmul.f32 %v337, %v1115
      %v1163 = vmul.f32 %v338, %v1115
      %v1164 = vmul.f32 %v339, %v1115
      %v1165 = vmul.f32 %v340, %v1115
      %v1166 = vmul.f32 %v341, %v1115
      %v1167 = vmul.f32 %v342, %v1115
      %v1168 = vmul.f32 %v343, %v1115
      %v1169 = vmul.f32 %v344, %v1115
      %v1170 = vmul.f32 %v345, %v1115
      %v1171 = vmul.f32 %v346, %v1115
      %v1172 = vmul.f32 %v347, %v1115
      %v1173 = vmul.f32 %v348, %v1115
      %v1174 = vmul.f32 %v349, %v1115
      %v1175 = vmul.f32 %v350, %v1115
      %v1176 = vmul.f32 %v351, %v1115
      %v1177 = vmul.f32 %v352, %v1115
      %v1178 = vmul.f32 %v353, %v1115
      %v1179 = vmul.f32 %v354, %v1115
      %v1180 = vmul.f32 %v355, %v1115
      %v1181 = vmul.f32 %v356, %v1115
      %v1182 = vmul.f32 %v357, %v1115
      %v1183 = vmul.f32 %v358, %v1115
      %v1184 = vmul.f32 %v359, %v1115
      %v1185 = vmul.f32 %v360, %v1115
      %v1186 = vmul.f32 %v361, %v1115
      %v1187 = vmul.f32 %v362, %v1115
      %v1188 = vmul.f32 %v363, %v1115
      %v1189 = vmul.f32 %v364, %v1115
      %v1190 = vmul.f32 %v365, %v1115
      %v1191 = vmul.f32 %v366, %v1115
      %v1192 = vmul.f32 %v367, %v1115
      %v1193 = vmul.f32 %v368, %v1115
      %v1194 = vmul.f32 %v369, %v1115
      %v1195 = vmul.f32 %v370, %v1115
      %v1196 = vmul.f32 %v371, %v1115
      %v1197 = vmul.f32 %v372, %v1115
      %v1198 = vmul.f32 %v373, %v1115
      %v1199 = vmul.f32 %v374, %v1115
      %v1200 = vmul.f32 %v375, %v1115
      %v1201 = vmul.f32 %v376, %v1115
      %v1202 = vmul.f32 %v377, %v1115
      %v1203 = vmul.f32 %v378, %v1115
      %v1204 = vmul.f32 %v379, %v1115
      %v1205 = vmul.f32 %v380, %v1115
      %v1206 = vmul.f32 %v381, %v1115
      %v1207 = vmul.f32 %v382, %v1115
      %v1208 = vmul.f32 %v383, %v1115
      %v1209 = vmul.f32 %v384, %v1115
      %v1210 = vmul.f32 %v385, %v1115
      %v1211 = vmul.f32 %v386, %v1115
      %v1212 = vmul.f32 %v387, %v1115
      %v1213 = vmul.f32 %v388, %v1115
      %v1214 = vmul.f32 %v389, %v1115
      %v1215 = vmul.f32 %v390, %v1115
      %v1216 = vmul.f32 %v391, %v1115
      %v1217 = vmul.f32 %v392, %v1115
      %v1218 = vmul.f32 %v393, %v1115
      %v1219 = vmul.f32 %v394, %v1115
      %v1220 = vmul.f32 %v395, %v1115
      %v1221 = vmul.f32 %v396, %v1115
      %v1222 = vmul.f32 %v397, %v1115
      %v1223 = vmul.f32 %v398, %v1115
      %v1224 = vmul.f32 %v399, %v1115
      %v1225 = vmul.f32 %v400, %v1115
      %v1226 = vmul.f32 %v401, %v1115
      %v1227 = vmul.f32 %v402, %v1115
      %v1228 = vmul.f32 %v403, %v1115
      %vm1341 = vcmask 1046528
      %v1342 = vrot.slane %v1117, 1
      %v1343 = vrot.slane %v1118, 1
      %v1344 = vsel %vm1341, %v1342, %v1343
      %v1345 = vrot.slane %v1119, 1
      %v1346 = vsel %vm1341, %v1343, %v1345
      %v1347 = vrot.slane %v1120, 1
      %v1348 = vsel %vm1341, %v1345, %v1347
      %v1349 = vrot.slane %v1121, 1
      %v1350 = vrot.slane %v1122, 1
      %v1351 = vsel %vm1341, %v1349, %v1350
      %v1352 = vrot.slane %v1123, 1
      %v1353 = vsel %vm1341, %v1350, %v1352
      %v1354 = vrot.slane %v1124, 1
      %v1355 = vsel %vm1341, %v1352, %v1354
      %v1356 = vrot.slane %v1125, 1
      %v1357 = vrot.slane %v1126, 1
      %v1358 = vsel %vm1341, %v1356, %v1357
      %v1359 = vrot.slane %v1127, 1
      %v1360 = vsel %vm1341, %v1357, %v1359
      %v1361 = vrot.slane %v1128, 1
      %v1362 = vsel %vm1341, %v1359, %v1361
      %v1363 = vrot.slane %v1129, 1
      %v1364 = vrot.slane %v1130, 1
      %v1365 = vsel %vm1341, %v1363, %v1364
      %v1366 = vrot.slane %v1131, 1
      %v1367 = vsel %vm1341, %v1364, %v1366
      %v1368 = vrot.slane %v1132, 1
      %v1369 = vsel %vm1341, %v1366, %v1368
      %v1370 = vrot.slane %v1133, 1
      %v1371 = vrot.slane %v1134, 1
      %v1372 = vsel %vm1341, %v1370, %v1371
      %v1373 = vrot.slane %v1135, 1
      %v1374 = vsel %vm1341, %v1371, %v1373
      %v1375 = vrot.slane %v1136, 1
      %v1376 = vsel %vm1341, %v1373, %v1375
      %v1377 = vrot.slane %v1137, 1
      %v1378 = vrot.slane %v1138, 1
      %v1379 = vsel %vm1341, %v1377, %v1378
      %v1380 = vrot.slane %v1139, 1
      %v1381 = vsel %vm1341, %v1378, %v1380
      %v1382 = vrot.slane %v1140, 1
      %v1383 = vsel %vm1341, %v1380, %v1382
      %v1384 = vrot.slane %v1141, 1
      %v1385 = vrot.slane %v1142, 1
      %v1386 = vsel %vm1341, %v1384, %v1385
      %v1387 = vrot.slane %v1143, 1
      %v1388 = vsel %vm1341, %v1385, %v1387
      %v1389 = vrot.slane %v1144, 1
      %v1390 = vsel %vm1341, %v1387, %v1389
      %v1391 = vrot.slane %v1145, 1
      %v1392 = vrot.slane %v1146, 1
      %v1393 = vsel %vm1341, %v1391, %v1392
      %v1394 = vrot.slane %v1147, 1
      %v1395 = vsel %vm1341, %v1392, %v1394
      %v1396 = vrot.slane %v1148, 1
      %v1397 = vsel %vm1341, %v1394, %v1396
      %v1398 = vrot.slane %v1149, 1
      %v1399 = vrot.slane %v1150, 1
      %v1400 = vsel %vm1341, %v1398, %v1399
      %v1401 = vrot.slane %v1151, 1
      %v1402 = vsel %vm1341, %v1399, %v1401
      %v1403 = vrot.slane %v1152, 1
      %v1404 = vsel %vm1341, %v1401, %v1403
      %v1405 = vrot.slane %v1153, 1
      %v1406 = vrot.slane %v1154, 1
      %v1407 = vsel %vm1341, %v1405, %v1406
      %v1408 = vrot.slane %v1155, 1
      %v1409 = vsel %vm1341, %v1406, %v1408
      %v1410 = vrot.slane %v1156, 1
      %v1411 = vsel %vm1341, %v1408, %v1410
      %v1412 = vrot.slane %v1157, 1
      %v1413 = vrot.slane %v1158, 1
      %v1414 = vsel %vm1341, %v1412, %v1413
      %v1415 = vrot.slane %v1159, 1
      %v1416 = vsel %vm1341, %v1413, %v1415
      %v1417 = vrot.slane %v1160, 1
      %v1418 = vsel %vm1341, %v1415, %v1417
      %v1419 = vrot.slane %v1161, 1
      %v1420 = vrot.slane %v1162, 1
      %v1421 = vsel %vm1341, %v1419, %v1420
      %v1422 = vrot.slane %v1163, 1
      %v1423 = vsel %vm1341, %v1420, %v1422
      %v1424 = vrot.slane %v1164, 1
      %v1425 = vsel %vm1341, %v1422, %v1424
      %v1426 = vrot.slane %v1165, 1
      %v1427 = vrot.slane %v1166, 1
      %v1428 = vsel %vm1341, %v1426, %v1427
      %v1429 = vrot.slane %v1167, 1
      %v1430 = vsel %vm1341, %v1427, %v1429
      %v1431 = vrot.slane %v1168, 1
      %v1432 = vsel %vm1341, %v1429, %v1431
      %v1433 = vrot.slane %v1169, 1
      %v1434 = vrot.slane %v1170, 1
      %v1435 = vsel %vm1341, %v1433, %v1434
      %v1436 = vrot.slane %v1171, 1
      %v1437 = vsel %vm1341, %v1434, %v1436
      %v1438 = vrot.slane %v1172, 1
      %v1439 = vsel %vm1341, %v1436, %v1438
      %v1440 = vrot.slane %v1173, 1
      %v1441 = vrot.slane %v1174, 1
      %v1442 = vsel %vm1341, %v1440, %v1441
      %v1443 = vrot.slane %v1175, 1
      %v1444 = vsel %vm1341, %v1441, %v1443
      %v1445 = vrot.slane %v1176, 1
      %v1446 = vsel %vm1341, %v1443, %v1445
      %v1447 = vrot.slane %v1177, 1
      %v1448 = vrot.slane %v1178, 1
      %v1449 = vsel %vm1341, %v1447, %v1448
      %v1450 = vrot.slane %v1179, 1
      %v1451 = vsel %vm1341, %v1448, %v1450
      %v1452 = vrot.slane %v1180, 1
      %v1453 = vsel %vm1341, %v1450, %v1452
      %v1454 = vrot.slane %v1181, 1
      %v1455 = vrot.slane %v1182, 1
      %v1456 = vsel %vm1341, %v1454, %v1455
      %v1457 = vrot.slane %v1183, 1
      %v1458 = vsel %vm1341, %v1455, %v1457
      %v1459 = vrot.slane %v1184, 1
      %v1460 = vsel %vm1341, %v1457, %v1459
      %v1461 = vrot.slane %v1185, 1
      %v1462 = vrot.slane %v1186, 1
      %v1463 = vsel %vm1341, %v1461, %v1462
      %v1464 = vrot.slane %v1187, 1
      %v1465 = vsel %vm1341, %v1462, %v1464
      %v1466 = vrot.slane %v1188, 1
      %v1467 = vsel %vm1341, %v1464, %v1466
      %v1468 = vrot.slane %v1189, 1
      %v1469 = vrot.slane %v1190, 1
      %v1470 = vsel %vm1341, %v1468, %v1469
      %v1471 = vrot.slane %v1191, 1
      %v1472 = vsel %vm1341, %v1469, %v1471
      %v1473 = vrot.slane %v1192, 1
      %v1474 = vsel %vm1341, %v1471, %v1473
      %v1475 = vrot.slane %v1193, 1
      %v1476 = vrot.slane %v1194, 1
      %v1477 = vsel %vm1341, %v1475, %v1476
      %v1478 = vrot.slane %v1195, 1
      %v1479 = vsel %vm1341, %v1476, %v1478
      %v1480 = vrot.slane %v1196, 1
      %v1481 = vsel %vm1341, %v1478, %v1480
      %v1482 = vrot.slane %v1197, 1
      %v1483 = vrot.slane %v1198, 1
      %v1484 = vsel %vm1341, %v1482, %v1483
      %v1485 = vrot.slane %v1199, 1
      %v1486 = vsel %vm1341, %v1483, %v1485
      %v1487 = vrot.slane %v1200, 1
      %v1488 = vsel %vm1341, %v1485, %v1487
      %v1489 = vrot.slane %v1201, 1
      %v1490 = vrot.slane %v1202, 1
      %v1491 = vsel %vm1341, %v1489, %v1490
      %v1492 = vrot.slane %v1203, 1
      %v1493 = vsel %vm1341, %v1490, %v1492
      %v1494 = vrot.slane %v1204, 1
      %v1495 = vsel %vm1341, %v1492, %v1494
      %v1496 = vrot.slane %v1205, 1
      %v1497 = vrot.slane %v1206, 1
      %v1498 = vsel %vm1341, %v1496, %v1497
      %v1499 = vrot.slane %v1207, 1
      %v1500 = vsel %vm1341, %v1497, %v1499
      %v1501 = vrot.slane %v1208, 1
      %v1502 = vsel %vm1341, %v1499, %v1501
      %v1503 = vrot.slane %v1209, 1
      %v1504 = vrot.slane %v1210, 1
      %v1505 = vsel %vm1341, %v1503, %v1504
      %v1506 = vrot.slane %v1211, 1
      %v1507 = vsel %vm1341, %v1504, %v1506
      %v1508 = vrot.slane %v1212, 1
      %v1509 = vsel %vm1341, %v1506, %v1508
      %v1510 = vrot.slane %v1213, 1
      %v1511 = vrot.slane %v1214, 1
      %v1512 = vsel %vm1341, %v1510, %v1511
      %v1513 = vrot.slane %v1215, 1
      %v1514 = vsel %vm1341, %v1511, %v1513
      %v1515 = vrot.slane %v1216, 1
      %v1516 = vsel %vm1341, %v1513, %v1515
      %v1517 = vrot.slane %v1217, 1
      %v1518 = vrot.slane %v1218, 1
      %v1519 = vsel %vm1341, %v1517, %v1518
      %v1520 = vrot.slane %v1219, 1
      %v1521 = vsel %vm1341, %v1518, %v1520
      %v1522 = vrot.slane %v1220, 1
      %v1523 = vsel %vm1341, %v1520, %v1522
      %v1524 = vrot.slane %v1221, 1
      %v1525 = vrot.slane %v1222, 1
      %v1526 = vsel %vm1341, %v1524, %v1525
      %v1527 = vrot.slane %v1223, 1
      %v1528 = vsel %vm1341, %v1525, %v1527
      %v1529 = vrot.slane %v1224, 1
      %v1530 = vsel %vm1341, %v1527, %v1529
      %v1531 = vrot.slane %v1225, 1
      %v1532 = vrot.slane %v1226, 1
      %v1533 = vsel %vm1341, %v1531, %v1532
      %v1534 = vrot.slane %v1227, 1
      %v1535 = vsel %vm1341, %v1532, %v1534
      %v1536 = vrot.slane %v1228, 1
      %v1537 = vsel %vm1341, %v1534, %v1536
      %v1650 = vadd.f32 %v999, %v1344
      %v1651 = vadd.f32 %v1000, %v1346
      %v1652 = vadd.f32 %v1001, %v1348
      %v1653 = vadd.f32 %v1002, %v1347
      %v1654 = vadd.f32 %v1003, %v1351
      %v1655 = vadd.f32 %v1004, %v1353
      %v1656 = vadd.f32 %v1005, %v1355
      %v1657 = vadd.f32 %v1006, %v1354
      %v1658 = vadd.f32 %v1007, %v1358
      %v1659 = vadd.f32 %v1008, %v1360
      %v1660 = vadd.f32 %v1009, %v1362
      %v1661 = vadd.f32 %v1010, %v1361
      %v1662 = vadd.f32 %v1011, %v1365
      %v1663 = vadd.f32 %v1012, %v1367
      %v1664 = vadd.f32 %v1013, %v1369
      %v1665 = vadd.f32 %v1014, %v1368
      %v1666 = vadd.f32 %v1015, %v1372
      %v1667 = vadd.f32 %v1016, %v1374
      %v1668 = vadd.f32 %v1017, %v1376
      %v1669 = vadd.f32 %v1018, %v1375
      %v1670 = vadd.f32 %v1019, %v1379
      %v1671 = vadd.f32 %v1020, %v1381
      %v1672 = vadd.f32 %v1021, %v1383
      %v1673 = vadd.f32 %v1022, %v1382
      %v1674 = vadd.f32 %v1023, %v1386
      %v1675 = vadd.f32 %v1024, %v1388
      %v1676 = vadd.f32 %v1025, %v1390
      %v1677 = vadd.f32 %v1026, %v1389
      %v1678 = vadd.f32 %v1027, %v1393
      %v1679 = vadd.f32 %v1028, %v1395
      %v1680 = vadd.f32 %v1029, %v1397
      %v1681 = vadd.f32 %v1030, %v1396
      %v1682 = vadd.f32 %v1031, %v1400
      %v1683 = vadd.f32 %v1032, %v1402
      %v1684 = vadd.f32 %v1033, %v1404
      %v1685 = vadd.f32 %v1034, %v1403
      %v1686 = vadd.f32 %v1035, %v1407
      %v1687 = vadd.f32 %v1036, %v1409
      %v1688 = vadd.f32 %v1037, %v1411
      %v1689 = vadd.f32 %v1038, %v1410
      %v1690 = vadd.f32 %v1039, %v1414
      %v1691 = vadd.f32 %v1040, %v1416
      %v1692 = vadd.f32 %v1041, %v1418
      %v1693 = vadd.f32 %v1042, %v1417
      %v1694 = vadd.f32 %v1043, %v1421
      %v1695 = vadd.f32 %v1044, %v1423
      %v1696 = vadd.f32 %v1045, %v1425
      %v1697 = vadd.f32 %v1046, %v1424
      %v1698 = vadd.f32 %v1047, %v1428
      %v1699 = vadd.f32 %v1048, %v1430
      %v1700 = vadd.f32 %v1049, %v1432
      %v1701 = vadd.f32 %v1050, %v1431
      %v1702 = vadd.f32 %v1051, %v1435
      %v1703 = vadd.f32 %v1052, %v1437
      %v1704 = vadd.f32 %v1053, %v1439
      %v1705 = vadd.f32 %v1054, %v1438
      %v1706 = vadd.f32 %v1055, %v1442
      %v1707 = vadd.f32 %v1056, %v1444
      %v1708 = vadd.f32 %v1057, %v1446
      %v1709 = vadd.f32 %v1058, %v1445
      %v1710 = vadd.f32 %v1059, %v1449
      %v1711 = vadd.f32 %v1060, %v1451
      %v1712 = vadd.f32 %v1061, %v1453
      %v1713 = vadd.f32 %v1062, %v1452
      %v1714 = vadd.f32 %v1063, %v1456
      %v1715 = vadd.f32 %v1064, %v1458
      %v1716 = vadd.f32 %v1065, %v1460
      %v1717 = vadd.f32 %v1066, %v1459
      %v1718 = vadd.f32 %v1067, %v1463
      %v1719 = vadd.f32 %v1068, %v1465
      %v1720 = vadd.f32 %v1069, %v1467
      %v1721 = vadd.f32 %v1070, %v1466
      %v1722 = vadd.f32 %v1071, %v1470
      %v1723 = vadd.f32 %v1072, %v1472
      %v1724 = vadd.f32 %v1073, %v1474
      %v1725 = vadd.f32 %v1074, %v1473
      %v1726 = vadd.f32 %v1075, %v1477
      %v1727 = vadd.f32 %v1076, %v1479
      %v1728 = vadd.f32 %v1077, %v1481
      %v1729 = vadd.f32 %v1078, %v1480
      %v1730 = vadd.f32 %v1079, %v1484
      %v1731 = vadd.f32 %v1080, %v1486
      %v1732 = vadd.f32 %v1081, %v1488
      %v1733 = vadd.f32 %v1082, %v1487
      %v1734 = vadd.f32 %v1083, %v1491
      %v1735 = vadd.f32 %v1084, %v1493
      %v1736 = vadd.f32 %v1085, %v1495
      %v1737 = vadd.f32 %v1086, %v1494
      %v1738 = vadd.f32 %v1087, %v1498
      %v1739 = vadd.f32 %v1088, %v1500
      %v1740 = vadd.f32 %v1089, %v1502
      %v1741 = vadd.f32 %v1090, %v1501
      %v1742 = vadd.f32 %v1091, %v1505
      %v1743 = vadd.f32 %v1092, %v1507
      %v1744 = vadd.f32 %v1093, %v1509
      %v1745 = vadd.f32 %v1094, %v1508
      %v1746 = vadd.f32 %v1095, %v1512
      %v1747 = vadd.f32 %v1096, %v1514
      %v1748 = vadd.f32 %v1097, %v1516
      %v1749 = vadd.f32 %v1098, %v1515
      %v1750 = vadd.f32 %v1099, %v1519
      %v1751 = vadd.f32 %v1100, %v1521
      %v1752 = vadd.f32 %v1101, %v1523
      %v1753 = vadd.f32 %v1102, %v1522
      %v1754 = vadd.f32 %v1103, %v1526
      %v1755 = vadd.f32 %v1104, %v1528
      %v1756 = vadd.f32 %v1105, %v1530
      %v1757 = vadd.f32 %v1106, %v1529
      %v1758 = vadd.f32 %v1107, %v1533
      %v1759 = vadd.f32 %v1108, %v1535
      %v1760 = vadd.f32 %v1109, %v1537
      %v1761 = vadd.f32 %v1110, %v1536
      %v1763 = vlaneseq
      %v1764 = vshrl.u32 %v1763, 7
      %v1765 = vsub.s32 0, %v1764
      %v1766 = vrot.slane %v416, %v1765
      %v1768 = vmul.f32 %v296, %v1766
      %v1769 = vmul.f32 %v297, %v1766
      %v1770 = vmul.f32 %v298, %v1766
      %v1771 = vmul.f32 %v299, %v1766
      %v1772 = vmul.f32 %v300, %v1766
      %v1773 = vmul.f32 %v301, %v1766
      %v1774 = vmul.f32 %v302, %v1766
      %v1775 = vmul.f32 %v303, %v1766
      %v1776 = vmul.f32 %v304, %v1766
      %v1777 = vmul.f32 %v305, %v1766
      %v1778 = vmul.f32 %v306, %v1766
      %v1779 = vmul.f32 %v307, %v1766
      %v1780 = vmul.f32 %v308, %v1766
      %v1781 = vmul.f32 %v309, %v1766
      %v1782 = vmul.f32 %v310, %v1766
      %v1783 = vmul.f32 %v311, %v1766
      %v1784 = vmul.f32 %v312, %v1766
      %v1785 = vmul.f32 %v313, %v1766
      %v1786 = vmul.f32 %v314, %v1766
      %v1787 = vmul.f32 %v315, %v1766
      %v1788 = vmul.f32 %v316, %v1766
      %v1789 = vmul.f32 %v317, %v1766
      %v1790 = vmul.f32 %v318, %v1766
      %v1791 = vmul.f32 %v319, %v1766
      %v1792 = vmul.f32 %v320, %v1766
      %v1793 = vmul.f32 %v321, %v1766
      %v1794 = vmul.f32 %v322, %v1766
      %v1795 = vmul.f32 %v323, %v1766
      %v1796 = vmul.f32 %v324, %v1766
      %v1797 = vmul.f32 %v325, %v1766
      %v1798 = vmul.f32 %v326, %v1766
      %v1799 = vmul.f32 %v327, %v1766
      %v1800 = vmul.f32 %v328, %v1766
      %v1801 = vmul.f32 %v329, %v1766
      %v1802 = vmul.f32 %v330, %v1766
      %v1803 = vmul.f32 %v331, %v1766
      %v1804 = vmul.f32 %v332, %v1766
      %v1805 = vmul.f32 %v333, %v1766
      %v1806 = vmul.f32 %v334, %v1766
      %v1807 = vmul.f32 %v335, %v1766
      %v1808 = vmul.f32 %v336, %v1766
      %v1809 = vmul.f32 %v337, %v1766
      %v1810 = vmul.f32 %v338, %v1766
      %v1811 = vmul.f32 %v339, %v1766
      %v1812 = vmul.f32 %v340, %v1766
      %v1813 = vmul.f32 %v341, %v1766
      %v1814 = vmul.f32 %v342, %v1766
      %v1815 = vmul.f32 %v343, %v1766
      %v1816 = vmul.f32 %v344, %v1766
      %v1817 = vmul.f32 %v345, %v1766
      %v1818 = vmul.f32 %v346, %v1766
      %v1819 = vmul.f32 %v347, %v1766
      %v1820 = vmul.f32 %v348, %v1766
      %v1821 = vmul.f32 %v349, %v1766
      %v1822 = vmul.f32 %v350, %v1766
      %v1823 = vmul.f32 %v351, %v1766
      %v1824 = vmul.f32 %v352, %v1766
      %v1825 = vmul.f32 %v353, %v1766
      %v1826 = vmul.f32 %v354, %v1766
      %v1827 = vmul.f32 %v355, %v1766
      %v1828 = vmul.f32 %v356, %v1766
      %v1829 = vmul.f32 %v357, %v1766
      %v1830 = vmul.f32 %v358, %v1766
      %v1831 = vmul.f32 %v359, %v1766
      %v1832 = vmul.f32 %v360, %v1766
      %v1833 = vmul.f32 %v361, %v1766
      %v1834 = vmul.f32 %v362, %v1766
      %v1835 = vmul.f32 %v363, %v1766
      %v1836 = vmul.f32 %v364, %v1766
      %v1837 = vmul.f32 %v365, %v1766
      %v1838 = vmul.f32 %v366, %v1766
      %v1839 = vmul.f32 %v367, %v1766
      %v1840 = vmul.f32 %v368, %v1766
      %v1841 = vmul.f32 %v369, %v1766
      %v1842 = vmul.f32 %v370, %v1766
      %v1843 = vmul.f32 %v371, %v1766
      %v1844 = vmul.f32 %v372, %v1766
      %v1845 = vmul.f32 %v373, %v1766
      %v1846 = vmul.f32 %v374, %v1766
      %v1847 = vmul.f32 %v375, %v1766
      %v1848 = vmul.f32 %v376, %v1766
      %v1849 = vmul.f32 %v377, %v1766
      %v1850 = vmul.f32 %v378, %v1766
      %v1851 = vmul.f32 %v379, %v1766
      %v1852 = vmul.f32 %v380, %v1766
      %v1853 = vmul.f32 %v381, %v1766
      %v1854 = vmul.f32 %v382, %v1766
      %v1855 = vmul.f32 %v383, %v1766
      %v1856 = vmul.f32 %v384, %v1766
      %v1857 = vmul.f32 %v385, %v1766
      %v1858 = vmul.f32 %v386, %v1766
      %v1859 = vmul.f32 %v387, %v1766
      %v1860 = vmul.f32 %v388, %v1766
      %v1861 = vmul.f32 %v389, %v1766
      %v1862 = vmul.f32 %v390, %v1766
      %v1863 = vmul.f32 %v391, %v1766
      %v1864 = vmul.f32 %v392, %v1766
      %v1865 = vmul.f32 %v393, %v1766
      %v1866 = vmul.f32 %v394, %v1766
      %v1867 = vmul.f32 %v395, %v1766
      %v1868 = vmul.f32 %v396, %v1766
      %v1869 = vmul.f32 %v397, %v1766
      %v1870 = vmul.f32 %v398, %v1766
      %v1871 = vmul.f32 %v399, %v1766
      %v1872 = vmul.f32 %v400, %v1766
      %v1873 = vmul.f32 %v401, %v1766
      %v1874 = vmul.f32 %v402, %v1766
      %v1875 = vmul.f32 %v403, %v1766
      %v1876 = vmul.f32 %v404, %v1766
      %v1877 = vmul.f32 %v405, %v1766
      %v1878 = vmul.f32 %v406, %v1766
      %v1879 = vmul.f32 %v407, %v1766
      %v1992 = vrot.slane %v1768, 1
      %v1993 = vrot.slane %v1769, 1
      %v1994 = vsel %vm1341, %v1992, %v1993
      %v1995 = vrot.slane %v1770, 1
      %v1996 = vsel %vm1341, %v1993, %v1995
      %v1997 = vrot.slane %v1771, 1
      %v1998 = vsel %vm1341, %v1995, %v1997
      %v1999 = vrot.slane %v1772, 1
      %v2000 = vrot.slane %v1773, 1
      %v2001 = vsel %vm1341, %v1999, %v2000
      %v2002 = vrot.slane %v1774, 1
      %v2003 = vsel %vm1341, %v2000, %v2002
      %v2004 = vrot.slane %v1775, 1
      %v2005 = vsel %vm1341, %v2002, %v2004
      %v2006 = vrot.slane %v1776, 1
      %v2007 = vrot.slane %v1777, 1
      %v2008 = vsel %vm1341, %v2006, %v2007
      %v2009 = vrot.slane %v1778, 1
      %v2010 = vsel %vm1341, %v2007, %v2009
      %v2011 = vrot.slane %v1779, 1
      %v2012 = vsel %vm1341, %v2009, %v2011
      %v2013 = vrot.slane %v1780, 1
      %v2014 = vrot.slane %v1781, 1
      %v2015 = vsel %vm1341, %v2013, %v2014
      %v2016 = vrot.slane %v1782, 1
      %v2017 = vsel %vm1341, %v2014, %v2016
      %v2018 = vrot.slane %v1783, 1
      %v2019 = vsel %vm1341, %v2016, %v2018
      %v2020 = vrot.slane %v1784, 1
      %v2021 = vrot.slane %v1785, 1
      %v2022 = vsel %vm1341, %v2020, %v2021
      %v2023 = vrot.slane %v1786, 1
      %v2024 = vsel %vm1341, %v2021, %v2023
      %v2025 = vrot.slane %v1787, 1
      %v2026 = vsel %vm1341, %v2023, %v2025
      %v2027 = vrot.slane %v1788, 1
      %v2028 = vrot.slane %v1789, 1
      %v2029 = vsel %vm1341, %v2027, %v2028
      %v2030 = vrot.slane %v1790, 1
      %v2031 = vsel %vm1341, %v2028, %v2030
      %v2032 = vrot.slane %v1791, 1
      %v2033 = vsel %vm1341, %v2030, %v2032
      %v2034 = vrot.slane %v1792, 1
      %v2035 = vrot.slane %v1793, 1
      %v2036 = vsel %vm1341, %v2034, %v2035
      %v2037 = vrot.slane %v1794, 1
      %v2038 = vsel %vm1341, %v2035, %v2037
      %v2039 = vrot.slane %v1795, 1
      %v2040 = vsel %vm1341, %v2037, %v2039
      %v2041 = vrot.slane %v1796, 1
      %v2042 = vrot.slane %v1797, 1
      %v2043 = vsel %vm1341, %v2041, %v2042
      %v2044 = vrot.slane %v1798, 1
      %v2045 = vsel %vm1341, %v2042, %v2044
      %v2046 = vrot.slane %v1799, 1
      %v2047 = vsel %vm1341, %v2044, %v2046
      %v2048 = vrot.slane %v1800, 1
      %v2049 = vrot.slane %v1801, 1
      %v2050 = vsel %vm1341, %v2048, %v2049
      %v2051 = vrot.slane %v1802, 1
      %v2052 = vsel %vm1341, %v2049, %v2051
      %v2053 = vrot.slane %v1803, 1
      %v2054 = vsel %vm1341, %v2051, %v2053
      %v2055 = vrot.slane %v1804, 1
      %v2056 = vrot.slane %v1805, 1
      %v2057 = vsel %vm1341, %v2055, %v2056
      %v2058 = vrot.slane %v1806, 1
      %v2059 = vsel %vm1341, %v2056, %v2058
      %v2060 = vrot.slane %v1807, 1
      %v2061 = vsel %vm1341, %v2058, %v2060
      %v2062 = vrot.slane %v1808, 1
      %v2063 = vrot.slane %v1809, 1
      %v2064 = vsel %vm1341, %v2062, %v2063
      %v2065 = vrot.slane %v1810, 1
      %v2066 = vsel %vm1341, %v2063, %v2065
      %v2067 = vrot.slane %v1811, 1
      %v2068 = vsel %vm1341, %v2065, %v2067
      %v2069 = vrot.slane %v1812, 1
      %v2070 = vrot.slane %v1813, 1
      %v2071 = vsel %vm1341, %v2069, %v2070
      %v2072 = vrot.slane %v1814, 1
      %v2073 = vsel %vm1341, %v2070, %v2072
      %v2074 = vrot.slane %v1815, 1
      %v2075 = vsel %vm1341, %v2072, %v2074
      %v2076 = vrot.slane %v1816, 1
      %v2077 = vrot.slane %v1817, 1
      %v2078 = vsel %vm1341, %v2076, %v2077
      %v2079 = vrot.slane %v1818, 1
      %v2080 = vsel %vm1341, %v2077, %v2079
      %v2081 = vrot.slane %v1819, 1
      %v2082 = vsel %vm1341, %v2079, %v2081
      %v2083 = vrot.slane %v1820, 1
      %v2084 = vrot.slane %v1821, 1
      %v2085 = vsel %vm1341, %v2083, %v2084
      %v2086 = vrot.slane %v1822, 1
      %v2087 = vsel %vm1341, %v2084, %v2086
      %v2088 = vrot.slane %v1823, 1
      %v2089 = vsel %vm1341, %v2086, %v2088
      %v2090 = vrot.slane %v1824, 1
      %v2091 = vrot.slane %v1825, 1
      %v2092 = vsel %vm1341, %v2090, %v2091
      %v2093 = vrot.slane %v1826, 1
      %v2094 = vsel %vm1341, %v2091, %v2093
      %v2095 = vrot.slane %v1827, 1
      %v2096 = vsel %vm1341, %v2093, %v2095
      %v2097 = vrot.slane %v1828, 1
      %v2098 = vrot.slane %v1829, 1
      %v2099 = vsel %vm1341, %v2097, %v2098
      %v2100 = vrot.slane %v1830, 1
      %v2101 = vsel %vm1341, %v2098, %v2100
      %v2102 = vrot.slane %v1831, 1
      %v2103 = vsel %vm1341, %v2100, %v2102
      %v2104 = vrot.slane %v1832, 1
      %v2105 = vrot.slane %v1833, 1
      %v2106 = vsel %vm1341, %v2104, %v2105
      %v2107 = vrot.slane %v1834, 1
      %v2108 = vsel %vm1341, %v2105, %v2107
      %v2109 = vrot.slane %v1835, 1
      %v2110 = vsel %vm1341, %v2107, %v2109
      %v2111 = vrot.slane %v1836, 1
      %v2112 = vrot.slane %v1837, 1
      %v2113 = vsel %vm1341, %v2111, %v2112
      %v2114 = vrot.slane %v1838, 1
      %v2115 = vsel %vm1341, %v2112, %v2114
      %v2116 = vrot.slane %v1839, 1
      %v2117 = vsel %vm1341, %v2114, %v2116
      %v2118 = vrot.slane %v1840, 1
      %v2119 = vrot.slane %v1841, 1
      %v2120 = vsel %vm1341, %v2118, %v2119
      %v2121 = vrot.slane %v1842, 1
      %v2122 = vsel %vm1341, %v2119, %v2121
      %v2123 = vrot.slane %v1843, 1
      %v2124 = vsel %vm1341, %v2121, %v2123
      %v2125 = vrot.slane %v1844, 1
      %v2126 = vrot.slane %v1845, 1
      %v2127 = vsel %vm1341, %v2125, %v2126
      %v2128 = vrot.slane %v1846, 1
      %v2129 = vsel %vm1341, %v2126, %v2128
      %v2130 = vrot.slane %v1847, 1
      %v2131 = vsel %vm1341, %v2128, %v2130
      %v2132 = vrot.slane %v1848, 1
      %v2133 = vrot.slane %v1849, 1
      %v2134 = vsel %vm1341, %v2132, %v2133
      %v2135 = vrot.slane %v1850, 1
      %v2136 = vsel %vm1341, %v2133, %v2135
      %v2137 = vrot.slane %v1851, 1
      %v2138 = vsel %vm1341, %v2135, %v2137
      %v2139 = vrot.slane %v1852, 1
      %v2140 = vrot.slane %v1853, 1
      %v2141 = vsel %vm1341, %v2139, %v2140
      %v2142 = vrot.slane %v1854, 1
      %v2143 = vsel %vm1341, %v2140, %v2142
      %v2144 = vrot.slane %v1855, 1
      %v2145 = vsel %vm1341, %v2142, %v2144
      %v2146 = vrot.slane %v1856, 1
      %v2147 = vrot.slane %v1857, 1
      %v2148 = vsel %vm1341, %v2146, %v2147
      %v2149 = vrot.slane %v1858, 1
      %v2150 = vsel %vm1341, %v2147, %v2149
      %v2151 = vrot.slane %v1859, 1
      %v2152 = vsel %vm1341, %v2149, %v2151
      %v2153 = vrot.slane %v1860, 1
      %v2154 = vrot.slane %v1861, 1
      %v2155 = vsel %vm1341, %v2153, %v2154
      %v2156 = vrot.slane %v1862, 1
      %v2157 = vsel %vm1341, %v2154, %v2156
      %v2158 = vrot.slane %v1863, 1
      %v2159 = vsel %vm1341, %v2156, %v2158
      %v2160 = vrot.slane %v1864, 1
      %v2161 = vrot.slane %v1865, 1
      %v2162 = vsel %vm1341, %v2160, %v2161
      %v2163 = vrot.slane %v1866, 1
      %v2164 = vsel %vm1341, %v2161, %v2163
      %v2165 = vrot.slane %v1867, 1
      %v2166 = vsel %vm1341, %v2163, %v2165
      %v2167 = vrot.slane %v1868, 1
      %v2168 = vrot.slane %v1869, 1
      %v2169 = vsel %vm1341, %v2167, %v2168
      %v2170 = vrot.slane %v1870, 1
      %v2171 = vsel %vm1341, %v2168, %v2170
      %v2172 = vrot.slane %v1871, 1
      %v2173 = vsel %vm1341, %v2170, %v2172
      %v2174 = vrot.slane %v1872, 1
      %v2175 = vrot.slane %v1873, 1
      %v2176 = vsel %vm1341, %v2174, %v2175
      %v2177 = vrot.slane %v1874, 1
      %v2178 = vsel %vm1341, %v2175, %v2177
      %v2179 = vrot.slane %v1875, 1
      %v2180 = vsel %vm1341, %v2177, %v2179
      %v2181 = vrot.slane %v1876, 1
      %v2182 = vrot.slane %v1877, 1
      %v2183 = vsel %vm1341, %v2181, %v2182
      %v2184 = vrot.slane %v1878, 1
      %v2185 = vsel %vm1341, %v2182, %v2184
      %v2186 = vrot.slane %v1879, 1
      %v2187 = vsel %vm1341, %v2184, %v2186
      %v2300 = vadd.f32 %v1650, %v1994
      %v2301 = vadd.f32 %v1651, %v1996
      %v2302 = vadd.f32 %v1652, %v1998
      %v2303 = vadd.f32 %v1653, %v1997
      %v2304 = vadd.f32 %v1654, %v2001
      %v2305 = vadd.f32 %v1655, %v2003
      %v2306 = vadd.f32 %v1656, %v2005
      %v2307 = vadd.f32 %v1657, %v2004
      %v2308 = vadd.f32 %v1658, %v2008
      %v2309 = vadd.f32 %v1659, %v2010
      %v2310 = vadd.f32 %v1660, %v2012
      %v2311 = vadd.f32 %v1661, %v2011
      %v2312 = vadd.f32 %v1662, %v2015
      %v2313 = vadd.f32 %v1663, %v2017
      %v2314 = vadd.f32 %v1664, %v2019
      %v2315 = vadd.f32 %v1665, %v2018
      %v2316 = vadd.f32 %v1666, %v2022
      %v2317 = vadd.f32 %v1667, %v2024
      %v2318 = vadd.f32 %v1668, %v2026
      %v2319 = vadd.f32 %v1669, %v2025
      %v2320 = vadd.f32 %v1670, %v2029
      %v2321 = vadd.f32 %v1671, %v2031
      %v2322 = vadd.f32 %v1672, %v2033
      %v2323 = vadd.f32 %v1673, %v2032
      %v2324 = vadd.f32 %v1674, %v2036
      %v2325 = vadd.f32 %v1675, %v2038
      %v2326 = vadd.f32 %v1676, %v2040
      %v2327 = vadd.f32 %v1677, %v2039
      %v2328 = vadd.f32 %v1678, %v2043
      %v2329 = vadd.f32 %v1679, %v2045
      %v2330 = vadd.f32 %v1680, %v2047
      %v2331 = vadd.f32 %v1681, %v2046
      %v2332 = vadd.f32 %v1682, %v2050
      %v2333 = vadd.f32 %v1683, %v2052
      %v2334 = vadd.f32 %v1684, %v2054
      %v2335 = vadd.f32 %v1685, %v2053
      %v2336 = vadd.f32 %v1686, %v2057
      %v2337 = vadd.f32 %v1687, %v2059
      %v2338 = vadd.f32 %v1688, %v2061
      %v2339 = vadd.f32 %v1689, %v2060
      %v2340 = vadd.f32 %v1690, %v2064
      %v2341 = vadd.f32 %v1691, %v2066
      %v2342 = vadd.f32 %v1692, %v2068
      %v2343 = vadd.f32 %v1693, %v2067
      %v2344 = vadd.f32 %v1694, %v2071
      %v2345 = vadd.f32 %v1695, %v2073
      %v2346 = vadd.f32 %v1696, %v2075
      %v2347 = vadd.f32 %v1697, %v2074
      %v2348 = vadd.f32 %v1698, %v2078
      %v2349 = vadd.f32 %v1699, %v2080
      %v2350 = vadd.f32 %v1700, %v2082
      %v2351 = vadd.f32 %v1701, %v2081
      %v2352 = vadd.f32 %v1702, %v2085
      %v2353 = vadd.f32 %v1703, %v2087
      %v2354 = vadd.f32 %v1704, %v2089
      %v2355 = vadd.f32 %v1705, %v2088
      %v2356 = vadd.f32 %v1706, %v2092
      %v2357 = vadd.f32 %v1707, %v2094
      %v2358 = vadd.f32 %v1708, %v2096
      %v2359 = vadd.f32 %v1709, %v2095
      %v2360 = vadd.f32 %v1710, %v2099
      %v2361 = vadd.f32 %v1711, %v2101
      %v2362 = vadd.f32 %v1712, %v2103
      %v2363 = vadd.f32 %v1713, %v2102
      %v2364 = vadd.f32 %v1714, %v2106
      %v2365 = vadd.f32 %v1715, %v2108
      %v2366 = vadd.f32 %v1716, %v2110
      %v2367 = vadd.f32 %v1717, %v2109
      %v2368 = vadd.f32 %v1718, %v2113
      %v2369 = vadd.f32 %v1719, %v2115
      %v2370 = vadd.f32 %v1720, %v2117
      %v2371 = vadd.f32 %v1721, %v2116
      %v2372 = vadd.f32 %v1722, %v2120
      %v2373 = vadd.f32 %v1723, %v2122
      %v2374 = vadd.f32 %v1724, %v2124
      %v2375 = vadd.f32 %v1725, %v2123
      %v2376 = vadd.f32 %v1726, %v2127
      %v2377 = vadd.f32 %v1727, %v2129
      %v2378 = vadd.f32 %v1728, %v2131
      %v2379 = vadd.f32 %v1729, %v2130
      %v2380 = vadd.f32 %v1730, %v2134
      %v2381 = vadd.f32 %v1731, %v2136
      %v2382 = vadd.f32 %v1732, %v2138
      %v2383 = vadd.f32 %v1733, %v2137
      %v2384 = vadd.f32 %v1734, %v2141
      %v2385 = vadd.f32 %v1735, %v2143
      %v2386 = vadd.f32 %v1736, %v2145
      %v2387 = vadd.f32 %v1737, %v2144
      %v2388 = vadd.f32 %v1738, %v2148
      %v2389 = vadd.f32 %v1739, %v2150
      %v2390 = vadd.f32 %v1740, %v2152
      %v2391 = vadd.f32 %v1741, %v2151
      %v2392 = vadd.f32 %v1742, %v2155
      %v2393 = vadd.f32 %v1743, %v2157
      %v2394 = vadd.f32 %v1744, %v2159
      %v2395 = vadd.f32 %v1745, %v2158
      %v2396 = vadd.f32 %v1746, %v2162
      %v2397 = vadd.f32 %v1747, %v2164
      %v2398 = vadd.f32 %v1748, %v2166
      %v2399 = vadd.f32 %v1749, %v2165
      %v2400 = vadd.f32 %v1750, %v2169
      %v2401 = vadd.f32 %v1751, %v2171
      %v2402 = vadd.f32 %v1752, %v2173
      %v2403 = vadd.f32 %v1753, %v2172
      %v2404 = vadd.f32 %v1754, %v2176
      %v2405 = vadd.f32 %v1755, %v2178
      %v2406 = vadd.f32 %v1756, %v2180
      %v2407 = vadd.f32 %v1757, %v2179
      %v2408 = vadd.f32 %v1758, %v2183
      %v2409 = vadd.f32 %v1759, %v2185
      %v2410 = vadd.f32 %v1760, %v2187
      %v2411 = vadd.f32 %v1761, %v2186
      %v2413 = vlaneseq
      %v2414 = vshrl.u32 %v2413, 7
      %v2415 = vsub.s32 0, %v2414
      %v2416 = vrot.slane %v419, %v2415
      %v2418 = vmul.f32 %v300, %v2416
      %v2419 = vmul.f32 %v301, %v2416
      %v2420 = vmul.f32 %v302, %v2416
      %v2421 = vmul.f32 %v303, %v2416
      %v2422 = vmul.f32 %v304, %v2416
      %v2423 = vmul.f32 %v305, %v2416
      %v2424 = vmul.f32 %v306, %v2416
      %v2425 = vmul.f32 %v307, %v2416
      %v2426 = vmul.f32 %v308, %v2416
      %v2427 = vmul.f32 %v309, %v2416
      %v2428 = vmul.f32 %v310, %v2416
      %v2429 = vmul.f32 %v311, %v2416
      %v2430 = vmul.f32 %v312, %v2416
      %v2431 = vmul.f32 %v313, %v2416
      %v2432 = vmul.f32 %v314, %v2416
      %v2433 = vmul.f32 %v315, %v2416
      %v2434 = vmul.f32 %v316, %v2416
      %v2435 = vmul.f32 %v317, %v2416
      %v2436 = vmul.f32 %v318, %v2416
      %v2437 = vmul.f32 %v319, %v2416
      %v2438 = vmul.f32 %v320, %v2416
      %v2439 = vmul.f32 %v321, %v2416
      %v2440 = vmul.f32 %v322, %v2416
      %v2441 = vmul.f32 %v323, %v2416
      %v2442 = vmul.f32 %v324, %v2416
      %v2443 = vmul.f32 %v325, %v2416
      %v2444 = vmul.f32 %v326, %v2416
      %v2445 = vmul.f32 %v327, %v2416
      %v2446 = vmul.f32 %v328, %v2416
      %v2447 = vmul.f32 %v329, %v2416
      %v2448 = vmul.f32 %v330, %v2416
      %v2449 = vmul.f32 %v331, %v2416
      %v2450 = vmul.f32 %v332, %v2416
      %v2451 = vmul.f32 %v333, %v2416
      %v2452 = vmul.f32 %v334, %v2416
      %v2453 = vmul.f32 %v335, %v2416
      %v2454 = vmul.f32 %v336, %v2416
      %v2455 = vmul.f32 %v337, %v2416
      %v2456 = vmul.f32 %v338, %v2416
      %v2457 = vmul.f32 %v339, %v2416
      %v2458 = vmul.f32 %v340, %v2416
      %v2459 = vmul.f32 %v341, %v2416
      %v2460 = vmul.f32 %v342, %v2416
      %v2461 = vmul.f32 %v343, %v2416
      %v2462 = vmul.f32 %v344, %v2416
      %v2463 = vmul.f32 %v345, %v2416
      %v2464 = vmul.f32 %v346, %v2416
      %v2465 = vmul.f32 %v347, %v2416
      %v2466 = vmul.f32 %v348, %v2416
      %v2467 = vmul.f32 %v349, %v2416
      %v2468 = vmul.f32 %v350, %v2416
      %v2469 = vmul.f32 %v351, %v2416
      %v2470 = vmul.f32 %v352, %v2416
      %v2471 = vmul.f32 %v353, %v2416
      %v2472 = vmul.f32 %v354, %v2416
      %v2473 = vmul.f32 %v355, %v2416
      %v2474 = vmul.f32 %v356, %v2416
      %v2475 = vmul.f32 %v357, %v2416
      %v2476 = vmul.f32 %v358, %v2416
      %v2477 = vmul.f32 %v359, %v2416
      %v2478 = vmul.f32 %v360, %v2416
      %v2479 = vmul.f32 %v361, %v2416
      %v2480 = vmul.f32 %v362, %v2416
      %v2481 = vmul.f32 %v363, %v2416
      %v2482 = vmul.f32 %v364, %v2416
      %v2483 = vmul.f32 %v365, %v2416
      %v2484 = vmul.f32 %v366, %v2416
      %v2485 = vmul.f32 %v367, %v2416
      %v2486 = vmul.f32 %v368, %v2416
      %v2487 = vmul.f32 %v369, %v2416
      %v2488 = vmul.f32 %v370, %v2416
      %v2489 = vmul.f32 %v371, %v2416
      %v2490 = vmul.f32 %v372, %v2416
      %v2491 = vmul.f32 %v373, %v2416
      %v2492 = vmul.f32 %v374, %v2416
      %v2493 = vmul.f32 %v375, %v2416
      %v2494 = vmul.f32 %v376, %v2416
      %v2495 = vmul.f32 %v377, %v2416
      %v2496 = vmul.f32 %v378, %v2416
      %v2497 = vmul.f32 %v379, %v2416
      %v2498 = vmul.f32 %v380, %v2416
      %v2499 = vmul.f32 %v381, %v2416
      %v2500 = vmul.f32 %v382, %v2416
      %v2501 = vmul.f32 %v383, %v2416
      %v2502 = vmul.f32 %v384, %v2416
      %v2503 = vmul.f32 %v385, %v2416
      %v2504 = vmul.f32 %v386, %v2416
      %v2505 = vmul.f32 %v387, %v2416
      %v2506 = vmul.f32 %v388, %v2416
      %v2507 = vmul.f32 %v389, %v2416
      %v2508 = vmul.f32 %v390, %v2416
      %v2509 = vmul.f32 %v391, %v2416
      %v2510 = vmul.f32 %v392, %v2416
      %v2511 = vmul.f32 %v393, %v2416
      %v2512 = vmul.f32 %v394, %v2416
      %v2513 = vmul.f32 %v395, %v2416
      %v2514 = vmul.f32 %v396, %v2416
      %v2515 = vmul.f32 %v397, %v2416
      %v2516 = vmul.f32 %v398, %v2416
      %v2517 = vmul.f32 %v399, %v2416
      %v2518 = vmul.f32 %v400, %v2416
      %v2519 = vmul.f32 %v401, %v2416
      %v2520 = vmul.f32 %v402, %v2416
      %v2521 = vmul.f32 %v403, %v2416
      %v2522 = vmul.f32 %v404, %v2416
      %v2523 = vmul.f32 %v405, %v2416
      %v2524 = vmul.f32 %v406, %v2416
      %v2525 = vmul.f32 %v407, %v2416
      %v2526 = vmul.f32 %v408, %v2416
      %v2527 = vmul.f32 %v409, %v2416
      %v2528 = vmul.f32 %v410, %v2416
      %v2529 = vmul.f32 %v411, %v2416
      %v2642 = vrot.slane %v2418, 1
      %v2643 = vrot.slane %v2419, 1
      %v2644 = vsel %vm1341, %v2642, %v2643
      %v2645 = vrot.slane %v2420, 1
      %v2646 = vsel %vm1341, %v2643, %v2645
      %v2647 = vrot.slane %v2421, 1
      %v2648 = vsel %vm1341, %v2645, %v2647
      %v2649 = vrot.slane %v2422, 1
      %v2650 = vrot.slane %v2423, 1
      %v2651 = vsel %vm1341, %v2649, %v2650
      %v2652 = vrot.slane %v2424, 1
      %v2653 = vsel %vm1341, %v2650, %v2652
      %v2654 = vrot.slane %v2425, 1
      %v2655 = vsel %vm1341, %v2652, %v2654
      %v2656 = vrot.slane %v2426, 1
      %v2657 = vrot.slane %v2427, 1
      %v2658 = vsel %vm1341, %v2656, %v2657
      %v2659 = vrot.slane %v2428, 1
      %v2660 = vsel %vm1341, %v2657, %v2659
      %v2661 = vrot.slane %v2429, 1
      %v2662 = vsel %vm1341, %v2659, %v2661
      %v2663 = vrot.slane %v2430, 1
      %v2664 = vrot.slane %v2431, 1
      %v2665 = vsel %vm1341, %v2663, %v2664
      %v2666 = vrot.slane %v2432, 1
      %v2667 = vsel %vm1341, %v2664, %v2666
      %v2668 = vrot.slane %v2433, 1
      %v2669 = vsel %vm1341, %v2666, %v2668
      %v2670 = vrot.slane %v2434, 1
      %v2671 = vrot.slane %v2435, 1
      %v2672 = vsel %vm1341, %v2670, %v2671
      %v2673 = vrot.slane %v2436, 1
      %v2674 = vsel %vm1341, %v2671, %v2673
      %v2675 = vrot.slane %v2437, 1
      %v2676 = vsel %vm1341, %v2673, %v2675
      %v2677 = vrot.slane %v2438, 1
      %v2678 = vrot.slane %v2439, 1
      %v2679 = vsel %vm1341, %v2677, %v2678
      %v2680 = vrot.slane %v2440, 1
      %v2681 = vsel %vm1341, %v2678, %v2680
      %v2682 = vrot.slane %v2441, 1
      %v2683 = vsel %vm1341, %v2680, %v2682
      %v2684 = vrot.slane %v2442, 1
      %v2685 = vrot.slane %v2443, 1
      %v2686 = vsel %vm1341, %v2684, %v2685
      %v2687 = vrot.slane %v2444, 1
      %v2688 = vsel %vm1341, %v2685, %v2687
      %v2689 = vrot.slane %v2445, 1
      %v2690 = vsel %vm1341, %v2687, %v2689
      %v2691 = vrot.slane %v2446, 1
      %v2692 = vrot.slane %v2447, 1
      %v2693 = vsel %vm1341, %v2691, %v2692
      %v2694 = vrot.slane %v2448, 1
      %v2695 = vsel %vm1341, %v2692, %v2694
      %v2696 = vrot.slane %v2449, 1
      %v2697 = vsel %vm1341, %v2694, %v2696
      %v2698 = vrot.slane %v2450, 1
      %v2699 = vrot.slane %v2451, 1
      %v2700 = vsel %vm1341, %v2698, %v2699
      %v2701 = vrot.slane %v2452, 1
      %v2702 = vsel %vm1341, %v2699, %v2701
      %v2703 = vrot.slane %v2453, 1
      %v2704 = vsel %vm1341, %v2701, %v2703
      %v2705 = vrot.slane %v2454, 1
      %v2706 = vrot.slane %v2455, 1
      %v2707 = vsel %vm1341, %v2705, %v2706
      %v2708 = vrot.slane %v2456, 1
      %v2709 = vsel %vm1341, %v2706, %v2708
      %v2710 = vrot.slane %v2457, 1
      %v2711 = vsel %vm1341, %v2708, %v2710
      %v2712 = vrot.slane %v2458, 1
      %v2713 = vrot.slane %v2459, 1
      %v2714 = vsel %vm1341, %v2712, %v2713
      %v2715 = vrot.slane %v2460, 1
      %v2716 = vsel %vm1341, %v2713, %v2715
      %v2717 = vrot.slane %v2461, 1
      %v2718 = vsel %vm1341, %v2715, %v2717
      %v2719 = vrot.slane %v2462, 1
      %v2720 = vrot.slane %v2463, 1
      %v2721 = vsel %vm1341, %v2719, %v2720
      %v2722 = vrot.slane %v2464, 1
      %v2723 = vsel %vm1341, %v2720, %v2722
      %v2724 = vrot.slane %v2465, 1
      %v2725 = vsel %vm1341, %v2722, %v2724
      %v2726 = vrot.slane %v2466, 1
      %v2727 = vrot.slane %v2467, 1
      %v2728 = vsel %vm1341, %v2726, %v2727
      %v2729 = vrot.slane %v2468, 1
      %v2730 = vsel %vm1341, %v2727, %v2729
      %v2731 = vrot.slane %v2469, 1
      %v2732 = vsel %vm1341, %v2729, %v2731
      %v2733 = vrot.slane %v2470, 1
      %v2734 = vrot.slane %v2471, 1
      %v2735 = vsel %vm1341, %v2733, %v2734
      %v2736 = vrot.slane %v2472, 1
      %v2737 = vsel %vm1341, %v2734, %v2736
      %v2738 = vrot.slane %v2473, 1
      %v2739 = vsel %vm1341, %v2736, %v2738
      %v2740 = vrot.slane %v2474, 1
      %v2741 = vrot.slane %v2475, 1
      %v2742 = vsel %vm1341, %v2740, %v2741
      %v2743 = vrot.slane %v2476, 1
      %v2744 = vsel %vm1341, %v2741, %v2743
      %v2745 = vrot.slane %v2477, 1
      %v2746 = vsel %vm1341, %v2743, %v2745
      %v2747 = vrot.slane %v2478, 1
      %v2748 = vrot.slane %v2479, 1
      %v2749 = vsel %vm1341, %v2747, %v2748
      %v2750 = vrot.slane %v2480, 1
      %v2751 = vsel %vm1341, %v2748, %v2750
      %v2752 = vrot.slane %v2481, 1
      %v2753 = vsel %vm1341, %v2750, %v2752
      %v2754 = vrot.slane %v2482, 1
      %v2755 = vrot.slane %v2483, 1
      %v2756 = vsel %vm1341, %v2754, %v2755
      %v2757 = vrot.slane %v2484, 1
      %v2758 = vsel %vm1341, %v2755, %v2757
      %v2759 = vrot.slane %v2485, 1
      %v2760 = vsel %vm1341, %v2757, %v2759
      %v2761 = vrot.slane %v2486, 1
      %v2762 = vrot.slane %v2487, 1
      %v2763 = vsel %vm1341, %v2761, %v2762
      %v2764 = vrot.slane %v2488, 1
      %v2765 = vsel %vm1341, %v2762, %v2764
      %v2766 = vrot.slane %v2489, 1
      %v2767 = vsel %vm1341, %v2764, %v2766
      %v2768 = vrot.slane %v2490, 1
      %v2769 = vrot.slane %v2491, 1
      %v2770 = vsel %vm1341, %v2768, %v2769
      %v2771 = vrot.slane %v2492, 1
      %v2772 = vsel %vm1341, %v2769, %v2771
      %v2773 = vrot.slane %v2493, 1
      %v2774 = vsel %vm1341, %v2771, %v2773
      %v2775 = vrot.slane %v2494, 1
      %v2776 = vrot.slane %v2495, 1
      %v2777 = vsel %vm1341, %v2775, %v2776
      %v2778 = vrot.slane %v2496, 1
      %v2779 = vsel %vm1341, %v2776, %v2778
      %v2780 = vrot.slane %v2497, 1
      %v2781 = vsel %vm1341, %v2778, %v2780
      %v2782 = vrot.slane %v2498, 1
      %v2783 = vrot.slane %v2499, 1
      %v2784 = vsel %vm1341, %v2782, %v2783
      %v2785 = vrot.slane %v2500, 1
      %v2786 = vsel %vm1341, %v2783, %v2785
      %v2787 = vrot.slane %v2501, 1
      %v2788 = vsel %vm1341, %v2785, %v2787
      %v2789 = vrot.slane %v2502, 1
      %v2790 = vrot.slane %v2503, 1
      %v2791 = vsel %vm1341, %v2789, %v2790
      %v2792 = vrot.slane %v2504, 1
      %v2793 = vsel %vm1341, %v2790, %v2792
      %v2794 = vrot.slane %v2505, 1
      %v2795 = vsel %vm1341, %v2792, %v2794
      %v2796 = vrot.slane %v2506, 1
      %v2797 = vrot.slane %v2507, 1
      %v2798 = vsel %vm1341, %v2796, %v2797
      %v2799 = vrot.slane %v2508, 1
      %v2800 = vsel %vm1341, %v2797, %v2799
      %v2801 = vrot.slane %v2509, 1
      %v2802 = vsel %vm1341, %v2799, %v2801
      %v2803 = vrot.slane %v2510, 1
      %v2804 = vrot.slane %v2511, 1
      %v2805 = vsel %vm1341, %v2803, %v2804
      %v2806 = vrot.slane %v2512, 1
      %v2807 = vsel %vm1341, %v2804, %v2806
      %v2808 = vrot.slane %v2513, 1
      %v2809 = vsel %vm1341, %v2806, %v2808
      %v2810 = vrot.slane %v2514, 1
      %v2811 = vrot.slane %v2515, 1
      %v2812 = vsel %vm1341, %v2810, %v2811
      %v2813 = vrot.slane %v2516, 1
      %v2814 = vsel %vm1341, %v2811, %v2813
      %v2815 = vrot.slane %v2517, 1
      %v2816 = vsel %vm1341, %v2813, %v2815
      %v2817 = vrot.slane %v2518, 1
      %v2818 = vrot.slane %v2519, 1
      %v2819 = vsel %vm1341, %v2817, %v2818
      %v2820 = vrot.slane %v2520, 1
      %v2821 = vsel %vm1341, %v2818, %v2820
      %v2822 = vrot.slane %v2521, 1
      %v2823 = vsel %vm1341, %v2820, %v2822
      %v2824 = vrot.slane %v2522, 1
      %v2825 = vrot.slane %v2523, 1
      %v2826 = vsel %vm1341, %v2824, %v2825
      %v2827 = vrot.slane %v2524, 1
      %v2828 = vsel %vm1341, %v2825, %v2827
      %v2829 = vrot.slane %v2525, 1
      %v2830 = vsel %vm1341, %v2827, %v2829
      %v2831 = vrot.slane %v2526, 1
      %v2832 = vrot.slane %v2527, 1
      %v2833 = vsel %vm1341, %v2831, %v2832
      %v2834 = vrot.slane %v2528, 1
      %v2835 = vsel %vm1341, %v2832, %v2834
      %v2836 = vrot.slane %v2529, 1
      %v2837 = vsel %vm1341, %v2834, %v2836
      %v2950 = vadd.f32 %v2300, %v2644
      %v2951 = vadd.f32 %v2301, %v2646
      %v2952 = vadd.f32 %v2302, %v2648
      %v2953 = vadd.f32 %v2303, %v2647
      %v2954 = vadd.f32 %v2304, %v2651
      %v2955 = vadd.f32 %v2305, %v2653
      %v2956 = vadd.f32 %v2306, %v2655
      %v2957 = vadd.f32 %v2307, %v2654
      %v2958 = vadd.f32 %v2308, %v2658
      %v2959 = vadd.f32 %v2309, %v2660
      %v2960 = vadd.f32 %v2310, %v2662
      %v2961 = vadd.f32 %v2311, %v2661
      %v2962 = vadd.f32 %v2312, %v2665
      %v2963 = vadd.f32 %v2313, %v2667
      %v2964 = vadd.f32 %v2314, %v2669
      %v2965 = vadd.f32 %v2315, %v2668
      %v2966 = vadd.f32 %v2316, %v2672
      %v2967 = vadd.f32 %v2317, %v2674
      %v2968 = vadd.f32 %v2318, %v2676
      %v2969 = vadd.f32 %v2319, %v2675
      %v2970 = vadd.f32 %v2320, %v2679
      %v2971 = vadd.f32 %v2321, %v2681
      %v2972 = vadd.f32 %v2322, %v2683
      %v2973 = vadd.f32 %v2323, %v2682
      %v2974 = vadd.f32 %v2324, %v2686
      %v2975 = vadd.f32 %v2325, %v2688
      %v2976 = vadd.f32 %v2326, %v2690
      %v2977 = vadd.f32 %v2327, %v2689
      %v2978 = vadd.f32 %v2328, %v2693
      %v2979 = vadd.f32 %v2329, %v2695
      %v2980 = vadd.f32 %v2330, %v2697
      %v2981 = vadd.f32 %v2331, %v2696
      %v2982 = vadd.f32 %v2332, %v2700
      %v2983 = vadd.f32 %v2333, %v2702
      %v2984 = vadd.f32 %v2334, %v2704
      %v2985 = vadd.f32 %v2335, %v2703
      %v2986 = vadd.f32 %v2336, %v2707
      %v2987 = vadd.f32 %v2337, %v2709
      %v2988 = vadd.f32 %v2338, %v2711
      %v2989 = vadd.f32 %v2339, %v2710
      %v2990 = vadd.f32 %v2340, %v2714
      %v2991 = vadd.f32 %v2341, %v2716
      %v2992 = vadd.f32 %v2342, %v2718
      %v2993 = vadd.f32 %v2343, %v2717
      %v2994 = vadd.f32 %v2344, %v2721
      %v2995 = vadd.f32 %v2345, %v2723
      %v2996 = vadd.f32 %v2346, %v2725
      %v2997 = vadd.f32 %v2347, %v2724
      %v2998 = vadd.f32 %v2348, %v2728
      %v2999 = vadd.f32 %v2349, %v2730
      %v3000 = vadd.f32 %v2350, %v2732
      %v3001 = vadd.f32 %v2351, %v2731
      %v3002 = vadd.f32 %v2352, %v2735
      %v3003 = vadd.f32 %v2353, %v2737
      %v3004 = vadd.f32 %v2354, %v2739
      %v3005 = vadd.f32 %v2355, %v2738
      %v3006 = vadd.f32 %v2356, %v2742
      %v3007 = vadd.f32 %v2357, %v2744
      %v3008 = vadd.f32 %v2358, %v2746
      %v3009 = vadd.f32 %v2359, %v2745
      %v3010 = vadd.f32 %v2360, %v2749
      %v3011 = vadd.f32 %v2361, %v2751
      %v3012 = vadd.f32 %v2362, %v2753
      %v3013 = vadd.f32 %v2363, %v2752
      %v3014 = vadd.f32 %v2364, %v2756
      %v3015 = vadd.f32 %v2365, %v2758
      %v3016 = vadd.f32 %v2366, %v2760
      %v3017 = vadd.f32 %v2367, %v2759
      %v3018 = vadd.f32 %v2368, %v2763
      %v3019 = vadd.f32 %v2369, %v2765
      %v3020 = vadd.f32 %v2370, %v2767
      %v3021 = vadd.f32 %v2371, %v2766
      %v3022 = vadd.f32 %v2372, %v2770
      %v3023 = vadd.f32 %v2373, %v2772
      %v3024 = vadd.f32 %v2374, %v2774
      %v3025 = vadd.f32 %v2375, %v2773
      %v3026 = vadd.f32 %v2376, %v2777
      %v3027 = vadd.f32 %v2377, %v2779
      %v3028 = vadd.f32 %v2378, %v2781
      %v3029 = vadd.f32 %v2379, %v2780
      %v3030 = vadd.f32 %v2380, %v2784
      %v3031 = vadd.f32 %v2381, %v2786
      %v3032 = vadd.f32 %v2382, %v2788
      %v3033 = vadd.f32 %v2383, %v2787
      %v3034 = vadd.f32 %v2384, %v2791
      %v3035 = vadd.f32 %v2385, %v2793
      %v3036 = vadd.f32 %v2386, %v2795
      %v3037 = vadd.f32 %v2387, %v2794
      %v3038 = vadd.f32 %v2388, %v2798
      %v3039 = vadd.f32 %v2389, %v2800
      %v3040 = vadd.f32 %v2390, %v2802
      %v3041 = vadd.f32 %v2391, %v2801
      %v3042 = vadd.f32 %v2392, %v2805
      %v3043 = vadd.f32 %v2393, %v2807
      %v3044 = vadd.f32 %v2394, %v2809
      %v3045 = vadd.f32 %v2395, %v2808
      %v3046 = vadd.f32 %v2396, %v2812
      %v3047 = vadd.f32 %v2397, %v2814
      %v3048 = vadd.f32 %v2398, %v2816
      %v3049 = vadd.f32 %v2399, %v2815
      %v3050 = vadd.f32 %v2400, %v2819
      %v3051 = vadd.f32 %v2401, %v2821
      %v3052 = vadd.f32 %v2402, %v2823
      %v3053 = vadd.f32 %v2403, %v2822
      %v3054 = vadd.f32 %v2404, %v2826
      %v3055 = vadd.f32 %v2405, %v2828
      %v3056 = vadd.f32 %v2406, %v2830
      %v3057 = vadd.f32 %v2407, %v2829
      %v3058 = vadd.f32 %v2408, %v2833
      %v3059 = vadd.f32 %v2409, %v2835
      %v3060 = vadd.f32 %v2410, %v2837
      %v3061 = vadd.f32 %v2411, %v2836
      %v3063 = vlaneseq
      %v3064 = vshrl.u32 %v3063, 7
      %v3065 = vsub.s32 0, %v3064
      %v3066 = vrot.slane %v414, %v3065
      %v3068 = vmul.f32 %v292, %v3066
      %v3069 = vmul.f32 %v293, %v3066
      %v3070 = vmul.f32 %v294, %v3066
      %v3071 = vmul.f32 %v295, %v3066
      %v3072 = vmul.f32 %v296, %v3066
      %v3073 = vmul.f32 %v297, %v3066
      %v3074 = vmul.f32 %v298, %v3066
      %v3075 = vmul.f32 %v299, %v3066
      %v3076 = vmul.f32 %v300, %v3066
      %v3077 = vmul.f32 %v301, %v3066
      %v3078 = vmul.f32 %v302, %v3066
      %v3079 = vmul.f32 %v303, %v3066
      %v3080 = vmul.f32 %v304, %v3066
      %v3081 = vmul.f32 %v305, %v3066
      %v3082 = vmul.f32 %v306, %v3066
      %v3083 = vmul.f32 %v307, %v3066
      %v3084 = vmul.f32 %v308, %v3066
      %v3085 = vmul.f32 %v309, %v3066
      %v3086 = vmul.f32 %v310, %v3066
      %v3087 = vmul.f32 %v311, %v3066
      %v3088 = vmul.f32 %v312, %v3066
      %v3089 = vmul.f32 %v313, %v3066
      %v3090 = vmul.f32 %v314, %v3066
      %v3091 = vmul.f32 %v315, %v3066
      %v3092 = vmul.f32 %v316, %v3066
      %v3093 = vmul.f32 %v317, %v3066
      %v3094 = vmul.f32 %v318, %v3066
      %v3095 = vmul.f32 %v319, %v3066
      %v3096 = vmul.f32 %v320, %v3066
      %v3097 = vmul.f32 %v321, %v3066
      %v3098 = vmul.f32 %v322, %v3066
      %v3099 = vmul.f32 %v323, %v3066
      %v3100 = vmul.f32 %v324, %v3066
      %v3101 = vmul.f32 %v325, %v3066
      %v3102 = vmul.f32 %v326, %v3066
      %v3103 = vmul.f32 %v327, %v3066
      %v3104 = vmul.f32 %v328, %v3066
      %v3105 = vmul.f32 %v329, %v3066
      %v3106 = vmul.f32 %v330, %v3066
      %v3107 = vmul.f32 %v331, %v3066
      %v3108 = vmul.f32 %v332, %v3066
      %v3109 = vmul.f32 %v333, %v3066
      %v3110 = vmul.f32 %v334, %v3066
      %v3111 = vmul.f32 %v335, %v3066
      %v3112 = vmul.f32 %v336, %v3066
      %v3113 = vmul.f32 %v337, %v3066
      %v3114 = vmul.f32 %v338, %v3066
      %v3115 = vmul.f32 %v339, %v3066
      %v3116 = vmul.f32 %v340, %v3066
      %v3117 = vmul.f32 %v341, %v3066
      %v3118 = vmul.f32 %v342, %v3066
      %v3119 = vmul.f32 %v343, %v3066
      %v3120 = vmul.f32 %v344, %v3066
      %v3121 = vmul.f32 %v345, %v3066
      %v3122 = vmul.f32 %v346, %v3066
      %v3123 = vmul.f32 %v347, %v3066
      %v3124 = vmul.f32 %v348, %v3066
      %v3125 = vmul.f32 %v349, %v3066
      %v3126 = vmul.f32 %v350, %v3066
      %v3127 = vmul.f32 %v351, %v3066
      %v3128 = vmul.f32 %v352, %v3066
      %v3129 = vmul.f32 %v353, %v3066
      %v3130 = vmul.f32 %v354, %v3066
      %v3131 = vmul.f32 %v355, %v3066
      %v3132 = vmul.f32 %v356, %v3066
      %v3133 = vmul.f32 %v357, %v3066
      %v3134 = vmul.f32 %v358, %v3066
      %v3135 = vmul.f32 %v359, %v3066
      %v3136 = vmul.f32 %v360, %v3066
      %v3137 = vmul.f32 %v361, %v3066
      %v3138 = vmul.f32 %v362, %v3066
      %v3139 = vmul.f32 %v363, %v3066
      %v3140 = vmul.f32 %v364, %v3066
      %v3141 = vmul.f32 %v365, %v3066
      %v3142 = vmul.f32 %v366, %v3066
      %v3143 = vmul.f32 %v367, %v3066
      %v3144 = vmul.f32 %v368, %v3066
      %v3145 = vmul.f32 %v369, %v3066
      %v3146 = vmul.f32 %v370, %v3066
      %v3147 = vmul.f32 %v371, %v3066
      %v3148 = vmul.f32 %v372, %v3066
      %v3149 = vmul.f32 %v373, %v3066
      %v3150 = vmul.f32 %v374, %v3066
      %v3151 = vmul.f32 %v375, %v3066
      %v3152 = vmul.f32 %v376, %v3066
      %v3153 = vmul.f32 %v377, %v3066
      %v3154 = vmul.f32 %v378, %v3066
      %v3155 = vmul.f32 %v379, %v3066
      %v3156 = vmul.f32 %v380, %v3066
      %v3157 = vmul.f32 %v381, %v3066
      %v3158 = vmul.f32 %v382, %v3066
      %v3159 = vmul.f32 %v383, %v3066
      %v3160 = vmul.f32 %v384, %v3066
      %v3161 = vmul.f32 %v385, %v3066
      %v3162 = vmul.f32 %v386, %v3066
      %v3163 = vmul.f32 %v387, %v3066
      %v3164 = vmul.f32 %v388, %v3066
      %v3165 = vmul.f32 %v389, %v3066
      %v3166 = vmul.f32 %v390, %v3066
      %v3167 = vmul.f32 %v391, %v3066
      %v3168 = vmul.f32 %v392, %v3066
      %v3169 = vmul.f32 %v393, %v3066
      %v3170 = vmul.f32 %v394, %v3066
      %v3171 = vmul.f32 %v395, %v3066
      %v3172 = vmul.f32 %v396, %v3066
      %v3173 = vmul.f32 %v397, %v3066
      %v3174 = vmul.f32 %v398, %v3066
      %v3175 = vmul.f32 %v399, %v3066
      %v3176 = vmul.f32 %v400, %v3066
      %v3177 = vmul.f32 %v401, %v3066
      %v3178 = vmul.f32 %v402, %v3066
      %v3179 = vmul.f32 %v403, %v3066
      %vm3292 = vcmask 1045504
      %v3293 = vrot.slane %v3068, 2
      %v3294 = vrot.slane %v3069, 2
      %v3295 = vsel %vm3292, %v3293, %v3294
      %v3296 = vrot.slane %v3070, 2
      %v3297 = vsel %vm3292, %v3294, %v3296
      %v3298 = vrot.slane %v3071, 2
      %v3299 = vsel %vm3292, %v3296, %v3298
      %v3300 = vrot.slane %v3072, 2
      %v3301 = vrot.slane %v3073, 2
      %v3302 = vsel %vm3292, %v3300, %v3301
      %v3303 = vrot.slane %v3074, 2
      %v3304 = vsel %vm3292, %v3301, %v3303
      %v3305 = vrot.slane %v3075, 2
      %v3306 = vsel %vm3292, %v3303, %v3305
      %v3307 = vrot.slane %v3076, 2
      %v3308 = vrot.slane %v3077, 2
      %v3309 = vsel %vm3292, %v3307, %v3308
      %v3310 = vrot.slane %v3078, 2
      %v3311 = vsel %vm3292, %v3308, %v3310
      %v3312 = vrot.slane %v3079, 2
      %v3313 = vsel %vm3292, %v3310, %v3312
      %v3314 = vrot.slane %v3080, 2
      %v3315 = vrot.slane %v3081, 2
      %v3316 = vsel %vm3292, %v3314, %v3315
      %v3317 = vrot.slane %v3082, 2
      %v3318 = vsel %vm3292, %v3315, %v3317
      %v3319 = vrot.slane %v3083, 2
      %v3320 = vsel %vm3292, %v3317, %v3319
      %v3321 = vrot.slane %v3084, 2
      %v3322 = vrot.slane %v3085, 2
      %v3323 = vsel %vm3292, %v3321, %v3322
      %v3324 = vrot.slane %v3086, 2
      %v3325 = vsel %vm3292, %v3322, %v3324
      %v3326 = vrot.slane %v3087, 2
      %v3327 = vsel %vm3292, %v3324, %v3326
      %v3328 = vrot.slane %v3088, 2
      %v3329 = vrot.slane %v3089, 2
      %v3330 = vsel %vm3292, %v3328, %v3329
      %v3331 = vrot.slane %v3090, 2
      %v3332 = vsel %vm3292, %v3329, %v3331
      %v3333 = vrot.slane %v3091, 2
      %v3334 = vsel %vm3292, %v3331, %v3333
      %v3335 = vrot.slane %v3092, 2
      %v3336 = vrot.slane %v3093, 2
      %v3337 = vsel %vm3292, %v3335, %v3336
      %v3338 = vrot.slane %v3094, 2
      %v3339 = vsel %vm3292, %v3336, %v3338
      %v3340 = vrot.slane %v3095, 2
      %v3341 = vsel %vm3292, %v3338, %v3340
      %v3342 = vrot.slane %v3096, 2
      %v3343 = vrot.slane %v3097, 2
      %v3344 = vsel %vm3292, %v3342, %v3343
      %v3345 = vrot.slane %v3098, 2
      %v3346 = vsel %vm3292, %v3343, %v3345
      %v3347 = vrot.slane %v3099, 2
      %v3348 = vsel %vm3292, %v3345, %v3347
      %v3349 = vrot.slane %v3100, 2
      %v3350 = vrot.slane %v3101, 2
      %v3351 = vsel %vm3292, %v3349, %v3350
      %v3352 = vrot.slane %v3102, 2
      %v3353 = vsel %vm3292, %v3350, %v3352
      %v3354 = vrot.slane %v3103, 2
      %v3355 = vsel %vm3292, %v3352, %v3354
      %v3356 = vrot.slane %v3104, 2
      %v3357 = vrot.slane %v3105, 2
      %v3358 = vsel %vm3292, %v3356, %v3357
      %v3359 = vrot.slane %v3106, 2
      %v3360 = vsel %vm3292, %v3357, %v3359
      %v3361 = vrot.slane %v3107, 2
      %v3362 = vsel %vm3292, %v3359, %v3361
      %v3363 = vrot.slane %v3108, 2
      %v3364 = vrot.slane %v3109, 2
      %v3365 = vsel %vm3292, %v3363, %v3364
      %v3366 = vrot.slane %v3110, 2
      %v3367 = vsel %vm3292, %v3364, %v3366
      %v3368 = vrot.slane %v3111, 2
      %v3369 = vsel %vm3292, %v3366, %v3368
      %v3370 = vrot.slane %v3112, 2
      %v3371 = vrot.slane %v3113, 2
      %v3372 = vsel %vm3292, %v3370, %v3371
      %v3373 = vrot.slane %v3114, 2
      %v3374 = vsel %vm3292, %v3371, %v3373
      %v3375 = vrot.slane %v3115, 2
      %v3376 = vsel %vm3292, %v3373, %v3375
      %v3377 = vrot.slane %v3116, 2
      %v3378 = vrot.slane %v3117, 2
      %v3379 = vsel %vm3292, %v3377, %v3378
      %v3380 = vrot.slane %v3118, 2
      %v3381 = vsel %vm3292, %v3378, %v3380
      %v3382 = vrot.slane %v3119, 2
      %v3383 = vsel %vm3292, %v3380, %v3382
      %v3384 = vrot.slane %v3120, 2
      %v3385 = vrot.slane %v3121, 2
      %v3386 = vsel %vm3292, %v3384, %v3385
      %v3387 = vrot.slane %v3122, 2
      %v3388 = vsel %vm3292, %v3385, %v3387
      %v3389 = vrot.slane %v3123, 2
      %v3390 = vsel %vm3292, %v3387, %v3389
      %v3391 = vrot.slane %v3124, 2
      %v3392 = vrot.slane %v3125, 2
      %v3393 = vsel %vm3292, %v3391, %v3392
      %v3394 = vrot.slane %v3126, 2
      %v3395 = vsel %vm3292, %v3392, %v3394
      %v3396 = vrot.slane %v3127, 2
      %v3397 = vsel %vm3292, %v3394, %v3396
      %v3398 = vrot.slane %v3128, 2
      %v3399 = vrot.slane %v3129, 2
      %v3400 = vsel %vm3292, %v3398, %v3399
      %v3401 = vrot.slane %v3130, 2
      %v3402 = vsel %vm3292, %v3399, %v3401
      %v3403 = vrot.slane %v3131, 2
      %v3404 = vsel %vm3292, %v3401, %v3403
      %v3405 = vrot.slane %v3132, 2
      %v3406 = vrot.slane %v3133, 2
      %v3407 = vsel %vm3292, %v3405, %v3406
      %v3408 = vrot.slane %v3134, 2
      %v3409 = vsel %vm3292, %v3406, %v3408
      %v3410 = vrot.slane %v3135, 2
      %v3411 = vsel %vm3292, %v3408, %v3410
      %v3412 = vrot.slane %v3136, 2
      %v3413 = vrot.slane %v3137, 2
      %v3414 = vsel %vm3292, %v3412, %v3413
      %v3415 = vrot.slane %v3138, 2
      %v3416 = vsel %vm3292, %v3413, %v3415
      %v3417 = vrot.slane %v3139, 2
      %v3418 = vsel %vm3292, %v3415, %v3417
      %v3419 = vrot.slane %v3140, 2
      %v3420 = vrot.slane %v3141, 2
      %v3421 = vsel %vm3292, %v3419, %v3420
      %v3422 = vrot.slane %v3142, 2
      %v3423 = vsel %vm3292, %v3420, %v3422
      %v3424 = vrot.slane %v3143, 2
      %v3425 = vsel %vm3292, %v3422, %v3424
      %v3426 = vrot.slane %v3144, 2
      %v3427 = vrot.slane %v3145, 2
      %v3428 = vsel %vm3292, %v3426, %v3427
      %v3429 = vrot.slane %v3146, 2
      %v3430 = vsel %vm3292, %v3427, %v3429
      %v3431 = vrot.slane %v3147, 2
      %v3432 = vsel %vm3292, %v3429, %v3431
      %v3433 = vrot.slane %v3148, 2
      %v3434 = vrot.slane %v3149, 2
      %v3435 = vsel %vm3292, %v3433, %v3434
      %v3436 = vrot.slane %v3150, 2
      %v3437 = vsel %vm3292, %v3434, %v3436
      %v3438 = vrot.slane %v3151, 2
      %v3439 = vsel %vm3292, %v3436, %v3438
      %v3440 = vrot.slane %v3152, 2
      %v3441 = vrot.slane %v3153, 2
      %v3442 = vsel %vm3292, %v3440, %v3441
      %v3443 = vrot.slane %v3154, 2
      %v3444 = vsel %vm3292, %v3441, %v3443
      %v3445 = vrot.slane %v3155, 2
      %v3446 = vsel %vm3292, %v3443, %v3445
      %v3447 = vrot.slane %v3156, 2
      %v3448 = vrot.slane %v3157, 2
      %v3449 = vsel %vm3292, %v3447, %v3448
      %v3450 = vrot.slane %v3158, 2
      %v3451 = vsel %vm3292, %v3448, %v3450
      %v3452 = vrot.slane %v3159, 2
      %v3453 = vsel %vm3292, %v3450, %v3452
      %v3454 = vrot.slane %v3160, 2
      %v3455 = vrot.slane %v3161, 2
      %v3456 = vsel %vm3292, %v3454, %v3455
      %v3457 = vrot.slane %v3162, 2
      %v3458 = vsel %vm3292, %v3455, %v3457
      %v3459 = vrot.slane %v3163, 2
      %v3460 = vsel %vm3292, %v3457, %v3459
      %v3461 = vrot.slane %v3164, 2
      %v3462 = vrot.slane %v3165, 2
      %v3463 = vsel %vm3292, %v3461, %v3462
      %v3464 = vrot.slane %v3166, 2
      %v3465 = vsel %vm3292, %v3462, %v3464
      %v3466 = vrot.slane %v3167, 2
      %v3467 = vsel %vm3292, %v3464, %v3466
      %v3468 = vrot.slane %v3168, 2
      %v3469 = vrot.slane %v3169, 2
      %v3470 = vsel %vm3292, %v3468, %v3469
      %v3471 = vrot.slane %v3170, 2
      %v3472 = vsel %vm3292, %v3469, %v3471
      %v3473 = vrot.slane %v3171, 2
      %v3474 = vsel %vm3292, %v3471, %v3473
      %v3475 = vrot.slane %v3172, 2
      %v3476 = vrot.slane %v3173, 2
      %v3477 = vsel %vm3292, %v3475, %v3476
      %v3478 = vrot.slane %v3174, 2
      %v3479 = vsel %vm3292, %v3476, %v3478
      %v3480 = vrot.slane %v3175, 2
      %v3481 = vsel %vm3292, %v3478, %v3480
      %v3482 = vrot.slane %v3176, 2
      %v3483 = vrot.slane %v3177, 2
      %v3484 = vsel %vm3292, %v3482, %v3483
      %v3485 = vrot.slane %v3178, 2
      %v3486 = vsel %vm3292, %v3483, %v3485
      %v3487 = vrot.slane %v3179, 2
      %v3488 = vsel %vm3292, %v3485, %v3487
      %v3601 = vadd.f32 %v2950, %v3295
      %v3602 = vadd.f32 %v2951, %v3297
      %v3603 = vadd.f32 %v2952, %v3299
      %v3604 = vadd.f32 %v2953, %v3298
      %v3605 = vadd.f32 %v2954, %v3302
      %v3606 = vadd.f32 %v2955, %v3304
      %v3607 = vadd.f32 %v2956, %v3306
      %v3608 = vadd.f32 %v2957, %v3305
      %v3609 = vadd.f32 %v2958, %v3309
      %v3610 = vadd.f32 %v2959, %v3311
      %v3611 = vadd.f32 %v2960, %v3313
      %v3612 = vadd.f32 %v2961, %v3312
      %v3613 = vadd.f32 %v2962, %v3316
      %v3614 = vadd.f32 %v2963, %v3318
      %v3615 = vadd.f32 %v2964, %v3320
      %v3616 = vadd.f32 %v2965, %v3319
      %v3617 = vadd.f32 %v2966, %v3323
      %v3618 = vadd.f32 %v2967, %v3325
      %v3619 = vadd.f32 %v2968, %v3327
      %v3620 = vadd.f32 %v2969, %v3326
      %v3621 = vadd.f32 %v2970, %v3330
      %v3622 = vadd.f32 %v2971, %v3332
      %v3623 = vadd.f32 %v2972, %v3334
      %v3624 = vadd.f32 %v2973, %v3333
      %v3625 = vadd.f32 %v2974, %v3337
      %v3626 = vadd.f32 %v2975, %v3339
      %v3627 = vadd.f32 %v2976, %v3341
      %v3628 = vadd.f32 %v2977, %v3340
      %v3629 = vadd.f32 %v2978, %v3344
      %v3630 = vadd.f32 %v2979, %v3346
      %v3631 = vadd.f32 %v2980, %v3348
      %v3632 = vadd.f32 %v2981, %v3347
      %v3633 = vadd.f32 %v2982, %v3351
      %v3634 = vadd.f32 %v2983, %v3353
      %v3635 = vadd.f32 %v2984, %v3355
      %v3636 = vadd.f32 %v2985, %v3354
      %v3637 = vadd.f32 %v2986, %v3358
      %v3638 = vadd.f32 %v2987, %v3360
      %v3639 = vadd.f32 %v2988, %v3362
      %v3640 = vadd.f32 %v2989, %v3361
      %v3641 = vadd.f32 %v2990, %v3365
      %v3642 = vadd.f32 %v2991, %v3367
      %v3643 = vadd.f32 %v2992, %v3369
      %v3644 = vadd.f32 %v2993, %v3368
      %v3645 = vadd.f32 %v2994, %v3372
      %v3646 = vadd.f32 %v2995, %v3374
      %v3647 = vadd.f32 %v2996, %v3376
      %v3648 = vadd.f32 %v2997, %v3375
      %v3649 = vadd.f32 %v2998, %v3379
      %v3650 = vadd.f32 %v2999, %v3381
      %v3651 = vadd.f32 %v3000, %v3383
      %v3652 = vadd.f32 %v3001, %v3382
      %v3653 = vadd.f32 %v3002, %v3386
      %v3654 = vadd.f32 %v3003, %v3388
      %v3655 = vadd.f32 %v3004, %v3390
      %v3656 = vadd.f32 %v3005, %v3389
      %v3657 = vadd.f32 %v3006, %v3393
      %v3658 = vadd.f32 %v3007, %v3395
      %v3659 = vadd.f32 %v3008, %v3397
      %v3660 = vadd.f32 %v3009, %v3396
      %v3661 = vadd.f32 %v3010, %v3400
      %v3662 = vadd.f32 %v3011, %v3402
      %v3663 = vadd.f32 %v3012, %v3404
      %v3664 = vadd.f32 %v3013, %v3403
      %v3665 = vadd.f32 %v3014, %v3407
      %v3666 = vadd.f32 %v3015, %v3409
      %v3667 = vadd.f32 %v3016, %v3411
      %v3668 = vadd.f32 %v3017, %v3410
      %v3669 = vadd.f32 %v3018, %v3414
      %v3670 = vadd.f32 %v3019, %v3416
      %v3671 = vadd.f32 %v3020, %v3418
      %v3672 = vadd.f32 %v3021, %v3417
      %v3673 = vadd.f32 %v3022, %v3421
      %v3674 = vadd.f32 %v3023, %v3423
      %v3675 = vadd.f32 %v3024, %v3425
      %v3676 = vadd.f32 %v3025, %v3424
      %v3677 = vadd.f32 %v3026, %v3428
      %v3678 = vadd.f32 %v3027, %v3430
      %v3679 = vadd.f32 %v3028, %v3432
      %v3680 = vadd.f32 %v3029, %v3431
      %v3681 = vadd.f32 %v3030, %v3435
      %v3682 = vadd.f32 %v3031, %v3437
      %v3683 = vadd.f32 %v3032, %v3439
      %v3684 = vadd.f32 %v3033, %v3438
      %v3685 = vadd.f32 %v3034, %v3442
      %v3686 = vadd.f32 %v3035, %v3444
      %v3687 = vadd.f32 %v3036, %v3446
      %v3688 = vadd.f32 %v3037, %v3445
      %v3689 = vadd.f32 %v3038, %v3449
      %v3690 = vadd.f32 %v3039, %v3451
      %v3691 = vadd.f32 %v3040, %v3453
      %v3692 = vadd.f32 %v3041, %v3452
      %v3693 = vadd.f32 %v3042, %v3456
      %v3694 = vadd.f32 %v3043, %v3458
      %v3695 = vadd.f32 %v3044, %v3460
      %v3696 = vadd.f32 %v3045, %v3459
      %v3697 = vadd.f32 %v3046, %v3463
      %v3698 = vadd.f32 %v3047, %v3465
      %v3699 = vadd.f32 %v3048, %v3467
      %v3700 = vadd.f32 %v3049, %v3466
      %v3701 = vadd.f32 %v3050, %v3470
      %v3702 = vadd.f32 %v3051, %v3472
      %v3703 = vadd.f32 %v3052, %v3474
      %v3704 = vadd.f32 %v3053, %v3473
      %v3705 = vadd.f32 %v3054, %v3477
      %v3706 = vadd.f32 %v3055, %v3479
      %v3707 = vadd.f32 %v3056, %v3481
      %v3708 = vadd.f32 %v3057, %v3480
      %v3709 = vadd.f32 %v3058, %v3484
      %v3710 = vadd.f32 %v3059, %v3486
      %v3711 = vadd.f32 %v3060, %v3488
      %v3712 = vadd.f32 %v3061, %v3487
      %v3714 = vlaneseq
      %v3715 = vshrl.u32 %v3714, 7
      %v3716 = vsub.s32 0, %v3715
      %v3717 = vrot.slane %v417, %v3716
      %v3719 = vmul.f32 %v296, %v3717
      %v3720 = vmul.f32 %v297, %v3717
      %v3721 = vmul.f32 %v298, %v3717
      %v3722 = vmul.f32 %v299, %v3717
      %v3723 = vmul.f32 %v300, %v3717
      %v3724 = vmul.f32 %v301, %v3717
      %v3725 = vmul.f32 %v302, %v3717
      %v3726 = vmul.f32 %v303, %v3717
      %v3727 = vmul.f32 %v304, %v3717
      %v3728 = vmul.f32 %v305, %v3717
      %v3729 = vmul.f32 %v306, %v3717
      %v3730 = vmul.f32 %v307, %v3717
      %v3731 = vmul.f32 %v308, %v3717
      %v3732 = vmul.f32 %v309, %v3717
      %v3733 = vmul.f32 %v310, %v3717
      %v3734 = vmul.f32 %v311, %v3717
      %v3735 = vmul.f32 %v312, %v3717
      %v3736 = vmul.f32 %v313, %v3717
      %v3737 = vmul.f32 %v314, %v3717
      %v3738 = vmul.f32 %v315, %v3717
      %v3739 = vmul.f32 %v316, %v3717
      %v3740 = vmul.f32 %v317, %v3717
      %v3741 = vmul.f32 %v318, %v3717
      %v3742 = vmul.f32 %v319, %v3717
      %v3743 = vmul.f32 %v320, %v3717
      %v3744 = vmul.f32 %v321, %v3717
      %v3745 = vmul.f32 %v322, %v3717
      %v3746 = vmul.f32 %v323, %v3717
      %v3747 = vmul.f32 %v324, %v3717
      %v3748 = vmul.f32 %v325, %v3717
      %v3749 = vmul.f32 %v326, %v3717
      %v3750 = vmul.f32 %v327, %v3717
      %v3751 = vmul.f32 %v328, %v3717
      %v3752 = vmul.f32 %v329, %v3717
      %v3753 = vmul.f32 %v330, %v3717
      %v3754 = vmul.f32 %v331, %v3717
      %v3755 = vmul.f32 %v332, %v3717
      %v3756 = vmul.f32 %v333, %v3717
      %v3757 = vmul.f32 %v334, %v3717
      %v3758 = vmul.f32 %v335, %v3717
      %v3759 = vmul.f32 %v336, %v3717
      %v3760 = vmul.f32 %v337, %v3717
      %v3761 = vmul.f32 %v338, %v3717
      %v3762 = vmul.f32 %v339, %v3717
      %v3763 = vmul.f32 %v340, %v3717
      %v3764 = vmul.f32 %v341, %v3717
      %v3765 = vmul.f32 %v342, %v3717
      %v3766 = vmul.f32 %v343, %v3717
      %v3767 = vmul.f32 %v344, %v3717
      %v3768 = vmul.f32 %v345, %v3717
      %v3769 = vmul.f32 %v346, %v3717
      %v3770 = vmul.f32 %v347, %v3717
      %v3771 = vmul.f32 %v348, %v3717
      %v3772 = vmul.f32 %v349, %v3717
      %v3773 = vmul.f32 %v350, %v3717
      %v3774 = vmul.f32 %v351, %v3717
      %v3775 = vmul.f32 %v352, %v3717
      %v3776 = vmul.f32 %v353, %v3717
      %v3777 = vmul.f32 %v354, %v3717
      %v3778 = vmul.f32 %v355, %v3717
      %v3779 = vmul.f32 %v356, %v3717
      %v3780 = vmul.f32 %v357, %v3717
      %v3781 = vmul.f32 %v358, %v3717
      %v3782 = vmul.f32 %v359, %v3717
      %v3783 = vmul.f32 %v360, %v3717
      %v3784 = vmul.f32 %v361, %v3717
      %v3785 = vmul.f32 %v362, %v3717
      %v3786 = vmul.f32 %v363, %v3717
      %v3787 = vmul.f32 %v364, %v3717
      %v3788 = vmul.f32 %v365, %v3717
      %v3789 = vmul.f32 %v366, %v3717
      %v3790 = vmul.f32 %v367, %v3717
      %v3791 = vmul.f32 %v368, %v3717
      %v3792 = vmul.f32 %v369, %v3717
      %v3793 = vmul.f32 %v370, %v3717
      %v3794 = vmul.f32 %v371, %v3717
      %v3795 = vmul.f32 %v372, %v3717
      %v3796 = vmul.f32 %v373, %v3717
      %v3797 = vmul.f32 %v374, %v3717
      %v3798 = vmul.f32 %v375, %v3717
      %v3799 = vmul.f32 %v376, %v3717
      %v3800 = vmul.f32 %v377, %v3717
      %v3801 = vmul.f32 %v378, %v3717
      %v3802 = vmul.f32 %v379, %v3717
      %v3803 = vmul.f32 %v380, %v3717
      %v3804 = vmul.f32 %v381, %v3717
      %v3805 = vmul.f32 %v382, %v3717
      %v3806 = vmul.f32 %v383, %v3717
      %v3807 = vmul.f32 %v384, %v3717
      %v3808 = vmul.f32 %v385, %v3717
      %v3809 = vmul.f32 %v386, %v3717
      %v3810 = vmul.f32 %v387, %v3717
      %v3811 = vmul.f32 %v388, %v3717
      %v3812 = vmul.f32 %v389, %v3717
      %v3813 = vmul.f32 %v390, %v3717
      %v3814 = vmul.f32 %v391, %v3717
      %v3815 = vmul.f32 %v392, %v3717
      %v3816 = vmul.f32 %v393, %v3717
      %v3817 = vmul.f32 %v394, %v3717
      %v3818 = vmul.f32 %v395, %v3717
      %v3819 = vmul.f32 %v396, %v3717
      %v3820 = vmul.f32 %v397, %v3717
      %v3821 = vmul.f32 %v398, %v3717
      %v3822 = vmul.f32 %v399, %v3717
      %v3823 = vmul.f32 %v400, %v3717
      %v3824 = vmul.f32 %v401, %v3717
      %v3825 = vmul.f32 %v402, %v3717
      %v3826 = vmul.f32 %v403, %v3717
      %v3827 = vmul.f32 %v404, %v3717
      %v3828 = vmul.f32 %v405, %v3717
      %v3829 = vmul.f32 %v406, %v3717
      %v3830 = vmul.f32 %v407, %v3717
      %v3943 = vrot.slane %v3719, 2
      %v3944 = vrot.slane %v3720, 2
      %v3945 = vsel %vm3292, %v3943, %v3944
      %v3946 = vrot.slane %v3721, 2
      %v3947 = vsel %vm3292, %v3944, %v3946
      %v3948 = vrot.slane %v3722, 2
      %v3949 = vsel %vm3292, %v3946, %v3948
      %v3950 = vrot.slane %v3723, 2
      %v3951 = vrot.slane %v3724, 2
      %v3952 = vsel %vm3292, %v3950, %v3951
      %v3953 = vrot.slane %v3725, 2
      %v3954 = vsel %vm3292, %v3951, %v3953
      %v3955 = vrot.slane %v3726, 2
      %v3956 = vsel %vm3292, %v3953, %v3955
      %v3957 = vrot.slane %v3727, 2
      %v3958 = vrot.slane %v3728, 2
      %v3959 = vsel %vm3292, %v3957, %v3958
      %v3960 = vrot.slane %v3729, 2
      %v3961 = vsel %vm3292, %v3958, %v3960
      %v3962 = vrot.slane %v3730, 2
      %v3963 = vsel %vm3292, %v3960, %v3962
      %v3964 = vrot.slane %v3731, 2
      %v3965 = vrot.slane %v3732, 2
      %v3966 = vsel %vm3292, %v3964, %v3965
      %v3967 = vrot.slane %v3733, 2
      %v3968 = vsel %vm3292, %v3965, %v3967
      %v3969 = vrot.slane %v3734, 2
      %v3970 = vsel %vm3292, %v3967, %v3969
      %v3971 = vrot.slane %v3735, 2
      %v3972 = vrot.slane %v3736, 2
      %v3973 = vsel %vm3292, %v3971, %v3972
      %v3974 = vrot.slane %v3737, 2
      %v3975 = vsel %vm3292, %v3972, %v3974
      %v3976 = vrot.slane %v3738, 2
      %v3977 = vsel %vm3292, %v3974, %v3976
      %v3978 = vrot.slane %v3739, 2
      %v3979 = vrot.slane %v3740, 2
      %v3980 = vsel %vm3292, %v3978, %v3979
      %v3981 = vrot.slane %v3741, 2
      %v3982 = vsel %vm3292, %v3979, %v3981
      %v3983 = vrot.slane %v3742, 2
      %v3984 = vsel %vm3292, %v3981, %v3983
      %v3985 = vrot.slane %v3743, 2
      %v3986 = vrot.slane %v3744, 2
      %v3987 = vsel %vm3292, %v3985, %v3986
      %v3988 = vrot.slane %v3745, 2
      %v3989 = vsel %vm3292, %v3986, %v3988
      %v3990 = vrot.slane %v3746, 2
      %v3991 = vsel %vm3292, %v3988, %v3990
      %v3992 = vrot.slane %v3747, 2
      %v3993 = vrot.slane %v3748, 2
      %v3994 = vsel %vm3292, %v3992, %v3993
      %v3995 = vrot.slane %v3749, 2
      %v3996 = vsel %vm3292, %v3993, %v3995
      %v3997 = vrot.slane %v3750, 2
      %v3998 = vsel %vm3292, %v3995, %v3997
      %v3999 = vrot.slane %v3751, 2
      %v4000 = vrot.slane %v3752, 2
      %v4001 = vsel %vm3292, %v3999, %v4000
      %v4002 = vrot.slane %v3753, 2
      %v4003 = vsel %vm3292, %v4000, %v4002
      %v4004 = vrot.slane %v3754, 2
      %v4005 = vsel %vm3292, %v4002, %v4004
      %v4006 = vrot.slane %v3755, 2
      %v4007 = vrot.slane %v3756, 2
      %v4008 = vsel %vm3292, %v4006, %v4007
      %v4009 = vrot.slane %v3757, 2
      %v4010 = vsel %vm3292, %v4007, %v4009
      %v4011 = vrot.slane %v3758, 2
      %v4012 = vsel %vm3292, %v4009, %v4011
      %v4013 = vrot.slane %v3759, 2
      %v4014 = vrot.slane %v3760, 2
      %v4015 = vsel %vm3292, %v4013, %v4014
      %v4016 = vrot.slane %v3761, 2
      %v4017 = vsel %vm3292, %v4014, %v4016
      %v4018 = vrot.slane %v3762, 2
      %v4019 = vsel %vm3292, %v4016, %v4018
      %v4020 = vrot.slane %v3763, 2
      %v4021 = vrot.slane %v3764, 2
      %v4022 = vsel %vm3292, %v4020, %v4021
      %v4023 = vrot.slane %v3765, 2
      %v4024 = vsel %vm3292, %v4021, %v4023
      %v4025 = vrot.slane %v3766, 2
      %v4026 = vsel %vm3292, %v4023, %v4025
      %v4027 = vrot.slane %v3767, 2
      %v4028 = vrot.slane %v3768, 2
      %v4029 = vsel %vm3292, %v4027, %v4028
      %v4030 = vrot.slane %v3769, 2
      %v4031 = vsel %vm3292, %v4028, %v4030
      %v4032 = vrot.slane %v3770, 2
      %v4033 = vsel %vm3292, %v4030, %v4032
      %v4034 = vrot.slane %v3771, 2
      %v4035 = vrot.slane %v3772, 2
      %v4036 = vsel %vm3292, %v4034, %v4035
      %v4037 = vrot.slane %v3773, 2
      %v4038 = vsel %vm3292, %v4035, %v4037
      %v4039 = vrot.slane %v3774, 2
      %v4040 = vsel %vm3292, %v4037, %v4039
      %v4041 = vrot.slane %v3775, 2
      %v4042 = vrot.slane %v3776, 2
      %v4043 = vsel %vm3292, %v4041, %v4042
      %v4044 = vrot.slane %v3777, 2
      %v4045 = vsel %vm3292, %v4042, %v4044
      %v4046 = vrot.slane %v3778, 2
      %v4047 = vsel %vm3292, %v4044, %v4046
      %v4048 = vrot.slane %v3779, 2
      %v4049 = vrot.slane %v3780, 2
      %v4050 = vsel %vm3292, %v4048, %v4049
      %v4051 = vrot.slane %v3781, 2
      %v4052 = vsel %vm3292, %v4049, %v4051
      %v4053 = vrot.slane %v3782, 2
      %v4054 = vsel %vm3292, %v4051, %v4053
      %v4055 = vrot.slane %v3783, 2
      %v4056 = vrot.slane %v3784, 2
      %v4057 = vsel %vm3292, %v4055, %v4056
      %v4058 = vrot.slane %v3785, 2
      %v4059 = vsel %vm3292, %v4056, %v4058
      %v4060 = vrot.slane %v3786, 2
      %v4061 = vsel %vm3292, %v4058, %v4060
      %v4062 = vrot.slane %v3787, 2
      %v4063 = vrot.slane %v3788, 2
      %v4064 = vsel %vm3292, %v4062, %v4063
      %v4065 = vrot.slane %v3789, 2
      %v4066 = vsel %vm3292, %v4063, %v4065
      %v4067 = vrot.slane %v3790, 2
      %v4068 = vsel %vm3292, %v4065, %v4067
      %v4069 = vrot.slane %v3791, 2
      %v4070 = vrot.slane %v3792, 2
      %v4071 = vsel %vm3292, %v4069, %v4070
      %v4072 = vrot.slane %v3793, 2
      %v4073 = vsel %vm3292, %v4070, %v4072
      %v4074 = vrot.slane %v3794, 2
      %v4075 = vsel %vm3292, %v4072, %v4074
      %v4076 = vrot.slane %v3795, 2
      %v4077 = vrot.slane %v3796, 2
      %v4078 = vsel %vm3292, %v4076, %v4077
      %v4079 = vrot.slane %v3797, 2
      %v4080 = vsel %vm3292, %v4077, %v4079
      %v4081 = vrot.slane %v3798, 2
      %v4082 = vsel %vm3292, %v4079, %v4081
      %v4083 = vrot.slane %v3799, 2
      %v4084 = vrot.slane %v3800, 2
      %v4085 = vsel %vm3292, %v4083, %v4084
      %v4086 = vrot.slane %v3801, 2
      %v4087 = vsel %vm3292, %v4084, %v4086
      %v4088 = vrot.slane %v3802, 2
      %v4089 = vsel %vm3292, %v4086, %v4088
      %v4090 = vrot.slane %v3803, 2
      %v4091 = vrot.slane %v3804, 2
      %v4092 = vsel %vm3292, %v4090, %v4091
      %v4093 = vrot.slane %v3805, 2
      %v4094 = vsel %vm3292, %v4091, %v4093
      %v4095 = vrot.slane %v3806, 2
      %v4096 = vsel %vm3292, %v4093, %v4095
      %v4097 = vrot.slane %v3807, 2
      %v4098 = vrot.slane %v3808, 2
      %v4099 = vsel %vm3292, %v4097, %v4098
      %v4100 = vrot.slane %v3809, 2
      %v4101 = vsel %vm3292, %v4098, %v4100
      %v4102 = vrot.slane %v3810, 2
      %v4103 = vsel %vm3292, %v4100, %v4102
      %v4104 = vrot.slane %v3811, 2
      %v4105 = vrot.slane %v3812, 2
      %v4106 = vsel %vm3292, %v4104, %v4105
      %v4107 = vrot.slane %v3813, 2
      %v4108 = vsel %vm3292, %v4105, %v4107
      %v4109 = vrot.slane %v3814, 2
      %v4110 = vsel %vm3292, %v4107, %v4109
      %v4111 = vrot.slane %v3815, 2
      %v4112 = vrot.slane %v3816, 2
      %v4113 = vsel %vm3292, %v4111, %v4112
      %v4114 = vrot.slane %v3817, 2
      %v4115 = vsel %vm3292, %v4112, %v4114
      %v4116 = vrot.slane %v3818, 2
      %v4117 = vsel %vm3292, %v4114, %v4116
      %v4118 = vrot.slane %v3819, 2
      %v4119 = vrot.slane %v3820, 2
      %v4120 = vsel %vm3292, %v4118, %v4119
      %v4121 = vrot.slane %v3821, 2
      %v4122 = vsel %vm3292, %v4119, %v4121
      %v4123 = vrot.slane %v3822, 2
      %v4124 = vsel %vm3292, %v4121, %v4123
      %v4125 = vrot.slane %v3823, 2
      %v4126 = vrot.slane %v3824, 2
      %v4127 = vsel %vm3292, %v4125, %v4126
      %v4128 = vrot.slane %v3825, 2
      %v4129 = vsel %vm3292, %v4126, %v4128
      %v4130 = vrot.slane %v3826, 2
      %v4131 = vsel %vm3292, %v4128, %v4130
      %v4132 = vrot.slane %v3827, 2
      %v4133 = vrot.slane %v3828, 2
      %v4134 = vsel %vm3292, %v4132, %v4133
      %v4135 = vrot.slane %v3829, 2
      %v4136 = vsel %vm3292, %v4133, %v4135
      %v4137 = vrot.slane %v3830, 2
      %v4138 = vsel %vm3292, %v4135, %v4137
      %v4251 = vadd.f32 %v3601, %v3945
      %v4252 = vadd.f32 %v3602, %v3947
      %v4253 = vadd.f32 %v3603, %v3949
      %v4254 = vadd.f32 %v3604, %v3948
      %v4255 = vadd.f32 %v3605, %v3952
      %v4256 = vadd.f32 %v3606, %v3954
      %v4257 = vadd.f32 %v3607, %v3956
      %v4258 = vadd.f32 %v3608, %v3955
      %v4259 = vadd.f32 %v3609, %v3959
      %v4260 = vadd.f32 %v3610, %v3961
      %v4261 = vadd.f32 %v3611, %v3963
      %v4262 = vadd.f32 %v3612, %v3962
      %v4263 = vadd.f32 %v3613, %v3966
      %v4264 = vadd.f32 %v3614, %v3968
      %v4265 = vadd.f32 %v3615, %v3970
      %v4266 = vadd.f32 %v3616, %v3969
      %v4267 = vadd.f32 %v3617, %v3973
      %v4268 = vadd.f32 %v3618, %v3975
      %v4269 = vadd.f32 %v3619, %v3977
      %v4270 = vadd.f32 %v3620, %v3976
      %v4271 = vadd.f32 %v3621, %v3980
      %v4272 = vadd.f32 %v3622, %v3982
      %v4273 = vadd.f32 %v3623, %v3984
      %v4274 = vadd.f32 %v3624, %v3983
      %v4275 = vadd.f32 %v3625, %v3987
      %v4276 = vadd.f32 %v3626, %v3989
      %v4277 = vadd.f32 %v3627, %v3991
      %v4278 = vadd.f32 %v3628, %v3990
      %v4279 = vadd.f32 %v3629, %v3994
      %v4280 = vadd.f32 %v3630, %v3996
      %v4281 = vadd.f32 %v3631, %v3998
      %v4282 = vadd.f32 %v3632, %v3997
      %v4283 = vadd.f32 %v3633, %v4001
      %v4284 = vadd.f32 %v3634, %v4003
      %v4285 = vadd.f32 %v3635, %v4005
      %v4286 = vadd.f32 %v3636, %v4004
      %v4287 = vadd.f32 %v3637, %v4008
      %v4288 = vadd.f32 %v3638, %v4010
      %v4289 = vadd.f32 %v3639, %v4012
      %v4290 = vadd.f32 %v3640, %v4011
      %v4291 = vadd.f32 %v3641, %v4015
      %v4292 = vadd.f32 %v3642, %v4017
      %v4293 = vadd.f32 %v3643, %v4019
      %v4294 = vadd.f32 %v3644, %v4018
      %v4295 = vadd.f32 %v3645, %v4022
      %v4296 = vadd.f32 %v3646, %v4024
      %v4297 = vadd.f32 %v3647, %v4026
      %v4298 = vadd.f32 %v3648, %v4025
      %v4299 = vadd.f32 %v3649, %v4029
      %v4300 = vadd.f32 %v3650, %v4031
      %v4301 = vadd.f32 %v3651, %v4033
      %v4302 = vadd.f32 %v3652, %v4032
      %v4303 = vadd.f32 %v3653, %v4036
      %v4304 = vadd.f32 %v3654, %v4038
      %v4305 = vadd.f32 %v3655, %v4040
      %v4306 = vadd.f32 %v3656, %v4039
      %v4307 = vadd.f32 %v3657, %v4043
      %v4308 = vadd.f32 %v3658, %v4045
      %v4309 = vadd.f32 %v3659, %v4047
      %v4310 = vadd.f32 %v3660, %v4046
      %v4311 = vadd.f32 %v3661, %v4050
      %v4312 = vadd.f32 %v3662, %v4052
      %v4313 = vadd.f32 %v3663, %v4054
      %v4314 = vadd.f32 %v3664, %v4053
      %v4315 = vadd.f32 %v3665, %v4057
      %v4316 = vadd.f32 %v3666, %v4059
      %v4317 = vadd.f32 %v3667, %v4061
      %v4318 = vadd.f32 %v3668, %v4060
      %v4319 = vadd.f32 %v3669, %v4064
      %v4320 = vadd.f32 %v3670, %v4066
      %v4321 = vadd.f32 %v3671, %v4068
      %v4322 = vadd.f32 %v3672, %v4067
      %v4323 = vadd.f32 %v3673, %v4071
      %v4324 = vadd.f32 %v3674, %v4073
      %v4325 = vadd.f32 %v3675, %v4075
      %v4326 = vadd.f32 %v3676, %v4074
      %v4327 = vadd.f32 %v3677, %v4078
      %v4328 = vadd.f32 %v3678, %v4080
      %v4329 = vadd.f32 %v3679, %v4082
      %v4330 = vadd.f32 %v3680, %v4081
      %v4331 = vadd.f32 %v3681, %v4085
      %v4332 = vadd.f32 %v3682, %v4087
      %v4333 = vadd.f32 %v3683, %v4089
      %v4334 = vadd.f32 %v3684, %v4088
      %v4335 = vadd.f32 %v3685, %v4092
      %v4336 = vadd.f32 %v3686, %v4094
      %v4337 = vadd.f32 %v3687, %v4096
      %v4338 = vadd.f32 %v3688, %v4095
      %v4339 = vadd.f32 %v3689, %v4099
      %v4340 = vadd.f32 %v3690, %v4101
      %v4341 = vadd.f32 %v3691, %v4103
      %v4342 = vadd.f32 %v3692, %v4102
      %v4343 = vadd.f32 %v3693, %v4106
      %v4344 = vadd.f32 %v3694, %v4108
      %v4345 = vadd.f32 %v3695, %v4110
      %v4346 = vadd.f32 %v3696, %v4109
      %v4347 = vadd.f32 %v3697, %v4113
      %v4348 = vadd.f32 %v3698, %v4115
      %v4349 = vadd.f32 %v3699, %v4117
      %v4350 = vadd.f32 %v3700, %v4116
      %v4351 = vadd.f32 %v3701, %v4120
      %v4352 = vadd.f32 %v3702, %v4122
      %v4353 = vadd.f32 %v3703, %v4124
      %v4354 = vadd.f32 %v3704, %v4123
      %v4355 = vadd.f32 %v3705, %v4127
      %v4356 = vadd.f32 %v3706, %v4129
      %v4357 = vadd.f32 %v3707, %v4131
      %v4358 = vadd.f32 %v3708, %v4130
      %v4359 = vadd.f32 %v3709, %v4134
      %v4360 = vadd.f32 %v3710, %v4136
      %v4361 = vadd.f32 %v3711, %v4138
      %v4362 = vadd.f32 %v3712, %v4137
      %v4364 = vlaneseq
      %v4365 = vshrl.u32 %v4364, 7
      %v4366 = vsub.s32 0, %v4365
      %v4367 = vrot.slane %v420, %v4366
      %v4369 = vmul.f32 %v300, %v4367
      %v4370 = vmul.f32 %v301, %v4367
      %v4371 = vmul.f32 %v302, %v4367
      %v4372 = vmul.f32 %v303, %v4367
      %v4373 = vmul.f32 %v304, %v4367
      %v4374 = vmul.f32 %v305, %v4367
      %v4375 = vmul.f32 %v306, %v4367
      %v4376 = vmul.f32 %v307, %v4367
      %v4377 = vmul.f32 %v308, %v4367
      %v4378 = vmul.f32 %v309, %v4367
      %v4379 = vmul.f32 %v310, %v4367
      %v4380 = vmul.f32 %v311, %v4367
      %v4381 = vmul.f32 %v312, %v4367
      %v4382 = vmul.f32 %v313, %v4367
      %v4383 = vmul.f32 %v314, %v4367
      %v4384 = vmul.f32 %v315, %v4367
      %v4385 = vmul.f32 %v316, %v4367
      %v4386 = vmul.f32 %v317, %v4367
      %v4387 = vmul.f32 %v318, %v4367
      %v4388 = vmul.f32 %v319, %v4367
      %v4389 = vmul.f32 %v320, %v4367
      %v4390 = vmul.f32 %v321, %v4367
      %v4391 = vmul.f32 %v322, %v4367
      %v4392 = vmul.f32 %v323, %v4367
      %v4393 = vmul.f32 %v324, %v4367
      %v4394 = vmul.f32 %v325, %v4367
      %v4395 = vmul.f32 %v326, %v4367
      %v4396 = vmul.f32 %v327, %v4367
      %v4397 = vmul.f32 %v328, %v4367
      %v4398 = vmul.f32 %v329, %v4367
      %v4399 = vmul.f32 %v330, %v4367
      %v4400 = vmul.f32 %v331, %v4367
      %v4401 = vmul.f32 %v332, %v4367
      %v4402 = vmul.f32 %v333, %v4367
      %v4403 = vmul.f32 %v334, %v4367
      %v4404 = vmul.f32 %v335, %v4367
      %v4405 = vmul.f32 %v336, %v4367
      %v4406 = vmul.f32 %v337, %v4367
      %v4407 = vmul.f32 %v338, %v4367
      %v4408 = vmul.f32 %v339, %v4367
      %v4409 = vmul.f32 %v340, %v4367
      %v4410 = vmul.f32 %v341, %v4367
      %v4411 = vmul.f32 %v342, %v4367
      %v4412 = vmul.f32 %v343, %v4367
      %v4413 = vmul.f32 %v344, %v4367
      %v4414 = vmul.f32 %v345, %v4367
      %v4415 = vmul.f32 %v346, %v4367
      %v4416 = vmul.f32 %v347, %v4367
      %v4417 = vmul.f32 %v348, %v4367
      %v4418 = vmul.f32 %v349, %v4367
      %v4419 = vmul.f32 %v350, %v4367
      %v4420 = vmul.f32 %v351, %v4367
      %v4421 = vmul.f32 %v352, %v4367
      %v4422 = vmul.f32 %v353, %v4367
      %v4423 = vmul.f32 %v354, %v4367
      %v4424 = vmul.f32 %v355, %v4367
      %v4425 = vmul.f32 %v356, %v4367
      %v4426 = vmul.f32 %v357, %v4367
      %v4427 = vmul.f32 %v358, %v4367
      %v4428 = vmul.f32 %v359, %v4367
      %v4429 = vmul.f32 %v360, %v4367
      %v4430 = vmul.f32 %v361, %v4367
      %v4431 = vmul.f32 %v362, %v4367
      %v4432 = vmul.f32 %v363, %v4367
      %v4433 = vmul.f32 %v364, %v4367
      %v4434 = vmul.f32 %v365, %v4367
      %v4435 = vmul.f32 %v366, %v4367
      %v4436 = vmul.f32 %v367, %v4367
      %v4437 = vmul.f32 %v368, %v4367
      %v4438 = vmul.f32 %v369, %v4367
      %v4439 = vmul.f32 %v370, %v4367
      %v4440 = vmul.f32 %v371, %v4367
      %v4441 = vmul.f32 %v372, %v4367
      %v4442 = vmul.f32 %v373, %v4367
      %v4443 = vmul.f32 %v374, %v4367
      %v4444 = vmul.f32 %v375, %v4367
      %v4445 = vmul.f32 %v376, %v4367
      %v4446 = vmul.f32 %v377, %v4367
      %v4447 = vmul.f32 %v378, %v4367
      %v4448 = vmul.f32 %v379, %v4367
      %v4449 = vmul.f32 %v380, %v4367
      %v4450 = vmul.f32 %v381, %v4367
      %v4451 = vmul.f32 %v382, %v4367
      %v4452 = vmul.f32 %v383, %v4367
      %v4453 = vmul.f32 %v384, %v4367
      %v4454 = vmul.f32 %v385, %v4367
      %v4455 = vmul.f32 %v386, %v4367
      %v4456 = vmul.f32 %v387, %v4367
      %v4457 = vmul.f32 %v388, %v4367
      %v4458 = vmul.f32 %v389, %v4367
      %v4459 = vmul.f32 %v390, %v4367
      %v4460 = vmul.f32 %v391, %v4367
      %v4461 = vmul.f32 %v392, %v4367
      %v4462 = vmul.f32 %v393, %v4367
      %v4463 = vmul.f32 %v394, %v4367
      %v4464 = vmul.f32 %v395, %v4367
      %v4465 = vmul.f32 %v396, %v4367
      %v4466 = vmul.f32 %v397, %v4367
      %v4467 = vmul.f32 %v398, %v4367
      %v4468 = vmul.f32 %v399, %v4367
      %v4469 = vmul.f32 %v400, %v4367
      %v4470 = vmul.f32 %v401, %v4367
      %v4471 = vmul.f32 %v402, %v4367
      %v4472 = vmul.f32 %v403, %v4367
      %v4473 = vmul.f32 %v404, %v4367
      %v4474 = vmul.f32 %v405, %v4367
      %v4475 = vmul.f32 %v406, %v4367
      %v4476 = vmul.f32 %v407, %v4367
      %v4477 = vmul.f32 %v408, %v4367
      %v4478 = vmul.f32 %v409, %v4367
      %v4479 = vmul.f32 %v410, %v4367
      %v4480 = vmul.f32 %v411, %v4367
      %v4593 = vrot.slane %v4369, 2
      %v4594 = vrot.slane %v4370, 2
      %v4595 = vsel %vm3292, %v4593, %v4594
      %v4596 = vrot.slane %v4371, 2
      %v4597 = vsel %vm3292, %v4594, %v4596
      %v4598 = vrot.slane %v4372, 2
      %v4599 = vsel %vm3292, %v4596, %v4598
      %v4600 = vrot.slane %v4373, 2
      %v4601 = vrot.slane %v4374, 2
      %v4602 = vsel %vm3292, %v4600, %v4601
      %v4603 = vrot.slane %v4375, 2
      %v4604 = vsel %vm3292, %v4601, %v4603
      %v4605 = vrot.slane %v4376, 2
      %v4606 = vsel %vm3292, %v4603, %v4605
      %v4607 = vrot.slane %v4377, 2
      %v4608 = vrot.slane %v4378, 2
      %v4609 = vsel %vm3292, %v4607, %v4608
      %v4610 = vrot.slane %v4379, 2
      %v4611 = vsel %vm3292, %v4608, %v4610
      %v4612 = vrot.slane %v4380, 2
      %v4613 = vsel %vm3292, %v4610, %v4612
      %v4614 = vrot.slane %v4381, 2
      %v4615 = vrot.slane %v4382, 2
      %v4616 = vsel %vm3292, %v4614, %v4615
      %v4617 = vrot.slane %v4383, 2
      %v4618 = vsel %vm3292, %v4615, %v4617
      %v4619 = vrot.slane %v4384, 2
      %v4620 = vsel %vm3292, %v4617, %v4619
      %v4621 = vrot.slane %v4385, 2
      %v4622 = vrot.slane %v4386, 2
      %v4623 = vsel %vm3292, %v4621, %v4622
      %v4624 = vrot.slane %v4387, 2
      %v4625 = vsel %vm3292, %v4622, %v4624
      %v4626 = vrot.slane %v4388, 2
      %v4627 = vsel %vm3292, %v4624, %v4626
      %v4628 = vrot.slane %v4389, 2
      %v4629 = vrot.slane %v4390, 2
      %v4630 = vsel %vm3292, %v4628, %v4629
      %v4631 = vrot.slane %v4391, 2
      %v4632 = vsel %vm3292, %v4629, %v4631
      %v4633 = vrot.slane %v4392, 2
      %v4634 = vsel %vm3292, %v4631, %v4633
      %v4635 = vrot.slane %v4393, 2
      %v4636 = vrot.slane %v4394, 2
      %v4637 = vsel %vm3292, %v4635, %v4636
      %v4638 = vrot.slane %v4395, 2
      %v4639 = vsel %vm3292, %v4636, %v4638
      %v4640 = vrot.slane %v4396, 2
      %v4641 = vsel %vm3292, %v4638, %v4640
      %v4642 = vrot.slane %v4397, 2
      %v4643 = vrot.slane %v4398, 2
      %v4644 = vsel %vm3292, %v4642, %v4643
      %v4645 = vrot.slane %v4399, 2
      %v4646 = vsel %vm3292, %v4643, %v4645
      %v4647 = vrot.slane %v4400, 2
      %v4648 = vsel %vm3292, %v4645, %v4647
      %v4649 = vrot.slane %v4401, 2
      %v4650 = vrot.slane %v4402, 2
      %v4651 = vsel %vm3292, %v4649, %v4650
      %v4652 = vrot.slane %v4403, 2
      %v4653 = vsel %vm3292, %v4650, %v4652
      %v4654 = vrot.slane %v4404, 2
      %v4655 = vsel %vm3292, %v4652, %v4654
      %v4656 = vrot.slane %v4405, 2
      %v4657 = vrot.slane %v4406, 2
      %v4658 = vsel %vm3292, %v4656, %v4657
      %v4659 = vrot.slane %v4407, 2
      %v4660 = vsel %vm3292, %v4657, %v4659
      %v4661 = vrot.slane %v4408, 2
      %v4662 = vsel %vm3292, %v4659, %v4661
      %v4663 = vrot.slane %v4409, 2
      %v4664 = vrot.slane %v4410, 2
      %v4665 = vsel %vm3292, %v4663, %v4664
      %v4666 = vrot.slane %v4411, 2
      %v4667 = vsel %vm3292, %v4664, %v4666
      %v4668 = vrot.slane %v4412, 2
      %v4669 = vsel %vm3292, %v4666, %v4668
      %v4670 = vrot.slane %v4413, 2
      %v4671 = vrot.slane %v4414, 2
      %v4672 = vsel %vm3292, %v4670, %v4671
      %v4673 = vrot.slane %v4415, 2
      %v4674 = vsel %vm3292, %v4671, %v4673
      %v4675 = vrot.slane %v4416, 2
      %v4676 = vsel %vm3292, %v4673, %v4675
      %v4677 = vrot.slane %v4417, 2
      %v4678 = vrot.slane %v4418, 2
      %v4679 = vsel %vm3292, %v4677, %v4678
      %v4680 = vrot.slane %v4419, 2
      %v4681 = vsel %vm3292, %v4678, %v4680
      %v4682 = vrot.slane %v4420, 2
      %v4683 = vsel %vm3292, %v4680, %v4682
      %v4684 = vrot.slane %v4421, 2
      %v4685 = vrot.slane %v4422, 2
      %v4686 = vsel %vm3292, %v4684, %v4685
      %v4687 = vrot.slane %v4423, 2
      %v4688 = vsel %vm3292, %v4685, %v4687
      %v4689 = vrot.slane %v4424, 2
      %v4690 = vsel %vm3292, %v4687, %v4689
      %v4691 = vrot.slane %v4425, 2
      %v4692 = vrot.slane %v4426, 2
      %v4693 = vsel %vm3292, %v4691, %v4692
      %v4694 = vrot.slane %v4427, 2
      %v4695 = vsel %vm3292, %v4692, %v4694
      %v4696 = vrot.slane %v4428, 2
      %v4697 = vsel %vm3292, %v4694, %v4696
      %v4698 = vrot.slane %v4429, 2
      %v4699 = vrot.slane %v4430, 2
      %v4700 = vsel %vm3292, %v4698, %v4699
      %v4701 = vrot.slane %v4431, 2
      %v4702 = vsel %vm3292, %v4699, %v4701
      %v4703 = vrot.slane %v4432, 2
      %v4704 = vsel %vm3292, %v4701, %v4703
      %v4705 = vrot.slane %v4433, 2
      %v4706 = vrot.slane %v4434, 2
      %v4707 = vsel %vm3292, %v4705, %v4706
      %v4708 = vrot.slane %v4435, 2
      %v4709 = vsel %vm3292, %v4706, %v4708
      %v4710 = vrot.slane %v4436, 2
      %v4711 = vsel %vm3292, %v4708, %v4710
      %v4712 = vrot.slane %v4437, 2
      %v4713 = vrot.slane %v4438, 2
      %v4714 = vsel %vm3292, %v4712, %v4713
      %v4715 = vrot.slane %v4439, 2
      %v4716 = vsel %vm3292, %v4713, %v4715
      %v4717 = vrot.slane %v4440, 2
      %v4718 = vsel %vm3292, %v4715, %v4717
      %v4719 = vrot.slane %v4441, 2
      %v4720 = vrot.slane %v4442, 2
      %v4721 = vsel %vm3292, %v4719, %v4720
      %v4722 = vrot.slane %v4443, 2
      %v4723 = vsel %vm3292, %v4720, %v4722
      %v4724 = vrot.slane %v4444, 2
      %v4725 = vsel %vm3292, %v4722, %v4724
      %v4726 = vrot.slane %v4445, 2
      %v4727 = vrot.slane %v4446, 2
      %v4728 = vsel %vm3292, %v4726, %v4727
      %v4729 = vrot.slane %v4447, 2
      %v4730 = vsel %vm3292, %v4727, %v4729
      %v4731 = vrot.slane %v4448, 2
      %v4732 = vsel %vm3292, %v4729, %v4731
      %v4733 = vrot.slane %v4449, 2
      %v4734 = vrot.slane %v4450, 2
      %v4735 = vsel %vm3292, %v4733, %v4734
      %v4736 = vrot.slane %v4451, 2
      %v4737 = vsel %vm3292, %v4734, %v4736
      %v4738 = vrot.slane %v4452, 2
      %v4739 = vsel %vm3292, %v4736, %v4738
      %v4740 = vrot.slane %v4453, 2
      %v4741 = vrot.slane %v4454, 2
      %v4742 = vsel %vm3292, %v4740, %v4741
      %v4743 = vrot.slane %v4455, 2
      %v4744 = vsel %vm3292, %v4741, %v4743
      %v4745 = vrot.slane %v4456, 2
      %v4746 = vsel %vm3292, %v4743, %v4745
      %v4747 = vrot.slane %v4457, 2
      %v4748 = vrot.slane %v4458, 2
      %v4749 = vsel %vm3292, %v4747, %v4748
      %v4750 = vrot.slane %v4459, 2
      %v4751 = vsel %vm3292, %v4748, %v4750
      %v4752 = vrot.slane %v4460, 2
      %v4753 = vsel %vm3292, %v4750, %v4752
      %v4754 = vrot.slane %v4461, 2
      %v4755 = vrot.slane %v4462, 2
      %v4756 = vsel %vm3292, %v4754, %v4755
      %v4757 = vrot.slane %v4463, 2
      %v4758 = vsel %vm3292, %v4755, %v4757
      %v4759 = vrot.slane %v4464, 2
      %v4760 = vsel %vm3292, %v4757, %v4759
      %v4761 = vrot.slane %v4465, 2
      %v4762 = vrot.slane %v4466, 2
      %v4763 = vsel %vm3292, %v4761, %v4762
      %v4764 = vrot.slane %v4467, 2
      %v4765 = vsel %vm3292, %v4762, %v4764
      %v4766 = vrot.slane %v4468, 2
      %v4767 = vsel %vm3292, %v4764, %v4766
      %v4768 = vrot.slane %v4469, 2
      %v4769 = vrot.slane %v4470, 2
      %v4770 = vsel %vm3292, %v4768, %v4769
      %v4771 = vrot.slane %v4471, 2
      %v4772 = vsel %vm3292, %v4769, %v4771
      %v4773 = vrot.slane %v4472, 2
      %v4774 = vsel %vm3292, %v4771, %v4773
      %v4775 = vrot.slane %v4473, 2
      %v4776 = vrot.slane %v4474, 2
      %v4777 = vsel %vm3292, %v4775, %v4776
      %v4778 = vrot.slane %v4475, 2
      %v4779 = vsel %vm3292, %v4776, %v4778
      %v4780 = vrot.slane %v4476, 2
      %v4781 = vsel %vm3292, %v4778, %v4780
      %v4782 = vrot.slane %v4477, 2
      %v4783 = vrot.slane %v4478, 2
      %v4784 = vsel %vm3292, %v4782, %v4783
      %v4785 = vrot.slane %v4479, 2
      %v4786 = vsel %vm3292, %v4783, %v4785
      %v4787 = vrot.slane %v4480, 2
      %v4788 = vsel %vm3292, %v4785, %v4787
      %v4901 = vadd.f32 %v4251, %v4595
      %v4902 = vadd.f32 %v4252, %v4597
      %v4903 = vadd.f32 %v4253, %v4599
      %v4904 = vadd.f32 %v4254, %v4598
      %v4905 = vadd.f32 %v4255, %v4602
      %v4906 = vadd.f32 %v4256, %v4604
      %v4907 = vadd.f32 %v4257, %v4606
      %v4908 = vadd.f32 %v4258, %v4605
      %v4909 = vadd.f32 %v4259, %v4609
      %v4910 = vadd.f32 %v4260, %v4611
      %v4911 = vadd.f32 %v4261, %v4613
      %v4912 = vadd.f32 %v4262, %v4612
      %v4913 = vadd.f32 %v4263, %v4616
      %v4914 = vadd.f32 %v4264, %v4618
      %v4915 = vadd.f32 %v4265, %v4620
      %v4916 = vadd.f32 %v4266, %v4619
      %v4917 = vadd.f32 %v4267, %v4623
      %v4918 = vadd.f32 %v4268, %v4625
      %v4919 = vadd.f32 %v4269, %v4627
      %v4920 = vadd.f32 %v4270, %v4626
      %v4921 = vadd.f32 %v4271, %v4630
      %v4922 = vadd.f32 %v4272, %v4632
      %v4923 = vadd.f32 %v4273, %v4634
      %v4924 = vadd.f32 %v4274, %v4633
      %v4925 = vadd.f32 %v4275, %v4637
      %v4926 = vadd.f32 %v4276, %v4639
      %v4927 = vadd.f32 %v4277, %v4641
      %v4928 = vadd.f32 %v4278, %v4640
      %v4929 = vadd.f32 %v4279, %v4644
      %v4930 = vadd.f32 %v4280, %v4646
      %v4931 = vadd.f32 %v4281, %v4648
      %v4932 = vadd.f32 %v4282, %v4647
      %v4933 = vadd.f32 %v4283, %v4651
      %v4934 = vadd.f32 %v4284, %v4653
      %v4935 = vadd.f32 %v4285, %v4655
      %v4936 = vadd.f32 %v4286, %v4654
      %v4937 = vadd.f32 %v4287, %v4658
      %v4938 = vadd.f32 %v4288, %v4660
      %v4939 = vadd.f32 %v4289, %v4662
      %v4940 = vadd.f32 %v4290, %v4661
      %v4941 = vadd.f32 %v4291, %v4665
      %v4942 = vadd.f32 %v4292, %v4667
      %v4943 = vadd.f32 %v4293, %v4669
      %v4944 = vadd.f32 %v4294, %v4668
      %v4945 = vadd.f32 %v4295, %v4672
      %v4946 = vadd.f32 %v4296, %v4674
      %v4947 = vadd.f32 %v4297, %v4676
      %v4948 = vadd.f32 %v4298, %v4675
      %v4949 = vadd.f32 %v4299, %v4679
      %v4950 = vadd.f32 %v4300, %v4681
      %v4951 = vadd.f32 %v4301, %v4683
      %v4952 = vadd.f32 %v4302, %v4682
      %v4953 = vadd.f32 %v4303, %v4686
      %v4954 = vadd.f32 %v4304, %v4688
      %v4955 = vadd.f32 %v4305, %v4690
      %v4956 = vadd.f32 %v4306, %v4689
      %v4957 = vadd.f32 %v4307, %v4693
      %v4958 = vadd.f32 %v4308, %v4695
      %v4959 = vadd.f32 %v4309, %v4697
      %v4960 = vadd.f32 %v4310, %v4696
      %v4961 = vadd.f32 %v4311, %v4700
      %v4962 = vadd.f32 %v4312, %v4702
      %v4963 = vadd.f32 %v4313, %v4704
      %v4964 = vadd.f32 %v4314, %v4703
      %v4965 = vadd.f32 %v4315, %v4707
      %v4966 = vadd.f32 %v4316, %v4709
      %v4967 = vadd.f32 %v4317, %v4711
      %v4968 = vadd.f32 %v4318, %v4710
      %v4969 = vadd.f32 %v4319, %v4714
      %v4970 = vadd.f32 %v4320, %v4716
      %v4971 = vadd.f32 %v4321, %v4718
      %v4972 = vadd.f32 %v4322, %v4717
      %v4973 = vadd.f32 %v4323, %v4721
      %v4974 = vadd.f32 %v4324, %v4723
      %v4975 = vadd.f32 %v4325, %v4725
      %v4976 = vadd.f32 %v4326, %v4724
      %v4977 = vadd.f32 %v4327, %v4728
      %v4978 = vadd.f32 %v4328, %v4730
      %v4979 = vadd.f32 %v4329, %v4732
      %v4980 = vadd.f32 %v4330, %v4731
      %v4981 = vadd.f32 %v4331, %v4735
      %v4982 = vadd.f32 %v4332, %v4737
      %v4983 = vadd.f32 %v4333, %v4739
      %v4984 = vadd.f32 %v4334, %v4738
      %v4985 = vadd.f32 %v4335, %v4742
      %v4986 = vadd.f32 %v4336, %v4744
      %v4987 = vadd.f32 %v4337, %v4746
      %v4988 = vadd.f32 %v4338, %v4745
      %v4989 = vadd.f32 %v4339, %v4749
      %v4990 = vadd.f32 %v4340, %v4751
      %v4991 = vadd.f32 %v4341, %v4753
      %v4992 = vadd.f32 %v4342, %v4752
      %v4993 = vadd.f32 %v4343, %v4756
      %v4994 = vadd.f32 %v4344, %v4758
      %v4995 = vadd.f32 %v4345, %v4760
      %v4996 = vadd.f32 %v4346, %v4759
      %v4997 = vadd.f32 %v4347, %v4763
      %v4998 = vadd.f32 %v4348, %v4765
      %v4999 = vadd.f32 %v4349, %v4767
      %v5000 = vadd.f32 %v4350, %v4766
      %v5001 = vadd.f32 %v4351, %v4770
      %v5002 = vadd.f32 %v4352, %v4772
      %v5003 = vadd.f32 %v4353, %v4774
      %v5004 = vadd.f32 %v4354, %v4773
      %v5005 = vadd.f32 %v4355, %v4777
      %v5006 = vadd.f32 %v4356, %v4779
      %v5007 = vadd.f32 %v4357, %v4781
      %v5008 = vadd.f32 %v4358, %v4780
      %v5009 = vadd.f32 %v4359, %v4784
      %v5010 = vadd.f32 %v4360, %v4786
      %v5011 = vadd.f32 %v4361, %v4788
      %v5012 = vadd.f32 %v4362, %v4787
      %vm5013 = vcmask 261120
      %v5014 = vsel %vm5013, %v4901, 0.0
      %5015 = vadd.xlane.f32.xlu0 %v5014
      %v5016 = vpop.xlane.xlu0 %5015
      %v5017 = vsel %vm5013, %v4902, 0.0
      %5018 = vadd.xlane.f32.xlu0 %v5017
      %v5019 = vpop.xlane.xlu0 %5018
      %v5020 = vsel %vm5013, %v4903, 0.0
      %5021 = vadd.xlane.f32.xlu0 %v5020
      %v5022 = vpop.xlane.xlu0 %5021
      %vm5023 = vcmask 257024
      %v5024 = vsel %vm5023, %v4904, 0.0
      %5025 = vadd.xlane.f32.xlu0 %v5024
      %v5026 = vpop.xlane.xlu0 %5025
      %v5027 = vsel %vm5013, %v4905, 0.0
      %5028 = vadd.xlane.f32.xlu0 %v5027
      %v5029 = vpop.xlane.xlu0 %5028
      %v5030 = vsel %vm5013, %v4906, 0.0
      %5031 = vadd.xlane.f32.xlu0 %v5030
      %v5032 = vpop.xlane.xlu0 %5031
      %v5033 = vsel %vm5013, %v4907, 0.0
      %5034 = vadd.xlane.f32.xlu0 %v5033
      %v5035 = vpop.xlane.xlu0 %5034
      %v5036 = vsel %vm5023, %v4908, 0.0
      %5037 = vadd.xlane.f32.xlu0 %v5036
      %v5038 = vpop.xlane.xlu0 %5037
      %v5039 = vsel %vm5013, %v4909, 0.0
      %5040 = vadd.xlane.f32.xlu0 %v5039
      %v5041 = vpop.xlane.xlu0 %5040
      %v5042 = vsel %vm5013, %v4910, 0.0
      %5043 = vadd.xlane.f32.xlu0 %v5042
      %v5044 = vpop.xlane.xlu0 %5043
      %v5045 = vsel %vm5013, %v4911, 0.0
      %5046 = vadd.xlane.f32.xlu0 %v5045
      %v5047 = vpop.xlane.xlu0 %5046
      %v5048 = vsel %vm5023, %v4912, 0.0
      %5049 = vadd.xlane.f32.xlu0 %v5048
      %v5050 = vpop.xlane.xlu0 %5049
      %v5051 = vsel %vm5013, %v4913, 0.0
      %5052 = vadd.xlane.f32.xlu0 %v5051
      %v5053 = vpop.xlane.xlu0 %5052
      %v5054 = vsel %vm5013, %v4914, 0.0
      %5055 = vadd.xlane.f32.xlu0 %v5054
      %v5056 = vpop.xlane.xlu0 %5055
      %v5057 = vsel %vm5013, %v4915, 0.0
      %5058 = vadd.xlane.f32.xlu0 %v5057
      %v5059 = vpop.xlane.xlu0 %5058
      %v5060 = vsel %vm5023, %v4916, 0.0
      %5061 = vadd.xlane.f32.xlu0 %v5060
      %v5062 = vpop.xlane.xlu0 %5061
      %v5063 = vsel %vm5013, %v4917, 0.0
      %5064 = vadd.xlane.f32.xlu0 %v5063
      %v5065 = vpop.xlane.xlu0 %5064
      %v5066 = vsel %vm5013, %v4918, 0.0
      %5067 = vadd.xlane.f32.xlu0 %v5066
      %v5068 = vpop.xlane.xlu0 %5067
      %v5069 = vsel %vm5013, %v4919, 0.0
      %5070 = vadd.xlane.f32.xlu0 %v5069
      %v5071 = vpop.xlane.xlu0 %5070
      %v5072 = vsel %vm5023, %v4920, 0.0
      %5073 = vadd.xlane.f32.xlu0 %v5072
      %v5074 = vpop.xlane.xlu0 %5073
      %v5075 = vsel %vm5013, %v4921, 0.0
      %5076 = vadd.xlane.f32.xlu0 %v5075
      %v5077 = vpop.xlane.xlu0 %5076
      %v5078 = vsel %vm5013, %v4922, 0.0
      %5079 = vadd.xlane.f32.xlu0 %v5078
      %v5080 = vpop.xlane.xlu0 %5079
      %v5081 = vsel %vm5013, %v4923, 0.0
      %5082 = vadd.xlane.f32.xlu0 %v5081
      %v5083 = vpop.xlane.xlu0 %5082
      %v5084 = vsel %vm5023, %v4924, 0.0
      %5085 = vadd.xlane.f32.xlu0 %v5084
      %v5086 = vpop.xlane.xlu0 %5085
      %v5087 = vsel %vm5013, %v4925, 0.0
      %5088 = vadd.xlane.f32.xlu0 %v5087
      %v5089 = vpop.xlane.xlu0 %5088
      %v5090 = vsel %vm5013, %v4926, 0.0
      %5091 = vadd.xlane.f32.xlu0 %v5090
      %v5092 = vpop.xlane.xlu0 %5091
      %v5093 = vsel %vm5013, %v4927, 0.0
      %5094 = vadd.xlane.f32.xlu0 %v5093
      %v5095 = vpop.xlane.xlu0 %5094
      %v5096 = vsel %vm5023, %v4928, 0.0
      %5097 = vadd.xlane.f32.xlu0 %v5096
      %v5098 = vpop.xlane.xlu0 %5097
      %v5099 = vsel %vm5013, %v4929, 0.0
      %5100 = vadd.xlane.f32.xlu0 %v5099
      %v5101 = vpop.xlane.xlu0 %5100
      %v5102 = vsel %vm5013, %v4930, 0.0
      %5103 = vadd.xlane.f32.xlu0 %v5102
      %v5104 = vpop.xlane.xlu0 %5103
      %v5105 = vsel %vm5013, %v4931, 0.0
      %5106 = vadd.xlane.f32.xlu0 %v5105
      %v5107 = vpop.xlane.xlu0 %5106
      %v5108 = vsel %vm5023, %v4932, 0.0
      %5109 = vadd.xlane.f32.xlu0 %v5108
      %v5110 = vpop.xlane.xlu0 %5109
      %v5111 = vsel %vm5013, %v4933, 0.0
      %5112 = vadd.xlane.f32.xlu0 %v5111
      %v5113 = vpop.xlane.xlu0 %5112
      %v5114 = vsel %vm5013, %v4934, 0.0
      %5115 = vadd.xlane.f32.xlu0 %v5114
      %v5116 = vpop.xlane.xlu0 %5115
      %v5117 = vsel %vm5013, %v4935, 0.0
      %5118 = vadd.xlane.f32.xlu0 %v5117
      %v5119 = vpop.xlane.xlu0 %5118
      %v5120 = vsel %vm5023, %v4936, 0.0
      %5121 = vadd.xlane.f32.xlu0 %v5120
      %v5122 = vpop.xlane.xlu0 %5121
      %v5123 = vsel %vm5013, %v4937, 0.0
      %5124 = vadd.xlane.f32.xlu0 %v5123
      %v5125 = vpop.xlane.xlu0 %5124
      %v5126 = vsel %vm5013, %v4938, 0.0
      %5127 = vadd.xlane.f32.xlu0 %v5126
      %v5128 = vpop.xlane.xlu0 %5127
      %v5129 = vsel %vm5013, %v4939, 0.0
      %5130 = vadd.xlane.f32.xlu0 %v5129
      %v5131 = vpop.xlane.xlu0 %5130
      %v5132 = vsel %vm5023, %v4940, 0.0
      %5133 = vadd.xlane.f32.xlu0 %v5132
      %v5134 = vpop.xlane.xlu0 %5133
      %v5135 = vsel %vm5013, %v4941, 0.0
      %5136 = vadd.xlane.f32.xlu0 %v5135
      %v5137 = vpop.xlane.xlu0 %5136
      %v5138 = vsel %vm5013, %v4942, 0.0
      %5139 = vadd.xlane.f32.xlu0 %v5138
      %v5140 = vpop.xlane.xlu0 %5139
      %v5141 = vsel %vm5013, %v4943, 0.0
      %5142 = vadd.xlane.f32.xlu0 %v5141
      %v5143 = vpop.xlane.xlu0 %5142
      %v5144 = vsel %vm5023, %v4944, 0.0
      %5145 = vadd.xlane.f32.xlu0 %v5144
      %v5146 = vpop.xlane.xlu0 %5145
      %v5147 = vsel %vm5013, %v4945, 0.0
      %5148 = vadd.xlane.f32.xlu0 %v5147
      %v5149 = vpop.xlane.xlu0 %5148
      %v5150 = vsel %vm5013, %v4946, 0.0
      %5151 = vadd.xlane.f32.xlu0 %v5150
      %v5152 = vpop.xlane.xlu0 %5151
      %v5153 = vsel %vm5013, %v4947, 0.0
      %5154 = vadd.xlane.f32.xlu0 %v5153
      %v5155 = vpop.xlane.xlu0 %5154
      %v5156 = vsel %vm5023, %v4948, 0.0
      %5157 = vadd.xlane.f32.xlu0 %v5156
      %v5158 = vpop.xlane.xlu0 %5157
      %v5159 = vsel %vm5013, %v4949, 0.0
      %5160 = vadd.xlane.f32.xlu0 %v5159
      %v5161 = vpop.xlane.xlu0 %5160
      %v5162 = vsel %vm5013, %v4950, 0.0
      %5163 = vadd.xlane.f32.xlu0 %v5162
      %v5164 = vpop.xlane.xlu0 %5163
      %v5165 = vsel %vm5013, %v4951, 0.0
      %5166 = vadd.xlane.f32.xlu0 %v5165
      %v5167 = vpop.xlane.xlu0 %5166
      %v5168 = vsel %vm5023, %v4952, 0.0
      %5169 = vadd.xlane.f32.xlu0 %v5168
      %v5170 = vpop.xlane.xlu0 %5169
      %v5171 = vsel %vm5013, %v4953, 0.0
      %5172 = vadd.xlane.f32.xlu0 %v5171
      %v5173 = vpop.xlane.xlu0 %5172
      %v5174 = vsel %vm5013, %v4954, 0.0
      %5175 = vadd.xlane.f32.xlu0 %v5174
      %v5176 = vpop.xlane.xlu0 %5175
      %v5177 = vsel %vm5013, %v4955, 0.0
      %5178 = vadd.xlane.f32.xlu0 %v5177
      %v5179 = vpop.xlane.xlu0 %5178
      %v5180 = vsel %vm5023, %v4956, 0.0
      %5181 = vadd.xlane.f32.xlu0 %v5180
      %v5182 = vpop.xlane.xlu0 %5181
      %v5183 = vsel %vm5013, %v4957, 0.0
      %5184 = vadd.xlane.f32.xlu0 %v5183
      %v5185 = vpop.xlane.xlu0 %5184
      %v5186 = vsel %vm5013, %v4958, 0.0
      %5187 = vadd.xlane.f32.xlu0 %v5186
      %v5188 = vpop.xlane.xlu0 %5187
      %v5189 = vsel %vm5013, %v4959, 0.0
      %5190 = vadd.xlane.f32.xlu0 %v5189
      %v5191 = vpop.xlane.xlu0 %5190
      %v5192 = vsel %vm5023, %v4960, 0.0
      %5193 = vadd.xlane.f32.xlu0 %v5192
      %v5194 = vpop.xlane.xlu0 %5193
      %v5195 = vsel %vm5013, %v4961, 0.0
      %5196 = vadd.xlane.f32.xlu0 %v5195
      %v5197 = vpop.xlane.xlu0 %5196
      %v5198 = vsel %vm5013, %v4962, 0.0
      %5199 = vadd.xlane.f32.xlu0 %v5198
      %v5200 = vpop.xlane.xlu0 %5199
      %v5201 = vsel %vm5013, %v4963, 0.0
      %5202 = vadd.xlane.f32.xlu0 %v5201
      %v5203 = vpop.xlane.xlu0 %5202
      %v5204 = vsel %vm5023, %v4964, 0.0
      %5205 = vadd.xlane.f32.xlu0 %v5204
      %v5206 = vpop.xlane.xlu0 %5205
      %v5207 = vsel %vm5013, %v4965, 0.0
      %5208 = vadd.xlane.f32.xlu0 %v5207
      %v5209 = vpop.xlane.xlu0 %5208
      %v5210 = vsel %vm5013, %v4966, 0.0
      %5211 = vadd.xlane.f32.xlu0 %v5210
      %v5212 = vpop.xlane.xlu0 %5211
      %v5213 = vsel %vm5013, %v4967, 0.0
      %5214 = vadd.xlane.f32.xlu0 %v5213
      %v5215 = vpop.xlane.xlu0 %5214
      %v5216 = vsel %vm5023, %v4968, 0.0
      %5217 = vadd.xlane.f32.xlu0 %v5216
      %v5218 = vpop.xlane.xlu0 %5217
      %v5219 = vsel %vm5013, %v4969, 0.0
      %5220 = vadd.xlane.f32.xlu0 %v5219
      %v5221 = vpop.xlane.xlu0 %5220
      %v5222 = vsel %vm5013, %v4970, 0.0
      %5223 = vadd.xlane.f32.xlu0 %v5222
      %v5224 = vpop.xlane.xlu0 %5223
      %v5225 = vsel %vm5013, %v4971, 0.0
      %5226 = vadd.xlane.f32.xlu0 %v5225
      %v5227 = vpop.xlane.xlu0 %5226
      %v5228 = vsel %vm5023, %v4972, 0.0
      %5229 = vadd.xlane.f32.xlu0 %v5228
      %v5230 = vpop.xlane.xlu0 %5229
      %v5231 = vsel %vm5013, %v4973, 0.0
      %5232 = vadd.xlane.f32.xlu0 %v5231
      %v5233 = vpop.xlane.xlu0 %5232
      %v5234 = vsel %vm5013, %v4974, 0.0
      %5235 = vadd.xlane.f32.xlu0 %v5234
      %v5236 = vpop.xlane.xlu0 %5235
      %v5237 = vsel %vm5013, %v4975, 0.0
      %5238 = vadd.xlane.f32.xlu0 %v5237
      %v5239 = vpop.xlane.xlu0 %5238
      %v5240 = vsel %vm5023, %v4976, 0.0
      %5241 = vadd.xlane.f32.xlu0 %v5240
      %v5242 = vpop.xlane.xlu0 %5241
      %v5243 = vsel %vm5013, %v4977, 0.0
      %5244 = vadd.xlane.f32.xlu0 %v5243
      %v5245 = vpop.xlane.xlu0 %5244
      %v5246 = vsel %vm5013, %v4978, 0.0
      %5247 = vadd.xlane.f32.xlu0 %v5246
      %v5248 = vpop.xlane.xlu0 %5247
      %v5249 = vsel %vm5013, %v4979, 0.0
      %5250 = vadd.xlane.f32.xlu0 %v5249
      %v5251 = vpop.xlane.xlu0 %5250
      %v5252 = vsel %vm5023, %v4980, 0.0
      %5253 = vadd.xlane.f32.xlu0 %v5252
      %v5254 = vpop.xlane.xlu0 %5253
      %v5255 = vsel %vm5013, %v4981, 0.0
      %5256 = vadd.xlane.f32.xlu0 %v5255
      %v5257 = vpop.xlane.xlu0 %5256
      %v5258 = vsel %vm5013, %v4982, 0.0
      %5259 = vadd.xlane.f32.xlu0 %v5258
      %v5260 = vpop.xlane.xlu0 %5259
      %v5261 = vsel %vm5013, %v4983, 0.0
      %5262 = vadd.xlane.f32.xlu0 %v5261
      %v5263 = vpop.xlane.xlu0 %5262
      %v5264 = vsel %vm5023, %v4984, 0.0
      %5265 = vadd.xlane.f32.xlu0 %v5264
      %v5266 = vpop.xlane.xlu0 %5265
      %v5267 = vsel %vm5013, %v4985, 0.0
      %5268 = vadd.xlane.f32.xlu0 %v5267
      %v5269 = vpop.xlane.xlu0 %5268
      %v5270 = vsel %vm5013, %v4986, 0.0
      %5271 = vadd.xlane.f32.xlu0 %v5270
      %v5272 = vpop.xlane.xlu0 %5271
      %v5273 = vsel %vm5013, %v4987, 0.0
      %5274 = vadd.xlane.f32.xlu0 %v5273
      %v5275 = vpop.xlane.xlu0 %5274
      %v5276 = vsel %vm5023, %v4988, 0.0
      %5277 = vadd.xlane.f32.xlu0 %v5276
      %v5278 = vpop.xlane.xlu0 %5277
      %v5279 = vsel %vm5013, %v4989, 0.0
      %5280 = vadd.xlane.f32.xlu0 %v5279
      %v5281 = vpop.xlane.xlu0 %5280
      %v5282 = vsel %vm5013, %v4990, 0.0
      %5283 = vadd.xlane.f32.xlu0 %v5282
      %v5284 = vpop.xlane.xlu0 %5283
      %v5285 = vsel %vm5013, %v4991, 0.0
      %5286 = vadd.xlane.f32.xlu0 %v5285
      %v5287 = vpop.xlane.xlu0 %5286
      %v5288 = vsel %vm5023, %v4992, 0.0
      %5289 = vadd.xlane.f32.xlu0 %v5288
      %v5290 = vpop.xlane.xlu0 %5289
      %v5291 = vsel %vm5013, %v4993, 0.0
      %5292 = vadd.xlane.f32.xlu0 %v5291
      %v5293 = vpop.xlane.xlu0 %5292
      %v5294 = vsel %vm5013, %v4994, 0.0
      %5295 = vadd.xlane.f32.xlu0 %v5294
      %v5296 = vpop.xlane.xlu0 %5295
      %v5297 = vsel %vm5013, %v4995, 0.0
      %5298 = vadd.xlane.f32.xlu0 %v5297
      %v5299 = vpop.xlane.xlu0 %5298
      %v5300 = vsel %vm5023, %v4996, 0.0
      %5301 = vadd.xlane.f32.xlu0 %v5300
      %v5302 = vpop.xlane.xlu0 %5301
      %v5303 = vsel %vm5013, %v4997, 0.0
      %5304 = vadd.xlane.f32.xlu0 %v5303
      %v5305 = vpop.xlane.xlu0 %5304
      %v5306 = vsel %vm5013, %v4998, 0.0
      %5307 = vadd.xlane.f32.xlu0 %v5306
      %v5308 = vpop.xlane.xlu0 %5307
      %v5309 = vsel %vm5013, %v4999, 0.0
      %5310 = vadd.xlane.f32.xlu0 %v5309
      %v5311 = vpop.xlane.xlu0 %5310
      %v5312 = vsel %vm5023, %v5000, 0.0
      %5313 = vadd.xlane.f32.xlu0 %v5312
      %v5314 = vpop.xlane.xlu0 %5313
      %v5315 = vsel %vm5013, %v5001, 0.0
      %5316 = vadd.xlane.f32.xlu0 %v5315
      %v5317 = vpop.xlane.xlu0 %5316
      %v5318 = vsel %vm5013, %v5002, 0.0
      %5319 = vadd.xlane.f32.xlu0 %v5318
      %v5320 = vpop.xlane.xlu0 %5319
      %v5321 = vsel %vm5013, %v5003, 0.0
      %5322 = vadd.xlane.f32.xlu0 %v5321
      %v5323 = vpop.xlane.xlu0 %5322
      %v5324 = vsel %vm5023, %v5004, 0.0
      %5325 = vadd.xlane.f32.xlu0 %v5324
      %v5326 = vpop.xlane.xlu0 %5325
      %v5327 = vsel %vm5013, %v5005, 0.0
      %5328 = vadd.xlane.f32.xlu0 %v5327
      %v5329 = vpop.xlane.xlu0 %5328
      %v5330 = vsel %vm5013, %v5006, 0.0
      %5331 = vadd.xlane.f32.xlu0 %v5330
      %v5332 = vpop.xlane.xlu0 %5331
      %v5333 = vsel %vm5013, %v5007, 0.0
      %5334 = vadd.xlane.f32.xlu0 %v5333
      %v5335 = vpop.xlane.xlu0 %5334
      %v5336 = vsel %vm5023, %v5008, 0.0
      %5337 = vadd.xlane.f32.xlu0 %v5336
      %v5338 = vpop.xlane.xlu0 %5337
      %v5339 = vsel %vm5013, %v5009, 0.0
      %5340 = vadd.xlane.f32.xlu0 %v5339
      %v5341 = vpop.xlane.xlu0 %5340
      %v5342 = vsel %vm5013, %v5010, 0.0
      %5343 = vadd.xlane.f32.xlu0 %v5342
      %v5344 = vpop.xlane.xlu0 %5343
      %v5345 = vsel %vm5013, %v5011, 0.0
      %5346 = vadd.xlane.f32.xlu0 %v5345
      %v5347 = vpop.xlane.xlu0 %5346
      %v5348 = vsel %vm5023, %v5012, 0.0
      %5349 = vadd.xlane.f32.xlu0 %v5348
      %v5350 = vpop.xlane.xlu0 %5349
      %s5351 = sld [smem:[#allocation2]]
      %v5352 = vstv %s5351
      %v5353 = vadd.f32 %v5016, %v5352
      %v5354 = vadd.f32 %v5019, %v5352
      %v5355 = vadd.f32 %v5022, %v5352
      %v5356 = vadd.f32 %v5026, %v5352
      %v5357 = vadd.f32 %v5029, %v5352
      %v5358 = vadd.f32 %v5032, %v5352
      %v5359 = vadd.f32 %v5035, %v5352
      %v5360 = vadd.f32 %v5038, %v5352
      %v5361 = vadd.f32 %v5041, %v5352
      %v5362 = vadd.f32 %v5044, %v5352
      %v5363 = vadd.f32 %v5047, %v5352
      %v5364 = vadd.f32 %v5050, %v5352
      %v5365 = vadd.f32 %v5053, %v5352
      %v5366 = vadd.f32 %v5056, %v5352
      %v5367 = vadd.f32 %v5059, %v5352
      %v5368 = vadd.f32 %v5062, %v5352
      %v5369 = vadd.f32 %v5065, %v5352
      %v5370 = vadd.f32 %v5068, %v5352
      %v5371 = vadd.f32 %v5071, %v5352
      %v5372 = vadd.f32 %v5074, %v5352
      %v5373 = vadd.f32 %v5077, %v5352
      %v5374 = vadd.f32 %v5080, %v5352
      %v5375 = vadd.f32 %v5083, %v5352
      %v5376 = vadd.f32 %v5086, %v5352
      %v5377 = vadd.f32 %v5089, %v5352
      %v5378 = vadd.f32 %v5092, %v5352
      %v5379 = vadd.f32 %v5095, %v5352
      %v5380 = vadd.f32 %v5098, %v5352
      %v5381 = vadd.f32 %v5101, %v5352
      %v5382 = vadd.f32 %v5104, %v5352
      %v5383 = vadd.f32 %v5107, %v5352
      %v5384 = vadd.f32 %v5110, %v5352
      %v5385 = vadd.f32 %v5113, %v5352
      %v5386 = vadd.f32 %v5116, %v5352
      %v5387 = vadd.f32 %v5119, %v5352
      %v5388 = vadd.f32 %v5122, %v5352
      %v5389 = vadd.f32 %v5125, %v5352
      %v5390 = vadd.f32 %v5128, %v5352
      %v5391 = vadd.f32 %v5131, %v5352
      %v5392 = vadd.f32 %v5134, %v5352
      %v5393 = vadd.f32 %v5137, %v5352
      %v5394 = vadd.f32 %v5140, %v5352
      %v5395 = vadd.f32 %v5143, %v5352
      %v5396 = vadd.f32 %v5146, %v5352
      %v5397 = vadd.f32 %v5149, %v5352
      %v5398 = vadd.f32 %v5152, %v5352
      %v5399 = vadd.f32 %v5155, %v5352
      %v5400 = vadd.f32 %v5158, %v5352
      %v5401 = vadd.f32 %v5161, %v5352
      %v5402 = vadd.f32 %v5164, %v5352
      %v5403 = vadd.f32 %v5167, %v5352
      %v5404 = vadd.f32 %v5170, %v5352
      %v5405 = vadd.f32 %v5173, %v5352
      %v5406 = vadd.f32 %v5176, %v5352
      %v5407 = vadd.f32 %v5179, %v5352
      %v5408 = vadd.f32 %v5182, %v5352
      %v5409 = vadd.f32 %v5185, %v5352
      %v5410 = vadd.f32 %v5188, %v5352
      %v5411 = vadd.f32 %v5191, %v5352
      %v5412 = vadd.f32 %v5194, %v5352
      %v5413 = vadd.f32 %v5197, %v5352
      %v5414 = vadd.f32 %v5200, %v5352
      %v5415 = vadd.f32 %v5203, %v5352
      %v5416 = vadd.f32 %v5206, %v5352
      %v5417 = vadd.f32 %v5209, %v5352
      %v5418 = vadd.f32 %v5212, %v5352
      %v5419 = vadd.f32 %v5215, %v5352
      %v5420 = vadd.f32 %v5218, %v5352
      %v5421 = vadd.f32 %v5221, %v5352
      %v5422 = vadd.f32 %v5224, %v5352
      %v5423 = vadd.f32 %v5227, %v5352
      %v5424 = vadd.f32 %v5230, %v5352
      %v5425 = vadd.f32 %v5233, %v5352
      %v5426 = vadd.f32 %v5236, %v5352
      %v5427 = vadd.f32 %v5239, %v5352
      %v5428 = vadd.f32 %v5242, %v5352
      %v5429 = vadd.f32 %v5245, %v5352
      %v5430 = vadd.f32 %v5248, %v5352
      %v5431 = vadd.f32 %v5251, %v5352
      %v5432 = vadd.f32 %v5254, %v5352
      %v5433 = vadd.f32 %v5257, %v5352
      %v5434 = vadd.f32 %v5260, %v5352
      %v5435 = vadd.f32 %v5263, %v5352
      %v5436 = vadd.f32 %v5266, %v5352
      %v5437 = vadd.f32 %v5269, %v5352
      %v5438 = vadd.f32 %v5272, %v5352
      %v5439 = vadd.f32 %v5275, %v5352
      %v5440 = vadd.f32 %v5278, %v5352
      %v5441 = vadd.f32 %v5281, %v5352
      %v5442 = vadd.f32 %v5284, %v5352
      %v5443 = vadd.f32 %v5287, %v5352
      %v5444 = vadd.f32 %v5290, %v5352
      %v5445 = vadd.f32 %v5293, %v5352
      %v5446 = vadd.f32 %v5296, %v5352
      %v5447 = vadd.f32 %v5299, %v5352
      %v5448 = vadd.f32 %v5302, %v5352
      %v5449 = vadd.f32 %v5305, %v5352
      %v5450 = vadd.f32 %v5308, %v5352
      %v5451 = vadd.f32 %v5311, %v5352
      %v5452 = vadd.f32 %v5314, %v5352
      %v5453 = vadd.f32 %v5317, %v5352
      %v5454 = vadd.f32 %v5320, %v5352
      %v5455 = vadd.f32 %v5323, %v5352
      %v5456 = vadd.f32 %v5326, %v5352
      %v5457 = vadd.f32 %v5329, %v5352
      %v5458 = vadd.f32 %v5332, %v5352
      %v5459 = vadd.f32 %v5335, %v5352
      %v5460 = vadd.f32 %v5338, %v5352
      %v5461 = vadd.f32 %v5341, %v5352
      %v5462 = vadd.f32 %v5344, %v5352
      %v5463 = vadd.f32 %v5347, %v5352
      %v5464 = vadd.f32 %v5350, %v5352
      %v5577 = vlaneseq
      %v5578 = vand.u32 %v5577, 127
      %v5579 = vlaneseq
      %v5580 = vshrl.u32 %v5579, 7
      %v5581 = vsub.s32 %v5578, %v5580
      %v5582 = vrot.slane %v5353, %v5581
      %v5583 = vadd.s32 %v5578, 4294967288
      %v5584 = vlaneseq
      %v5585 = vshrl.u32 %v5584, 7
      %v5586 = vsub.s32 %v5583, %v5585
      %v5587 = vrot.slane %v5354, %v5586
      %vm5588 = vcmask 130112
      %v5589 = vsel %vm5588, %v5587, %v5582
      %v5590 = vadd.s32 %v5578, 4294967280
      %v5591 = vlaneseq
      %v5592 = vshrl.u32 %v5591, 7
      %v5593 = vsub.s32 %v5590, %v5592
      %v5594 = vrot.slane %v5355, %v5593
      %vm5595 = vcmask 195712
      %v5596 = vsel %vm5595, %v5594, %v5589
      %v5597 = vadd.s32 %v5578, 4294967272
      %v5598 = vlaneseq
      %v5599 = vshrl.u32 %v5598, 7
      %v5600 = vsub.s32 %v5597, %v5599
      %v5601 = vrot.slane %v5356, %v5600
      %vm5602 = vcmask 261312
      %v5603 = vsel %vm5602, %v5601, %v5596
      %v5604 = vlaneseq
      %v5605 = vshrl.u32 %v5604, 7
      %v5606 = vsub.s32 %v5578, %v5605
      %v5607 = vrot.slane %v5357, %v5606
      %v5608 = vlaneseq
      %v5609 = vshrl.u32 %v5608, 7
      %v5610 = vsub.s32 %v5583, %v5609
      %v5611 = vrot.slane %v5358, %v5610
      %v5612 = vsel %vm5588, %v5611, %v5607
      %v5613 = vlaneseq
      %v5614 = vshrl.u32 %v5613, 7
      %v5615 = vsub.s32 %v5590, %v5614
      %v5616 = vrot.slane %v5359, %v5615
      %v5617 = vsel %vm5595, %v5616, %v5612
      %v5618 = vlaneseq
      %v5619 = vshrl.u32 %v5618, 7
      %v5620 = vsub.s32 %v5597, %v5619
      %v5621 = vrot.slane %v5360, %v5620
      %v5622 = vsel %vm5602, %v5621, %v5617
      %v5623 = vlaneseq
      %v5624 = vshrl.u32 %v5623, 7
      %v5625 = vsub.s32 %v5578, %v5624
      %v5626 = vrot.slane %v5361, %v5625
      %v5627 = vlaneseq
      %v5628 = vshrl.u32 %v5627, 7
      %v5629 = vsub.s32 %v5583, %v5628
      %v5630 = vrot.slane %v5362, %v5629
      %v5631 = vsel %vm5588, %v5630, %v5626
      %v5632 = vlaneseq
      %v5633 = vshrl.u32 %v5632, 7
      %v5634 = vsub.s32 %v5590, %v5633
      %v5635 = vrot.slane %v5363, %v5634
      %v5636 = vsel %vm5595, %v5635, %v5631
      %v5637 = vlaneseq
      %v5638 = vshrl.u32 %v5637, 7
      %v5639 = vsub.s32 %v5597, %v5638
      %v5640 = vrot.slane %v5364, %v5639
      %v5641 = vsel %vm5602, %v5640, %v5636
      %v5642 = vlaneseq
      %v5643 = vshrl.u32 %v5642, 7
      %v5644 = vsub.s32 %v5578, %v5643
      %v5645 = vrot.slane %v5365, %v5644
      %v5646 = vlaneseq
      %v5647 = vshrl.u32 %v5646, 7
      %v5648 = vsub.s32 %v5583, %v5647
      %v5649 = vrot.slane %v5366, %v5648
      %v5650 = vsel %vm5588, %v5649, %v5645
      %v5651 = vlaneseq
      %v5652 = vshrl.u32 %v5651, 7
      %v5653 = vsub.s32 %v5590, %v5652
      %v5654 = vrot.slane %v5367, %v5653
      %v5655 = vsel %vm5595, %v5654, %v5650
      %v5656 = vlaneseq
      %v5657 = vshrl.u32 %v5656, 7
      %v5658 = vsub.s32 %v5597, %v5657
      %v5659 = vrot.slane %v5368, %v5658
      %v5660 = vsel %vm5602, %v5659, %v5655
      %v5661 = vlaneseq
      %v5662 = vshrl.u32 %v5661, 7
      %v5663 = vsub.s32 %v5578, %v5662
      %v5664 = vrot.slane %v5369, %v5663
      %v5665 = vlaneseq
      %v5666 = vshrl.u32 %v5665, 7
      %v5667 = vsub.s32 %v5583, %v5666
      %v5668 = vrot.slane %v5370, %v5667
      %v5669 = vsel %vm5588, %v5668, %v5664
      %v5670 = vlaneseq
      %v5671 = vshrl.u32 %v5670, 7
      %v5672 = vsub.s32 %v5590, %v5671
      %v5673 = vrot.slane %v5371, %v5672
      %v5674 = vsel %vm5595, %v5673, %v5669
      %v5675 = vlaneseq
      %v5676 = vshrl.u32 %v5675, 7
      %v5677 = vsub.s32 %v5597, %v5676
      %v5678 = vrot.slane %v5372, %v5677
      %v5679 = vsel %vm5602, %v5678, %v5674
      %v5680 = vlaneseq
      %v5681 = vshrl.u32 %v5680, 7
      %v5682 = vsub.s32 %v5578, %v5681
      %v5683 = vrot.slane %v5373, %v5682
      %v5684 = vlaneseq
      %v5685 = vshrl.u32 %v5684, 7
      %v5686 = vsub.s32 %v5583, %v5685
      %v5687 = vrot.slane %v5374, %v5686
      %v5688 = vsel %vm5588, %v5687, %v5683
      %v5689 = vlaneseq
      %v5690 = vshrl.u32 %v5689, 7
      %v5691 = vsub.s32 %v5590, %v5690
      %v5692 = vrot.slane %v5375, %v5691
      %v5693 = vsel %vm5595, %v5692, %v5688
      %v5694 = vlaneseq
      %v5695 = vshrl.u32 %v5694, 7
      %v5696 = vsub.s32 %v5597, %v5695
      %v5697 = vrot.slane %v5376, %v5696
      %v5698 = vsel %vm5602, %v5697, %v5693
      %v5699 = vlaneseq
      %v5700 = vshrl.u32 %v5699, 7
      %v5701 = vsub.s32 %v5578, %v5700
      %v5702 = vrot.slane %v5377, %v5701
      %v5703 = vlaneseq
      %v5704 = vshrl.u32 %v5703, 7
      %v5705 = vsub.s32 %v5583, %v5704
      %v5706 = vrot.slane %v5378, %v5705
      %v5707 = vsel %vm5588, %v5706, %v5702
      %v5708 = vlaneseq
      %v5709 = vshrl.u32 %v5708, 7
      %v5710 = vsub.s32 %v5590, %v5709
      %v5711 = vrot.slane %v5379, %v5710
      %v5712 = vsel %vm5595, %v5711, %v5707
      %v5713 = vlaneseq
      %v5714 = vshrl.u32 %v5713, 7
      %v5715 = vsub.s32 %v5597, %v5714
      %v5716 = vrot.slane %v5380, %v5715
      %v5717 = vsel %vm5602, %v5716, %v5712
      %v5718 = vlaneseq
      %v5719 = vshrl.u32 %v5718, 7
      %v5720 = vsub.s32 %v5578, %v5719
      %v5721 = vrot.slane %v5381, %v5720
      %v5722 = vlaneseq
      %v5723 = vshrl.u32 %v5722, 7
      %v5724 = vsub.s32 %v5583, %v5723
      %v5725 = vrot.slane %v5382, %v5724
      %v5726 = vsel %vm5588, %v5725, %v5721
      %v5727 = vlaneseq
      %v5728 = vshrl.u32 %v5727, 7
      %v5729 = vsub.s32 %v5590, %v5728
      %v5730 = vrot.slane %v5383, %v5729
      %v5731 = vsel %vm5595, %v5730, %v5726
      %v5732 = vlaneseq
      %v5733 = vshrl.u32 %v5732, 7
      %v5734 = vsub.s32 %v5597, %v5733
      %v5735 = vrot.slane %v5384, %v5734
      %v5736 = vsel %vm5602, %v5735, %v5731
      %v5737 = vlaneseq
      %v5738 = vshrl.u32 %v5737, 7
      %v5739 = vsub.s32 %v5578, %v5738
      %v5740 = vrot.slane %v5385, %v5739
      %v5741 = vlaneseq
      %v5742 = vshrl.u32 %v5741, 7
      %v5743 = vsub.s32 %v5583, %v5742
      %v5744 = vrot.slane %v5386, %v5743
      %v5745 = vsel %vm5588, %v5744, %v5740
      %v5746 = vlaneseq
      %v5747 = vshrl.u32 %v5746, 7
      %v5748 = vsub.s32 %v5590, %v5747
      %v5749 = vrot.slane %v5387, %v5748
      %v5750 = vsel %vm5595, %v5749, %v5745
      %v5751 = vlaneseq
      %v5752 = vshrl.u32 %v5751, 7
      %v5753 = vsub.s32 %v5597, %v5752
      %v5754 = vrot.slane %v5388, %v5753
      %v5755 = vsel %vm5602, %v5754, %v5750
      %v5756 = vlaneseq
      %v5757 = vshrl.u32 %v5756, 7
      %v5758 = vsub.s32 %v5578, %v5757
      %v5759 = vrot.slane %v5389, %v5758
      %v5760 = vlaneseq
      %v5761 = vshrl.u32 %v5760, 7
      %v5762 = vsub.s32 %v5583, %v5761
      %v5763 = vrot.slane %v5390, %v5762
      %v5764 = vsel %vm5588, %v5763, %v5759
      %v5765 = vlaneseq
      %v5766 = vshrl.u32 %v5765, 7
      %v5767 = vsub.s32 %v5590, %v5766
      %v5768 = vrot.slane %v5391, %v5767
      %v5769 = vsel %vm5595, %v5768, %v5764
      %v5770 = vlaneseq
      %v5771 = vshrl.u32 %v5770, 7
      %v5772 = vsub.s32 %v5597, %v5771
      %v5773 = vrot.slane %v5392, %v5772
      %v5774 = vsel %vm5602, %v5773, %v5769
      %v5775 = vlaneseq
      %v5776 = vshrl.u32 %v5775, 7
      %v5777 = vsub.s32 %v5578, %v5776
      %v5778 = vrot.slane %v5393, %v5777
      %v5779 = vlaneseq
      %v5780 = vshrl.u32 %v5779, 7
      %v5781 = vsub.s32 %v5583, %v5780
      %v5782 = vrot.slane %v5394, %v5781
      %v5783 = vsel %vm5588, %v5782, %v5778
      %v5784 = vlaneseq
      %v5785 = vshrl.u32 %v5784, 7
      %v5786 = vsub.s32 %v5590, %v5785
      %v5787 = vrot.slane %v5395, %v5786
      %v5788 = vsel %vm5595, %v5787, %v5783
      %v5789 = vlaneseq
      %v5790 = vshrl.u32 %v5789, 7
      %v5791 = vsub.s32 %v5597, %v5790
      %v5792 = vrot.slane %v5396, %v5791
      %v5793 = vsel %vm5602, %v5792, %v5788
      %v5794 = vlaneseq
      %v5795 = vshrl.u32 %v5794, 7
      %v5796 = vsub.s32 %v5578, %v5795
      %v5797 = vrot.slane %v5397, %v5796
      %v5798 = vlaneseq
      %v5799 = vshrl.u32 %v5798, 7
      %v5800 = vsub.s32 %v5583, %v5799
      %v5801 = vrot.slane %v5398, %v5800
      %v5802 = vsel %vm5588, %v5801, %v5797
      %v5803 = vlaneseq
      %v5804 = vshrl.u32 %v5803, 7
      %v5805 = vsub.s32 %v5590, %v5804
      %v5806 = vrot.slane %v5399, %v5805
      %v5807 = vsel %vm5595, %v5806, %v5802
      %v5808 = vlaneseq
      %v5809 = vshrl.u32 %v5808, 7
      %v5810 = vsub.s32 %v5597, %v5809
      %v5811 = vrot.slane %v5400, %v5810
      %v5812 = vsel %vm5602, %v5811, %v5807
      %v5813 = vlaneseq
      %v5814 = vshrl.u32 %v5813, 7
      %v5815 = vsub.s32 %v5578, %v5814
      %v5816 = vrot.slane %v5401, %v5815
      %v5817 = vlaneseq
      %v5818 = vshrl.u32 %v5817, 7
      %v5819 = vsub.s32 %v5583, %v5818
      %v5820 = vrot.slane %v5402, %v5819
      %v5821 = vsel %vm5588, %v5820, %v5816
      %v5822 = vlaneseq
      %v5823 = vshrl.u32 %v5822, 7
      %v5824 = vsub.s32 %v5590, %v5823
      %v5825 = vrot.slane %v5403, %v5824
      %v5826 = vsel %vm5595, %v5825, %v5821
      %v5827 = vlaneseq
      %v5828 = vshrl.u32 %v5827, 7
      %v5829 = vsub.s32 %v5597, %v5828
      %v5830 = vrot.slane %v5404, %v5829
      %v5831 = vsel %vm5602, %v5830, %v5826
      %v5832 = vlaneseq
      %v5833 = vshrl.u32 %v5832, 7
      %v5834 = vsub.s32 %v5578, %v5833
      %v5835 = vrot.slane %v5405, %v5834
      %v5836 = vlaneseq
      %v5837 = vshrl.u32 %v5836, 7
      %v5838 = vsub.s32 %v5583, %v5837
      %v5839 = vrot.slane %v5406, %v5838
      %v5840 = vsel %vm5588, %v5839, %v5835
      %v5841 = vlaneseq
      %v5842 = vshrl.u32 %v5841, 7
      %v5843 = vsub.s32 %v5590, %v5842
      %v5844 = vrot.slane %v5407, %v5843
      %v5845 = vsel %vm5595, %v5844, %v5840
      %v5846 = vlaneseq
      %v5847 = vshrl.u32 %v5846, 7
      %v5848 = vsub.s32 %v5597, %v5847
      %v5849 = vrot.slane %v5408, %v5848
      %v5850 = vsel %vm5602, %v5849, %v5845
      %v5851 = vlaneseq
      %v5852 = vshrl.u32 %v5851, 7
      %v5853 = vsub.s32 %v5578, %v5852
      %v5854 = vrot.slane %v5409, %v5853
      %v5855 = vlaneseq
      %v5856 = vshrl.u32 %v5855, 7
      %v5857 = vsub.s32 %v5583, %v5856
      %v5858 = vrot.slane %v5410, %v5857
      %v5859 = vsel %vm5588, %v5858, %v5854
      %v5860 = vlaneseq
      %v5861 = vshrl.u32 %v5860, 7
      %v5862 = vsub.s32 %v5590, %v5861
      %v5863 = vrot.slane %v5411, %v5862
      %v5864 = vsel %vm5595, %v5863, %v5859
      %v5865 = vlaneseq
      %v5866 = vshrl.u32 %v5865, 7
      %v5867 = vsub.s32 %v5597, %v5866
      %v5868 = vrot.slane %v5412, %v5867
      %v5869 = vsel %vm5602, %v5868, %v5864
      %v5870 = vlaneseq
      %v5871 = vshrl.u32 %v5870, 7
      %v5872 = vsub.s32 %v5578, %v5871
      %v5873 = vrot.slane %v5413, %v5872
      %v5874 = vlaneseq
      %v5875 = vshrl.u32 %v5874, 7
      %v5876 = vsub.s32 %v5583, %v5875
      %v5877 = vrot.slane %v5414, %v5876
      %v5878 = vsel %vm5588, %v5877, %v5873
      %v5879 = vlaneseq
      %v5880 = vshrl.u32 %v5879, 7
      %v5881 = vsub.s32 %v5590, %v5880
      %v5882 = vrot.slane %v5415, %v5881
      %v5883 = vsel %vm5595, %v5882, %v5878
      %v5884 = vlaneseq
      %v5885 = vshrl.u32 %v5884, 7
      %v5886 = vsub.s32 %v5597, %v5885
      %v5887 = vrot.slane %v5416, %v5886
      %v5888 = vsel %vm5602, %v5887, %v5883
      %v5889 = vlaneseq
      %v5890 = vshrl.u32 %v5889, 7
      %v5891 = vsub.s32 %v5578, %v5890
      %v5892 = vrot.slane %v5417, %v5891
      %v5893 = vlaneseq
      %v5894 = vshrl.u32 %v5893, 7
      %v5895 = vsub.s32 %v5583, %v5894
      %v5896 = vrot.slane %v5418, %v5895
      %v5897 = vsel %vm5588, %v5896, %v5892
      %v5898 = vlaneseq
      %v5899 = vshrl.u32 %v5898, 7
      %v5900 = vsub.s32 %v5590, %v5899
      %v5901 = vrot.slane %v5419, %v5900
      %v5902 = vsel %vm5595, %v5901, %v5897
      %v5903 = vlaneseq
      %v5904 = vshrl.u32 %v5903, 7
      %v5905 = vsub.s32 %v5597, %v5904
      %v5906 = vrot.slane %v5420, %v5905
      %v5907 = vsel %vm5602, %v5906, %v5902
      %v5908 = vlaneseq
      %v5909 = vshrl.u32 %v5908, 7
      %v5910 = vsub.s32 %v5578, %v5909
      %v5911 = vrot.slane %v5421, %v5910
      %v5912 = vlaneseq
      %v5913 = vshrl.u32 %v5912, 7
      %v5914 = vsub.s32 %v5583, %v5913
      %v5915 = vrot.slane %v5422, %v5914
      %v5916 = vsel %vm5588, %v5915, %v5911
      %v5917 = vlaneseq
      %v5918 = vshrl.u32 %v5917, 7
      %v5919 = vsub.s32 %v5590, %v5918
      %v5920 = vrot.slane %v5423, %v5919
      %v5921 = vsel %vm5595, %v5920, %v5916
      %v5922 = vlaneseq
      %v5923 = vshrl.u32 %v5922, 7
      %v5924 = vsub.s32 %v5597, %v5923
      %v5925 = vrot.slane %v5424, %v5924
      %v5926 = vsel %vm5602, %v5925, %v5921
      %v5927 = vlaneseq
      %v5928 = vshrl.u32 %v5927, 7
      %v5929 = vsub.s32 %v5578, %v5928
      %v5930 = vrot.slane %v5425, %v5929
      %v5931 = vlaneseq
      %v5932 = vshrl.u32 %v5931, 7
      %v5933 = vsub.s32 %v5583, %v5932
      %v5934 = vrot.slane %v5426, %v5933
      %v5935 = vsel %vm5588, %v5934, %v5930
      %v5936 = vlaneseq
      %v5937 = vshrl.u32 %v5936, 7
      %v5938 = vsub.s32 %v5590, %v5937
      %v5939 = vrot.slane %v5427, %v5938
      %v5940 = vsel %vm5595, %v5939, %v5935
      %v5941 = vlaneseq
      %v5942 = vshrl.u32 %v5941, 7
      %v5943 = vsub.s32 %v5597, %v5942
      %v5944 = vrot.slane %v5428, %v5943
      %v5945 = vsel %vm5602, %v5944, %v5940
      %v5946 = vlaneseq
      %v5947 = vshrl.u32 %v5946, 7
      %v5948 = vsub.s32 %v5578, %v5947
      %v5949 = vrot.slane %v5429, %v5948
      %v5950 = vlaneseq
      %v5951 = vshrl.u32 %v5950, 7
      %v5952 = vsub.s32 %v5583, %v5951
      %v5953 = vrot.slane %v5430, %v5952
      %v5954 = vsel %vm5588, %v5953, %v5949
      %v5955 = vlaneseq
      %v5956 = vshrl.u32 %v5955, 7
      %v5957 = vsub.s32 %v5590, %v5956
      %v5958 = vrot.slane %v5431, %v5957
      %v5959 = vsel %vm5595, %v5958, %v5954
      %v5960 = vlaneseq
      %v5961 = vshrl.u32 %v5960, 7
      %v5962 = vsub.s32 %v5597, %v5961
      %v5963 = vrot.slane %v5432, %v5962
      %v5964 = vsel %vm5602, %v5963, %v5959
      %v5965 = vlaneseq
      %v5966 = vshrl.u32 %v5965, 7
      %v5967 = vsub.s32 %v5578, %v5966
      %v5968 = vrot.slane %v5433, %v5967
      %v5969 = vlaneseq
      %v5970 = vshrl.u32 %v5969, 7
      %v5971 = vsub.s32 %v5583, %v5970
      %v5972 = vrot.slane %v5434, %v5971
      %v5973 = vsel %vm5588, %v5972, %v5968
      %v5974 = vlaneseq
      %v5975 = vshrl.u32 %v5974, 7
      %v5976 = vsub.s32 %v5590, %v5975
      %v5977 = vrot.slane %v5435, %v5976
      %v5978 = vsel %vm5595, %v5977, %v5973
      %v5979 = vlaneseq
      %v5980 = vshrl.u32 %v5979, 7
      %v5981 = vsub.s32 %v5597, %v5980
      %v5982 = vrot.slane %v5436, %v5981
      %v5983 = vsel %vm5602, %v5982, %v5978
      %v5984 = vlaneseq
      %v5985 = vshrl.u32 %v5984, 7
      %v5986 = vsub.s32 %v5578, %v5985
      %v5987 = vrot.slane %v5437, %v5986
      %v5988 = vlaneseq
      %v5989 = vshrl.u32 %v5988, 7
      %v5990 = vsub.s32 %v5583, %v5989
      %v5991 = vrot.slane %v5438, %v5990
      %v5992 = vsel %vm5588, %v5991, %v5987
      %v5993 = vlaneseq
      %v5994 = vshrl.u32 %v5993, 7
      %v5995 = vsub.s32 %v5590, %v5994
      %v5996 = vrot.slane %v5439, %v5995
      %v5997 = vsel %vm5595, %v5996, %v5992
      %v5998 = vlaneseq
      %v5999 = vshrl.u32 %v5998, 7
      %v6000 = vsub.s32 %v5597, %v5999
      %v6001 = vrot.slane %v5440, %v6000
      %v6002 = vsel %vm5602, %v6001, %v5997
      %v6003 = vlaneseq
      %v6004 = vshrl.u32 %v6003, 7
      %v6005 = vsub.s32 %v5578, %v6004
      %v6006 = vrot.slane %v5441, %v6005
      %v6007 = vlaneseq
      %v6008 = vshrl.u32 %v6007, 7
      %v6009 = vsub.s32 %v5583, %v6008
      %v6010 = vrot.slane %v5442, %v6009
      %v6011 = vsel %vm5588, %v6010, %v6006
      %v6012 = vlaneseq
      %v6013 = vshrl.u32 %v6012, 7
      %v6014 = vsub.s32 %v5590, %v6013
      %v6015 = vrot.slane %v5443, %v6014
      %v6016 = vsel %vm5595, %v6015, %v6011
      %v6017 = vlaneseq
      %v6018 = vshrl.u32 %v6017, 7
      %v6019 = vsub.s32 %v5597, %v6018
      %v6020 = vrot.slane %v5444, %v6019
      %v6021 = vsel %vm5602, %v6020, %v6016
      %v6022 = vlaneseq
      %v6023 = vshrl.u32 %v6022, 7
      %v6024 = vsub.s32 %v5578, %v6023
      %v6025 = vrot.slane %v5445, %v6024
      %v6026 = vlaneseq
      %v6027 = vshrl.u32 %v6026, 7
      %v6028 = vsub.s32 %v5583, %v6027
      %v6029 = vrot.slane %v5446, %v6028
      %v6030 = vsel %vm5588, %v6029, %v6025
      %v6031 = vlaneseq
      %v6032 = vshrl.u32 %v6031, 7
      %v6033 = vsub.s32 %v5590, %v6032
      %v6034 = vrot.slane %v5447, %v6033
      %v6035 = vsel %vm5595, %v6034, %v6030
      %v6036 = vlaneseq
      %v6037 = vshrl.u32 %v6036, 7
      %v6038 = vsub.s32 %v5597, %v6037
      %v6039 = vrot.slane %v5448, %v6038
      %v6040 = vsel %vm5602, %v6039, %v6035
      %v6041 = vlaneseq
      %v6042 = vshrl.u32 %v6041, 7
      %v6043 = vsub.s32 %v5578, %v6042
      %v6044 = vrot.slane %v5449, %v6043
      %v6045 = vlaneseq
      %v6046 = vshrl.u32 %v6045, 7
      %v6047 = vsub.s32 %v5583, %v6046
      %v6048 = vrot.slane %v5450, %v6047
      %v6049 = vsel %vm5588, %v6048, %v6044
      %v6050 = vlaneseq
      %v6051 = vshrl.u32 %v6050, 7
      %v6052 = vsub.s32 %v5590, %v6051
      %v6053 = vrot.slane %v5451, %v6052
      %v6054 = vsel %vm5595, %v6053, %v6049
      %v6055 = vlaneseq
      %v6056 = vshrl.u32 %v6055, 7
      %v6057 = vsub.s32 %v5597, %v6056
      %v6058 = vrot.slane %v5452, %v6057
      %v6059 = vsel %vm5602, %v6058, %v6054
      %v6060 = vlaneseq
      %v6061 = vshrl.u32 %v6060, 7
      %v6062 = vsub.s32 %v5578, %v6061
      %v6063 = vrot.slane %v5453, %v6062
      %v6064 = vlaneseq
      %v6065 = vshrl.u32 %v6064, 7
      %v6066 = vsub.s32 %v5583, %v6065
      %v6067 = vrot.slane %v5454, %v6066
      %v6068 = vsel %vm5588, %v6067, %v6063
      %v6069 = vlaneseq
      %v6070 = vshrl.u32 %v6069, 7
      %v6071 = vsub.s32 %v5590, %v6070
      %v6072 = vrot.slane %v5455, %v6071
      %v6073 = vsel %vm5595, %v6072, %v6068
      %v6074 = vlaneseq
      %v6075 = vshrl.u32 %v6074, 7
      %v6076 = vsub.s32 %v5597, %v6075
      %v6077 = vrot.slane %v5456, %v6076
      %v6078 = vsel %vm5602, %v6077, %v6073
      %v6079 = vlaneseq
      %v6080 = vshrl.u32 %v6079, 7
      %v6081 = vsub.s32 %v5578, %v6080
      %v6082 = vrot.slane %v5457, %v6081
      %v6083 = vlaneseq
      %v6084 = vshrl.u32 %v6083, 7
      %v6085 = vsub.s32 %v5583, %v6084
      %v6086 = vrot.slane %v5458, %v6085
      %v6087 = vsel %vm5588, %v6086, %v6082
      %v6088 = vlaneseq
      %v6089 = vshrl.u32 %v6088, 7
      %v6090 = vsub.s32 %v5590, %v6089
      %v6091 = vrot.slane %v5459, %v6090
      %v6092 = vsel %vm5595, %v6091, %v6087
      %v6093 = vlaneseq
      %v6094 = vshrl.u32 %v6093, 7
      %v6095 = vsub.s32 %v5597, %v6094
      %v6096 = vrot.slane %v5460, %v6095
      %v6097 = vsel %vm5602, %v6096, %v6092
      %v6098 = vlaneseq
      %v6099 = vshrl.u32 %v6098, 7
      %v6100 = vsub.s32 %v5578, %v6099
      %v6101 = vrot.slane %v5461, %v6100
      %v6102 = vlaneseq
      %v6103 = vshrl.u32 %v6102, 7
      %v6104 = vsub.s32 %v5583, %v6103
      %v6105 = vrot.slane %v5462, %v6104
      %v6106 = vsel %vm5588, %v6105, %v6101
      %v6107 = vlaneseq
      %v6108 = vshrl.u32 %v6107, 7
      %v6109 = vsub.s32 %v5590, %v6108
      %v6110 = vrot.slane %v5463, %v6109
      %v6111 = vsel %vm5595, %v6110, %v6106
      %v6112 = vlaneseq
      %v6113 = vshrl.u32 %v6112, 7
      %v6114 = vsub.s32 %v5597, %v6113
      %v6115 = vrot.slane %v5464, %v6114
      %v6116 = vsel %vm5602, %v6115, %v6111
      %vm6117 = vcmask 1041409
      %v6118 = vsel %vm6117, %v5622, %v5603
      %vm6119 = vcmask 1042434
      %v6120 = vsel %vm6119, %v5641, %v6118
      %vm6121 = vcmask 1043459
      %v6122 = vsel %vm6121, %v5660, %v6120
      %vm6123 = vcmask 1044484
      %v6124 = vsel %vm6123, %v5679, %v6122
      %vm6125 = vcmask 1045509
      %v6126 = vsel %vm6125, %v5698, %v6124
      %vm6127 = vcmask 1046534
      %v6128 = vsel %vm6127, %v5717, %v6126
      %vm6129 = vcmask 1047559
      %v6130 = vsel %vm6129, %v5736, %v6128
      %v6131 = vsel %vm6117, %v5774, %v5755
      %v6132 = vsel %vm6119, %v5793, %v6131
      %v6133 = vsel %vm6121, %v5812, %v6132
      %v6134 = vsel %vm6123, %v5831, %v6133
      %v6135 = vsel %vm6125, %v5850, %v6134
      %v6136 = vsel %vm6127, %v5869, %v6135
      %v6137 = vsel %vm6129, %v5888, %v6136
      %v6138 = vsel %vm6117, %v5926, %v5907
      %v6139 = vsel %vm6119, %v5945, %v6138
      %v6140 = vsel %vm6121, %v5964, %v6139
      %v6141 = vsel %vm6123, %v5983, %v6140
      %v6142 = vsel %vm6125, %v6002, %v6141
      %v6143 = vsel %vm6127, %v6021, %v6142
      %v6144 = vsel %vm6129, %v6040, %v6143
      %v6145 = vsel %vm6117, %v6078, %v6059
      %v6146 = vsel %vm6119, %v6097, %v6145
      %v6147 = vsel %vm6121, %v6116, %v6146
      %vm6152 = vcmask 228352
      %6153 = vst.msk [vmem:[%s171] sm:$0xff] %vm6152, %v6130
      %6154 = vst.msk [vmem:[%s171 + $0x8] sm:$0xff] %vm6152, %v6137
      %6155 = vst.msk [vmem:[%s171 + $0x10] sm:$0xff] %vm6152, %v6144
      %vm6156 = vcmask 224256
      %6157 = vst.msk [vmem:[%s171 + $0x18] sm:$0xf] %vm6156, %v6147
      %p6158 = scmp.lt.s32.totalorder %s15, 1
      %s6159 = scalar_select %p6158, %s15, 1
      %s6160 = smul.addr %s6159, 4
      %s6161 = smul.addr %s6160, 8
      %s6162 = scalar_lea.vmem %s3, %s6161
      // Predicated region
      $region33: #{generator_forward.11} parent=31 // pred_check
        %p6163 = pneg %p101
      $region34: #{generator_forward.11} parent=31 // pred_check_branch
        %6165 = sbr.rel (%p6163) target = $region36
      $region35: #{generator_forward.11} parent=31 // pred_region
        _
      $region36: #{generator_forward.11} parent=31 // pred_fallthru
        _
    $region32: #{generator_forward.11} parent=5 // pred_fallthru
      _
    %p6166 = scmp.le.s32.totalorder 2, %s10
    // Predicated region
    $region37: #{generator_forward.11} parent=5 // pred_check
      %p6167 = pneg %p6166
    $region38: #{generator_forward.11} parent=5 // pred_check_branch
      %6169 = sbr.rel (%p6167) target = $region40
    $region39: #{generator_forward.11} parent=5 // pred_region
      %s6170 = ssub.s32 %s10, 2
      // Predicated region
      $region41: #{generator_forward.11} parent=39 // pred_check
        %p6171 = pneg %p107
      $region42: #{generator_forward.11} parent=39 // pred_check_branch
        %6173 = sbr.rel (%p6171) target = $region44
      $region43: #{generator_forward.11} parent=39 // pred_region
        %p6174 = scmp.lt.s32.totalorder %s16, 1
        %s6175 = scalar_select %p6174, %s16, 1
        %s6176 = smul.addr %s6175, 4
        %s6177 = smul.addr %s6176, 8
        %s6178 = scalar_lea.vmem %s3, %s6177
      $region44: #{generator_forward.11} parent=39 // pred_fallthru
        _
    $region40: #{generator_forward.11} parent=5 // pred_fallthru
      _
  $region6: #{generator_forward.11} parent=0 // loop_footer
    %s14 = sadd.s32 1, %s10
  $region7: #{generator_forward.11} parent=0 // loop_footer_branch
    %9 = sbr.rel target = $region3
  $region8: #{generator_forward.11} parent=0 // loop_exit
    _

</llo_original>
